<compile_context>
chip_gen: v7x
topology: tpu7x:2x2x1
jax: 0.10.0
libtpu: 0.0.40
codegen_flags: <defaults>
</compile_context>

<pallas_src>
import jax
import jax.numpy as jnp
from jax.experimental import pallas as pl
from jax.experimental.pallas import tpu as pltpu

LEAKY_SLOPE = 0.01     # nn.LeakyReLU default
LN_EPS = 1e-5          # nn.LayerNorm default
MAX_VALUE = 512.0      # ContinuousValueEncoder clamp


def _layer_norm(x, w, b):
    mu = jnp.mean(x, axis=-1, keepdims=True)
    var = jnp.mean(jnp.square(x - mu), axis=-1, keepdims=True)
    return (x - mu) * jax.lax.rsqrt(var + LN_EPS) * w + b


def _leaky_relu(x):
    return jnp.where(x > 0, x, LEAKY_SLOPE * x)


def mamba_generator_kernel(
    gene_raw_ref, vals_ref, flags_ref,
    g_ln_w_ref, g_ln_b_ref, pert_tab_ref,
    v_w1_ref, v_b1_ref, v_w2_ref, v_b2_ref, v_ln_w_ref, v_ln_b_ref,
    dec_w1_ref, dec_b1_ref,
    c_w2_ref, c_b2_ref, d_w2_ref, d_b2_ref,
    dec_w3_ref, c_b3_ref, d_b3_ref,
    out_ref,
):
    tm, D = gene_raw_ref.shape
    vals = vals_ref[...]                                   # [tm, 1] f32 (raw values)

    # GeneEncoder: (embedding gathered in the wrapper) + LayerNorm, f32.
    gene = _layer_norm(gene_raw_ref[...], g_ln_w_ref[...], g_ln_b_ref[...])

    # pert_encoder: select rows of the VMEM-resident 3xD table in-kernel
    # (no [N, D] pert-embedding round trip through HBM).
    tab = pert_tab_ref[...]                                # [8, D]; rows >= 3 are zero pad
    flags = flags_ref[...]                                 # [tm, 1] f32 in {0,1,2}
    pert = jnp.where(flags < 0.5, tab[0:1, :],
                     jnp.where(flags < 1.5, tab[1:2, :], tab[2:3, :]))

    # ContinuousValueEncoder: clamp(max=512) -> Linear(1,D) -> ReLU -> Linear(D,D) -> LN.
    v = jnp.minimum(vals, MAX_VALUE)
    h = jnp.maximum(v * v_w1_ref[...] + v_b1_ref[...], 0.0)            # [tm, D] f32
    h = jnp.dot(h.astype(jnp.bfloat16), v_w2_ref[...],
                preferred_element_type=jnp.float32) + v_b2_ref[...]
    val_emb = _layer_norm(h, v_ln_w_ref[...], v_ln_b_ref[...])

    total_embs = gene + val_emb + pert

    # TODO(synk): mambaformer(d_model, mamba_layer) source is not provided in the
    # reference module; the encoder is passed through as identity here.
    enc = total_embs.astype(jnp.bfloat16)

    # Fused AffineExprDecoder (coeff & bias ExprDecoders share `enc`):
    #   layer 1: one [D, 2D] matmul (coeff half | bias half)
    #   layer 2: two [D, D] matmuls on the halves
    #   layer 3: row-scale the coeff half by `values`, then ONE [2D, 1] matmul:
    #            (h2c @ w3c) * v + h2b @ w3d  ==  [v*h2c | h2b] @ [w3c ; w3d]
    h1 = _leaky_relu(jnp.dot(enc, dec_w1_ref[...],
                             preferred_element_type=jnp.float32) + dec_b1_ref[...])
    h2c = _leaky_relu(jnp.dot(h1[:, :D].astype(jnp.bfloat16), c_w2_ref[...],
                              preferred_element_type=jnp.float32) + c_b2_ref[...])
    h2b = _leaky_relu(jnp.dot(h1[:, D:].astype(jnp.bfloat16), d_w2_ref[...],
                              preferred_element_type=jnp.float32) + d_b2_ref[...])
    h2 = jnp.concatenate([(h2c * vals).astype(jnp.bfloat16),
                          h2b.astype(jnp.bfloat16)], axis=-1)          # [tm, 2D]
    pred = jnp.dot(h2, dec_w3_ref[...], preferred_element_type=jnp.float32)  # [tm, 1]
    final = pred + c_b3_ref[...] * vals + d_b3_ref[...]                      # [tm, 1]
    # Lane-dense store: tokens go out along the lane axis as a (1, tm) row.
    out_ref[...] = final.reshape(1, tm)


def mamba_generator_forward(params, src, values, input_pert_flags,
                            src_key_padding_mask, *, tm=256):
    """src / values / pert_flags / mask: [B, S]. Returns {'mlm_output': [B, S] f32}."""
    del src_key_padding_mask  # only consumed by the (unavailable) mamba encoder
    B, S = src.shape
    D = params["gene_emb"].shape[1]
    N = B * S

    # Row tile: multiple of 128 so the lane-dense (1, tm) output block is legal.
    tm = max(128, (int(tm) // 128) * 128)
    n_tiles = (N + tm - 1) // tm
    Np = n_tiles * tm
    pad = Np - N

    # Token-major activations. Only gene embeddings are streamed at [Np, D];
    # values / pert flags are [Np, 1] scalars.
    gene_ids = src.reshape(-1).astype(jnp.int32)
    pert_ids = input_pert_flags.reshape(-1).astype(jnp.int32)
    vals_flat = values.reshape(-1).astype(jnp.float32)
    if pad:
        gene_ids = jnp.concatenate([gene_ids, jnp.zeros((pad,), jnp.int32)])
        pert_ids = jnp.concatenate([pert_ids, jnp.zeros((pad,), jnp.int32)])
        vals_flat = jnp.concatenate([vals_flat, jnp.zeros((pad,), jnp.float32)])
    gene_raw = params["gene_emb"][gene_ids]                          # [Np, D] f32
    vals = vals_flat.reshape(Np, 1)
    flags = pert_ids.astype(jnp.float32).reshape(Np, 1)

    # VMEM-resident weights. DxD-class matmul weights go in as bf16 (2x MXU
    # throughput, half the residency); LayerNorm / bias / elementwise stay f32.
    pert_tab = jnp.zeros((8, D), jnp.float32).at[:3].set(params["pert_emb"])
    dec_w1 = jnp.concatenate([params["c_w1"], params["d_w1"]], axis=1).astype(jnp.bfloat16)
    dec_b1 = jnp.concatenate([params["c_b1"], params["d_b1"]], axis=1)
    dec_w3 = jnp.concatenate([params["c_w3"], params["d_w3"]], axis=0).astype(jnp.bfloat16)
    weight_args = [
        params["g_ln_w"], params["g_ln_b"], pert_tab,
        params["v_w1"], params["v_b1"], params["v_w2"].astype(jnp.bfloat16),
        params["v_b2"], params["v_ln_w"], params["v_ln_b"],
        dec_w1, dec_b1,
        params["c_w2"].astype(jnp.bfloat16), params["c_b2"],
        params["d_w2"].astype(jnp.bfloat16), params["d_b2"],
        dec_w3, params["c_b3"], params["d_b3"],
    ]

    row_spec = lambda last: pl.BlockSpec((tm, last), lambda i: (i, 0))
    full_spec = lambda shape: pl.BlockSpec(shape, lambda i: (0, 0))
    in_specs = [row_spec(D), row_spec(1), row_spec(1)] + \
               [full_spec(tuple(w.shape)) for w in weight_args]

    # Explicit VMEM budget: resident weights (double-buffered by the pipeline)
    # + double-buffered streamed row tiles + headroom, capped for v7x (64 MiB).
    weight_bytes = sum(int(w.size) * w.dtype.itemsize for w in weight_args)
    est = 2 * weight_bytes + 4 * tm * (D + 3) * 4 + (8 << 20)
    vmem_limit = int(min(max(est, 32 << 20), 48 << 20))

    out = pl.pallas_call(
        mamba_generator_kernel,
        out_shape=jax.ShapeDtypeStruct((1, Np), jnp.float32),
        grid=(n_tiles,),
        in_specs=in_specs,
        out_specs=pl.BlockSpec((1, tm), lambda i: (0, i)),
        compiler_params=pltpu.CompilerParams(
            dimension_semantics=("parallel",),
            vmem_limit_bytes=vmem_limit),
    )(gene_raw, vals, flags, *weight_args)

    return {"mlm_output": out[0, :N].reshape(B, S)}


def _reference_forward(params, src, values, input_pert_flags):
    """Pure-JAX f32 reference (identity mamba encoder), for correctness check."""
    def ln(x, w, b):
        mu = x.mean(-1, keepdims=True)
        var = ((x - mu) ** 2).mean(-1, keepdims=True)
        return (x - mu) * jax.lax.rsqrt(var + LN_EPS) * w + b

    gene = ln(params["gene_emb"][src], params["g_ln_w"][0], params["g_ln_b"][0])
    v = jnp.minimum(values, MAX_VALUE)[..., None]
    h = jnp.maximum(v * params["v_w1"][0] + params["v_b1"][0], 0.0)
    h = h @ params["v_w2"] + params["v_b2"][0]
    val_emb = ln(h, params["v_ln_w"][0], params["v_ln_b"][0])
    pert = params["pert_emb"][input_pert_flags]
    enc = gene + val_emb + pert

    def dec(x, p):
        h = x @ params[p + "_w1"] + params[p + "_b1"][0]
        h = jnp.where(h > 0, h, LEAKY_SLOPE * h)
        h = h @ params[p + "_w2"] + params[p + "_b2"][0]
        h = jnp.where(h > 0, h, LEAKY_SLOPE * h)
        return (h @ params[p + "_w3"] + params[p + "_b3"][0])[..., 0]

    return dec(enc, "c") * values + dec(enc, "d")


def init_params(key, ntoken, d_model, pad_token_id=0, pert_pad_id=2):
    """Deterministic synthetic parameter init mirroring the module's shapes.
    Linear weights are stored as [in, out] (x @ W + b)."""
    ks = list(jax.random.split(key, 20))

    def lin(k, fan_in, fan_out):
        bound = 1.0 / jnp.sqrt(jnp.float32(fan_in))
        return jax.random.uniform(k, (fan_in, fan_out), jnp.float32, -bound, bound)

    p = {}
    # GeneEncoder: Embedding(ntoken, D, padding_idx) uniform(-0.1, 0.1) per init_weights
    gene_emb = jax.random.uniform(ks[0], (ntoken, d_model), jnp.float32, -0.1, 0.1)
    p["gene_emb"] = gene_emb.at[pad_token_id].set(0.0)
    p["g_ln_w"] = jnp.ones((1, d_model), jnp.float32)
    p["g_ln_b"] = jnp.zeros((1, d_model), jnp.float32)
    # pert_encoder: Embedding(3, D, padding_idx=2)
    pert_emb = 0.02 * jax.random.normal(ks[1], (3, d_model), jnp.float32)
    p["pert_emb"] = pert_emb.at[pert_pad_id].set(0.0)
    # ContinuousValueEncoder
    p["v_w1"] = lin(ks[2], 1, d_model)
    p["v_b1"] = 0.01 * jax.random.normal(ks[3], (1, d_model), jnp.float32)
    p["v_w2"] = lin(ks[4], d_model, d_model)
    p["v_b2"] = 0.01 * jax.random.normal(ks[5], (1, d_model), jnp.float32)
    p["v_ln_w"] = jnp.ones((1, d_model), jnp.float32)
    p["v_ln_b"] = jnp.zeros((1, d_model), jnp.float32)
    # AffineExprDecoder -> two ExprDecoders (coeff 'c', bias 'd')
    for pref, base in (("c", 6), ("d", 13)):
        p[f"{pref}_w1"] = lin(ks[base + 0], d_model, d_model)
        p[f"{pref}_b1"] = 0.01 * jax.random.normal(ks[base + 1], (1, d_model), jnp.float32)
        p[f"{pref}_w2"] = lin(ks[base + 2], d_model, d_model)
        p[f"{pref}_b2"] = 0.01 * jax.random.normal(ks[base + 3], (1, d_model), jnp.float32)
        p[f"{pref}_w3"] = lin(ks[base + 4], d_model, 1)
        p[f"{pref}_b3"] = 0.01 * jax.random.normal(ks[base + 5], (1, 1), jnp.float32)
    return p


if __name__ == "__main__":
    B, S, D, NTOKEN = 2, 256, 128, 100     # d_model multiple of 128 (lane-dense)
    key = jax.random.PRNGKey(0)
    k_src, k_val, k_pert, k_param = jax.random.split(key, 4)

    params = init_params(k_param, NTOKEN, D)

    src = jax.random.randint(k_src, (B, S), 0, NTOKEN, dtype=jnp.int32)
    values = jax.random.uniform(k_val, (B, S), jnp.float32, 0.0, 5.0)
    input_pert_flags = jax.random.randint(k_pert, (B, S), 0, 3, dtype=jnp.int32)
    src_key_padding_mask = jnp.zeros((B, S), dtype=bool)

    out = mamba_generator_forward(params, src, values, input_pert_flags,
                                  src_key_padding_mask)
    mlm = jax.block_until_ready(out["mlm_output"])
    assert mlm.shape == (B, S)
    assert mlm.dtype == jnp.float32

    # Check against a pure-JAX f32 reference (bf16 MXU operands => loose tol).
    ref = _reference_forward(params, src, values, input_pert_flags)
    err = float(jnp.max(jnp.abs(mlm - ref)))
    scale = float(jnp.max(jnp.abs(ref)))
    assert err <= 0.05 * (scale + 1.0), f"max|diff|={err}, scale={scale}"
    print("KERNEL_OK")
</pallas_src>

<mosaic_0001>
module attributes {stable_mosaic.version = 11 : i64} {
  func.func @mamba_generator_kernel(%arg0: i32, %arg1: memref<256x128xf32, #tpu.memory_space<vmem>>, %arg2: memref<256x1xf32, #tpu.memory_space<vmem>>, %arg3: memref<256x1xf32, #tpu.memory_space<vmem>>, %arg4: memref<1x128xf32, #tpu.memory_space<vmem>>, %arg5: memref<1x128xf32, #tpu.memory_space<vmem>>, %arg6: memref<8x128xf32, #tpu.memory_space<vmem>>, %arg7: memref<1x128xf32, #tpu.memory_space<vmem>>, %arg8: memref<1x128xf32, #tpu.memory_space<vmem>>, %arg9: memref<128x128xbf16, #tpu.memory_space<vmem>>, %arg10: memref<1x128xf32, #tpu.memory_space<vmem>>, %arg11: memref<1x128xf32, #tpu.memory_space<vmem>>, %arg12: memref<1x128xf32, #tpu.memory_space<vmem>>, %arg13: memref<128x256xbf16, #tpu.memory_space<vmem>>, %arg14: memref<1x256xf32, #tpu.memory_space<vmem>>, %arg15: memref<128x128xbf16, #tpu.memory_space<vmem>>, %arg16: memref<1x128xf32, #tpu.memory_space<vmem>>, %arg17: memref<128x128xbf16, #tpu.memory_space<vmem>>, %arg18: memref<1x128xf32, #tpu.memory_space<vmem>>, %arg19: memref<256x1xbf16, #tpu.memory_space<vmem>>, %arg20: memref<1x1xf32, #tpu.memory_space<vmem>>, %arg21: memref<1x1xf32, #tpu.memory_space<vmem>>, %arg22: memref<1x256xf32, #tpu.memory_space<vmem>>) attributes {dimension_semantics = [#tpu.dimension_semantics<parallel>], iteration_bounds = array<i64: 2>, scalar_prefetch = 0 : i64, scratch_operands = 0 : i64, tpu.core_type = #tpu.core_type<tc>, window_params = [{transform_indices = @transform_0, window_bounds = array<i64: 256, 128>}, {transform_indices = @transform_1, window_bounds = array<i64: 256, 1>}, {transform_indices = @transform_2, window_bounds = array<i64: 256, 1>}, {pipeline_mode = #tpu.pipeline_mode<synchronous>, transform_indices = @transform_3, window_bounds = array<i64: 1, 128>}, {pipeline_mode = #tpu.pipeline_mode<synchronous>, transform_indices = @transform_4, window_bounds = array<i64: 1, 128>}, {pipeline_mode = #tpu.pipeline_mode<synchronous>, transform_indices = @transform_5, window_bounds = array<i64: 8, 128>}, {pipeline_mode = #tpu.pipeline_mode<synchronous>, transform_indices = @transform_6, window_bounds = array<i64: 1, 128>}, {pipeline_mode = #tpu.pipeline_mode<synchronous>, transform_indices = @transform_7, window_bounds = array<i64: 1, 128>}, {pipeline_mode = #tpu.pipeline_mode<synchronous>, transform_indices = @transform_8, window_bounds = array<i64: 128, 128>}, {pipeline_mode = #tpu.pipeline_mode<synchronous>, transform_indices = @transform_9, window_bounds = array<i64: 1, 128>}, {pipeline_mode = #tpu.pipeline_mode<synchronous>, transform_indices = @transform_10, window_bounds = array<i64: 1, 128>}, {pipeline_mode = #tpu.pipeline_mode<synchronous>, transform_indices = @transform_11, window_bounds = array<i64: 1, 128>}, {pipeline_mode = #tpu.pipeline_mode<synchronous>, transform_indices = @transform_12, window_bounds = array<i64: 128, 256>}, {pipeline_mode = #tpu.pipeline_mode<synchronous>, transform_indices = @transform_13, window_bounds = array<i64: 1, 256>}, {pipeline_mode = #tpu.pipeline_mode<synchronous>, transform_indices = @transform_14, window_bounds = array<i64: 128, 128>}, {pipeline_mode = #tpu.pipeline_mode<synchronous>, transform_indices = @transform_15, window_bounds = array<i64: 1, 128>}, {pipeline_mode = #tpu.pipeline_mode<synchronous>, transform_indices = @transform_16, window_bounds = array<i64: 128, 128>}, {pipeline_mode = #tpu.pipeline_mode<synchronous>, transform_indices = @transform_17, window_bounds = array<i64: 1, 128>}, {pipeline_mode = #tpu.pipeline_mode<synchronous>, transform_indices = @transform_18, window_bounds = array<i64: 256, 1>}, {pipeline_mode = #tpu.pipeline_mode<synchronous>, transform_indices = @transform_19, window_bounds = array<i64: 1, 1>}, {pipeline_mode = #tpu.pipeline_mode<synchronous>, transform_indices = @transform_20, window_bounds = array<i64: 1, 1>}, {transform_indices = @transform_21, window_bounds = array<i64: 1, 256>}]} {
    %c0 = arith.constant 0 : index
    %c0_0 = arith.constant 0 : index
    %0 = vector.load %arg2[%c0, %c0_0] : memref<256x1xf32, #tpu.memory_space<vmem>>, vector<256x1xf32>
    %c0_1 = arith.constant 0 : index
    %c0_2 = arith.constant 0 : index
    %1 = vector.load %arg1[%c0_1, %c0_2] : memref<256x128xf32, #tpu.memory_space<vmem>>, vector<256x128xf32>
    %c0_3 = arith.constant 0 : index
    %c0_4 = arith.constant 0 : index
    %2 = vector.load %arg4[%c0_3, %c0_4] : memref<1x128xf32, #tpu.memory_space<vmem>>, vector<1x128xf32>
    %c0_5 = arith.constant 0 : index
    %c0_6 = arith.constant 0 : index
    %3 = vector.load %arg5[%c0_5, %c0_6] : memref<1x128xf32, #tpu.memory_space<vmem>>, vector<1x128xf32>
    %cst = arith.constant dense<0.000000e+00> : vector<256xf32>
    %4 = vector.multi_reduction <add>, %1, %cst [1] : vector<256x128xf32> to vector<256xf32>
    %5 = vector.shape_cast %4 : vector<256xf32> to vector<256x1xf32>
    %cst_7 = arith.constant 1.280000e+02 : f32
    %6 = vector.broadcast %cst_7 : f32 to vector<256x1xf32>
    %7 = arith.divf %5, %6 : vector<256x1xf32>
    %8 = vector.broadcast %7 : vector<256x1xf32> to vector<256x128xf32>
    %9 = arith.subf %1, %8 : vector<256x128xf32>
    %10 = arith.mulf %9, %9 : vector<256x128xf32>
    %cst_8 = arith.constant dense<0.000000e+00> : vector<256xf32>
    %11 = vector.multi_reduction <add>, %10, %cst_8 [1] : vector<256x128xf32> to vector<256xf32>
    %12 = vector.shape_cast %11 : vector<256xf32> to vector<256x1xf32>
    %cst_9 = arith.constant 1.280000e+02 : f32
    %13 = vector.broadcast %cst_9 : f32 to vector<256x1xf32>
    %14 = arith.divf %12, %13 : vector<256x1xf32>
    %15 = vector.broadcast %7 : vector<256x1xf32> to vector<256x128xf32>
    %16 = arith.subf %1, %15 : vector<256x128xf32>
    %cst_10 = arith.constant 9.99999974E-6 : f32
    %17 = vector.broadcast %cst_10 : f32 to vector<256x1xf32>
    %18 = arith.addf %14, %17 : vector<256x1xf32>
    %19 = math.rsqrt %18 : vector<256x1xf32>
    %20 = vector.broadcast %19 : vector<256x1xf32> to vector<256x128xf32>
    %21 = arith.mulf %16, %20 : vector<256x128xf32>
    %22 = vector.broadcast %2 : vector<1x128xf32> to vector<256x128xf32>
    %23 = arith.mulf %21, %22 : vector<256x128xf32>
    %24 = vector.broadcast %3 : vector<1x128xf32> to vector<256x128xf32>
    %25 = arith.addf %23, %24 : vector<256x128xf32>
    %c0_11 = arith.constant 0 : index
    %c0_12 = arith.constant 0 : index
    %26 = vector.load %arg6[%c0_11, %c0_12] : memref<8x128xf32, #tpu.memory_space<vmem>>, vector<8x128xf32>
    %c0_13 = arith.constant 0 : index
    %c0_14 = arith.constant 0 : index
    %27 = vector.load %arg3[%c0_13, %c0_14] : memref<256x1xf32, #tpu.memory_space<vmem>>, vector<256x1xf32>
    %cst_15 = arith.constant 5.000000e-01 : f32
    %28 = vector.broadcast %cst_15 : f32 to vector<256x1xf32>
    %29 = arith.cmpf olt, %27, %28 : vector<256x1xf32>
    %30 = vector.extract_strided_slice %26 {offsets = [0, 0], sizes = [1, 128], strides = [1, 1]} : vector<8x128xf32> to vector<1x128xf32>
    %cst_16 = arith.constant 1.500000e+00 : f32
    %31 = vector.broadcast %cst_16 : f32 to vector<256x1xf32>
    %32 = arith.cmpf olt, %27, %31 : vector<256x1xf32>
    %33 = vector.extract_strided_slice %26 {offsets = [1, 0], sizes = [1, 128], strides = [1, 1]} : vector<8x128xf32> to vector<1x128xf32>
    %34 = vector.extract_strided_slice %26 {offsets = [2, 0], sizes = [1, 128], strides = [1, 1]} : vector<8x128xf32> to vector<1x128xf32>
    %35 = vector.shape_cast %32 : vector<256x1xi1> to vector<256x1xi1>
    %36 = vector.broadcast %35 : vector<256x1xi1> to vector<256x128xi1>
    %37 = vector.shape_cast %33 : vector<1x128xf32> to vector<1x128xf32>
    %38 = vector.broadcast %37 : vector<1x128xf32> to vector<256x128xf32>
    %39 = vector.shape_cast %34 : vector<1x128xf32> to vector<1x128xf32>
    %40 = vector.broadcast %39 : vector<1x128xf32> to vector<256x128xf32>
    %41 = arith.select %36, %38, %40 : vector<256x128xi1>, vector<256x128xf32>
    %42 = vector.shape_cast %29 : vector<256x1xi1> to vector<256x1xi1>
    %43 = vector.broadcast %42 : vector<256x1xi1> to vector<256x128xi1>
    %44 = vector.shape_cast %30 : vector<1x128xf32> to vector<1x128xf32>
    %45 = vector.broadcast %44 : vector<1x128xf32> to vector<256x128xf32>
    %46 = arith.select %43, %45, %41 : vector<256x128xi1>, vector<256x128xf32>
    %cst_17 = arith.constant 5.120000e+02 : f32
    %47 = vector.broadcast %cst_17 : f32 to vector<256x1xf32>
    %48 = arith.minimumf %0, %47 : vector<256x1xf32>
    %c0_18 = arith.constant 0 : index
    %c0_19 = arith.constant 0 : index
    %49 = vector.load %arg7[%c0_18, %c0_19] : memref<1x128xf32, #tpu.memory_space<vmem>>, vector<1x128xf32>
    %50 = vector.broadcast %48 : vector<256x1xf32> to vector<256x128xf32>
    %51 = vector.broadcast %49 : vector<1x128xf32> to vector<256x128xf32>
    %52 = arith.mulf %50, %51 : vector<256x128xf32>
    %c0_20 = arith.constant 0 : index
    %c0_21 = arith.constant 0 : index
    %53 = vector.load %arg8[%c0_20, %c0_21] : memref<1x128xf32, #tpu.memory_space<vmem>>, vector<1x128xf32>
    %54 = vector.broadcast %53 : vector<1x128xf32> to vector<256x128xf32>
    %55 = arith.addf %52, %54 : vector<256x128xf32>
    %cst_22 = arith.constant 0.000000e+00 : f32
    %56 = vector.broadcast %cst_22 : f32 to vector<256x128xf32>
    %57 = arith.maximumf %55, %56 : vector<256x128xf32>
    %58 = arith.truncf %57 : vector<256x128xf32> to vector<256x128xbf16>
    %c0_23 = arith.constant 0 : index
    %c0_24 = arith.constant 0 : index
    %59 = vector.load %arg9[%c0_23, %c0_24] : memref<128x128xbf16, #tpu.memory_space<vmem>>, vector<128x128xbf16>
    %cst_25 = arith.constant dense<0.000000e+00> : vector<256x128xf32>
    %60 = tpu.matmul %58, %59, %cst_25 {dimension_numbers = #tpu.dot_dimension_numbers<[1], [0], [0], [1], [0, 0, 1, 1], [], []>} : vector<256x128xbf16>, vector<128x128xbf16>, vector<256x128xf32> -> vector<256x128xf32>
    %c0_26 = arith.constant 0 : index
    %c0_27 = arith.constant 0 : index
    %61 = vector.load %arg10[%c0_26, %c0_27] : memref<1x128xf32, #tpu.memory_space<vmem>>, vector<1x128xf32>
    %62 = vector.broadcast %61 : vector<1x128xf32> to vector<256x128xf32>
    %63 = arith.addf %60, %62 : vector<256x128xf32>
    %c0_28 = arith.constant 0 : index
    %c0_29 = arith.constant 0 : index
    %64 = vector.load %arg11[%c0_28, %c0_29] : memref<1x128xf32, #tpu.memory_space<vmem>>, vector<1x128xf32>
    %c0_30 = arith.constant 0 : index
    %c0_31 = arith.constant 0 : index
    %65 = vector.load %arg12[%c0_30, %c0_31] : memref<1x128xf32, #tpu.memory_space<vmem>>, vector<1x128xf32>
    %cst_32 = arith.constant dense<0.000000e+00> : vector<256xf32>
    %66 = vector.multi_reduction <add>, %63, %cst_32 [1] : vector<256x128xf32> to vector<256xf32>
    %67 = vector.shape_cast %66 : vector<256xf32> to vector<256x1xf32>
    %cst_33 = arith.constant 1.280000e+02 : f32
    %68 = vector.broadcast %cst_33 : f32 to vector<256x1xf32>
    %69 = arith.divf %67, %68 : vector<256x1xf32>
    %70 = vector.broadcast %69 : vector<256x1xf32> to vector<256x128xf32>
    %71 = arith.subf %63, %70 : vector<256x128xf32>
    %72 = arith.mulf %71, %71 : vector<256x128xf32>
    %cst_34 = arith.constant dense<0.000000e+00> : vector<256xf32>
    %73 = vector.multi_reduction <add>, %72, %cst_34 [1] : vector<256x128xf32> to vector<256xf32>
    %74 = vector.shape_cast %73 : vector<256xf32> to vector<256x1xf32>
    %cst_35 = arith.constant 1.280000e+02 : f32
    %75 = vector.broadcast %cst_35 : f32 to vector<256x1xf32>
    %76 = arith.divf %74, %75 : vector<256x1xf32>
    %77 = vector.broadcast %69 : vector<256x1xf32> to vector<256x128xf32>
    %78 = arith.subf %63, %77 : vector<256x128xf32>
    %cst_36 = arith.constant 9.99999974E-6 : f32
    %79 = vector.broadcast %cst_36 : f32 to vector<256x1xf32>
    %80 = arith.addf %76, %79 : vector<256x1xf32>
    %81 = math.rsqrt %80 : vector<256x1xf32>
    %82 = vector.broadcast %81 : vector<256x1xf32> to vector<256x128xf32>
    %83 = arith.mulf %78, %82 : vector<256x128xf32>
    %84 = vector.broadcast %64 : vector<1x128xf32> to vector<256x128xf32>
    %85 = arith.mulf %83, %84 : vector<256x128xf32>
    %86 = vector.broadcast %65 : vector<1x128xf32> to vector<256x128xf32>
    %87 = arith.addf %85, %86 : vector<256x128xf32>
    %88 = arith.addf %25, %87 : vector<256x128xf32>
    %89 = arith.addf %88, %46 : vector<256x128xf32>
    %90 = arith.truncf %89 : vector<256x128xf32> to vector<256x128xbf16>
    %c0_37 = arith.constant 0 : index
    %c0_38 = arith.constant 0 : index
    %91 = vector.load %arg13[%c0_37, %c0_38] : memref<128x256xbf16, #tpu.memory_space<vmem>>, vector<128x256xbf16>
    %cst_39 = arith.constant dense<0.000000e+00> : vector<256x256xf32>
    %92 = tpu.matmul %90, %91, %cst_39 {dimension_numbers = #tpu.dot_dimension_numbers<[1], [0], [0], [1], [0, 0, 1, 1], [], []>} : vector<256x128xbf16>, vector<128x256xbf16>, vector<256x256xf32> -> vector<256x256xf32>
    %c0_40 = arith.constant 0 : index
    %c0_41 = arith.constant 0 : index
    %93 = vector.load %arg14[%c0_40, %c0_41] : memref<1x256xf32, #tpu.memory_space<vmem>>, vector<1x256xf32>
    %94 = vector.broadcast %93 : vector<1x256xf32> to vector<256x256xf32>
    %95 = arith.addf %92, %94 : vector<256x256xf32>
    %cst_42 = arith.constant 0.000000e+00 : f32
    %96 = vector.broadcast %cst_42 : f32 to vector<256x256xf32>
    %97 = arith.cmpf ogt, %95, %96 : vector<256x256xf32>
    %cst_43 = arith.constant 0.00999999977 : f32
    %98 = vector.broadcast %cst_43 : f32 to vector<256x256xf32>
    %99 = arith.mulf %98, %95 : vector<256x256xf32>
    %100 = arith.select %97, %95, %99 : vector<256x256xi1>, vector<256x256xf32>
    %101 = vector.extract_strided_slice %100 {offsets = [0, 0], sizes = [256, 128], strides = [1, 1]} : vector<256x256xf32> to vector<256x128xf32>
    %102 = arith.truncf %101 : vector<256x128xf32> to vector<256x128xbf16>
    %c0_44 = arith.constant 0 : index
    %c0_45 = arith.constant 0 : index
    %103 = vector.load %arg15[%c0_44, %c0_45] : memref<128x128xbf16, #tpu.memory_space<vmem>>, vector<128x128xbf16>
    %cst_46 = arith.constant dense<0.000000e+00> : vector<256x128xf32>
    %104 = tpu.matmul %102, %103, %cst_46 {dimension_numbers = #tpu.dot_dimension_numbers<[1], [0], [0], [1], [0, 0, 1, 1], [], []>} : vector<256x128xbf16>, vector<128x128xbf16>, vector<256x128xf32> -> vector<256x128xf32>
    %c0_47 = arith.constant 0 : index
    %c0_48 = arith.constant 0 : index
    %105 = vector.load %arg16[%c0_47, %c0_48] : memref<1x128xf32, #tpu.memory_space<vmem>>, vector<1x128xf32>
    %106 = vector.broadcast %105 : vector<1x128xf32> to vector<256x128xf32>
    %107 = arith.addf %104, %106 : vector<256x128xf32>
    %cst_49 = arith.constant 0.000000e+00 : f32
    %108 = vector.broadcast %cst_49 : f32 to vector<256x128xf32>
    %109 = arith.cmpf ogt, %107, %108 : vector<256x128xf32>
    %cst_50 = arith.constant 0.00999999977 : f32
    %110 = vector.broadcast %cst_50 : f32 to vector<256x128xf32>
    %111 = arith.mulf %110, %107 : vector<256x128xf32>
    %112 = arith.select %109, %107, %111 : vector<256x128xi1>, vector<256x128xf32>
    %113 = vector.extract_strided_slice %100 {offsets = [0, 128], sizes = [256, 128], strides = [1, 1]} : vector<256x256xf32> to vector<256x128xf32>
    %114 = arith.truncf %113 : vector<256x128xf32> to vector<256x128xbf16>
    %c0_51 = arith.constant 0 : index
    %c0_52 = arith.constant 0 : index
    %115 = vector.load %arg17[%c0_51, %c0_52] : memref<128x128xbf16, #tpu.memory_space<vmem>>, vector<128x128xbf16>
    %cst_53 = arith.constant dense<0.000000e+00> : vector<256x128xf32>
    %116 = tpu.matmul %114, %115, %cst_53 {dimension_numbers = #tpu.dot_dimension_numbers<[1], [0], [0], [1], [0, 0, 1, 1], [], []>} : vector<256x128xbf16>, vector<128x128xbf16>, vector<256x128xf32> -> vector<256x128xf32>
    %c0_54 = arith.constant 0 : index
    %c0_55 = arith.constant 0 : index
    %117 = vector.load %arg18[%c0_54, %c0_55] : memref<1x128xf32, #tpu.memory_space<vmem>>, vector<1x128xf32>
    %118 = vector.broadcast %117 : vector<1x128xf32> to vector<256x128xf32>
    %119 = arith.addf %116, %118 : vector<256x128xf32>
    %cst_56 = arith.constant 0.000000e+00 : f32
    %120 = vector.broadcast %cst_56 : f32 to vector<256x128xf32>
    %121 = arith.cmpf ogt, %119, %120 : vector<256x128xf32>
    %cst_57 = arith.constant 0.00999999977 : f32
    %122 = vector.broadcast %cst_57 : f32 to vector<256x128xf32>
    %123 = arith.mulf %122, %119 : vector<256x128xf32>
    %124 = arith.select %121, %119, %123 : vector<256x128xi1>, vector<256x128xf32>
    %125 = vector.broadcast %0 : vector<256x1xf32> to vector<256x128xf32>
    %126 = arith.mulf %112, %125 : vector<256x128xf32>
    %127 = arith.truncf %126 : vector<256x128xf32> to vector<256x128xbf16>
    %128 = arith.truncf %124 : vector<256x128xf32> to vector<256x128xbf16>
    %129 = tpu.concatenate %127, %128 in 1 : vector<256x128xbf16>, vector<256x128xbf16> -> vector<256x256xbf16>
    %c0_58 = arith.constant 0 : index
    %c0_59 = arith.constant 0 : index
    %130 = vector.load %arg19[%c0_58, %c0_59] : memref<256x1xbf16, #tpu.memory_space<vmem>>, vector<256x1xbf16>
    %cst_60 = arith.constant dense<0.000000e+00> : vector<256x1xf32>
    %131 = tpu.matmul %129, %130, %cst_60 {dimension_numbers = #tpu.dot_dimension_numbers<[1], [0], [0], [1], [0, 0, 1, 1], [], []>} : vector<256x256xbf16>, vector<256x1xbf16>, vector<256x1xf32> -> vector<256x1xf32>
    %c0_61 = arith.constant 0 : index
    %c0_62 = arith.constant 0 : index
    %132 = vector.load %arg20[%c0_61, %c0_62] : memref<1x1xf32, #tpu.memory_space<vmem>>, vector<1x1xf32>
    %133 = vector.broadcast %132 : vector<1x1xf32> to vector<256x1xf32>
    %134 = arith.mulf %133, %0 : vector<256x1xf32>
    %135 = arith.addf %131, %134 : vector<256x1xf32>
    %c0_63 = arith.constant 0 : index
    %c0_64 = arith.constant 0 : index
    %136 = vector.load %arg21[%c0_63, %c0_64] : memref<1x1xf32, #tpu.memory_space<vmem>>, vector<1x1xf32>
    %137 = vector.broadcast %136 : vector<1x1xf32> to vector<256x1xf32>
    %138 = arith.addf %135, %137 : vector<256x1xf32>
    %139 = vector.shape_cast %138 : vector<256x1xf32> to vector<1x256xf32>
    %c0_65 = arith.constant 0 : index
    %c0_66 = arith.constant 0 : index
    %140 = vector.load %arg22[%c0_65, %c0_66] : memref<1x256xf32, #tpu.memory_space<vmem>>, vector<1x256xf32>
    tpu.vector_store %arg22[%c0_65, %c0_66], %139 {strides = array<i32>} : memref<1x256xf32, #tpu.memory_space<vmem>>, vector<1x256xf32>,
    return
  }
  func.func @transform_0(%arg0: i32) -> (i32, i32) {
    %c0_i32 = arith.constant 0 : i32
    %c0_i32_0 = arith.constant 0 : i32
    return %arg0, %c0_i32 : i32, i32
  }
  func.func @transform_1(%arg0: i32) -> (i32, i32) {
    %c0_i32 = arith.constant 0 : i32
    %c0_i32_0 = arith.constant 0 : i32
    return %arg0, %c0_i32 : i32, i32
  }
  func.func @transform_2(%arg0: i32) -> (i32, i32) {
    %c0_i32 = arith.constant 0 : i32
    %c0_i32_0 = arith.constant 0 : i32
    return %arg0, %c0_i32 : i32, i32
  }
  func.func @transform_3(%arg0: i32) -> (i32, i32) {
    %c0_i32 = arith.constant 0 : i32
    %c0_i32_0 = arith.constant 0 : i32
    %c0_i32_1 = arith.constant 0 : i32
    return %c0_i32, %c0_i32_0 : i32, i32
  }
  func.func @transform_4(%arg0: i32) -> (i32, i32) {
    %c0_i32 = arith.constant 0 : i32
    %c0_i32_0 = arith.constant 0 : i32
    %c0_i32_1 = arith.constant 0 : i32
    return %c0_i32, %c0_i32_0 : i32, i32
  }
  func.func @transform_5(%arg0: i32) -> (i32, i32) {
    %c0_i32 = arith.constant 0 : i32
    %c0_i32_0 = arith.constant 0 : i32
    %c0_i32_1 = arith.constant 0 : i32
    return %c0_i32, %c0_i32_0 : i32, i32
  }
  func.func @transform_6(%arg0: i32) -> (i32, i32) {
    %c0_i32 = arith.constant 0 : i32
    %c0_i32_0 = arith.constant 0 : i32
    %c0_i32_1 = arith.constant 0 : i32
    return %c0_i32, %c0_i32_0 : i32, i32
  }
  func.func @transform_7(%arg0: i32) -> (i32, i32) {
    %c0_i32 = arith.constant 0 : i32
    %c0_i32_0 = arith.constant 0 : i32
    %c0_i32_1 = arith.constant 0 : i32
    return %c0_i32, %c0_i32_0 : i32, i32
  }
  func.func @transform_8(%arg0: i32) -> (i32, i32) {
    %c0_i32 = arith.constant 0 : i32
    %c0_i32_0 = arith.constant 0 : i32
    %c0_i32_1 = arith.constant 0 : i32
    return %c0_i32, %c0_i32_0 : i32, i32
  }
  func.func @transform_9(%arg0: i32) -> (i32, i32) {
    %c0_i32 = arith.constant 0 : i32
    %c0_i32_0 = arith.constant 0 : i32
    %c0_i32_1 = arith.constant 0 : i32
    return %c0_i32, %c0_i32_0 : i32, i32
  }
  func.func @transform_10(%arg0: i32) -> (i32, i32) {
    %c0_i32 = arith.constant 0 : i32
    %c0_i32_0 = arith.constant 0 : i32
    %c0_i32_1 = arith.constant 0 : i32
    return %c0_i32, %c0_i32_0 : i32, i32
  }
  func.func @transform_11(%arg0: i32) -> (i32, i32) {
    %c0_i32 = arith.constant 0 : i32
    %c0_i32_0 = arith.constant 0 : i32
    %c0_i32_1 = arith.constant 0 : i32
    return %c0_i32, %c0_i32_0 : i32, i32
  }
  func.func @transform_12(%arg0: i32) -> (i32, i32) {
    %c0_i32 = arith.constant 0 : i32
    %c0_i32_0 = arith.constant 0 : i32
    %c0_i32_1 = arith.constant 0 : i32
    return %c0_i32, %c0_i32_0 : i32, i32
  }
  func.func @transform_13(%arg0: i32) -> (i32, i32) {
    %c0_i32 = arith.constant 0 : i32
    %c0_i32_0 = arith.constant 0 : i32
    %c0_i32_1 = arith.constant 0 : i32
    return %c0_i32, %c0_i32_0 : i32, i32
  }
  func.func @transform_14(%arg0: i32) -> (i32, i32) {
    %c0_i32 = arith.constant 0 : i32
    %c0_i32_0 = arith.constant 0 : i32
    %c0_i32_1 = arith.constant 0 : i32
    return %c0_i32, %c0_i32_0 : i32, i32
  }
  func.func @transform_15(%arg0: i32) -> (i32, i32) {
    %c0_i32 = arith.constant 0 : i32
    %c0_i32_0 = arith.constant 0 : i32
    %c0_i32_1 = arith.constant 0 : i32
    return %c0_i32, %c0_i32_0 : i32, i32
  }
  func.func @transform_16(%arg0: i32) -> (i32, i32) {
    %c0_i32 = arith.constant 0 : i32
    %c0_i32_0 = arith.constant 0 : i32
    %c0_i32_1 = arith.constant 0 : i32
    return %c0_i32, %c0_i32_0 : i32, i32
  }
  func.func @transform_17(%arg0: i32) -> (i32, i32) {
    %c0_i32 = arith.constant 0 : i32
    %c0_i32_0 = arith.constant 0 : i32
    %c0_i32_1 = arith.constant 0 : i32
    return %c0_i32, %c0_i32_0 : i32, i32
  }
  func.func @transform_18(%arg0: i32) -> (i32, i32) {
    %c0_i32 = arith.constant 0 : i32
    %c0_i32_0 = arith.constant 0 : i32
    %c0_i32_1 = arith.constant 0 : i32
    return %c0_i32, %c0_i32_0 : i32, i32
  }
  func.func @transform_19(%arg0: i32) -> (i32, i32) {
    %c0_i32 = arith.constant 0 : i32
    %c0_i32_0 = arith.constant 0 : i32
    %c0_i32_1 = arith.constant 0 : i32
    return %c0_i32, %c0_i32_0 : i32, i32
  }
  func.func @transform_20(%arg0: i32) -> (i32, i32) {
    %c0_i32 = arith.constant 0 : i32
    %c0_i32_0 = arith.constant 0 : i32
    %c0_i32_1 = arith.constant 0 : i32
    return %c0_i32, %c0_i32_0 : i32, i32
  }
  func.func @transform_21(%arg0: i32) -> (i32, i32) {
    %c0_i32 = arith.constant 0 : i32
    %c0_i32_0 = arith.constant 0 : i32
    return %c0_i32, %arg0 : i32, i32
  }
}

</mosaic_0001>

<llo_original>
// kernel: tpu_custom_call.1
$region0: #{tpu_custom_call.1}
  #allocation0 [shape = 'u32[]', space=smem, size = 0x4, offset = 0x4, fixed_abs, tag = 'smem constant byte address 0x4 - core index']
  #allocation1 [shape = 'u32[144,128]{1,0:T(1,128)}', space=vmem, size = 0x12000, scoped, tag = 'internal scratch']
  #allocation2 [shape = 'f32[1,1]{1,0:T(1,128)S(1)}', space=vmem, size = 0x200, scoped, tag = 'scoped memory for tpu_custom_call.1']
  #allocation3 [shape = 'f32[1,1]{1,0:T(1,128)S(1)}', space=vmem, size = 0x200, scoped, tag = 'scoped memory for tpu_custom_call.1']
  %s0 = inlined_call_operand.vmem [shape: f32[512,128], index: 0, kind: input, shape index: {}]
  %s1 = inlined_call_operand.vmem [shape: f32[512,1], index: 1, kind: input, shape index: {}]
  %s2 = inlined_call_operand.vmem [shape: f32[512,1], index: 2, kind: input, shape index: {}]
  %s3 = inlined_call_operand.vmem [shape: f32[1,128], index: 3, kind: input, shape index: {}]
  %s4 = inlined_call_operand.vmem [shape: f32[1,128], index: 4, kind: input, shape index: {}]
  %s5 = inlined_call_operand.vmem [shape: f32[8,128], index: 5, kind: input, shape index: {}]
  %s6 = inlined_call_operand.vmem [shape: f32[1,128], index: 6, kind: input, shape index: {}]
  %s7 = inlined_call_operand.vmem [shape: f32[1,128], index: 7, kind: input, shape index: {}]
  %s8 = inlined_call_operand.vmem [shape: bf16[128,128], index: 8, kind: input, shape index: {}]
  %s9 = inlined_call_operand.vmem [shape: f32[1,128], index: 9, kind: input, shape index: {}]
  %s10 = inlined_call_operand.vmem [shape: f32[1,128], index: 10, kind: input, shape index: {}]
  %s11 = inlined_call_operand.vmem [shape: f32[1,128], index: 11, kind: input, shape index: {}]
  %s12 = inlined_call_operand.vmem [shape: bf16[128,256], index: 12, kind: input, shape index: {}]
  %s13 = inlined_call_operand.vmem [shape: f32[1,256], index: 13, kind: input, shape index: {}]
  %s14 = inlined_call_operand.vmem [shape: bf16[128,128], index: 14, kind: input, shape index: {}]
  %s15 = inlined_call_operand.vmem [shape: f32[1,128], index: 15, kind: input, shape index: {}]
  %s16 = inlined_call_operand.vmem [shape: bf16[128,128], index: 16, kind: input, shape index: {}]
  %s17 = inlined_call_operand.vmem [shape: f32[1,128], index: 17, kind: input, shape index: {}]
  %s18 = inlined_call_operand.vmem [shape: bf16[256,1], index: 18, kind: input, shape index: {}]
  %s19 = inlined_call_operand.<no memory space> [shape: f32[1,1], index: 19, kind: input, shape index: {}]
  %s20 = inlined_call_operand.<no memory space> [shape: f32[1,1], index: 20, kind: input, shape index: {}]
  %s21 = inlined_call_operand.hbm [shape: f32[1,512], index: 21, kind: output, shape index: {}]
  %s22 = sld [smem:[#allocation0]]
  $region117: #{tpu_custom_call.1} parent=0
    _
  %s24 = ssub.s32 1, %s22
  %s25 = scalar_select 0, %s24, %s22
  %v26 = vstv %s19
  %27 = vst [vmem:[#allocation2] sm:$0x1] %v26
  %v28 = vstv %s20
  %29 = vst [vmem:[#allocation3] sm:$0x1] %v28
  $region1: #{tpu_custom_call.1} parent=0
    #allocation4 [shape = 'u8[2048]{0}', space=vmem, size = 0x800, scoped, tag = 'output window, operand 0']
    #allocation5 [shape = 's32[2]{0}', space=sflag, size = 0x8, scoped, tag = 'scoped memory for tpu_custom_call.1']
    %30 = vsyncpa [#allocation5], 0
    %s31 = scalar_lea.sflag [#allocation5], 1
    %32 = vsyncpa %s31, 0
    loop: start=0, step=1, limit=4
    $region2: #{tpu_custom_call.1} parent=1 // loop_pre_header
      _
    $region3: #{tpu_custom_call.1} parent=1 // loop_header
      %s34 = sphi 0, %s38
      %p35 = scmp.ge.s32.totalorder %s34, 4
      %s44 = sphi 0, %s46
      %s47 = sphi 0, %s44
      %s48 = sphi 0, %s47
      %s64 = sphi 0, %s48
      %s70 = sphi 0, %s72
      %s73 = sphi 0, %s70
      %s74 = sphi 0, %s73
      %s90 = sphi 0, %s74
      %s96 = sphi 0, %s98
      %s99 = sphi 0, %s96
      %s100 = sphi 0, %s99
      %s116 = sphi 0, %s100
      %s120 = sphi 0, %s120
      %s122 = sphi 0, %s120
      %s123 = sphi 0, %s122
      %s137 = sphi 0, %s123
      %s141 = sphi 0, %s141
      %s143 = sphi 0, %s141
      %s144 = sphi 0, %s143
      %s158 = sphi 0, %s144
      %s162 = sphi 0, %s162
      %s164 = sphi 0, %s162
      %s165 = sphi 0, %s164
      %s179 = sphi 0, %s165
      %s183 = sphi 0, %s183
      %s185 = sphi 0, %s183
      %s186 = sphi 0, %s185
      %s200 = sphi 0, %s186
      %s204 = sphi 0, %s204
      %s206 = sphi 0, %s204
      %s207 = sphi 0, %s206
      %s221 = sphi 0, %s207
      %s225 = sphi 0, %s225
      %s227 = sphi 0, %s225
      %s228 = sphi 0, %s227
      %s242 = sphi 0, %s228
      %s246 = sphi 0, %s246
      %s248 = sphi 0, %s246
      %s249 = sphi 0, %s248
      %s263 = sphi 0, %s249
      %s267 = sphi 0, %s267
      %s269 = sphi 0, %s267
      %s270 = sphi 0, %s269
      %s284 = sphi 0, %s270
      %s288 = sphi 0, %s288
      %s290 = sphi 0, %s288
      %s291 = sphi 0, %s290
      %s305 = sphi 0, %s291
      %s309 = sphi 0, %s309
      %s311 = sphi 0, %s309
      %s312 = sphi 0, %s311
      %s326 = sphi 0, %s312
      %s330 = sphi 0, %s330
      %s332 = sphi 0, %s330
      %s333 = sphi 0, %s332
      %s347 = sphi 0, %s333
      %s351 = sphi 0, %s351
      %s353 = sphi 0, %s351
      %s354 = sphi 0, %s353
      %s368 = sphi 0, %s354
      %s372 = sphi 0, %s372
      %s374 = sphi 0, %s372
      %s375 = sphi 0, %s374
      %s389 = sphi 0, %s375
      %s393 = sphi 0, %s393
      %s395 = sphi 0, %s393
      %s396 = sphi 0, %s395
      %s410 = sphi 0, %s396
      %s414 = sphi 0, %s414
      %s416 = sphi 0, %s414
      %s417 = sphi 0, %s416
      %s431 = sphi 0, %s417
      %s435 = sphi 0, %s435
      %s437 = sphi 0, %s435
      %s438 = sphi 0, %s437
      %s452 = sphi 0, %s438
      %s456 = sphi 0, %s456
      %s458 = sphi 0, %s456
      %s459 = sphi 0, %s458
      %s473 = sphi 0, %s459
      %s477 = sphi 0, %s477
      %s479 = sphi 0, %s477
      %s480 = sphi 0, %s479
      %s494 = sphi 0, %s480
      %s500 = sphi 0, %s502
      %s503 = sphi 0, %s500
      %s504 = sphi 0, %s503
      %s520 = sphi 0, %s504
    $region4: #{tpu_custom_call.1} parent=1 // loop_header_branch
      %37 = sbr.rel (%p35) target = $region8
    $region5: #{tpu_custom_call.1} parent=1 // loop_body
      %s39 = ssub.s32 %s34, 1
      %s40 = ssub.s32 %s34, 2
      %s41 = sadd.s32 %s34, 1
      %s42 = ssub.s32 %s34, %s41
      %p43 = scmp.eq.s32.totalorder %s42, 0
      %s45 = sadd.s32 %s44, 1
      %s46 = scalar_select %p43, %s44, %s45
      %p49 = pneg %p43
      %p50 = scmp.eq.s32.totalorder %s34, 1
      %p51 = por %p49, %p50
      %p52 = scmp.ne.s32.totalorder %s44, %s47
      %p53 = scmp.eq.s32.totalorder %s34, 0
      %p54 = por %p52, %p53
      %p55 = scmp.ne.s32.totalorder %s44, %s47
      %p56 = scmp.eq.s32.totalorder %s39, 1
      %p57 = por %p55, %p56
      %p58 = scmp.ne.s32.totalorder %s47, %s48
      %p59 = scmp.eq.s32.totalorder %s39, 0
      %p60 = por %p58, %p59
      %p61 = scmp.ne.s32.totalorder %s47, %s48
      %p62 = scmp.eq.s32.totalorder %s40, 1
      %p63 = por %p61, %p62
      %p65 = scmp.ne.s32.totalorder %s48, %s64
      %p66 = scmp.eq.s32.totalorder %s40, 0
      %p67 = por %p65, %p66
      %s68 = ssub.s32 %s34, %s41
      %p69 = scmp.eq.s32.totalorder %s68, 0
      %s71 = sadd.s32 %s70, 1
      %s72 = scalar_select %p69, %s70, %s71
      %p75 = pneg %p69
      %p76 = scmp.eq.s32.totalorder %s34, 1
      %p77 = por %p75, %p76
      %p78 = scmp.ne.s32.totalorder %s70, %s73
      %p79 = scmp.eq.s32.totalorder %s34, 0
      %p80 = por %p78, %p79
      %p81 = scmp.ne.s32.totalorder %s70, %s73
      %p82 = scmp.eq.s32.totalorder %s39, 1
      %p83 = por %p81, %p82
      %p84 = scmp.ne.s32.totalorder %s73, %s74
      %p85 = scmp.eq.s32.totalorder %s39, 0
      %p86 = por %p84, %p85
      %p87 = scmp.ne.s32.totalorder %s73, %s74
      %p88 = scmp.eq.s32.totalorder %s40, 1
      %p89 = por %p87, %p88
      %p91 = scmp.ne.s32.totalorder %s74, %s90
      %p92 = scmp.eq.s32.totalorder %s40, 0
      %p93 = por %p91, %p92
      %s94 = ssub.s32 %s34, %s41
      %p95 = scmp.eq.s32.totalorder %s94, 0
      %s97 = sadd.s32 %s96, 1
      %s98 = scalar_select %p95, %s96, %s97
      %p101 = pneg %p95
      %p102 = scmp.eq.s32.totalorder %s34, 1
      %p103 = por %p101, %p102
      %p104 = scmp.ne.s32.totalorder %s96, %s99
      %p105 = scmp.eq.s32.totalorder %s34, 0
      %p106 = por %p104, %p105
      %p107 = scmp.ne.s32.totalorder %s96, %s99
      %p108 = scmp.eq.s32.totalorder %s39, 1
      %p109 = por %p107, %p108
      %p110 = scmp.ne.s32.totalorder %s99, %s100
      %p111 = scmp.eq.s32.totalorder %s39, 0
      %p112 = por %p110, %p111
      %p113 = scmp.ne.s32.totalorder %s99, %s100
      %p114 = scmp.eq.s32.totalorder %s40, 1
      %p115 = por %p113, %p114
      %p117 = scmp.ne.s32.totalorder %s100, %s116
      %p118 = scmp.eq.s32.totalorder %s40, 0
      %p119 = por %p117, %p118
      %s121 = sadd.s32 %s120, 1
      %p124 = scmp.eq.s32.totalorder %s34, 1
      %p125 = scmp.ne.s32.totalorder %s120, %s122
      %p126 = scmp.eq.s32.totalorder %s34, 0
      %p127 = por %p125, %p126
      %p128 = scmp.ne.s32.totalorder %s120, %s122
      %p129 = scmp.eq.s32.totalorder %s39, 1
      %p130 = por %p128, %p129
      %p131 = scmp.ne.s32.totalorder %s122, %s123
      %p132 = scmp.eq.s32.totalorder %s39, 0
      %p133 = por %p131, %p132
      %p134 = scmp.ne.s32.totalorder %s122, %s123
      %p135 = scmp.eq.s32.totalorder %s40, 1
      %p136 = por %p134, %p135
      %p138 = scmp.ne.s32.totalorder %s123, %s137
      %p139 = scmp.eq.s32.totalorder %s40, 0
      %p140 = por %p138, %p139
      %s142 = sadd.s32 %s141, 1
      %p145 = scmp.eq.s32.totalorder %s34, 1
      %p146 = scmp.ne.s32.totalorder %s141, %s143
      %p147 = scmp.eq.s32.totalorder %s34, 0
      %p148 = por %p146, %p147
      %p149 = scmp.ne.s32.totalorder %s141, %s143
      %p150 = scmp.eq.s32.totalorder %s39, 1
      %p151 = por %p149, %p150
      %p152 = scmp.ne.s32.totalorder %s143, %s144
      %p153 = scmp.eq.s32.totalorder %s39, 0
      %p154 = por %p152, %p153
      %p155 = scmp.ne.s32.totalorder %s143, %s144
      %p156 = scmp.eq.s32.totalorder %s40, 1
      %p157 = por %p155, %p156
      %p159 = scmp.ne.s32.totalorder %s144, %s158
      %p160 = scmp.eq.s32.totalorder %s40, 0
      %p161 = por %p159, %p160
      %s163 = sadd.s32 %s162, 1
      %p166 = scmp.eq.s32.totalorder %s34, 1
      %p167 = scmp.ne.s32.totalorder %s162, %s164
      %p168 = scmp.eq.s32.totalorder %s34, 0
      %p169 = por %p167, %p168
      %p170 = scmp.ne.s32.totalorder %s162, %s164
      %p171 = scmp.eq.s32.totalorder %s39, 1
      %p172 = por %p170, %p171
      %p173 = scmp.ne.s32.totalorder %s164, %s165
      %p174 = scmp.eq.s32.totalorder %s39, 0
      %p175 = por %p173, %p174
      %p176 = scmp.ne.s32.totalorder %s164, %s165
      %p177 = scmp.eq.s32.totalorder %s40, 1
      %p178 = por %p176, %p177
      %p180 = scmp.ne.s32.totalorder %s165, %s179
      %p181 = scmp.eq.s32.totalorder %s40, 0
      %p182 = por %p180, %p181
      %s184 = sadd.s32 %s183, 1
      %p187 = scmp.eq.s32.totalorder %s34, 1
      %p188 = scmp.ne.s32.totalorder %s183, %s185
      %p189 = scmp.eq.s32.totalorder %s34, 0
      %p190 = por %p188, %p189
      %p191 = scmp.ne.s32.totalorder %s183, %s185
      %p192 = scmp.eq.s32.totalorder %s39, 1
      %p193 = por %p191, %p192
      %p194 = scmp.ne.s32.totalorder %s185, %s186
      %p195 = scmp.eq.s32.totalorder %s39, 0
      %p196 = por %p194, %p195
      %p197 = scmp.ne.s32.totalorder %s185, %s186
      %p198 = scmp.eq.s32.totalorder %s40, 1
      %p199 = por %p197, %p198
      %p201 = scmp.ne.s32.totalorder %s186, %s200
      %p202 = scmp.eq.s32.totalorder %s40, 0
      %p203 = por %p201, %p202
      %s205 = sadd.s32 %s204, 1
      %p208 = scmp.eq.s32.totalorder %s34, 1
      %p209 = scmp.ne.s32.totalorder %s204, %s206
      %p210 = scmp.eq.s32.totalorder %s34, 0
      %p211 = por %p209, %p210
      %p212 = scmp.ne.s32.totalorder %s204, %s206
      %p213 = scmp.eq.s32.totalorder %s39, 1
      %p214 = por %p212, %p213
      %p215 = scmp.ne.s32.totalorder %s206, %s207
      %p216 = scmp.eq.s32.totalorder %s39, 0
      %p217 = por %p215, %p216
      %p218 = scmp.ne.s32.totalorder %s206, %s207
      %p219 = scmp.eq.s32.totalorder %s40, 1
      %p220 = por %p218, %p219
      %p222 = scmp.ne.s32.totalorder %s207, %s221
      %p223 = scmp.eq.s32.totalorder %s40, 0
      %p224 = por %p222, %p223
      %s226 = sadd.s32 %s225, 1
      %p229 = scmp.eq.s32.totalorder %s34, 1
      %p230 = scmp.ne.s32.totalorder %s225, %s227
      %p231 = scmp.eq.s32.totalorder %s34, 0
      %p232 = por %p230, %p231
      %p233 = scmp.ne.s32.totalorder %s225, %s227
      %p234 = scmp.eq.s32.totalorder %s39, 1
      %p235 = por %p233, %p234
      %p236 = scmp.ne.s32.totalorder %s227, %s228
      %p237 = scmp.eq.s32.totalorder %s39, 0
      %p238 = por %p236, %p237
      %p239 = scmp.ne.s32.totalorder %s227, %s228
      %p240 = scmp.eq.s32.totalorder %s40, 1
      %p241 = por %p239, %p240
      %p243 = scmp.ne.s32.totalorder %s228, %s242
      %p244 = scmp.eq.s32.totalorder %s40, 0
      %p245 = por %p243, %p244
      %s247 = sadd.s32 %s246, 1
      %p250 = scmp.eq.s32.totalorder %s34, 1
      %p251 = scmp.ne.s32.totalorder %s246, %s248
      %p252 = scmp.eq.s32.totalorder %s34, 0
      %p253 = por %p251, %p252
      %p254 = scmp.ne.s32.totalorder %s246, %s248
      %p255 = scmp.eq.s32.totalorder %s39, 1
      %p256 = por %p254, %p255
      %p257 = scmp.ne.s32.totalorder %s248, %s249
      %p258 = scmp.eq.s32.totalorder %s39, 0
      %p259 = por %p257, %p258
      %p260 = scmp.ne.s32.totalorder %s248, %s249
      %p261 = scmp.eq.s32.totalorder %s40, 1
      %p262 = por %p260, %p261
      %p264 = scmp.ne.s32.totalorder %s249, %s263
      %p265 = scmp.eq.s32.totalorder %s40, 0
      %p266 = por %p264, %p265
      %s268 = sadd.s32 %s267, 1
      %p271 = scmp.eq.s32.totalorder %s34, 1
      %p272 = scmp.ne.s32.totalorder %s267, %s269
      %p273 = scmp.eq.s32.totalorder %s34, 0
      %p274 = por %p272, %p273
      %p275 = scmp.ne.s32.totalorder %s267, %s269
      %p276 = scmp.eq.s32.totalorder %s39, 1
      %p277 = por %p275, %p276
      %p278 = scmp.ne.s32.totalorder %s269, %s270
      %p279 = scmp.eq.s32.totalorder %s39, 0
      %p280 = por %p278, %p279
      %p281 = scmp.ne.s32.totalorder %s269, %s270
      %p282 = scmp.eq.s32.totalorder %s40, 1
      %p283 = por %p281, %p282
      %p285 = scmp.ne.s32.totalorder %s270, %s284
      %p286 = scmp.eq.s32.totalorder %s40, 0
      %p287 = por %p285, %p286
      %s289 = sadd.s32 %s288, 1
      %p292 = scmp.eq.s32.totalorder %s34, 1
      %p293 = scmp.ne.s32.totalorder %s288, %s290
      %p294 = scmp.eq.s32.totalorder %s34, 0
      %p295 = por %p293, %p294
      %p296 = scmp.ne.s32.totalorder %s288, %s290
      %p297 = scmp.eq.s32.totalorder %s39, 1
      %p298 = por %p296, %p297
      %p299 = scmp.ne.s32.totalorder %s290, %s291
      %p300 = scmp.eq.s32.totalorder %s39, 0
      %p301 = por %p299, %p300
      %p302 = scmp.ne.s32.totalorder %s290, %s291
      %p303 = scmp.eq.s32.totalorder %s40, 1
      %p304 = por %p302, %p303
      %p306 = scmp.ne.s32.totalorder %s291, %s305
      %p307 = scmp.eq.s32.totalorder %s40, 0
      %p308 = por %p306, %p307
      %s310 = sadd.s32 %s309, 1
      %p313 = scmp.eq.s32.totalorder %s34, 1
      %p314 = scmp.ne.s32.totalorder %s309, %s311
      %p315 = scmp.eq.s32.totalorder %s34, 0
      %p316 = por %p314, %p315
      %p317 = scmp.ne.s32.totalorder %s309, %s311
      %p318 = scmp.eq.s32.totalorder %s39, 1
      %p319 = por %p317, %p318
      %p320 = scmp.ne.s32.totalorder %s311, %s312
      %p321 = scmp.eq.s32.totalorder %s39, 0
      %p322 = por %p320, %p321
      %p323 = scmp.ne.s32.totalorder %s311, %s312
      %p324 = scmp.eq.s32.totalorder %s40, 1
      %p325 = por %p323, %p324
      %p327 = scmp.ne.s32.totalorder %s312, %s326
      %p328 = scmp.eq.s32.totalorder %s40, 0
      %p329 = por %p327, %p328
      %s331 = sadd.s32 %s330, 1
      %p334 = scmp.eq.s32.totalorder %s34, 1
      %p335 = scmp.ne.s32.totalorder %s330, %s332
      %p336 = scmp.eq.s32.totalorder %s34, 0
      %p337 = por %p335, %p336
      %p338 = scmp.ne.s32.totalorder %s330, %s332
      %p339 = scmp.eq.s32.totalorder %s39, 1
      %p340 = por %p338, %p339
      %p341 = scmp.ne.s32.totalorder %s332, %s333
      %p342 = scmp.eq.s32.totalorder %s39, 0
      %p343 = por %p341, %p342
      %p344 = scmp.ne.s32.totalorder %s332, %s333
      %p345 = scmp.eq.s32.totalorder %s40, 1
      %p346 = por %p344, %p345
      %p348 = scmp.ne.s32.totalorder %s333, %s347
      %p349 = scmp.eq.s32.totalorder %s40, 0
      %p350 = por %p348, %p349
      %s352 = sadd.s32 %s351, 1
      %p355 = scmp.eq.s32.totalorder %s34, 1
      %p356 = scmp.ne.s32.totalorder %s351, %s353
      %p357 = scmp.eq.s32.totalorder %s34, 0
      %p358 = por %p356, %p357
      %p359 = scmp.ne.s32.totalorder %s351, %s353
      %p360 = scmp.eq.s32.totalorder %s39, 1
      %p361 = por %p359, %p360
      %p362 = scmp.ne.s32.totalorder %s353, %s354
      %p363 = scmp.eq.s32.totalorder %s39, 0
      %p364 = por %p362, %p363
      %p365 = scmp.ne.s32.totalorder %s353, %s354
      %p366 = scmp.eq.s32.totalorder %s40, 1
      %p367 = por %p365, %p366
      %p369 = scmp.ne.s32.totalorder %s354, %s368
      %p370 = scmp.eq.s32.totalorder %s40, 0
      %p371 = por %p369, %p370
      %s373 = sadd.s32 %s372, 1
      %p376 = scmp.eq.s32.totalorder %s34, 1
      %p377 = scmp.ne.s32.totalorder %s372, %s374
      %p378 = scmp.eq.s32.totalorder %s34, 0
      %p379 = por %p377, %p378
      %p380 = scmp.ne.s32.totalorder %s372, %s374
      %p381 = scmp.eq.s32.totalorder %s39, 1
      %p382 = por %p380, %p381
      %p383 = scmp.ne.s32.totalorder %s374, %s375
      %p384 = scmp.eq.s32.totalorder %s39, 0
      %p385 = por %p383, %p384
      %p386 = scmp.ne.s32.totalorder %s374, %s375
      %p387 = scmp.eq.s32.totalorder %s40, 1
      %p388 = por %p386, %p387
      %p390 = scmp.ne.s32.totalorder %s375, %s389
      %p391 = scmp.eq.s32.totalorder %s40, 0
      %p392 = por %p390, %p391
      %s394 = sadd.s32 %s393, 1
      %p397 = scmp.eq.s32.totalorder %s34, 1
      %p398 = scmp.ne.s32.totalorder %s393, %s395
      %p399 = scmp.eq.s32.totalorder %s34, 0
      %p400 = por %p398, %p399
      %p401 = scmp.ne.s32.totalorder %s393, %s395
      %p402 = scmp.eq.s32.totalorder %s39, 1
      %p403 = por %p401, %p402
      %p404 = scmp.ne.s32.totalorder %s395, %s396
      %p405 = scmp.eq.s32.totalorder %s39, 0
      %p406 = por %p404, %p405
      %p407 = scmp.ne.s32.totalorder %s395, %s396
      %p408 = scmp.eq.s32.totalorder %s40, 1
      %p409 = por %p407, %p408
      %p411 = scmp.ne.s32.totalorder %s396, %s410
      %p412 = scmp.eq.s32.totalorder %s40, 0
      %p413 = por %p411, %p412
      %s415 = sadd.s32 %s414, 1
      %p418 = scmp.eq.s32.totalorder %s34, 1
      %p419 = scmp.ne.s32.totalorder %s414, %s416
      %p420 = scmp.eq.s32.totalorder %s34, 0
      %p421 = por %p419, %p420
      %p422 = scmp.ne.s32.totalorder %s414, %s416
      %p423 = scmp.eq.s32.totalorder %s39, 1
      %p424 = por %p422, %p423
      %p425 = scmp.ne.s32.totalorder %s416, %s417
      %p426 = scmp.eq.s32.totalorder %s39, 0
      %p427 = por %p425, %p426
      %p428 = scmp.ne.s32.totalorder %s416, %s417
      %p429 = scmp.eq.s32.totalorder %s40, 1
      %p430 = por %p428, %p429
      %p432 = scmp.ne.s32.totalorder %s417, %s431
      %p433 = scmp.eq.s32.totalorder %s40, 0
      %p434 = por %p432, %p433
      %s436 = sadd.s32 %s435, 1
      %p439 = scmp.eq.s32.totalorder %s34, 1
      %p440 = scmp.ne.s32.totalorder %s435, %s437
      %p441 = scmp.eq.s32.totalorder %s34, 0
      %p442 = por %p440, %p441
      %p443 = scmp.ne.s32.totalorder %s435, %s437
      %p444 = scmp.eq.s32.totalorder %s39, 1
      %p445 = por %p443, %p444
      %p446 = scmp.ne.s32.totalorder %s437, %s438
      %p447 = scmp.eq.s32.totalorder %s39, 0
      %p448 = por %p446, %p447
      %p449 = scmp.ne.s32.totalorder %s437, %s438
      %p450 = scmp.eq.s32.totalorder %s40, 1
      %p451 = por %p449, %p450
      %p453 = scmp.ne.s32.totalorder %s438, %s452
      %p454 = scmp.eq.s32.totalorder %s40, 0
      %p455 = por %p453, %p454
      %s457 = sadd.s32 %s456, 1
      %p460 = scmp.eq.s32.totalorder %s34, 1
      %p461 = scmp.ne.s32.totalorder %s456, %s458
      %p462 = scmp.eq.s32.totalorder %s34, 0
      %p463 = por %p461, %p462
      %p464 = scmp.ne.s32.totalorder %s456, %s458
      %p465 = scmp.eq.s32.totalorder %s39, 1
      %p466 = por %p464, %p465
      %p467 = scmp.ne.s32.totalorder %s458, %s459
      %p468 = scmp.eq.s32.totalorder %s39, 0
      %p469 = por %p467, %p468
      %p470 = scmp.ne.s32.totalorder %s458, %s459
      %p471 = scmp.eq.s32.totalorder %s40, 1
      %p472 = por %p470, %p471
      %p474 = scmp.ne.s32.totalorder %s459, %s473
      %p475 = scmp.eq.s32.totalorder %s40, 0
      %p476 = por %p474, %p475
      %s478 = sadd.s32 %s477, 1
      %p481 = scmp.eq.s32.totalorder %s34, 1
      %p482 = scmp.ne.s32.totalorder %s477, %s479
      %p483 = scmp.eq.s32.totalorder %s34, 0
      %p484 = por %p482, %p483
      %p485 = scmp.ne.s32.totalorder %s477, %s479
      %p486 = scmp.eq.s32.totalorder %s39, 1
      %p487 = por %p485, %p486
      %p488 = scmp.ne.s32.totalorder %s479, %s480
      %p489 = scmp.eq.s32.totalorder %s39, 0
      %p490 = por %p488, %p489
      %p491 = scmp.ne.s32.totalorder %s479, %s480
      %p492 = scmp.eq.s32.totalorder %s40, 1
      %p493 = por %p491, %p492
      %p495 = scmp.ne.s32.totalorder %s480, %s494
      %p496 = scmp.eq.s32.totalorder %s40, 0
      %p497 = por %p495, %p496
      %s498 = ssub.s32 %s34, %s41
      %p499 = scmp.eq.s32.totalorder %s498, 0
      %s501 = sadd.s32 %s500, 1
      %s502 = scalar_select %p499, %s500, %s501
      %p505 = pneg %p499
      %p506 = scmp.eq.s32.totalorder %s34, 1
      %p507 = por %p505, %p506
      %p508 = scmp.ne.s32.totalorder %s500, %s503
      %p509 = scmp.eq.s32.totalorder %s34, 0
      %p510 = por %p508, %p509
      %p511 = scmp.ne.s32.totalorder %s500, %s503
      %p512 = scmp.eq.s32.totalorder %s39, 1
      %p513 = por %p511, %p512
      %p514 = scmp.ne.s32.totalorder %s503, %s504
      %p515 = scmp.eq.s32.totalorder %s39, 0
      %p516 = por %p514, %p515
      %p517 = scmp.ne.s32.totalorder %s503, %s504
      %p518 = scmp.eq.s32.totalorder %s40, 1
      %p519 = por %p517, %p518
      %p521 = scmp.ne.s32.totalorder %s504, %s520
      %p522 = scmp.eq.s32.totalorder %s40, 0
      %p523 = por %p521, %p522
      %p524 = scmp.le.s32.totalorder 1, %s34
      %p525 = scmp.lt.s32.totalorder %s34, 3
      %p526 = pnand %p524, %p525
      %p527 = pneg %p526
      // Predicated region
      $region9: #{tpu_custom_call.1} parent=5 // pred_check
        _
      $region10: #{tpu_custom_call.1} parent=5 // pred_check_branch
        %529 = sbr.rel (%p526) target = $region12
      $region11: #{tpu_custom_call.1} parent=5 // pred_region
        %s530 = ssub.s32 %s34, 1
        // Predicated region
        $region13: #{tpu_custom_call.1} parent=11 // pred_check
          %p531 = pneg %p133
        $region14: #{tpu_custom_call.1} parent=11 // pred_check_branch
          %533 = sbr.rel (%p531) target = $region16
        $region15: #{tpu_custom_call.1} parent=11 // pred_region
          _
        $region16: #{tpu_custom_call.1} parent=11 // pred_fallthru
          _
        // Predicated region
        $region17: #{tpu_custom_call.1} parent=11 // pred_check
          %p534 = pneg %p154
        $region18: #{tpu_custom_call.1} parent=11 // pred_check_branch
          %536 = sbr.rel (%p534) target = $region20
        $region19: #{tpu_custom_call.1} parent=11 // pred_region
          _
        $region20: #{tpu_custom_call.1} parent=11 // pred_fallthru
          _
        // Predicated region
        $region21: #{tpu_custom_call.1} parent=11 // pred_check
          %p537 = pneg %p175
        $region22: #{tpu_custom_call.1} parent=11 // pred_check_branch
          %539 = sbr.rel (%p537) target = $region24
        $region23: #{tpu_custom_call.1} parent=11 // pred_region
          _
        $region24: #{tpu_custom_call.1} parent=11 // pred_fallthru
          _
        // Predicated region
        $region25: #{tpu_custom_call.1} parent=11 // pred_check
          %p540 = pneg %p196
        $region26: #{tpu_custom_call.1} parent=11 // pred_check_branch
          %542 = sbr.rel (%p540) target = $region28
        $region27: #{tpu_custom_call.1} parent=11 // pred_region
          _
        $region28: #{tpu_custom_call.1} parent=11 // pred_fallthru
          _
        // Predicated region
        $region29: #{tpu_custom_call.1} parent=11 // pred_check
          %p543 = pneg %p217
        $region30: #{tpu_custom_call.1} parent=11 // pred_check_branch
          %545 = sbr.rel (%p543) target = $region32
        $region31: #{tpu_custom_call.1} parent=11 // pred_region
          _
        $region32: #{tpu_custom_call.1} parent=11 // pred_fallthru
          _
        // Predicated region
        $region33: #{tpu_custom_call.1} parent=11 // pred_check
          %p546 = pneg %p238
        $region34: #{tpu_custom_call.1} parent=11 // pred_check_branch
          %548 = sbr.rel (%p546) target = $region36
        $region35: #{tpu_custom_call.1} parent=11 // pred_region
          _
        $region36: #{tpu_custom_call.1} parent=11 // pred_fallthru
          _
        // Predicated region
        $region37: #{tpu_custom_call.1} parent=11 // pred_check
          %p549 = pneg %p259
        $region38: #{tpu_custom_call.1} parent=11 // pred_check_branch
          %551 = sbr.rel (%p549) target = $region40
        $region39: #{tpu_custom_call.1} parent=11 // pred_region
          _
        $region40: #{tpu_custom_call.1} parent=11 // pred_fallthru
          _
        // Predicated region
        $region41: #{tpu_custom_call.1} parent=11 // pred_check
          %p552 = pneg %p280
        $region42: #{tpu_custom_call.1} parent=11 // pred_check_branch
          %554 = sbr.rel (%p552) target = $region44
        $region43: #{tpu_custom_call.1} parent=11 // pred_region
          _
        $region44: #{tpu_custom_call.1} parent=11 // pred_fallthru
          _
        // Predicated region
        $region45: #{tpu_custom_call.1} parent=11 // pred_check
          %p555 = pneg %p301
        $region46: #{tpu_custom_call.1} parent=11 // pred_check_branch
          %557 = sbr.rel (%p555) target = $region48
        $region47: #{tpu_custom_call.1} parent=11 // pred_region
          _
        $region48: #{tpu_custom_call.1} parent=11 // pred_fallthru
          _
        // Predicated region
        $region49: #{tpu_custom_call.1} parent=11 // pred_check
          %p558 = pneg %p322
        $region50: #{tpu_custom_call.1} parent=11 // pred_check_branch
          %560 = sbr.rel (%p558) target = $region52
        $region51: #{tpu_custom_call.1} parent=11 // pred_region
          _
        $region52: #{tpu_custom_call.1} parent=11 // pred_fallthru
          _
        // Predicated region
        $region53: #{tpu_custom_call.1} parent=11 // pred_check
          %p561 = pneg %p343
        $region54: #{tpu_custom_call.1} parent=11 // pred_check_branch
          %563 = sbr.rel (%p561) target = $region56
        $region55: #{tpu_custom_call.1} parent=11 // pred_region
          _
        $region56: #{tpu_custom_call.1} parent=11 // pred_fallthru
          _
        // Predicated region
        $region57: #{tpu_custom_call.1} parent=11 // pred_check
          %p564 = pneg %p364
        $region58: #{tpu_custom_call.1} parent=11 // pred_check_branch
          %566 = sbr.rel (%p564) target = $region60
        $region59: #{tpu_custom_call.1} parent=11 // pred_region
          _
        $region60: #{tpu_custom_call.1} parent=11 // pred_fallthru
          _
        // Predicated region
        $region61: #{tpu_custom_call.1} parent=11 // pred_check
          %p567 = pneg %p385
        $region62: #{tpu_custom_call.1} parent=11 // pred_check_branch
          %569 = sbr.rel (%p567) target = $region64
        $region63: #{tpu_custom_call.1} parent=11 // pred_region
          _
        $region64: #{tpu_custom_call.1} parent=11 // pred_fallthru
          _
        // Predicated region
        $region65: #{tpu_custom_call.1} parent=11 // pred_check
          %p570 = pneg %p406
        $region66: #{tpu_custom_call.1} parent=11 // pred_check_branch
          %572 = sbr.rel (%p570) target = $region68
        $region67: #{tpu_custom_call.1} parent=11 // pred_region
          _
        $region68: #{tpu_custom_call.1} parent=11 // pred_fallthru
          _
        // Predicated region
        $region69: #{tpu_custom_call.1} parent=11 // pred_check
          %p573 = pneg %p427
        $region70: #{tpu_custom_call.1} parent=11 // pred_check_branch
          %575 = sbr.rel (%p573) target = $region72
        $region71: #{tpu_custom_call.1} parent=11 // pred_region
          _
        $region72: #{tpu_custom_call.1} parent=11 // pred_fallthru
          _
        // Predicated region
        $region73: #{tpu_custom_call.1} parent=11 // pred_check
          %p576 = pneg %p448
        $region74: #{tpu_custom_call.1} parent=11 // pred_check_branch
          %578 = sbr.rel (%p576) target = $region76
        $region75: #{tpu_custom_call.1} parent=11 // pred_region
          _
        $region76: #{tpu_custom_call.1} parent=11 // pred_fallthru
          _
        // Predicated region
        $region77: #{tpu_custom_call.1} parent=11 // pred_check
          %p579 = pneg %p469
        $region78: #{tpu_custom_call.1} parent=11 // pred_check_branch
          %581 = sbr.rel (%p579) target = $region80
        $region79: #{tpu_custom_call.1} parent=11 // pred_region
          _
        $region80: #{tpu_custom_call.1} parent=11 // pred_fallthru
          _
        // Predicated region
        $region81: #{tpu_custom_call.1} parent=11 // pred_check
          %p582 = pneg %p490
        $region82: #{tpu_custom_call.1} parent=11 // pred_check_branch
          %584 = sbr.rel (%p582) target = $region84
        $region83: #{tpu_custom_call.1} parent=11 // pred_region
          _
        $region84: #{tpu_custom_call.1} parent=11 // pred_fallthru
          _
      $region12: #{tpu_custom_call.1} parent=5 // pred_fallthru
        _
      %p585 = scmp.lt.s32.totalorder %s34, 2
      // Predicated region
      $region85: #{tpu_custom_call.1} parent=5 // pred_check
        %p586 = pneg %p585
      $region86: #{tpu_custom_call.1} parent=5 // pred_check_branch
        %588 = sbr.rel (%p586) target = $region88
      $region87: #{tpu_custom_call.1} parent=5 // pred_region
        // Predicated region
        $region89: #{tpu_custom_call.1} parent=87 // pred_check
          %p589 = pneg %p54
        $region90: #{tpu_custom_call.1} parent=87 // pred_check_branch
          %591 = sbr.rel (%p589) target = $region92
        $region91: #{tpu_custom_call.1} parent=87 // pred_region
          %s592 = smul.u32 32, %s34
          %p593 = scmp.lt.s32.totalorder %s592, 63
          %s594 = scalar_select %p593, %s592, 63
          %s595 = smul.addr %s594, 8
          %s596 = scalar_lea.vmem %s0, %s595
          %s597 = smul.u32 32, %s34
        $region92: #{tpu_custom_call.1} parent=87 // pred_fallthru
          _
        // Predicated region
        $region93: #{tpu_custom_call.1} parent=87 // pred_check
          %p598 = pneg %p80
        $region94: #{tpu_custom_call.1} parent=87 // pred_check_branch
          %600 = sbr.rel (%p598) target = $region96
        $region95: #{tpu_custom_call.1} parent=87 // pred_region
          %s601 = smul.u32 32, %s34
          %p602 = scmp.lt.s32.totalorder %s601, 63
          %s603 = scalar_select %p602, %s601, 63
          %s604 = smul.addr %s603, 8
          %s605 = scalar_lea.vmem %s1, %s604
          %s606 = smul.u32 32, %s34
        $region96: #{tpu_custom_call.1} parent=87 // pred_fallthru
          _
        // Predicated region
        $region97: #{tpu_custom_call.1} parent=87 // pred_check
          %p607 = pneg %p106
        $region98: #{tpu_custom_call.1} parent=87 // pred_check_branch
          %609 = sbr.rel (%p607) target = $region100
        $region99: #{tpu_custom_call.1} parent=87 // pred_region
          %s610 = smul.u32 32, %s34
          %p611 = scmp.lt.s32.totalorder %s610, 63
          %s612 = scalar_select %p611, %s610, 63
          %s613 = smul.addr %s612, 8
          %s614 = scalar_lea.vmem %s2, %s613
          %s615 = smul.u32 32, %s34
        $region100: #{tpu_custom_call.1} parent=87 // pred_fallthru
          _
      $region88: #{tpu_custom_call.1} parent=5 // pred_fallthru
        _
      %p616 = scmp.le.s32.totalorder 1, %s34
      %p617 = scmp.lt.s32.totalorder %s34, 3
      %p618 = pnand %p616, %p617
      %p619 = pneg %p618
      // Predicated region
      $region101: #{tpu_custom_call.1} parent=5 // pred_check
        _
      $region102: #{tpu_custom_call.1} parent=5 // pred_check_branch
        %621 = sbr.rel (%p618) target = $region104
      $region103: #{tpu_custom_call.1} parent=5 // pred_region
        %s622 = ssub.s32 %s34, 1
        %s623 = smul.u32 32, %s39
        %p624 = scmp.lt.s32.totalorder %s623, 63
        %s625 = scalar_select %p624, %s623, 63
        %s626 = smul.addr %s625, 8
        %s627 = scalar_lea.vmem %s0, %s626
        %p628 = pneg %p60
        %p629 = pneg %p57
        %s630 = smul.u32 32, %s39
        %p631 = scmp.lt.s32.totalorder %s630, 63
        %s632 = scalar_select %p631, %s630, 63
        %s633 = smul.addr %s632, 8
        %s634 = scalar_lea.vmem %s1, %s633
        %p635 = pneg %p86
        %p636 = pneg %p83
        %s637 = smul.u32 32, %s39
        %p638 = scmp.lt.s32.totalorder %s637, 63
        %s639 = scalar_select %p638, %s637, 63
        %s640 = smul.addr %s639, 8
        %s641 = scalar_lea.vmem %s2, %s640
        %p642 = pneg %p112
        %p643 = pneg %p109
        %p644 = pneg %p133
        %p645 = pneg %p130
        %p646 = pneg %p154
        %p647 = pneg %p151
        %p648 = pneg %p175
        %p649 = pneg %p172
        %p650 = pneg %p196
        %p651 = pneg %p193
        %p652 = pneg %p217
        %p653 = pneg %p214
        %p654 = pneg %p238
        %p655 = pneg %p235
        %p656 = pneg %p259
        %p657 = pneg %p256
        %p658 = pneg %p280
        %p659 = pneg %p277
        %p660 = pneg %p301
        %p661 = pneg %p298
        %p662 = pneg %p322
        %p663 = pneg %p319
        %p664 = pneg %p343
        %p665 = pneg %p340
        %p666 = pneg %p364
        %p667 = pneg %p361
        %p668 = pneg %p385
        %p669 = pneg %p382
        %p670 = pneg %p406
        %p671 = pneg %p403
        %p672 = pneg %p427
        %p673 = pneg %p424
        %p674 = pneg %p448
        %p675 = pneg %p445
        %p676 = pneg %p469
        %p677 = pneg %p466
        %p678 = pneg %p490
        %p679 = pneg %p487
        %p680 = pneg %p516
        %p681 = pneg %p513
        %s682 = sand.u32 %s503, 1
        %s683 = scalar_lea.sflag [#allocation5], %s682
        %s684 = sand.u32 %s503, 1
        %s685 = smul.addr %s684, 2
        %s686 = scalar_lea.vmem [#allocation4], %s685
        %s687 = smul.u32 32, %s39
        %p688 = scmp.lt.s32.totalorder %s687, 63
        %s689 = scalar_select %p688, %s687, 63
        %s690 = smul.addr %s689, 8
        %s691 = scalar_lea.vmem %s0, %s690
        %s692 = smul.u32 32, %s39
        %s693 = smul.u32 32, %s39
        %p694 = scmp.lt.s32.totalorder %s693, 63
        %s695 = scalar_select %p694, %s693, 63
        %s696 = smul.addr %s695, 8
        %s697 = scalar_lea.vmem %s1, %s696
        %s698 = smul.u32 32, %s39
        %s699 = smul.u32 32, %s39
        %p700 = scmp.lt.s32.totalorder %s699, 63
        %s701 = scalar_select %p700, %s699, 63
        %s702 = smul.addr %s701, 8
        %s703 = scalar_lea.vmem %s2, %s702
        %s704 = smul.u32 32, %s39
        %s705 = smul.u32 2, %s39
        %v707 = vld [vmem:[%s697] sm:$0xff]
        %v708 = vld [vmem:[%s697 + $0x8] sm:$0xff]
        %v709 = vld [vmem:[%s697 + $0x10] sm:$0xff]
        %v710 = vld [vmem:[%s697 + $0x18] sm:$0xff]
        %v711 = vld [vmem:[%s697 + $0x20] sm:$0xff]
        %v712 = vld [vmem:[%s697 + $0x28] sm:$0xff]
        %v713 = vld [vmem:[%s697 + $0x30] sm:$0xff]
        %v714 = vld [vmem:[%s697 + $0x38] sm:$0xff]
        %v715 = vld [vmem:[%s697 + $0x40] sm:$0xff]
        %v716 = vld [vmem:[%s697 + $0x48] sm:$0xff]
        %v717 = vld [vmem:[%s697 + $0x50] sm:$0xff]
        %v718 = vld [vmem:[%s697 + $0x58] sm:$0xff]
        %v719 = vld [vmem:[%s697 + $0x60] sm:$0xff]
        %v720 = vld [vmem:[%s697 + $0x68] sm:$0xff]
        %v721 = vld [vmem:[%s697 + $0x70] sm:$0xff]
        %v722 = vld [vmem:[%s697 + $0x78] sm:$0xff]
        %v723 = vld [vmem:[%s697 + $0x80] sm:$0xff]
        %v724 = vld [vmem:[%s697 + $0x88] sm:$0xff]
        %v725 = vld [vmem:[%s697 + $0x90] sm:$0xff]
        %v726 = vld [vmem:[%s697 + $0x98] sm:$0xff]
        %v727 = vld [vmem:[%s697 + $0xa0] sm:$0xff]
        %v728 = vld [vmem:[%s697 + $0xa8] sm:$0xff]
        %v729 = vld [vmem:[%s697 + $0xb0] sm:$0xff]
        %v730 = vld [vmem:[%s697 + $0xb8] sm:$0xff]
        %v731 = vld [vmem:[%s697 + $0xc0] sm:$0xff]
        %v732 = vld [vmem:[%s697 + $0xc8] sm:$0xff]
        %v733 = vld [vmem:[%s697 + $0xd0] sm:$0xff]
        %v734 = vld [vmem:[%s697 + $0xd8] sm:$0xff]
        %v735 = vld [vmem:[%s697 + $0xe0] sm:$0xff]
        %v736 = vld [vmem:[%s697 + $0xe8] sm:$0xff]
        %v737 = vld [vmem:[%s697 + $0xf0] sm:$0xff]
        %v738 = vld [vmem:[%s697 + $0xf8] sm:$0xff]
        %v739 = vld [vmem:[%s691] sm:$0xff]
        %v740 = vld [vmem:[%s691 + $0x8] sm:$0xff]
        %v741 = vld [vmem:[%s691 + $0x10] sm:$0xff]
        %v742 = vld [vmem:[%s691 + $0x18] sm:$0xff]
        %v743 = vld [vmem:[%s691 + $0x20] sm:$0xff]
        %v744 = vld [vmem:[%s691 + $0x28] sm:$0xff]
        %v745 = vld [vmem:[%s691 + $0x30] sm:$0xff]
        %v746 = vld [vmem:[%s691 + $0x38] sm:$0xff]
        %v747 = vld [vmem:[%s691 + $0x40] sm:$0xff]
        %v748 = vld [vmem:[%s691 + $0x48] sm:$0xff]
        %v749 = vld [vmem:[%s691 + $0x50] sm:$0xff]
        %v750 = vld [vmem:[%s691 + $0x58] sm:$0xff]
        %v751 = vld [vmem:[%s691 + $0x60] sm:$0xff]
        %v752 = vld [vmem:[%s691 + $0x68] sm:$0xff]
        %v753 = vld [vmem:[%s691 + $0x70] sm:$0xff]
        %v754 = vld [vmem:[%s691 + $0x78] sm:$0xff]
        %v755 = vld [vmem:[%s691 + $0x80] sm:$0xff]
        %v756 = vld [vmem:[%s691 + $0x88] sm:$0xff]
        %v757 = vld [vmem:[%s691 + $0x90] sm:$0xff]
        %v758 = vld [vmem:[%s691 + $0x98] sm:$0xff]
        %v759 = vld [vmem:[%s691 + $0xa0] sm:$0xff]
        %v760 = vld [vmem:[%s691 + $0xa8] sm:$0xff]
        %v761 = vld [vmem:[%s691 + $0xb0] sm:$0xff]
        %v762 = vld [vmem:[%s691 + $0xb8] sm:$0xff]
        %v763 = vld [vmem:[%s691 + $0xc0] sm:$0xff]
        %v764 = vld [vmem:[%s691 + $0xc8] sm:$0xff]
        %v765 = vld [vmem:[%s691 + $0xd0] sm:$0xff]
        %v766 = vld [vmem:[%s691 + $0xd8] sm:$0xff]
        %v767 = vld [vmem:[%s691 + $0xe0] sm:$0xff]
        %v768 = vld [vmem:[%s691 + $0xe8] sm:$0xff]
        %v769 = vld [vmem:[%s691 + $0xf0] sm:$0xff]
        %v770 = vld [vmem:[%s691 + $0xf8] sm:$0xff]
        %v771 = vld [vmem:[%s3] sm:$0x1]
        %v772 = vld [vmem:[%s4] sm:$0x1]
        %773 = vadd.xlane.f32.xlu0 %v739
        %v774 = vpop.xlane.xlu0 %773
        %775 = vadd.xlane.f32.xlu0 %v740
        %v776 = vpop.xlane.xlu0 %775
        %777 = vadd.xlane.f32.xlu0 %v741
        %v778 = vpop.xlane.xlu0 %777
        %779 = vadd.xlane.f32.xlu0 %v742
        %v780 = vpop.xlane.xlu0 %779
        %781 = vadd.xlane.f32.xlu0 %v743
        %v782 = vpop.xlane.xlu0 %781
        %783 = vadd.xlane.f32.xlu0 %v744
        %v784 = vpop.xlane.xlu0 %783
        %785 = vadd.xlane.f32.xlu0 %v745
        %v786 = vpop.xlane.xlu0 %785
        %787 = vadd.xlane.f32.xlu0 %v746
        %v788 = vpop.xlane.xlu0 %787
        %789 = vadd.xlane.f32.xlu0 %v747
        %v790 = vpop.xlane.xlu0 %789
        %791 = vadd.xlane.f32.xlu0 %v748
        %v792 = vpop.xlane.xlu0 %791
        %793 = vadd.xlane.f32.xlu0 %v749
        %v794 = vpop.xlane.xlu0 %793
        %795 = vadd.xlane.f32.xlu0 %v750
        %v796 = vpop.xlane.xlu0 %795
        %797 = vadd.xlane.f32.xlu0 %v751
        %v798 = vpop.xlane.xlu0 %797
        %799 = vadd.xlane.f32.xlu0 %v752
        %v800 = vpop.xlane.xlu0 %799
        %801 = vadd.xlane.f32.xlu0 %v753
        %v802 = vpop.xlane.xlu0 %801
        %803 = vadd.xlane.f32.xlu0 %v754
        %v804 = vpop.xlane.xlu0 %803
        %805 = vadd.xlane.f32.xlu0 %v755
        %v806 = vpop.xlane.xlu0 %805
        %807 = vadd.xlane.f32.xlu0 %v756
        %v808 = vpop.xlane.xlu0 %807
        %809 = vadd.xlane.f32.xlu0 %v757
        %v810 = vpop.xlane.xlu0 %809
        %811 = vadd.xlane.f32.xlu0 %v758
        %v812 = vpop.xlane.xlu0 %811
        %813 = vadd.xlane.f32.xlu0 %v759
        %v814 = vpop.xlane.xlu0 %813
        %815 = vadd.xlane.f32.xlu0 %v760
        %v816 = vpop.xlane.xlu0 %815
        %817 = vadd.xlane.f32.xlu0 %v761
        %v818 = vpop.xlane.xlu0 %817
        %819 = vadd.xlane.f32.xlu0 %v762
        %v820 = vpop.xlane.xlu0 %819
        %821 = vadd.xlane.f32.xlu0 %v763
        %v822 = vpop.xlane.xlu0 %821
        %823 = vadd.xlane.f32.xlu0 %v764
        %v824 = vpop.xlane.xlu0 %823
        %825 = vadd.xlane.f32.xlu0 %v765
        %v826 = vpop.xlane.xlu0 %825
        %827 = vadd.xlane.f32.xlu0 %v766
        %v828 = vpop.xlane.xlu0 %827
        %829 = vadd.xlane.f32.xlu0 %v767
        %v830 = vpop.xlane.xlu0 %829
        %831 = vadd.xlane.f32.xlu0 %v768
        %v832 = vpop.xlane.xlu0 %831
        %833 = vadd.xlane.f32.xlu0 %v769
        %v834 = vpop.xlane.xlu0 %833
        %835 = vadd.xlane.f32.xlu0 %v770
        %v836 = vpop.xlane.xlu0 %835
        %v837 = vrcp.pop 128.0
        %v838 = vmul.f32 %v774, %v837
        %v839 = vmul.f32 %v776, %v837
        %v840 = vmul.f32 %v778, %v837
        %v841 = vmul.f32 %v780, %v837
        %v842 = vmul.f32 %v782, %v837
        %v843 = vmul.f32 %v784, %v837
        %v844 = vmul.f32 %v786, %v837
        %v845 = vmul.f32 %v788, %v837
        %v846 = vmul.f32 %v790, %v837
        %v847 = vmul.f32 %v792, %v837
        %v848 = vmul.f32 %v794, %v837
        %v849 = vmul.f32 %v796, %v837
        %v850 = vmul.f32 %v798, %v837
        %v851 = vmul.f32 %v800, %v837
        %v852 = vmul.f32 %v802, %v837
        %v853 = vmul.f32 %v804, %v837
        %v854 = vmul.f32 %v806, %v837
        %v855 = vmul.f32 %v808, %v837
        %v856 = vmul.f32 %v810, %v837
        %v857 = vmul.f32 %v812, %v837
        %v858 = vmul.f32 %v814, %v837
        %v859 = vmul.f32 %v816, %v837
        %v860 = vmul.f32 %v818, %v837
        %v861 = vmul.f32 %v820, %v837
        %v862 = vmul.f32 %v822, %v837
        %v863 = vmul.f32 %v824, %v837
        %v864 = vmul.f32 %v826, %v837
        %v865 = vmul.f32 %v828, %v837
        %v866 = vmul.f32 %v830, %v837
        %v867 = vmul.f32 %v832, %v837
        %v868 = vmul.f32 %v834, %v837
        %v869 = vmul.f32 %v836, %v837
        %v870 = vsub.f32 %v739, %v838
        %v871 = vsub.f32 %v740, %v839
        %v872 = vsub.f32 %v741, %v840
        %v873 = vsub.f32 %v742, %v841
        %v874 = vsub.f32 %v743, %v842
        %v875 = vsub.f32 %v744, %v843
        %v876 = vsub.f32 %v745, %v844
        %v877 = vsub.f32 %v746, %v845
        %v878 = vsub.f32 %v747, %v846
        %v879 = vsub.f32 %v748, %v847
        %v880 = vsub.f32 %v749, %v848
        %v881 = vsub.f32 %v750, %v849
        %v882 = vsub.f32 %v751, %v850
        %v883 = vsub.f32 %v752, %v851
        %v884 = vsub.f32 %v753, %v852
        %v885 = vsub.f32 %v754, %v853
        %v886 = vsub.f32 %v755, %v854
        %v887 = vsub.f32 %v756, %v855
        %v888 = vsub.f32 %v757, %v856
        %v889 = vsub.f32 %v758, %v857
        %v890 = vsub.f32 %v759, %v858
        %v891 = vsub.f32 %v760, %v859
        %v892 = vsub.f32 %v761, %v860
        %v893 = vsub.f32 %v762, %v861
        %v894 = vsub.f32 %v763, %v862
        %v895 = vsub.f32 %v764, %v863
        %v896 = vsub.f32 %v765, %v864
        %v897 = vsub.f32 %v766, %v865
        %v898 = vsub.f32 %v767, %v866
        %v899 = vsub.f32 %v768, %v867
        %v900 = vsub.f32 %v769, %v868
        %v901 = vsub.f32 %v770, %v869
        %v902 = vmul.f32 %v870, %v870
        %v903 = vmul.f32 %v871, %v871
        %v904 = vmul.f32 %v872, %v872
        %v905 = vmul.f32 %v873, %v873
        %v906 = vmul.f32 %v874, %v874
        %v907 = vmul.f32 %v875, %v875
        %v908 = vmul.f32 %v876, %v876
        %v909 = vmul.f32 %v877, %v877
        %v910 = vmul.f32 %v878, %v878
        %v911 = vmul.f32 %v879, %v879
        %v912 = vmul.f32 %v880, %v880
        %v913 = vmul.f32 %v881, %v881
        %v914 = vmul.f32 %v882, %v882
        %v915 = vmul.f32 %v883, %v883
        %v916 = vmul.f32 %v884, %v884
        %v917 = vmul.f32 %v885, %v885
        %v918 = vmul.f32 %v886, %v886
        %v919 = vmul.f32 %v887, %v887
        %v920 = vmul.f32 %v888, %v888
        %v921 = vmul.f32 %v889, %v889
        %v922 = vmul.f32 %v890, %v890
        %v923 = vmul.f32 %v891, %v891
        %v924 = vmul.f32 %v892, %v892
        %v925 = vmul.f32 %v893, %v893
        %v926 = vmul.f32 %v894, %v894
        %v927 = vmul.f32 %v895, %v895
        %v928 = vmul.f32 %v896, %v896
        %v929 = vmul.f32 %v897, %v897
        %v930 = vmul.f32 %v898, %v898
        %v931 = vmul.f32 %v899, %v899
        %v932 = vmul.f32 %v900, %v900
        %v933 = vmul.f32 %v901, %v901
        %934 = vadd.xlane.f32.xlu0 %v902
        %v935 = vpop.xlane.xlu0 %934
        %936 = vadd.xlane.f32.xlu0 %v903
        %v937 = vpop.xlane.xlu0 %936
        %938 = vadd.xlane.f32.xlu0 %v904
        %v939 = vpop.xlane.xlu0 %938
        %940 = vadd.xlane.f32.xlu0 %v905
        %v941 = vpop.xlane.xlu0 %940
        %942 = vadd.xlane.f32.xlu0 %v906
        %v943 = vpop.xlane.xlu0 %942
        %944 = vadd.xlane.f32.xlu0 %v907
        %v945 = vpop.xlane.xlu0 %944
        %946 = vadd.xlane.f32.xlu0 %v908
        %v947 = vpop.xlane.xlu0 %946
        %948 = vadd.xlane.f32.xlu0 %v909
        %v949 = vpop.xlane.xlu0 %948
        %950 = vadd.xlane.f32.xlu0 %v910
        %v951 = vpop.xlane.xlu0 %950
        %952 = vadd.xlane.f32.xlu0 %v911
        %v953 = vpop.xlane.xlu0 %952
        %954 = vadd.xlane.f32.xlu0 %v912
        %v955 = vpop.xlane.xlu0 %954
        %956 = vadd.xlane.f32.xlu0 %v913
        %v957 = vpop.xlane.xlu0 %956
        %958 = vadd.xlane.f32.xlu0 %v914
        %v959 = vpop.xlane.xlu0 %958
        %960 = vadd.xlane.f32.xlu0 %v915
        %v961 = vpop.xlane.xlu0 %960
        %962 = vadd.xlane.f32.xlu0 %v916
        %v963 = vpop.xlane.xlu0 %962
        %964 = vadd.xlane.f32.xlu0 %v917
        %v965 = vpop.xlane.xlu0 %964
        %966 = vadd.xlane.f32.xlu0 %v918
        %v967 = vpop.xlane.xlu0 %966
        %968 = vadd.xlane.f32.xlu0 %v919
        %v969 = vpop.xlane.xlu0 %968
        %970 = vadd.xlane.f32.xlu0 %v920
        %v971 = vpop.xlane.xlu0 %970
        %972 = vadd.xlane.f32.xlu0 %v921
        %v973 = vpop.xlane.xlu0 %972
        %974 = vadd.xlane.f32.xlu0 %v922
        %v975 = vpop.xlane.xlu0 %974
        %976 = vadd.xlane.f32.xlu0 %v923
        %v977 = vpop.xlane.xlu0 %976
        %978 = vadd.xlane.f32.xlu0 %v924
        %v979 = vpop.xlane.xlu0 %978
        %980 = vadd.xlane.f32.xlu0 %v925
        %v981 = vpop.xlane.xlu0 %980
        %982 = vadd.xlane.f32.xlu0 %v926
        %v983 = vpop.xlane.xlu0 %982
        %984 = vadd.xlane.f32.xlu0 %v927
        %v985 = vpop.xlane.xlu0 %984
        %986 = vadd.xlane.f32.xlu0 %v928
        %v987 = vpop.xlane.xlu0 %986
        %988 = vadd.xlane.f32.xlu0 %v929
        %v989 = vpop.xlane.xlu0 %988
        %990 = vadd.xlane.f32.xlu0 %v930
        %v991 = vpop.xlane.xlu0 %990
        %992 = vadd.xlane.f32.xlu0 %v931
        %v993 = vpop.xlane.xlu0 %992
        %994 = vadd.xlane.f32.xlu0 %v932
        %v995 = vpop.xlane.xlu0 %994
        %996 = vadd.xlane.f32.xlu0 %v933
        %v997 = vpop.xlane.xlu0 %996
        %v998 = vmul.f32 %v935, %v837
        %v999 = vmul.f32 %v937, %v837
        %v1000 = vmul.f32 %v939, %v837
        %v1001 = vmul.f32 %v941, %v837
        %v1002 = vmul.f32 %v943, %v837
        %v1003 = vmul.f32 %v945, %v837
        %v1004 = vmul.f32 %v947, %v837
        %v1005 = vmul.f32 %v949, %v837
        %v1006 = vmul.f32 %v951, %v837
        %v1007 = vmul.f32 %v953, %v837
        %v1008 = vmul.f32 %v955, %v837
        %v1009 = vmul.f32 %v957, %v837
        %v1010 = vmul.f32 %v959, %v837
        %v1011 = vmul.f32 %v961, %v837
        %v1012 = vmul.f32 %v963, %v837
        %v1013 = vmul.f32 %v965, %v837
        %v1014 = vmul.f32 %v967, %v837
        %v1015 = vmul.f32 %v969, %v837
        %v1016 = vmul.f32 %v971, %v837
        %v1017 = vmul.f32 %v973, %v837
        %v1018 = vmul.f32 %v975, %v837
        %v1019 = vmul.f32 %v977, %v837
        %v1020 = vmul.f32 %v979, %v837
        %v1021 = vmul.f32 %v981, %v837
        %v1022 = vmul.f32 %v983, %v837
        %v1023 = vmul.f32 %v985, %v837
        %v1024 = vmul.f32 %v987, %v837
        %v1025 = vmul.f32 %v989, %v837
        %v1026 = vmul.f32 %v991, %v837
        %v1027 = vmul.f32 %v993, %v837
        %v1028 = vmul.f32 %v995, %v837
        %v1029 = vmul.f32 %v997, %v837
        %v1030 = vadd.f32 %v998, 1e-05
        %v1031 = vadd.f32 %v999, 1e-05
        %v1032 = vadd.f32 %v1000, 1e-05
        %v1033 = vadd.f32 %v1001, 1e-05
        %v1034 = vadd.f32 %v1002, 1e-05
        %v1035 = vadd.f32 %v1003, 1e-05
        %v1036 = vadd.f32 %v1004, 1e-05
        %v1037 = vadd.f32 %v1005, 1e-05
        %v1038 = vadd.f32 %v1006, 1e-05
        %v1039 = vadd.f32 %v1007, 1e-05
        %v1040 = vadd.f32 %v1008, 1e-05
        %v1041 = vadd.f32 %v1009, 1e-05
        %v1042 = vadd.f32 %v1010, 1e-05
        %v1043 = vadd.f32 %v1011, 1e-05
        %v1044 = vadd.f32 %v1012, 1e-05
        %v1045 = vadd.f32 %v1013, 1e-05
        %v1046 = vadd.f32 %v1014, 1e-05
        %v1047 = vadd.f32 %v1015, 1e-05
        %v1048 = vadd.f32 %v1016, 1e-05
        %v1049 = vadd.f32 %v1017, 1e-05
        %v1050 = vadd.f32 %v1018, 1e-05
        %v1051 = vadd.f32 %v1019, 1e-05
        %v1052 = vadd.f32 %v1020, 1e-05
        %v1053 = vadd.f32 %v1021, 1e-05
        %v1054 = vadd.f32 %v1022, 1e-05
        %v1055 = vadd.f32 %v1023, 1e-05
        %v1056 = vadd.f32 %v1024, 1e-05
        %v1057 = vadd.f32 %v1025, 1e-05
        %v1058 = vadd.f32 %v1026, 1e-05
        %v1059 = vadd.f32 %v1027, 1e-05
        %v1060 = vadd.f32 %v1028, 1e-05
        %v1061 = vadd.f32 %v1029, 1e-05
        %v1062 = vrsqrt.pop %v1030
        %v1063 = vrsqrt.pop %v1031
        %v1064 = vrsqrt.pop %v1032
        %v1065 = vrsqrt.pop %v1033
        %v1066 = vrsqrt.pop %v1034
        %v1067 = vrsqrt.pop %v1035
        %v1068 = vrsqrt.pop %v1036
        %v1069 = vrsqrt.pop %v1037
        %v1070 = vrsqrt.pop %v1038
        %v1071 = vrsqrt.pop %v1039
        %v1072 = vrsqrt.pop %v1040
        %v1073 = vrsqrt.pop %v1041
        %v1074 = vrsqrt.pop %v1042
        %v1075 = vrsqrt.pop %v1043
        %v1076 = vrsqrt.pop %v1044
        %v1077 = vrsqrt.pop %v1045
        %v1078 = vrsqrt.pop %v1046
        %v1079 = vrsqrt.pop %v1047
        %v1080 = vrsqrt.pop %v1048
        %v1081 = vrsqrt.pop %v1049
        %v1082 = vrsqrt.pop %v1050
        %v1083 = vrsqrt.pop %v1051
        %v1084 = vrsqrt.pop %v1052
        %v1085 = vrsqrt.pop %v1053
        %v1086 = vrsqrt.pop %v1054
        %v1087 = vrsqrt.pop %v1055
        %v1088 = vrsqrt.pop %v1056
        %v1089 = vrsqrt.pop %v1057
        %v1090 = vrsqrt.pop %v1058
        %v1091 = vrsqrt.pop %v1059
        %v1092 = vrsqrt.pop %v1060
        %v1093 = vrsqrt.pop %v1061
        %v1094 = vmul.f32 %v870, %v1062
        %v1095 = vmul.f32 %v871, %v1063
        %v1096 = vmul.f32 %v872, %v1064
        %v1097 = vmul.f32 %v873, %v1065
        %v1098 = vmul.f32 %v874, %v1066
        %v1099 = vmul.f32 %v875, %v1067
        %v1100 = vmul.f32 %v876, %v1068
        %v1101 = vmul.f32 %v877, %v1069
        %v1102 = vmul.f32 %v878, %v1070
        %v1103 = vmul.f32 %v879, %v1071
        %v1104 = vmul.f32 %v880, %v1072
        %v1105 = vmul.f32 %v881, %v1073
        %v1106 = vmul.f32 %v882, %v1074
        %v1107 = vmul.f32 %v883, %v1075
        %v1108 = vmul.f32 %v884, %v1076
        %v1109 = vmul.f32 %v885, %v1077
        %v1110 = vmul.f32 %v886, %v1078
        %v1111 = vmul.f32 %v887, %v1079
        %v1112 = vmul.f32 %v888, %v1080
        %v1113 = vmul.f32 %v889, %v1081
        %v1114 = vmul.f32 %v890, %v1082
        %v1115 = vmul.f32 %v891, %v1083
        %v1116 = vmul.f32 %v892, %v1084
        %v1117 = vmul.f32 %v893, %v1085
        %v1118 = vmul.f32 %v894, %v1086
        %v1119 = vmul.f32 %v895, %v1087
        %v1120 = vmul.f32 %v896, %v1088
        %v1121 = vmul.f32 %v897, %v1089
        %v1122 = vmul.f32 %v898, %v1090
        %v1123 = vmul.f32 %v899, %v1091
        %v1124 = vmul.f32 %v900, %v1092
        %v1125 = vmul.f32 %v901, %v1093
        %v1127 = vlaneseq
        %v1128 = vshrl.u32 %v1127, 7
        %v1129 = vsub.s32 0, %v1128
        %v1130 = vrot.slane %v771, %v1129
        %v1132 = vmul.f32 %v1094, %v1130
        %v1133 = vmul.f32 %v1095, %v1130
        %v1134 = vmul.f32 %v1096, %v1130
        %v1135 = vmul.f32 %v1097, %v1130
        %v1136 = vmul.f32 %v1098, %v1130
        %v1137 = vmul.f32 %v1099, %v1130
        %v1138 = vmul.f32 %v1100, %v1130
        %v1139 = vmul.f32 %v1101, %v1130
        %v1140 = vmul.f32 %v1102, %v1130
        %v1141 = vmul.f32 %v1103, %v1130
        %v1142 = vmul.f32 %v1104, %v1130
        %v1143 = vmul.f32 %v1105, %v1130
        %v1144 = vmul.f32 %v1106, %v1130
        %v1145 = vmul.f32 %v1107, %v1130
        %v1146 = vmul.f32 %v1108, %v1130
        %v1147 = vmul.f32 %v1109, %v1130
        %v1148 = vmul.f32 %v1110, %v1130
        %v1149 = vmul.f32 %v1111, %v1130
        %v1150 = vmul.f32 %v1112, %v1130
        %v1151 = vmul.f32 %v1113, %v1130
        %v1152 = vmul.f32 %v1114, %v1130
        %v1153 = vmul.f32 %v1115, %v1130
        %v1154 = vmul.f32 %v1116, %v1130
        %v1155 = vmul.f32 %v1117, %v1130
        %v1156 = vmul.f32 %v1118, %v1130
        %v1157 = vmul.f32 %v1119, %v1130
        %v1158 = vmul.f32 %v1120, %v1130
        %v1159 = vmul.f32 %v1121, %v1130
        %v1160 = vmul.f32 %v1122, %v1130
        %v1161 = vmul.f32 %v1123, %v1130
        %v1162 = vmul.f32 %v1124, %v1130
        %v1163 = vmul.f32 %v1125, %v1130
        %v1165 = vlaneseq
        %v1166 = vshrl.u32 %v1165, 7
        %v1167 = vsub.s32 0, %v1166
        %v1168 = vrot.slane %v772, %v1167
        %v1170 = vadd.f32 %v1132, %v1168
        %v1171 = vadd.f32 %v1133, %v1168
        %v1172 = vadd.f32 %v1134, %v1168
        %v1173 = vadd.f32 %v1135, %v1168
        %v1174 = vadd.f32 %v1136, %v1168
        %v1175 = vadd.f32 %v1137, %v1168
        %v1176 = vadd.f32 %v1138, %v1168
        %v1177 = vadd.f32 %v1139, %v1168
        %v1178 = vadd.f32 %v1140, %v1168
        %v1179 = vadd.f32 %v1141, %v1168
        %v1180 = vadd.f32 %v1142, %v1168
        %v1181 = vadd.f32 %v1143, %v1168
        %v1182 = vadd.f32 %v1144, %v1168
        %v1183 = vadd.f32 %v1145, %v1168
        %v1184 = vadd.f32 %v1146, %v1168
        %v1185 = vadd.f32 %v1147, %v1168
        %v1186 = vadd.f32 %v1148, %v1168
        %v1187 = vadd.f32 %v1149, %v1168
        %v1188 = vadd.f32 %v1150, %v1168
        %v1189 = vadd.f32 %v1151, %v1168
        %v1190 = vadd.f32 %v1152, %v1168
        %v1191 = vadd.f32 %v1153, %v1168
        %v1192 = vadd.f32 %v1154, %v1168
        %v1193 = vadd.f32 %v1155, %v1168
        %v1194 = vadd.f32 %v1156, %v1168
        %v1195 = vadd.f32 %v1157, %v1168
        %v1196 = vadd.f32 %v1158, %v1168
        %v1197 = vadd.f32 %v1159, %v1168
        %v1198 = vadd.f32 %v1160, %v1168
        %v1199 = vadd.f32 %v1161, %v1168
        %v1200 = vadd.f32 %v1162, %v1168
        %v1201 = vadd.f32 %v1163, %v1168
        %v1202 = vld [vmem:[%s5] sm:$0xff]
        %v1203 = vld [vmem:[%s703] sm:$0xff]
        %v1204 = vld [vmem:[%s703 + $0x8] sm:$0xff]
        %v1205 = vld [vmem:[%s703 + $0x10] sm:$0xff]
        %v1206 = vld [vmem:[%s703 + $0x18] sm:$0xff]
        %v1207 = vld [vmem:[%s703 + $0x20] sm:$0xff]
        %v1208 = vld [vmem:[%s703 + $0x28] sm:$0xff]
        %v1209 = vld [vmem:[%s703 + $0x30] sm:$0xff]
        %v1210 = vld [vmem:[%s703 + $0x38] sm:$0xff]
        %v1211 = vld [vmem:[%s703 + $0x40] sm:$0xff]
        %v1212 = vld [vmem:[%s703 + $0x48] sm:$0xff]
        %v1213 = vld [vmem:[%s703 + $0x50] sm:$0xff]
        %v1214 = vld [vmem:[%s703 + $0x58] sm:$0xff]
        %v1215 = vld [vmem:[%s703 + $0x60] sm:$0xff]
        %v1216 = vld [vmem:[%s703 + $0x68] sm:$0xff]
        %v1217 = vld [vmem:[%s703 + $0x70] sm:$0xff]
        %v1218 = vld [vmem:[%s703 + $0x78] sm:$0xff]
        %v1219 = vld [vmem:[%s703 + $0x80] sm:$0xff]
        %v1220 = vld [vmem:[%s703 + $0x88] sm:$0xff]
        %v1221 = vld [vmem:[%s703 + $0x90] sm:$0xff]
        %v1222 = vld [vmem:[%s703 + $0x98] sm:$0xff]
        %v1223 = vld [vmem:[%s703 + $0xa0] sm:$0xff]
        %v1224 = vld [vmem:[%s703 + $0xa8] sm:$0xff]
        %v1225 = vld [vmem:[%s703 + $0xb0] sm:$0xff]
        %v1226 = vld [vmem:[%s703 + $0xb8] sm:$0xff]
        %v1227 = vld [vmem:[%s703 + $0xc0] sm:$0xff]
        %v1228 = vld [vmem:[%s703 + $0xc8] sm:$0xff]
        %v1229 = vld [vmem:[%s703 + $0xd0] sm:$0xff]
        %v1230 = vld [vmem:[%s703 + $0xd8] sm:$0xff]
        %v1231 = vld [vmem:[%s703 + $0xe0] sm:$0xff]
        %v1232 = vld [vmem:[%s703 + $0xe8] sm:$0xff]
        %v1233 = vld [vmem:[%s703 + $0xf0] sm:$0xff]
        %v1234 = vld [vmem:[%s703 + $0xf8] sm:$0xff]
        %vm1235 = vcmp.lt.f32.partialorder %v1203, 0.5
        %vm1236 = vcmp.lt.f32.partialorder %v1204, 0.5
        %vm1237 = vcmp.lt.f32.partialorder %v1205, 0.5
        %vm1238 = vcmp.lt.f32.partialorder %v1206, 0.5
        %vm1239 = vcmp.lt.f32.partialorder %v1207, 0.5
        %vm1240 = vcmp.lt.f32.partialorder %v1208, 0.5
        %vm1241 = vcmp.lt.f32.partialorder %v1209, 0.5
        %vm1242 = vcmp.lt.f32.partialorder %v1210, 0.5
        %vm1243 = vcmp.lt.f32.partialorder %v1211, 0.5
        %vm1244 = vcmp.lt.f32.partialorder %v1212, 0.5
        %vm1245 = vcmp.lt.f32.partialorder %v1213, 0.5
        %vm1246 = vcmp.lt.f32.partialorder %v1214, 0.5
        %vm1247 = vcmp.lt.f32.partialorder %v1215, 0.5
        %vm1248 = vcmp.lt.f32.partialorder %v1216, 0.5
        %vm1249 = vcmp.lt.f32.partialorder %v1217, 0.5
        %vm1250 = vcmp.lt.f32.partialorder %v1218, 0.5
        %vm1251 = vcmp.lt.f32.partialorder %v1219, 0.5
        %vm1252 = vcmp.lt.f32.partialorder %v1220, 0.5
        %vm1253 = vcmp.lt.f32.partialorder %v1221, 0.5
        %vm1254 = vcmp.lt.f32.partialorder %v1222, 0.5
        %vm1255 = vcmp.lt.f32.partialorder %v1223, 0.5
        %vm1256 = vcmp.lt.f32.partialorder %v1224, 0.5
        %vm1257 = vcmp.lt.f32.partialorder %v1225, 0.5
        %vm1258 = vcmp.lt.f32.partialorder %v1226, 0.5
        %vm1259 = vcmp.lt.f32.partialorder %v1227, 0.5
        %vm1260 = vcmp.lt.f32.partialorder %v1228, 0.5
        %vm1261 = vcmp.lt.f32.partialorder %v1229, 0.5
        %vm1262 = vcmp.lt.f32.partialorder %v1230, 0.5
        %vm1263 = vcmp.lt.f32.partialorder %v1231, 0.5
        %vm1264 = vcmp.lt.f32.partialorder %v1232, 0.5
        %vm1265 = vcmp.lt.f32.partialorder %v1233, 0.5
        %vm1266 = vcmp.lt.f32.partialorder %v1234, 0.5
        %vm1267 = vcmp.lt.f32.partialorder %v1203, 1.5
        %vm1268 = vcmp.lt.f32.partialorder %v1204, 1.5
        %vm1269 = vcmp.lt.f32.partialorder %v1205, 1.5
        %vm1270 = vcmp.lt.f32.partialorder %v1206, 1.5
        %vm1271 = vcmp.lt.f32.partialorder %v1207, 1.5
        %vm1272 = vcmp.lt.f32.partialorder %v1208, 1.5
        %vm1273 = vcmp.lt.f32.partialorder %v1209, 1.5
        %vm1274 = vcmp.lt.f32.partialorder %v1210, 1.5
        %vm1275 = vcmp.lt.f32.partialorder %v1211, 1.5
        %vm1276 = vcmp.lt.f32.partialorder %v1212, 1.5
        %vm1277 = vcmp.lt.f32.partialorder %v1213, 1.5
        %vm1278 = vcmp.lt.f32.partialorder %v1214, 1.5
        %vm1279 = vcmp.lt.f32.partialorder %v1215, 1.5
        %vm1280 = vcmp.lt.f32.partialorder %v1216, 1.5
        %vm1281 = vcmp.lt.f32.partialorder %v1217, 1.5
        %vm1282 = vcmp.lt.f32.partialorder %v1218, 1.5
        %vm1283 = vcmp.lt.f32.partialorder %v1219, 1.5
        %vm1284 = vcmp.lt.f32.partialorder %v1220, 1.5
        %vm1285 = vcmp.lt.f32.partialorder %v1221, 1.5
        %vm1286 = vcmp.lt.f32.partialorder %v1222, 1.5
        %vm1287 = vcmp.lt.f32.partialorder %v1223, 1.5
        %vm1288 = vcmp.lt.f32.partialorder %v1224, 1.5
        %vm1289 = vcmp.lt.f32.partialorder %v1225, 1.5
        %vm1290 = vcmp.lt.f32.partialorder %v1226, 1.5
        %vm1291 = vcmp.lt.f32.partialorder %v1227, 1.5
        %vm1292 = vcmp.lt.f32.partialorder %v1228, 1.5
        %vm1293 = vcmp.lt.f32.partialorder %v1229, 1.5
        %vm1294 = vcmp.lt.f32.partialorder %v1230, 1.5
        %vm1295 = vcmp.lt.f32.partialorder %v1231, 1.5
        %vm1296 = vcmp.lt.f32.partialorder %v1232, 1.5
        %vm1297 = vcmp.lt.f32.partialorder %v1233, 1.5
        %vm1298 = vcmp.lt.f32.partialorder %v1234, 1.5
        %v1299 = vsel %vm1267, 1, 0
        %v1300 = vsel %vm1268, 1, 0
        %v1301 = vsel %vm1269, 1, 0
        %v1302 = vsel %vm1270, 1, 0
        %v1303 = vsel %vm1271, 1, 0
        %v1304 = vsel %vm1272, 1, 0
        %v1305 = vsel %vm1273, 1, 0
        %v1306 = vsel %vm1274, 1, 0
        %v1307 = vsel %vm1275, 1, 0
        %v1308 = vsel %vm1276, 1, 0
        %v1309 = vsel %vm1277, 1, 0
        %v1310 = vsel %vm1278, 1, 0
        %v1311 = vsel %vm1279, 1, 0
        %v1312 = vsel %vm1280, 1, 0
        %v1313 = vsel %vm1281, 1, 0
        %v1314 = vsel %vm1282, 1, 0
        %v1315 = vsel %vm1283, 1, 0
        %v1316 = vsel %vm1284, 1, 0
        %v1317 = vsel %vm1285, 1, 0
        %v1318 = vsel %vm1286, 1, 0
        %v1319 = vsel %vm1287, 1, 0
        %v1320 = vsel %vm1288, 1, 0
        %v1321 = vsel %vm1289, 1, 0
        %v1322 = vsel %vm1290, 1, 0
        %v1323 = vsel %vm1291, 1, 0
        %v1324 = vsel %vm1292, 1, 0
        %v1325 = vsel %vm1293, 1, 0
        %v1326 = vsel %vm1294, 1, 0
        %v1327 = vsel %vm1295, 1, 0
        %v1328 = vsel %vm1296, 1, 0
        %v1329 = vsel %vm1297, 1, 0
        %v1330 = vsel %vm1298, 1, 0
        %1331 = vset.pattern.permute.xlu0 0
        %1332 = vperm.xlu0 %1331, %v1299
        %v1333 = vpop.permute.xlu0 %1332
        %1334 = vset.pattern.permute.xlu0 0
        %1335 = vperm.xlu0 %1334, %v1300
        %v1336 = vpop.permute.xlu0 %1335
        %1337 = vset.pattern.permute.xlu0 0
        %1338 = vperm.xlu0 %1337, %v1301
        %v1339 = vpop.permute.xlu0 %1338
        %1340 = vset.pattern.permute.xlu0 0
        %1341 = vperm.xlu0 %1340, %v1302
        %v1342 = vpop.permute.xlu0 %1341
        %1343 = vset.pattern.permute.xlu0 0
        %1344 = vperm.xlu0 %1343, %v1303
        %v1345 = vpop.permute.xlu0 %1344
        %1346 = vset.pattern.permute.xlu0 0
        %1347 = vperm.xlu0 %1346, %v1304
        %v1348 = vpop.permute.xlu0 %1347
        %1349 = vset.pattern.permute.xlu0 0
        %1350 = vperm.xlu0 %1349, %v1305
        %v1351 = vpop.permute.xlu0 %1350
        %1352 = vset.pattern.permute.xlu0 0
        %1353 = vperm.xlu0 %1352, %v1306
        %v1354 = vpop.permute.xlu0 %1353
        %1355 = vset.pattern.permute.xlu0 0
        %1356 = vperm.xlu0 %1355, %v1307
        %v1357 = vpop.permute.xlu0 %1356
        %1358 = vset.pattern.permute.xlu0 0
        %1359 = vperm.xlu0 %1358, %v1308
        %v1360 = vpop.permute.xlu0 %1359
        %1361 = vset.pattern.permute.xlu0 0
        %1362 = vperm.xlu0 %1361, %v1309
        %v1363 = vpop.permute.xlu0 %1362
        %1364 = vset.pattern.permute.xlu0 0
        %1365 = vperm.xlu0 %1364, %v1310
        %v1366 = vpop.permute.xlu0 %1365
        %1367 = vset.pattern.permute.xlu0 0
        %1368 = vperm.xlu0 %1367, %v1311
        %v1369 = vpop.permute.xlu0 %1368
        %1370 = vset.pattern.permute.xlu0 0
        %1371 = vperm.xlu0 %1370, %v1312
        %v1372 = vpop.permute.xlu0 %1371
        %1373 = vset.pattern.permute.xlu0 0
        %1374 = vperm.xlu0 %1373, %v1313
        %v1375 = vpop.permute.xlu0 %1374
        %1376 = vset.pattern.permute.xlu0 0
        %1377 = vperm.xlu0 %1376, %v1314
        %v1378 = vpop.permute.xlu0 %1377
        %1379 = vset.pattern.permute.xlu0 0
        %1380 = vperm.xlu0 %1379, %v1315
        %v1381 = vpop.permute.xlu0 %1380
        %1382 = vset.pattern.permute.xlu0 0
        %1383 = vperm.xlu0 %1382, %v1316
        %v1384 = vpop.permute.xlu0 %1383
        %1385 = vset.pattern.permute.xlu0 0
        %1386 = vperm.xlu0 %1385, %v1317
        %v1387 = vpop.permute.xlu0 %1386
        %1388 = vset.pattern.permute.xlu0 0
        %1389 = vperm.xlu0 %1388, %v1318
        %v1390 = vpop.permute.xlu0 %1389
        %1391 = vset.pattern.permute.xlu0 0
        %1392 = vperm.xlu0 %1391, %v1319
        %v1393 = vpop.permute.xlu0 %1392
        %1394 = vset.pattern.permute.xlu0 0
        %1395 = vperm.xlu0 %1394, %v1320
        %v1396 = vpop.permute.xlu0 %1395
        %1397 = vset.pattern.permute.xlu0 0
        %1398 = vperm.xlu0 %1397, %v1321
        %v1399 = vpop.permute.xlu0 %1398
        %1400 = vset.pattern.permute.xlu0 0
        %1401 = vperm.xlu0 %1400, %v1322
        %v1402 = vpop.permute.xlu0 %1401
        %1403 = vset.pattern.permute.xlu0 0
        %1404 = vperm.xlu0 %1403, %v1323
        %v1405 = vpop.permute.xlu0 %1404
        %1406 = vset.pattern.permute.xlu0 0
        %1407 = vperm.xlu0 %1406, %v1324
        %v1408 = vpop.permute.xlu0 %1407
        %1409 = vset.pattern.permute.xlu0 0
        %1410 = vperm.xlu0 %1409, %v1325
        %v1411 = vpop.permute.xlu0 %1410
        %1412 = vset.pattern.permute.xlu0 0
        %1413 = vperm.xlu0 %1412, %v1326
        %v1414 = vpop.permute.xlu0 %1413
        %1415 = vset.pattern.permute.xlu0 0
        %1416 = vperm.xlu0 %1415, %v1327
        %v1417 = vpop.permute.xlu0 %1416
        %1418 = vset.pattern.permute.xlu0 0
        %1419 = vperm.xlu0 %1418, %v1328
        %v1420 = vpop.permute.xlu0 %1419
        %1421 = vset.pattern.permute.xlu0 0
        %1422 = vperm.xlu0 %1421, %v1329
        %v1423 = vpop.permute.xlu0 %1422
        %1424 = vset.pattern.permute.xlu0 0
        %1425 = vperm.xlu0 %1424, %v1330
        %v1426 = vpop.permute.xlu0 %1425
        %vm1427 = vcmp.eq.s32.totalorder %v1333, 1
        %vm1428 = vcmp.eq.s32.totalorder %v1336, 1
        %vm1429 = vcmp.eq.s32.totalorder %v1339, 1
        %vm1430 = vcmp.eq.s32.totalorder %v1342, 1
        %vm1431 = vcmp.eq.s32.totalorder %v1345, 1
        %vm1432 = vcmp.eq.s32.totalorder %v1348, 1
        %vm1433 = vcmp.eq.s32.totalorder %v1351, 1
        %vm1434 = vcmp.eq.s32.totalorder %v1354, 1
        %vm1435 = vcmp.eq.s32.totalorder %v1357, 1
        %vm1436 = vcmp.eq.s32.totalorder %v1360, 1
        %vm1437 = vcmp.eq.s32.totalorder %v1363, 1
        %vm1438 = vcmp.eq.s32.totalorder %v1366, 1
        %vm1439 = vcmp.eq.s32.totalorder %v1369, 1
        %vm1440 = vcmp.eq.s32.totalorder %v1372, 1
        %vm1441 = vcmp.eq.s32.totalorder %v1375, 1
        %vm1442 = vcmp.eq.s32.totalorder %v1378, 1
        %vm1443 = vcmp.eq.s32.totalorder %v1381, 1
        %vm1444 = vcmp.eq.s32.totalorder %v1384, 1
        %vm1445 = vcmp.eq.s32.totalorder %v1387, 1
        %vm1446 = vcmp.eq.s32.totalorder %v1390, 1
        %vm1447 = vcmp.eq.s32.totalorder %v1393, 1
        %vm1448 = vcmp.eq.s32.totalorder %v1396, 1
        %vm1449 = vcmp.eq.s32.totalorder %v1399, 1
        %vm1450 = vcmp.eq.s32.totalorder %v1402, 1
        %vm1451 = vcmp.eq.s32.totalorder %v1405, 1
        %vm1452 = vcmp.eq.s32.totalorder %v1408, 1
        %vm1453 = vcmp.eq.s32.totalorder %v1411, 1
        %vm1454 = vcmp.eq.s32.totalorder %v1414, 1
        %vm1455 = vcmp.eq.s32.totalorder %v1417, 1
        %vm1456 = vcmp.eq.s32.totalorder %v1420, 1
        %vm1457 = vcmp.eq.s32.totalorder %v1423, 1
        %vm1458 = vcmp.eq.s32.totalorder %v1426, 1
        %v1459 = vlaneseq
        %v1460 = vshrl.u32 %v1459, 7
        %v1461 = vsub.s32 1, %v1460
        %v1462 = vrot.slane %v1202, %v1461
        %v1463 = vlaneseq
        %v1464 = vshrl.u32 %v1463, 7
        %v1465 = vsub.s32 2, %v1464
        %v1466 = vrot.slane %v1202, %v1465
        %v1467 = vsel %vm1427, %v1462, %v1466
        %v1468 = vsel %vm1428, %v1462, %v1466
        %v1469 = vsel %vm1429, %v1462, %v1466
        %v1470 = vsel %vm1430, %v1462, %v1466
        %v1471 = vsel %vm1431, %v1462, %v1466
        %v1472 = vsel %vm1432, %v1462, %v1466
        %v1473 = vsel %vm1433, %v1462, %v1466
        %v1474 = vsel %vm1434, %v1462, %v1466
        %v1475 = vsel %vm1435, %v1462, %v1466
        %v1476 = vsel %vm1436, %v1462, %v1466
        %v1477 = vsel %vm1437, %v1462, %v1466
        %v1478 = vsel %vm1438, %v1462, %v1466
        %v1479 = vsel %vm1439, %v1462, %v1466
        %v1480 = vsel %vm1440, %v1462, %v1466
        %v1481 = vsel %vm1441, %v1462, %v1466
        %v1482 = vsel %vm1442, %v1462, %v1466
        %v1483 = vsel %vm1443, %v1462, %v1466
        %v1484 = vsel %vm1444, %v1462, %v1466
        %v1485 = vsel %vm1445, %v1462, %v1466
        %v1486 = vsel %vm1446, %v1462, %v1466
        %v1487 = vsel %vm1447, %v1462, %v1466
        %v1488 = vsel %vm1448, %v1462, %v1466
        %v1489 = vsel %vm1449, %v1462, %v1466
        %v1490 = vsel %vm1450, %v1462, %v1466
        %v1491 = vsel %vm1451, %v1462, %v1466
        %v1492 = vsel %vm1452, %v1462, %v1466
        %v1493 = vsel %vm1453, %v1462, %v1466
        %v1494 = vsel %vm1454, %v1462, %v1466
        %v1495 = vsel %vm1455, %v1462, %v1466
        %v1496 = vsel %vm1456, %v1462, %v1466
        %v1497 = vsel %vm1457, %v1462, %v1466
        %v1498 = vsel %vm1458, %v1462, %v1466
        %v1499 = vsel %vm1235, 1, 0
        %v1500 = vsel %vm1236, 1, 0
        %v1501 = vsel %vm1237, 1, 0
        %v1502 = vsel %vm1238, 1, 0
        %v1503 = vsel %vm1239, 1, 0
        %v1504 = vsel %vm1240, 1, 0
        %v1505 = vsel %vm1241, 1, 0
        %v1506 = vsel %vm1242, 1, 0
        %v1507 = vsel %vm1243, 1, 0
        %v1508 = vsel %vm1244, 1, 0
        %v1509 = vsel %vm1245, 1, 0
        %v1510 = vsel %vm1246, 1, 0
        %v1511 = vsel %vm1247, 1, 0
        %v1512 = vsel %vm1248, 1, 0
        %v1513 = vsel %vm1249, 1, 0
        %v1514 = vsel %vm1250, 1, 0
        %v1515 = vsel %vm1251, 1, 0
        %v1516 = vsel %vm1252, 1, 0
        %v1517 = vsel %vm1253, 1, 0
        %v1518 = vsel %vm1254, 1, 0
        %v1519 = vsel %vm1255, 1, 0
        %v1520 = vsel %vm1256, 1, 0
        %v1521 = vsel %vm1257, 1, 0
        %v1522 = vsel %vm1258, 1, 0
        %v1523 = vsel %vm1259, 1, 0
        %v1524 = vsel %vm1260, 1, 0
        %v1525 = vsel %vm1261, 1, 0
        %v1526 = vsel %vm1262, 1, 0
        %v1527 = vsel %vm1263, 1, 0
        %v1528 = vsel %vm1264, 1, 0
        %v1529 = vsel %vm1265, 1, 0
        %v1530 = vsel %vm1266, 1, 0
        %1531 = vset.pattern.permute.xlu0 0
        %1532 = vperm.xlu0 %1531, %v1499
        %v1533 = vpop.permute.xlu0 %1532
        %1534 = vset.pattern.permute.xlu0 0
        %1535 = vperm.xlu0 %1534, %v1500
        %v1536 = vpop.permute.xlu0 %1535
        %1537 = vset.pattern.permute.xlu0 0
        %1538 = vperm.xlu0 %1537, %v1501
        %v1539 = vpop.permute.xlu0 %1538
        %1540 = vset.pattern.permute.xlu0 0
        %1541 = vperm.xlu0 %1540, %v1502
        %v1542 = vpop.permute.xlu0 %1541
        %1543 = vset.pattern.permute.xlu0 0
        %1544 = vperm.xlu0 %1543, %v1503
        %v1545 = vpop.permute.xlu0 %1544
        %1546 = vset.pattern.permute.xlu0 0
        %1547 = vperm.xlu0 %1546, %v1504
        %v1548 = vpop.permute.xlu0 %1547
        %1549 = vset.pattern.permute.xlu0 0
        %1550 = vperm.xlu0 %1549, %v1505
        %v1551 = vpop.permute.xlu0 %1550
        %1552 = vset.pattern.permute.xlu0 0
        %1553 = vperm.xlu0 %1552, %v1506
        %v1554 = vpop.permute.xlu0 %1553
        %1555 = vset.pattern.permute.xlu0 0
        %1556 = vperm.xlu0 %1555, %v1507
        %v1557 = vpop.permute.xlu0 %1556
        %1558 = vset.pattern.permute.xlu0 0
        %1559 = vperm.xlu0 %1558, %v1508
        %v1560 = vpop.permute.xlu0 %1559
        %1561 = vset.pattern.permute.xlu0 0
        %1562 = vperm.xlu0 %1561, %v1509
        %v1563 = vpop.permute.xlu0 %1562
        %1564 = vset.pattern.permute.xlu0 0
        %1565 = vperm.xlu0 %1564, %v1510
        %v1566 = vpop.permute.xlu0 %1565
        %1567 = vset.pattern.permute.xlu0 0
        %1568 = vperm.xlu0 %1567, %v1511
        %v1569 = vpop.permute.xlu0 %1568
        %1570 = vset.pattern.permute.xlu0 0
        %1571 = vperm.xlu0 %1570, %v1512
        %v1572 = vpop.permute.xlu0 %1571
        %1573 = vset.pattern.permute.xlu0 0
        %1574 = vperm.xlu0 %1573, %v1513
        %v1575 = vpop.permute.xlu0 %1574
        %1576 = vset.pattern.permute.xlu0 0
        %1577 = vperm.xlu0 %1576, %v1514
        %v1578 = vpop.permute.xlu0 %1577
        %1579 = vset.pattern.permute.xlu0 0
        %1580 = vperm.xlu0 %1579, %v1515
        %v1581 = vpop.permute.xlu0 %1580
        %1582 = vset.pattern.permute.xlu0 0
        %1583 = vperm.xlu0 %1582, %v1516
        %v1584 = vpop.permute.xlu0 %1583
        %1585 = vset.pattern.permute.xlu0 0
        %1586 = vperm.xlu0 %1585, %v1517
        %v1587 = vpop.permute.xlu0 %1586
        %1588 = vset.pattern.permute.xlu0 0
        %1589 = vperm.xlu0 %1588, %v1518
        %v1590 = vpop.permute.xlu0 %1589
        %1591 = vset.pattern.permute.xlu0 0
        %1592 = vperm.xlu0 %1591, %v1519
        %v1593 = vpop.permute.xlu0 %1592
        %1594 = vset.pattern.permute.xlu0 0
        %1595 = vperm.xlu0 %1594, %v1520
        %v1596 = vpop.permute.xlu0 %1595
        %1597 = vset.pattern.permute.xlu0 0
        %1598 = vperm.xlu0 %1597, %v1521
        %v1599 = vpop.permute.xlu0 %1598
        %1600 = vset.pattern.permute.xlu0 0
        %1601 = vperm.xlu0 %1600, %v1522
        %v1602 = vpop.permute.xlu0 %1601
        %1603 = vset.pattern.permute.xlu0 0
        %1604 = vperm.xlu0 %1603, %v1523
        %v1605 = vpop.permute.xlu0 %1604
        %1606 = vset.pattern.permute.xlu0 0
        %1607 = vperm.xlu0 %1606, %v1524
        %v1608 = vpop.permute.xlu0 %1607
        %1609 = vset.pattern.permute.xlu0 0
        %1610 = vperm.xlu0 %1609, %v1525
        %v1611 = vpop.permute.xlu0 %1610
        %1612 = vset.pattern.permute.xlu0 0
        %1613 = vperm.xlu0 %1612, %v1526
        %v1614 = vpop.permute.xlu0 %1613
        %1615 = vset.pattern.permute.xlu0 0
        %1616 = vperm.xlu0 %1615, %v1527
        %v1617 = vpop.permute.xlu0 %1616
        %1618 = vset.pattern.permute.xlu0 0
        %1619 = vperm.xlu0 %1618, %v1528
        %v1620 = vpop.permute.xlu0 %1619
        %1621 = vset.pattern.permute.xlu0 0
        %1622 = vperm.xlu0 %1621, %v1529
        %v1623 = vpop.permute.xlu0 %1622
        %1624 = vset.pattern.permute.xlu0 0
        %1625 = vperm.xlu0 %1624, %v1530
        %v1626 = vpop.permute.xlu0 %1625
        %vm1627 = vcmp.eq.s32.totalorder %v1533, 1
        %vm1628 = vcmp.eq.s32.totalorder %v1536, 1
        %vm1629 = vcmp.eq.s32.totalorder %v1539, 1
        %vm1630 = vcmp.eq.s32.totalorder %v1542, 1
        %vm1631 = vcmp.eq.s32.totalorder %v1545, 1
        %vm1632 = vcmp.eq.s32.totalorder %v1548, 1
        %vm1633 = vcmp.eq.s32.totalorder %v1551, 1
        %vm1634 = vcmp.eq.s32.totalorder %v1554, 1
        %vm1635 = vcmp.eq.s32.totalorder %v1557, 1
        %vm1636 = vcmp.eq.s32.totalorder %v1560, 1
        %vm1637 = vcmp.eq.s32.totalorder %v1563, 1
        %vm1638 = vcmp.eq.s32.totalorder %v1566, 1
        %vm1639 = vcmp.eq.s32.totalorder %v1569, 1
        %vm1640 = vcmp.eq.s32.totalorder %v1572, 1
        %vm1641 = vcmp.eq.s32.totalorder %v1575, 1
        %vm1642 = vcmp.eq.s32.totalorder %v1578, 1
        %vm1643 = vcmp.eq.s32.totalorder %v1581, 1
        %vm1644 = vcmp.eq.s32.totalorder %v1584, 1
        %vm1645 = vcmp.eq.s32.totalorder %v1587, 1
        %vm1646 = vcmp.eq.s32.totalorder %v1590, 1
        %vm1647 = vcmp.eq.s32.totalorder %v1593, 1
        %vm1648 = vcmp.eq.s32.totalorder %v1596, 1
        %vm1649 = vcmp.eq.s32.totalorder %v1599, 1
        %vm1650 = vcmp.eq.s32.totalorder %v1602, 1
        %vm1651 = vcmp.eq.s32.totalorder %v1605, 1
        %vm1652 = vcmp.eq.s32.totalorder %v1608, 1
        %vm1653 = vcmp.eq.s32.totalorder %v1611, 1
        %vm1654 = vcmp.eq.s32.totalorder %v1614, 1
        %vm1655 = vcmp.eq.s32.totalorder %v1617, 1
        %vm1656 = vcmp.eq.s32.totalorder %v1620, 1
        %vm1657 = vcmp.eq.s32.totalorder %v1623, 1
        %vm1658 = vcmp.eq.s32.totalorder %v1626, 1
        %v1659 = vlaneseq
        %v1660 = vshrl.u32 %v1659, 7
        %v1661 = vsub.s32 0, %v1660
        %v1662 = vrot.slane %v1202, %v1661
        %v1663 = vsel %vm1627, %v1662, %v1467
        %v1664 = vsel %vm1628, %v1662, %v1468
        %v1665 = vsel %vm1629, %v1662, %v1469
        %v1666 = vsel %vm1630, %v1662, %v1470
        %v1667 = vsel %vm1631, %v1662, %v1471
        %v1668 = vsel %vm1632, %v1662, %v1472
        %v1669 = vsel %vm1633, %v1662, %v1473
        %v1670 = vsel %vm1634, %v1662, %v1474
        %v1671 = vsel %vm1635, %v1662, %v1475
        %v1672 = vsel %vm1636, %v1662, %v1476
        %v1673 = vsel %vm1637, %v1662, %v1477
        %v1674 = vsel %vm1638, %v1662, %v1478
        %v1675 = vsel %vm1639, %v1662, %v1479
        %v1676 = vsel %vm1640, %v1662, %v1480
        %v1677 = vsel %vm1641, %v1662, %v1481
        %v1678 = vsel %vm1642, %v1662, %v1482
        %v1679 = vsel %vm1643, %v1662, %v1483
        %v1680 = vsel %vm1644, %v1662, %v1484
        %v1681 = vsel %vm1645, %v1662, %v1485
        %v1682 = vsel %vm1646, %v1662, %v1486
        %v1683 = vsel %vm1647, %v1662, %v1487
        %v1684 = vsel %vm1648, %v1662, %v1488
        %v1685 = vsel %vm1649, %v1662, %v1489
        %v1686 = vsel %vm1650, %v1662, %v1490
        %v1687 = vsel %vm1651, %v1662, %v1491
        %v1688 = vsel %vm1652, %v1662, %v1492
        %v1689 = vsel %vm1653, %v1662, %v1493
        %v1690 = vsel %vm1654, %v1662, %v1494
        %v1691 = vsel %vm1655, %v1662, %v1495
        %v1692 = vsel %vm1656, %v1662, %v1496
        %v1693 = vsel %vm1657, %v1662, %v1497
        %v1694 = vsel %vm1658, %v1662, %v1498
        %v1695 = vmin.f32 %v707, 512.0
        %v1696 = vmin.f32 %v708, 512.0
        %v1697 = vmin.f32 %v709, 512.0
        %v1698 = vmin.f32 %v710, 512.0
        %v1699 = vmin.f32 %v711, 512.0
        %v1700 = vmin.f32 %v712, 512.0
        %v1701 = vmin.f32 %v713, 512.0
        %v1702 = vmin.f32 %v714, 512.0
        %v1703 = vmin.f32 %v715, 512.0
        %v1704 = vmin.f32 %v716, 512.0
        %v1705 = vmin.f32 %v717, 512.0
        %v1706 = vmin.f32 %v718, 512.0
        %v1707 = vmin.f32 %v719, 512.0
        %v1708 = vmin.f32 %v720, 512.0
        %v1709 = vmin.f32 %v721, 512.0
        %v1710 = vmin.f32 %v722, 512.0
        %v1711 = vmin.f32 %v723, 512.0
        %v1712 = vmin.f32 %v724, 512.0
        %v1713 = vmin.f32 %v725, 512.0
        %v1714 = vmin.f32 %v726, 512.0
        %v1715 = vmin.f32 %v727, 512.0
        %v1716 = vmin.f32 %v728, 512.0
        %v1717 = vmin.f32 %v729, 512.0
        %v1718 = vmin.f32 %v730, 512.0
        %v1719 = vmin.f32 %v731, 512.0
        %v1720 = vmin.f32 %v732, 512.0
        %v1721 = vmin.f32 %v733, 512.0
        %v1722 = vmin.f32 %v734, 512.0
        %v1723 = vmin.f32 %v735, 512.0
        %v1724 = vmin.f32 %v736, 512.0
        %v1725 = vmin.f32 %v737, 512.0
        %v1726 = vmin.f32 %v738, 512.0
        %v1727 = vld [vmem:[%s6] sm:$0x1]
        %1729 = vset.pattern.permute.xlu0 0
        %1730 = vperm.xlu0 %1729, %v1695
        %v1731 = vpop.permute.xlu0 %1730
        %1734 = vset.pattern.permute.xlu0 0
        %1735 = vperm.xlu0 %1734, %v1696
        %v1736 = vpop.permute.xlu0 %1735
        %1739 = vset.pattern.permute.xlu0 0
        %1740 = vperm.xlu0 %1739, %v1697
        %v1741 = vpop.permute.xlu0 %1740
        %1744 = vset.pattern.permute.xlu0 0
        %1745 = vperm.xlu0 %1744, %v1698
        %v1746 = vpop.permute.xlu0 %1745
        %1749 = vset.pattern.permute.xlu0 0
        %1750 = vperm.xlu0 %1749, %v1699
        %v1751 = vpop.permute.xlu0 %1750
        %1754 = vset.pattern.permute.xlu0 0
        %1755 = vperm.xlu0 %1754, %v1700
        %v1756 = vpop.permute.xlu0 %1755
        %1759 = vset.pattern.permute.xlu0 0
        %1760 = vperm.xlu0 %1759, %v1701
        %v1761 = vpop.permute.xlu0 %1760
        %1764 = vset.pattern.permute.xlu0 0
        %1765 = vperm.xlu0 %1764, %v1702
        %v1766 = vpop.permute.xlu0 %1765
        %1769 = vset.pattern.permute.xlu0 0
        %1770 = vperm.xlu0 %1769, %v1703
        %v1771 = vpop.permute.xlu0 %1770
        %1774 = vset.pattern.permute.xlu0 0
        %1775 = vperm.xlu0 %1774, %v1704
        %v1776 = vpop.permute.xlu0 %1775
        %1779 = vset.pattern.permute.xlu0 0
        %1780 = vperm.xlu0 %1779, %v1705
        %v1781 = vpop.permute.xlu0 %1780
        %1784 = vset.pattern.permute.xlu0 0
        %1785 = vperm.xlu0 %1784, %v1706
        %v1786 = vpop.permute.xlu0 %1785
        %1789 = vset.pattern.permute.xlu0 0
        %1790 = vperm.xlu0 %1789, %v1707
        %v1791 = vpop.permute.xlu0 %1790
        %1794 = vset.pattern.permute.xlu0 0
        %1795 = vperm.xlu0 %1794, %v1708
        %v1796 = vpop.permute.xlu0 %1795
        %1799 = vset.pattern.permute.xlu0 0
        %1800 = vperm.xlu0 %1799, %v1709
        %v1801 = vpop.permute.xlu0 %1800
        %1804 = vset.pattern.permute.xlu0 0
        %1805 = vperm.xlu0 %1804, %v1710
        %v1806 = vpop.permute.xlu0 %1805
        %1809 = vset.pattern.permute.xlu0 0
        %1810 = vperm.xlu0 %1809, %v1711
        %v1811 = vpop.permute.xlu0 %1810
        %1814 = vset.pattern.permute.xlu0 0
        %1815 = vperm.xlu0 %1814, %v1712
        %v1816 = vpop.permute.xlu0 %1815
        %1819 = vset.pattern.permute.xlu0 0
        %1820 = vperm.xlu0 %1819, %v1713
        %v1821 = vpop.permute.xlu0 %1820
        %1824 = vset.pattern.permute.xlu0 0
        %1825 = vperm.xlu0 %1824, %v1714
        %v1826 = vpop.permute.xlu0 %1825
        %1829 = vset.pattern.permute.xlu0 0
        %1830 = vperm.xlu0 %1829, %v1715
        %v1831 = vpop.permute.xlu0 %1830
        %1834 = vset.pattern.permute.xlu0 0
        %1835 = vperm.xlu0 %1834, %v1716
        %v1836 = vpop.permute.xlu0 %1835
        %1839 = vset.pattern.permute.xlu0 0
        %1840 = vperm.xlu0 %1839, %v1717
        %v1841 = vpop.permute.xlu0 %1840
        %1844 = vset.pattern.permute.xlu0 0
        %1845 = vperm.xlu0 %1844, %v1718
        %v1846 = vpop.permute.xlu0 %1845
        %1849 = vset.pattern.permute.xlu0 0
        %1850 = vperm.xlu0 %1849, %v1719
        %v1851 = vpop.permute.xlu0 %1850
        %1854 = vset.pattern.permute.xlu0 0
        %1855 = vperm.xlu0 %1854, %v1720
        %v1856 = vpop.permute.xlu0 %1855
        %1859 = vset.pattern.permute.xlu0 0
        %1860 = vperm.xlu0 %1859, %v1721
        %v1861 = vpop.permute.xlu0 %1860
        %1864 = vset.pattern.permute.xlu0 0
        %1865 = vperm.xlu0 %1864, %v1722
        %v1866 = vpop.permute.xlu0 %1865
        %1869 = vset.pattern.permute.xlu0 0
        %1870 = vperm.xlu0 %1869, %v1723
        %v1871 = vpop.permute.xlu0 %1870
        %1874 = vset.pattern.permute.xlu0 0
        %1875 = vperm.xlu0 %1874, %v1724
        %v1876 = vpop.permute.xlu0 %1875
        %1879 = vset.pattern.permute.xlu0 0
        %1880 = vperm.xlu0 %1879, %v1725
        %v1881 = vpop.permute.xlu0 %1880
        %1884 = vset.pattern.permute.xlu0 0
        %1885 = vperm.xlu0 %1884, %v1726
        %v1886 = vpop.permute.xlu0 %1885
        %v1889 = vlaneseq
        %v1890 = vshrl.u32 %v1889, 7
        %v1891 = vsub.s32 0, %v1890
        %v1892 = vrot.slane %v1727, %v1891
        %v1894 = vmul.f32 %v1731, %v1892
        %v1895 = vmul.f32 %v1736, %v1892
        %v1896 = vmul.f32 %v1741, %v1892
        %v1897 = vmul.f32 %v1746, %v1892
        %v1898 = vmul.f32 %v1751, %v1892
        %v1899 = vmul.f32 %v1756, %v1892
        %v1900 = vmul.f32 %v1761, %v1892
        %v1901 = vmul.f32 %v1766, %v1892
        %v1902 = vmul.f32 %v1771, %v1892
        %v1903 = vmul.f32 %v1776, %v1892
        %v1904 = vmul.f32 %v1781, %v1892
        %v1905 = vmul.f32 %v1786, %v1892
        %v1906 = vmul.f32 %v1791, %v1892
        %v1907 = vmul.f32 %v1796, %v1892
        %v1908 = vmul.f32 %v1801, %v1892
        %v1909 = vmul.f32 %v1806, %v1892
        %v1910 = vmul.f32 %v1811, %v1892
        %v1911 = vmul.f32 %v1816, %v1892
        %v1912 = vmul.f32 %v1821, %v1892
        %v1913 = vmul.f32 %v1826, %v1892
        %v1914 = vmul.f32 %v1831, %v1892
        %v1915 = vmul.f32 %v1836, %v1892
        %v1916 = vmul.f32 %v1841, %v1892
        %v1917 = vmul.f32 %v1846, %v1892
        %v1918 = vmul.f32 %v1851, %v1892
        %v1919 = vmul.f32 %v1856, %v1892
        %v1920 = vmul.f32 %v1861, %v1892
        %v1921 = vmul.f32 %v1866, %v1892
        %v1922 = vmul.f32 %v1871, %v1892
        %v1923 = vmul.f32 %v1876, %v1892
        %v1924 = vmul.f32 %v1881, %v1892
        %v1925 = vmul.f32 %v1886, %v1892
        %v1926 = vld [vmem:[%s7] sm:$0x1]
        %v1928 = vlaneseq
        %v1929 = vshrl.u32 %v1928, 7
        %v1930 = vsub.s32 0, %v1929
        %v1931 = vrot.slane %v1926, %v1930
        %v1933 = vadd.f32 %v1894, %v1931
        %v1934 = vadd.f32 %v1895, %v1931
        %v1935 = vadd.f32 %v1896, %v1931
        %v1936 = vadd.f32 %v1897, %v1931
        %v1937 = vadd.f32 %v1898, %v1931
        %v1938 = vadd.f32 %v1899, %v1931
        %v1939 = vadd.f32 %v1900, %v1931
        %v1940 = vadd.f32 %v1901, %v1931
        %v1941 = vadd.f32 %v1902, %v1931
        %v1942 = vadd.f32 %v1903, %v1931
        %v1943 = vadd.f32 %v1904, %v1931
        %v1944 = vadd.f32 %v1905, %v1931
        %v1945 = vadd.f32 %v1906, %v1931
        %v1946 = vadd.f32 %v1907, %v1931
        %v1947 = vadd.f32 %v1908, %v1931
        %v1948 = vadd.f32 %v1909, %v1931
        %v1949 = vadd.f32 %v1910, %v1931
        %v1950 = vadd.f32 %v1911, %v1931
        %v1951 = vadd.f32 %v1912, %v1931
        %v1952 = vadd.f32 %v1913, %v1931
        %v1953 = vadd.f32 %v1914, %v1931
        %v1954 = vadd.f32 %v1915, %v1931
        %v1955 = vadd.f32 %v1916, %v1931
        %v1956 = vadd.f32 %v1917, %v1931
        %v1957 = vadd.f32 %v1918, %v1931
        %v1958 = vadd.f32 %v1919, %v1931
        %v1959 = vadd.f32 %v1920, %v1931
        %v1960 = vadd.f32 %v1921, %v1931
        %v1961 = vadd.f32 %v1922, %v1931
        %v1962 = vadd.f32 %v1923, %v1931
        %v1963 = vadd.f32 %v1924, %v1931
        %v1964 = vadd.f32 %v1925, %v1931
        %v1965 = vmax.f32 %v1933, 0.0
        %v1966 = vmax.f32 %v1934, 0.0
        %v1967 = vmax.f32 %v1935, 0.0
        %v1968 = vmax.f32 %v1936, 0.0
        %v1969 = vmax.f32 %v1937, 0.0
        %v1970 = vmax.f32 %v1938, 0.0
        %v1971 = vmax.f32 %v1939, 0.0
        %v1972 = vmax.f32 %v1940, 0.0
        %v1973 = vmax.f32 %v1941, 0.0
        %v1974 = vmax.f32 %v1942, 0.0
        %v1975 = vmax.f32 %v1943, 0.0
        %v1976 = vmax.f32 %v1944, 0.0
        %v1977 = vmax.f32 %v1945, 0.0
        %v1978 = vmax.f32 %v1946, 0.0
        %v1979 = vmax.f32 %v1947, 0.0
        %v1980 = vmax.f32 %v1948, 0.0
        %v1981 = vmax.f32 %v1949, 0.0
        %v1982 = vmax.f32 %v1950, 0.0
        %v1983 = vmax.f32 %v1951, 0.0
        %v1984 = vmax.f32 %v1952, 0.0
        %v1985 = vmax.f32 %v1953, 0.0
        %v1986 = vmax.f32 %v1954, 0.0
        %v1987 = vmax.f32 %v1955, 0.0
        %v1988 = vmax.f32 %v1956, 0.0
        %v1989 = vmax.f32 %v1957, 0.0
        %v1990 = vmax.f32 %v1958, 0.0
        %v1991 = vmax.f32 %v1959, 0.0
        %v1992 = vmax.f32 %v1960, 0.0
        %v1993 = vmax.f32 %v1961, 0.0
        %v1994 = vmax.f32 %v1962, 0.0
        %v1995 = vmax.f32 %v1963, 0.0
        %v1996 = vmax.f32 %v1964, 0.0
        %v1997 = vpack.c.bf16 %v1966, %v1965
        %v1998 = vpack.c.bf16 %v1968, %v1967
        %v1999 = vpack.c.bf16 %v1970, %v1969
        %v2000 = vpack.c.bf16 %v1972, %v1971
        %v2001 = vpack.c.bf16 %v1974, %v1973
        %v2002 = vpack.c.bf16 %v1976, %v1975
        %v2003 = vpack.c.bf16 %v1978, %v1977
        %v2004 = vpack.c.bf16 %v1980, %v1979
        %v2005 = vpack.c.bf16 %v1982, %v1981
        %v2006 = vpack.c.bf16 %v1984, %v1983
        %v2007 = vpack.c.bf16 %v1986, %v1985
        %v2008 = vpack.c.bf16 %v1988, %v1987
        %v2009 = vpack.c.bf16 %v1990, %v1989
        %v2010 = vpack.c.bf16 %v1992, %v1991
        %v2011 = vpack.c.bf16 %v1994, %v1993
        %v2012 = vpack.c.bf16 %v1996, %v1995
        %v2013 = vld [vmem:[%s8] sm:$0xf]
        %v2014 = vld [vmem:[%s8 + $0x4] sm:$0xf]
        %v2015 = vld [vmem:[%s8 + $0x8] sm:$0xf]
        %v2016 = vld [vmem:[%s8 + $0xc] sm:$0xf]
        %v2017 = vld [vmem:[%s8 + $0x10] sm:$0xf]
        %v2018 = vld [vmem:[%s8 + $0x14] sm:$0xf]
        %v2019 = vld [vmem:[%s8 + $0x18] sm:$0xf]
        %v2020 = vld [vmem:[%s8 + $0x1c] sm:$0xf]
        %v2021 = vld [vmem:[%s8 + $0x20] sm:$0xf]
        %v2022 = vld [vmem:[%s8 + $0x24] sm:$0xf]
        %v2023 = vld [vmem:[%s8 + $0x28] sm:$0xf]
        %v2024 = vld [vmem:[%s8 + $0x2c] sm:$0xf]
        %v2025 = vld [vmem:[%s8 + $0x30] sm:$0xf]
        %v2026 = vld [vmem:[%s8 + $0x34] sm:$0xf]
        %v2027 = vld [vmem:[%s8 + $0x38] sm:$0xf]
        %v2028 = vld [vmem:[%s8 + $0x3c] sm:$0xf]
        %v2029 = vld [vmem:[%s9] sm:$0x1]
        %v2031 = vlaneseq
        %v2032 = vshrl.u32 %v2031, 7
        %v2033 = vsub.s32 0, %v2032
        %v2034 = vrot.slane %v2029, %v2033
        %v2052 = vunpack.c.l.b16 %v2013
        %v2053 = vunpack.c.l.b16 %v2014
        %v2054 = vunpack.c.l.b16 %v2015
        %v2055 = vunpack.c.l.b16 %v2016
        %v2056 = vunpack.c.l.b16 %v2017
        %v2057 = vunpack.c.l.b16 %v2018
        %v2058 = vunpack.c.l.b16 %v2019
        %v2059 = vunpack.c.l.b16 %v2020
        %v2060 = vunpack.c.l.b16 %v2021
        %v2061 = vunpack.c.l.b16 %v2022
        %v2062 = vunpack.c.l.b16 %v2023
        %v2063 = vunpack.c.l.b16 %v2024
        %v2064 = vunpack.c.l.b16 %v2025
        %v2065 = vunpack.c.l.b16 %v2026
        %v2066 = vunpack.c.l.b16 %v2027
        %v2067 = vunpack.c.l.b16 %v2028
        %v2068 = vpack.c.b16 %v2053, %v2052
        %v2069 = vpack.c.b16 %v2055, %v2054
        %v2070 = vpack.c.b16 %v2057, %v2056
        %v2071 = vpack.c.b16 %v2059, %v2058
        %v2072 = vpack.c.b16 %v2061, %v2060
        %v2073 = vpack.c.b16 %v2063, %v2062
        %v2074 = vpack.c.b16 %v2065, %v2064
        %v2075 = vpack.c.b16 %v2067, %v2066
        %2084 = vmatprep.subr.bf16.mxu0 0
        %2085 = vmatpush1.bf16.msra.mxu0 %v2068
        %2086 = vmatprep.subr.bf16.mxu0 0
        %2087 = vmatpush1.bf16.msra.mxu0 %v2069
        %2088 = vmatprep.subr.bf16.mxu0 0
        %2089 = vmatpush1.bf16.msra.mxu0 %v2070
        %2090 = vmatprep.subr.bf16.mxu0 0
        %2091 = vmatpush1.bf16.msra.mxu0 %v2071
        %2092 = vmatprep.subr.bf16.mxu0 0
        %2093 = vmatpush1.bf16.msra.mxu0 %v2072
        %2094 = vmatprep.subr.bf16.mxu0 0
        %2095 = vmatpush1.bf16.msra.mxu0 %v2073
        %2096 = vmatprep.subr.bf16.mxu0 0
        %2097 = vmatpush1.bf16.msra.mxu0 %v2074
        %2098 = vmatprep.subr.bf16.mxu0 0
        %2099 = vmatpush1.bf16.msra.mxu0 %v2075
        %2100 = vmatprep.subr.bf16.mxu0 0
        %2101 = vmatpush1.bf16.msra.mxu0 0
        %2102 = vmatprep.subr.bf16.mxu0 0
        %2103 = vmatpush1.bf16.msra.mxu0 0
        %2104 = vmatprep.subr.bf16.mxu0 0
        %2105 = vmatpush1.bf16.msra.mxu0 0
        %2106 = vmatprep.subr.bf16.mxu0 0
        %2107 = vmatpush1.bf16.msra.mxu0 0
        %2108 = vmatprep.subr.bf16.mxu0 0
        %2109 = vmatpush1.bf16.msra.mxu0 0
        %2110 = vmatprep.subr.bf16.mxu0 0
        %2111 = vmatpush1.bf16.msra.mxu0 0
        %2112 = vmatprep.subr.bf16.mxu0 0
        %2113 = vmatpush1.bf16.msra.mxu0 0
        %2114 = vmatprep.subr.bf16.mxu0 0
        %2115 = vmatpush1.bf16.msra.mxu0 0
        %2116 = vmatprep.mubr.bf16.mxu0 0
        %2117 = vmatmul.mubr.bf16.gmra.mrb[0].mxu0 %v1997
        %v2118 = vpop.f32.mrb[0].mxu0
        %v2119 = vadd.f32 %v2034, %v2118
        %v2120 = vpop.f32.mrb[0].mxu0
        %v2121 = vpop.f32.mrb[0].mxu0
        %v2122 = vadd.f32 %v2034, %v2121
        %v2123 = vpop.f32.mrb[0].mxu0
        %2124 = vmatprep.mubr.bf16.mxu0 0
        %2125 = vmatmul.mubr.bf16.gmra.mrb[0].mxu0 %v1998
        %v2126 = vpop.f32.mrb[0].mxu0
        %v2127 = vadd.f32 %v2034, %v2126
        %v2128 = vpop.f32.mrb[0].mxu0
        %v2129 = vpop.f32.mrb[0].mxu0
        %v2130 = vadd.f32 %v2034, %v2129
        %v2131 = vpop.f32.mrb[0].mxu0
        %2132 = vmatprep.mubr.bf16.mxu0 0
        %2133 = vmatmul.mubr.bf16.gmra.mrb[0].mxu0 %v1999
        %v2134 = vpop.f32.mrb[0].mxu0
        %v2135 = vadd.f32 %v2034, %v2134
        %v2136 = vpop.f32.mrb[0].mxu0
        %v2137 = vpop.f32.mrb[0].mxu0
        %v2138 = vadd.f32 %v2034, %v2137
        %v2139 = vpop.f32.mrb[0].mxu0
        %2140 = vmatprep.mubr.bf16.mxu0 0
        %2141 = vmatmul.mubr.bf16.gmra.mrb[0].mxu0 %v2000
        %v2142 = vpop.f32.mrb[0].mxu0
        %v2143 = vadd.f32 %v2034, %v2142
        %v2144 = vpop.f32.mrb[0].mxu0
        %v2145 = vpop.f32.mrb[0].mxu0
        %v2146 = vadd.f32 %v2034, %v2145
        %v2147 = vpop.f32.mrb[0].mxu0
        %2148 = vmatprep.mubr.bf16.mxu0 0
        %2149 = vmatmul.mubr.bf16.gmra.mrb[0].mxu0 %v2001
        %v2150 = vpop.f32.mrb[0].mxu0
        %v2151 = vadd.f32 %v2034, %v2150
        %v2152 = vpop.f32.mrb[0].mxu0
        %v2153 = vpop.f32.mrb[0].mxu0
        %v2154 = vadd.f32 %v2034, %v2153
        %v2155 = vpop.f32.mrb[0].mxu0
        %2156 = vmatprep.mubr.bf16.mxu0 0
        %2157 = vmatmul.mubr.bf16.gmra.mrb[0].mxu0 %v2002
        %v2158 = vpop.f32.mrb[0].mxu0
        %v2159 = vadd.f32 %v2034, %v2158
        %v2160 = vpop.f32.mrb[0].mxu0
        %v2161 = vpop.f32.mrb[0].mxu0
        %v2162 = vadd.f32 %v2034, %v2161
        %v2163 = vpop.f32.mrb[0].mxu0
        %2164 = vmatprep.mubr.bf16.mxu0 0
        %2165 = vmatmul.mubr.bf16.gmra.mrb[0].mxu0 %v2003
        %v2166 = vpop.f32.mrb[0].mxu0
        %v2167 = vadd.f32 %v2034, %v2166
        %v2168 = vpop.f32.mrb[0].mxu0
        %v2169 = vpop.f32.mrb[0].mxu0
        %v2170 = vadd.f32 %v2034, %v2169
        %v2171 = vpop.f32.mrb[0].mxu0
        %2172 = vmatprep.mubr.bf16.mxu0 0
        %2173 = vmatmul.mubr.bf16.gmra.mrb[0].mxu0 %v2004
        %v2174 = vpop.f32.mrb[0].mxu0
        %v2175 = vadd.f32 %v2034, %v2174
        %v2176 = vpop.f32.mrb[0].mxu0
        %v2177 = vpop.f32.mrb[0].mxu0
        %v2178 = vadd.f32 %v2034, %v2177
        %v2179 = vpop.f32.mrb[0].mxu0
        %2180 = vmatprep.mubr.bf16.mxu0 0
        %2181 = vmatmul.mubr.bf16.gmra.mrb[0].mxu0 %v2005
        %v2182 = vpop.f32.mrb[0].mxu0
        %v2183 = vadd.f32 %v2034, %v2182
        %v2184 = vpop.f32.mrb[0].mxu0
        %v2185 = vpop.f32.mrb[0].mxu0
        %v2186 = vadd.f32 %v2034, %v2185
        %v2187 = vpop.f32.mrb[0].mxu0
        %2188 = vmatprep.mubr.bf16.mxu0 0
        %2189 = vmatmul.mubr.bf16.gmra.mrb[0].mxu0 %v2006
        %v2190 = vpop.f32.mrb[0].mxu0
        %v2191 = vadd.f32 %v2034, %v2190
        %v2192 = vpop.f32.mrb[0].mxu0
        %v2193 = vpop.f32.mrb[0].mxu0
        %v2194 = vadd.f32 %v2034, %v2193
        %v2195 = vpop.f32.mrb[0].mxu0
        %2196 = vmatprep.mubr.bf16.mxu0 0
        %2197 = vmatmul.mubr.bf16.gmra.mrb[0].mxu0 %v2007
        %v2198 = vpop.f32.mrb[0].mxu0
        %v2199 = vadd.f32 %v2034, %v2198
        %v2200 = vpop.f32.mrb[0].mxu0
        %v2201 = vpop.f32.mrb[0].mxu0
        %v2202 = vadd.f32 %v2034, %v2201
        %v2203 = vpop.f32.mrb[0].mxu0
        %2204 = vmatprep.mubr.bf16.mxu0 0
        %2205 = vmatmul.mubr.bf16.gmra.mrb[0].mxu0 %v2008
        %v2206 = vpop.f32.mrb[0].mxu0
        %v2207 = vadd.f32 %v2034, %v2206
        %v2208 = vpop.f32.mrb[0].mxu0
        %v2209 = vpop.f32.mrb[0].mxu0
        %v2210 = vadd.f32 %v2034, %v2209
        %v2211 = vpop.f32.mrb[0].mxu0
        %2212 = vmatprep.mubr.bf16.mxu0 0
        %2213 = vmatmul.mubr.bf16.gmra.mrb[0].mxu0 %v2009
        %v2214 = vpop.f32.mrb[0].mxu0
        %v2215 = vadd.f32 %v2034, %v2214
        %v2216 = vpop.f32.mrb[0].mxu0
        %v2217 = vpop.f32.mrb[0].mxu0
        %v2218 = vadd.f32 %v2034, %v2217
        %v2219 = vpop.f32.mrb[0].mxu0
        %2220 = vmatprep.mubr.bf16.mxu0 0
        %2221 = vmatmul.mubr.bf16.gmra.mrb[0].mxu0 %v2010
        %v2222 = vpop.f32.mrb[0].mxu0
        %v2223 = vadd.f32 %v2034, %v2222
        %v2224 = vpop.f32.mrb[0].mxu0
        %v2225 = vpop.f32.mrb[0].mxu0
        %v2226 = vadd.f32 %v2034, %v2225
        %v2227 = vpop.f32.mrb[0].mxu0
        %2228 = vmatprep.mubr.bf16.mxu0 0
        %2229 = vmatmul.mubr.bf16.gmra.mrb[0].mxu0 %v2011
        %v2230 = vpop.f32.mrb[0].mxu0
        %v2231 = vadd.f32 %v2034, %v2230
        %v2232 = vpop.f32.mrb[0].mxu0
        %v2233 = vpop.f32.mrb[0].mxu0
        %v2234 = vadd.f32 %v2034, %v2233
        %v2235 = vpop.f32.mrb[0].mxu0
        %2236 = vmatprep.mubr.bf16.mxu0 0
        %2237 = vmatmul.mubr.bf16.gmra.mrb[0].mxu0 %v2012
        %v2238 = vpop.f32.mrb[0].mxu0
        %v2239 = vadd.f32 %v2034, %v2238
        %v2240 = vpop.f32.mrb[0].mxu0
        %v2241 = vpop.f32.mrb[0].mxu0
        %v2242 = vadd.f32 %v2034, %v2241
        %v2243 = vpop.f32.mrb[0].mxu0
        %2244 = vdwg.mxu0
        %v2245 = vld [vmem:[%s10] sm:$0x1]
        %v2246 = vld [vmem:[%s11] sm:$0x1]
        %2247 = vadd.xlane.f32.xlu0 %v2119
        %v2248 = vpop.xlane.xlu0 %2247
        %2249 = vadd.xlane.f32.xlu0 %v2122
        %v2250 = vpop.xlane.xlu0 %2249
        %2251 = vadd.xlane.f32.xlu0 %v2127
        %v2252 = vpop.xlane.xlu0 %2251
        %2253 = vadd.xlane.f32.xlu0 %v2130
        %v2254 = vpop.xlane.xlu0 %2253
        %2255 = vadd.xlane.f32.xlu0 %v2135
        %v2256 = vpop.xlane.xlu0 %2255
        %2257 = vadd.xlane.f32.xlu0 %v2138
        %v2258 = vpop.xlane.xlu0 %2257
        %2259 = vadd.xlane.f32.xlu0 %v2143
        %v2260 = vpop.xlane.xlu0 %2259
        %2261 = vadd.xlane.f32.xlu0 %v2146
        %v2262 = vpop.xlane.xlu0 %2261
        %2263 = vadd.xlane.f32.xlu0 %v2151
        %v2264 = vpop.xlane.xlu0 %2263
        %2265 = vadd.xlane.f32.xlu0 %v2154
        %v2266 = vpop.xlane.xlu0 %2265
        %2267 = vadd.xlane.f32.xlu0 %v2159
        %v2268 = vpop.xlane.xlu0 %2267
        %2269 = vadd.xlane.f32.xlu0 %v2162
        %v2270 = vpop.xlane.xlu0 %2269
        %2271 = vadd.xlane.f32.xlu0 %v2167
        %v2272 = vpop.xlane.xlu0 %2271
        %2273 = vadd.xlane.f32.xlu0 %v2170
        %v2274 = vpop.xlane.xlu0 %2273
        %2275 = vadd.xlane.f32.xlu0 %v2175
        %v2276 = vpop.xlane.xlu0 %2275
        %2277 = vadd.xlane.f32.xlu0 %v2178
        %v2278 = vpop.xlane.xlu0 %2277
        %2279 = vadd.xlane.f32.xlu0 %v2183
        %v2280 = vpop.xlane.xlu0 %2279
        %2281 = vadd.xlane.f32.xlu0 %v2186
        %v2282 = vpop.xlane.xlu0 %2281
        %2283 = vadd.xlane.f32.xlu0 %v2191
        %v2284 = vpop.xlane.xlu0 %2283
        %2285 = vadd.xlane.f32.xlu0 %v2194
        %v2286 = vpop.xlane.xlu0 %2285
        %2287 = vadd.xlane.f32.xlu0 %v2199
        %v2288 = vpop.xlane.xlu0 %2287
        %2289 = vadd.xlane.f32.xlu0 %v2202
        %v2290 = vpop.xlane.xlu0 %2289
        %2291 = vadd.xlane.f32.xlu0 %v2207
        %v2292 = vpop.xlane.xlu0 %2291
        %2293 = vadd.xlane.f32.xlu0 %v2210
        %v2294 = vpop.xlane.xlu0 %2293
        %2295 = vadd.xlane.f32.xlu0 %v2215
        %v2296 = vpop.xlane.xlu0 %2295
        %2297 = vadd.xlane.f32.xlu0 %v2218
        %v2298 = vpop.xlane.xlu0 %2297
        %2299 = vadd.xlane.f32.xlu0 %v2223
        %v2300 = vpop.xlane.xlu0 %2299
        %2301 = vadd.xlane.f32.xlu0 %v2226
        %v2302 = vpop.xlane.xlu0 %2301
        %2303 = vadd.xlane.f32.xlu0 %v2231
        %v2304 = vpop.xlane.xlu0 %2303
        %2305 = vadd.xlane.f32.xlu0 %v2234
        %v2306 = vpop.xlane.xlu0 %2305
        %2307 = vadd.xlane.f32.xlu0 %v2239
        %v2308 = vpop.xlane.xlu0 %2307
        %2309 = vadd.xlane.f32.xlu0 %v2242
        %v2310 = vpop.xlane.xlu0 %2309
        %v2311 = vmul.f32 %v2248, %v837
        %v2312 = vmul.f32 %v2250, %v837
        %v2313 = vmul.f32 %v2252, %v837
        %v2314 = vmul.f32 %v2254, %v837
        %v2315 = vmul.f32 %v2256, %v837
        %v2316 = vmul.f32 %v2258, %v837
        %v2317 = vmul.f32 %v2260, %v837
        %v2318 = vmul.f32 %v2262, %v837
        %v2319 = vmul.f32 %v2264, %v837
        %v2320 = vmul.f32 %v2266, %v837
        %v2321 = vmul.f32 %v2268, %v837
        %v2322 = vmul.f32 %v2270, %v837
        %v2323 = vmul.f32 %v2272, %v837
        %v2324 = vmul.f32 %v2274, %v837
        %v2325 = vmul.f32 %v2276, %v837
        %v2326 = vmul.f32 %v2278, %v837
        %v2327 = vmul.f32 %v2280, %v837
        %v2328 = vmul.f32 %v2282, %v837
        %v2329 = vmul.f32 %v2284, %v837
        %v2330 = vmul.f32 %v2286, %v837
        %v2331 = vmul.f32 %v2288, %v837
        %v2332 = vmul.f32 %v2290, %v837
        %v2333 = vmul.f32 %v2292, %v837
        %v2334 = vmul.f32 %v2294, %v837
        %v2335 = vmul.f32 %v2296, %v837
        %v2336 = vmul.f32 %v2298, %v837
        %v2337 = vmul.f32 %v2300, %v837
        %v2338 = vmul.f32 %v2302, %v837
        %v2339 = vmul.f32 %v2304, %v837
        %v2340 = vmul.f32 %v2306, %v837
        %v2341 = vmul.f32 %v2308, %v837
        %v2342 = vmul.f32 %v2310, %v837
        %v2343 = vsub.f32 %v2119, %v2311
        %v2344 = vsub.f32 %v2122, %v2312
        %v2345 = vsub.f32 %v2127, %v2313
        %v2346 = vsub.f32 %v2130, %v2314
        %v2347 = vsub.f32 %v2135, %v2315
        %v2348 = vsub.f32 %v2138, %v2316
        %v2349 = vsub.f32 %v2143, %v2317
        %v2350 = vsub.f32 %v2146, %v2318
        %v2351 = vsub.f32 %v2151, %v2319
        %v2352 = vsub.f32 %v2154, %v2320
        %v2353 = vsub.f32 %v2159, %v2321
        %v2354 = vsub.f32 %v2162, %v2322
        %v2355 = vsub.f32 %v2167, %v2323
        %v2356 = vsub.f32 %v2170, %v2324
        %v2357 = vsub.f32 %v2175, %v2325
        %v2358 = vsub.f32 %v2178, %v2326
        %v2359 = vsub.f32 %v2183, %v2327
        %v2360 = vsub.f32 %v2186, %v2328
        %v2361 = vsub.f32 %v2191, %v2329
        %v2362 = vsub.f32 %v2194, %v2330
        %v2363 = vsub.f32 %v2199, %v2331
        %v2364 = vsub.f32 %v2202, %v2332
        %v2365 = vsub.f32 %v2207, %v2333
        %v2366 = vsub.f32 %v2210, %v2334
        %v2367 = vsub.f32 %v2215, %v2335
        %v2368 = vsub.f32 %v2218, %v2336
        %v2369 = vsub.f32 %v2223, %v2337
        %v2370 = vsub.f32 %v2226, %v2338
        %v2371 = vsub.f32 %v2231, %v2339
        %v2372 = vsub.f32 %v2234, %v2340
        %v2373 = vsub.f32 %v2239, %v2341
        %v2374 = vsub.f32 %v2242, %v2342
        %v2375 = vmul.f32 %v2343, %v2343
        %v2376 = vmul.f32 %v2344, %v2344
        %v2377 = vmul.f32 %v2345, %v2345
        %v2378 = vmul.f32 %v2346, %v2346
        %v2379 = vmul.f32 %v2347, %v2347
        %v2380 = vmul.f32 %v2348, %v2348
        %v2381 = vmul.f32 %v2349, %v2349
        %v2382 = vmul.f32 %v2350, %v2350
        %v2383 = vmul.f32 %v2351, %v2351
        %v2384 = vmul.f32 %v2352, %v2352
        %v2385 = vmul.f32 %v2353, %v2353
        %v2386 = vmul.f32 %v2354, %v2354
        %v2387 = vmul.f32 %v2355, %v2355
        %v2388 = vmul.f32 %v2356, %v2356
        %v2389 = vmul.f32 %v2357, %v2357
        %v2390 = vmul.f32 %v2358, %v2358
        %v2391 = vmul.f32 %v2359, %v2359
        %v2392 = vmul.f32 %v2360, %v2360
        %v2393 = vmul.f32 %v2361, %v2361
        %v2394 = vmul.f32 %v2362, %v2362
        %v2395 = vmul.f32 %v2363, %v2363
        %v2396 = vmul.f32 %v2364, %v2364
        %v2397 = vmul.f32 %v2365, %v2365
        %v2398 = vmul.f32 %v2366, %v2366
        %v2399 = vmul.f32 %v2367, %v2367
        %v2400 = vmul.f32 %v2368, %v2368
        %v2401 = vmul.f32 %v2369, %v2369
        %v2402 = vmul.f32 %v2370, %v2370
        %v2403 = vmul.f32 %v2371, %v2371
        %v2404 = vmul.f32 %v2372, %v2372
        %v2405 = vmul.f32 %v2373, %v2373
        %v2406 = vmul.f32 %v2374, %v2374
        %2407 = vadd.xlane.f32.xlu0 %v2375
        %v2408 = vpop.xlane.xlu0 %2407
        %2409 = vadd.xlane.f32.xlu0 %v2376
        %v2410 = vpop.xlane.xlu0 %2409
        %2411 = vadd.xlane.f32.xlu0 %v2377
        %v2412 = vpop.xlane.xlu0 %2411
        %2413 = vadd.xlane.f32.xlu0 %v2378
        %v2414 = vpop.xlane.xlu0 %2413
        %2415 = vadd.xlane.f32.xlu0 %v2379
        %v2416 = vpop.xlane.xlu0 %2415
        %2417 = vadd.xlane.f32.xlu0 %v2380
        %v2418 = vpop.xlane.xlu0 %2417
        %2419 = vadd.xlane.f32.xlu0 %v2381
        %v2420 = vpop.xlane.xlu0 %2419
        %2421 = vadd.xlane.f32.xlu0 %v2382
        %v2422 = vpop.xlane.xlu0 %2421
        %2423 = vadd.xlane.f32.xlu0 %v2383
        %v2424 = vpop.xlane.xlu0 %2423
        %2425 = vadd.xlane.f32.xlu0 %v2384
        %v2426 = vpop.xlane.xlu0 %2425
        %2427 = vadd.xlane.f32.xlu0 %v2385
        %v2428 = vpop.xlane.xlu0 %2427
        %2429 = vadd.xlane.f32.xlu0 %v2386
        %v2430 = vpop.xlane.xlu0 %2429
        %2431 = vadd.xlane.f32.xlu0 %v2387
        %v2432 = vpop.xlane.xlu0 %2431
        %2433 = vadd.xlane.f32.xlu0 %v2388
        %v2434 = vpop.xlane.xlu0 %2433
        %2435 = vadd.xlane.f32.xlu0 %v2389
        %v2436 = vpop.xlane.xlu0 %2435
        %2437 = vadd.xlane.f32.xlu0 %v2390
        %v2438 = vpop.xlane.xlu0 %2437
        %2439 = vadd.xlane.f32.xlu0 %v2391
        %v2440 = vpop.xlane.xlu0 %2439
        %2441 = vadd.xlane.f32.xlu0 %v2392
        %v2442 = vpop.xlane.xlu0 %2441
        %2443 = vadd.xlane.f32.xlu0 %v2393
        %v2444 = vpop.xlane.xlu0 %2443
        %2445 = vadd.xlane.f32.xlu0 %v2394
        %v2446 = vpop.xlane.xlu0 %2445
        %2447 = vadd.xlane.f32.xlu0 %v2395
        %v2448 = vpop.xlane.xlu0 %2447
        %2449 = vadd.xlane.f32.xlu0 %v2396
        %v2450 = vpop.xlane.xlu0 %2449
        %2451 = vadd.xlane.f32.xlu0 %v2397
        %v2452 = vpop.xlane.xlu0 %2451
        %2453 = vadd.xlane.f32.xlu0 %v2398
        %v2454 = vpop.xlane.xlu0 %2453
        %2455 = vadd.xlane.f32.xlu0 %v2399
        %v2456 = vpop.xlane.xlu0 %2455
        %2457 = vadd.xlane.f32.xlu0 %v2400
        %v2458 = vpop.xlane.xlu0 %2457
        %2459 = vadd.xlane.f32.xlu0 %v2401
        %v2460 = vpop.xlane.xlu0 %2459
        %2461 = vadd.xlane.f32.xlu0 %v2402
        %v2462 = vpop.xlane.xlu0 %2461
        %2463 = vadd.xlane.f32.xlu0 %v2403
        %v2464 = vpop.xlane.xlu0 %2463
        %2465 = vadd.xlane.f32.xlu0 %v2404
        %v2466 = vpop.xlane.xlu0 %2465
        %2467 = vadd.xlane.f32.xlu0 %v2405
        %v2468 = vpop.xlane.xlu0 %2467
        %2469 = vadd.xlane.f32.xlu0 %v2406
        %v2470 = vpop.xlane.xlu0 %2469
        %v2471 = vmul.f32 %v2408, %v837
        %v2472 = vmul.f32 %v2410, %v837
        %v2473 = vmul.f32 %v2412, %v837
        %v2474 = vmul.f32 %v2414, %v837
        %v2475 = vmul.f32 %v2416, %v837
        %v2476 = vmul.f32 %v2418, %v837
        %v2477 = vmul.f32 %v2420, %v837
        %v2478 = vmul.f32 %v2422, %v837
        %v2479 = vmul.f32 %v2424, %v837
        %v2480 = vmul.f32 %v2426, %v837
        %v2481 = vmul.f32 %v2428, %v837
        %v2482 = vmul.f32 %v2430, %v837
        %v2483 = vmul.f32 %v2432, %v837
        %v2484 = vmul.f32 %v2434, %v837
        %v2485 = vmul.f32 %v2436, %v837
        %v2486 = vmul.f32 %v2438, %v837
        %v2487 = vmul.f32 %v2440, %v837
        %v2488 = vmul.f32 %v2442, %v837
        %v2489 = vmul.f32 %v2444, %v837
        %v2490 = vmul.f32 %v2446, %v837
        %v2491 = vmul.f32 %v2448, %v837
        %v2492 = vmul.f32 %v2450, %v837
        %v2493 = vmul.f32 %v2452, %v837
        %v2494 = vmul.f32 %v2454, %v837
        %v2495 = vmul.f32 %v2456, %v837
        %v2496 = vmul.f32 %v2458, %v837
        %v2497 = vmul.f32 %v2460, %v837
        %v2498 = vmul.f32 %v2462, %v837
        %v2499 = vmul.f32 %v2464, %v837
        %v2500 = vmul.f32 %v2466, %v837
        %v2501 = vmul.f32 %v2468, %v837
        %v2502 = vmul.f32 %v2470, %v837
        %v2503 = vadd.f32 %v2471, 1e-05
        %v2504 = vadd.f32 %v2472, 1e-05
        %v2505 = vadd.f32 %v2473, 1e-05
        %v2506 = vadd.f32 %v2474, 1e-05
        %v2507 = vadd.f32 %v2475, 1e-05
        %v2508 = vadd.f32 %v2476, 1e-05
        %v2509 = vadd.f32 %v2477, 1e-05
        %v2510 = vadd.f32 %v2478, 1e-05
        %v2511 = vadd.f32 %v2479, 1e-05
        %v2512 = vadd.f32 %v2480, 1e-05
        %v2513 = vadd.f32 %v2481, 1e-05
        %v2514 = vadd.f32 %v2482, 1e-05
        %v2515 = vadd.f32 %v2483, 1e-05
        %v2516 = vadd.f32 %v2484, 1e-05
        %v2517 = vadd.f32 %v2485, 1e-05
        %v2518 = vadd.f32 %v2486, 1e-05
        %v2519 = vadd.f32 %v2487, 1e-05
        %v2520 = vadd.f32 %v2488, 1e-05
        %v2521 = vadd.f32 %v2489, 1e-05
        %v2522 = vadd.f32 %v2490, 1e-05
        %v2523 = vadd.f32 %v2491, 1e-05
        %v2524 = vadd.f32 %v2492, 1e-05
        %v2525 = vadd.f32 %v2493, 1e-05
        %v2526 = vadd.f32 %v2494, 1e-05
        %v2527 = vadd.f32 %v2495, 1e-05
        %v2528 = vadd.f32 %v2496, 1e-05
        %v2529 = vadd.f32 %v2497, 1e-05
        %v2530 = vadd.f32 %v2498, 1e-05
        %v2531 = vadd.f32 %v2499, 1e-05
        %v2532 = vadd.f32 %v2500, 1e-05
        %v2533 = vadd.f32 %v2501, 1e-05
        %v2534 = vadd.f32 %v2502, 1e-05
        %v2535 = vrsqrt.pop %v2503
        %v2536 = vrsqrt.pop %v2504
        %v2537 = vrsqrt.pop %v2505
        %v2538 = vrsqrt.pop %v2506
        %v2539 = vrsqrt.pop %v2507
        %v2540 = vrsqrt.pop %v2508
        %v2541 = vrsqrt.pop %v2509
        %v2542 = vrsqrt.pop %v2510
        %v2543 = vrsqrt.pop %v2511
        %v2544 = vrsqrt.pop %v2512
        %v2545 = vrsqrt.pop %v2513
        %v2546 = vrsqrt.pop %v2514
        %v2547 = vrsqrt.pop %v2515
        %v2548 = vrsqrt.pop %v2516
        %v2549 = vrsqrt.pop %v2517
        %v2550 = vrsqrt.pop %v2518
        %v2551 = vrsqrt.pop %v2519
        %v2552 = vrsqrt.pop %v2520
        %v2553 = vrsqrt.pop %v2521
        %v2554 = vrsqrt.pop %v2522
        %v2555 = vrsqrt.pop %v2523
        %v2556 = vrsqrt.pop %v2524
        %v2557 = vrsqrt.pop %v2525
        %v2558 = vrsqrt.pop %v2526
        %v2559 = vrsqrt.pop %v2527
        %v2560 = vrsqrt.pop %v2528
        %v2561 = vrsqrt.pop %v2529
        %v2562 = vrsqrt.pop %v2530
        %v2563 = vrsqrt.pop %v2531
        %v2564 = vrsqrt.pop %v2532
        %v2565 = vrsqrt.pop %v2533
        %v2566 = vrsqrt.pop %v2534
        %v2567 = vmul.f32 %v2343, %v2535
        %v2568 = vmul.f32 %v2344, %v2536
        %v2569 = vmul.f32 %v2345, %v2537
        %v2570 = vmul.f32 %v2346, %v2538
        %v2571 = vmul.f32 %v2347, %v2539
        %v2572 = vmul.f32 %v2348, %v2540
        %v2573 = vmul.f32 %v2349, %v2541
        %v2574 = vmul.f32 %v2350, %v2542
        %v2575 = vmul.f32 %v2351, %v2543
        %v2576 = vmul.f32 %v2352, %v2544
        %v2577 = vmul.f32 %v2353, %v2545
        %v2578 = vmul.f32 %v2354, %v2546
        %v2579 = vmul.f32 %v2355, %v2547
        %v2580 = vmul.f32 %v2356, %v2548
        %v2581 = vmul.f32 %v2357, %v2549
        %v2582 = vmul.f32 %v2358, %v2550
        %v2583 = vmul.f32 %v2359, %v2551
        %v2584 = vmul.f32 %v2360, %v2552
        %v2585 = vmul.f32 %v2361, %v2553
        %v2586 = vmul.f32 %v2362, %v2554
        %v2587 = vmul.f32 %v2363, %v2555
        %v2588 = vmul.f32 %v2364, %v2556
        %v2589 = vmul.f32 %v2365, %v2557
        %v2590 = vmul.f32 %v2366, %v2558
        %v2591 = vmul.f32 %v2367, %v2559
        %v2592 = vmul.f32 %v2368, %v2560
        %v2593 = vmul.f32 %v2369, %v2561
        %v2594 = vmul.f32 %v2370, %v2562
        %v2595 = vmul.f32 %v2371, %v2563
        %v2596 = vmul.f32 %v2372, %v2564
        %v2597 = vmul.f32 %v2373, %v2565
        %v2598 = vmul.f32 %v2374, %v2566
        %v2600 = vlaneseq
        %v2601 = vshrl.u32 %v2600, 7
        %v2602 = vsub.s32 0, %v2601
        %v2603 = vrot.slane %v2245, %v2602
        %v2605 = vmul.f32 %v2567, %v2603
        %v2606 = vmul.f32 %v2568, %v2603
        %v2607 = vmul.f32 %v2569, %v2603
        %v2608 = vmul.f32 %v2570, %v2603
        %v2609 = vmul.f32 %v2571, %v2603
        %v2610 = vmul.f32 %v2572, %v2603
        %v2611 = vmul.f32 %v2573, %v2603
        %v2612 = vmul.f32 %v2574, %v2603
        %v2613 = vmul.f32 %v2575, %v2603
        %v2614 = vmul.f32 %v2576, %v2603
        %v2615 = vmul.f32 %v2577, %v2603
        %v2616 = vmul.f32 %v2578, %v2603
        %v2617 = vmul.f32 %v2579, %v2603
        %v2618 = vmul.f32 %v2580, %v2603
        %v2619 = vmul.f32 %v2581, %v2603
        %v2620 = vmul.f32 %v2582, %v2603
        %v2621 = vmul.f32 %v2583, %v2603
        %v2622 = vmul.f32 %v2584, %v2603
        %v2623 = vmul.f32 %v2585, %v2603
        %v2624 = vmul.f32 %v2586, %v2603
        %v2625 = vmul.f32 %v2587, %v2603
        %v2626 = vmul.f32 %v2588, %v2603
        %v2627 = vmul.f32 %v2589, %v2603
        %v2628 = vmul.f32 %v2590, %v2603
        %v2629 = vmul.f32 %v2591, %v2603
        %v2630 = vmul.f32 %v2592, %v2603
        %v2631 = vmul.f32 %v2593, %v2603
        %v2632 = vmul.f32 %v2594, %v2603
        %v2633 = vmul.f32 %v2595, %v2603
        %v2634 = vmul.f32 %v2596, %v2603
        %v2635 = vmul.f32 %v2597, %v2603
        %v2636 = vmul.f32 %v2598, %v2603
        %v2638 = vlaneseq
        %v2639 = vshrl.u32 %v2638, 7
        %v2640 = vsub.s32 0, %v2639
        %v2641 = vrot.slane %v2246, %v2640
        %v2643 = vadd.f32 %v2605, %v2641
        %v2644 = vadd.f32 %v2606, %v2641
        %v2645 = vadd.f32 %v2607, %v2641
        %v2646 = vadd.f32 %v2608, %v2641
        %v2647 = vadd.f32 %v2609, %v2641
        %v2648 = vadd.f32 %v2610, %v2641
        %v2649 = vadd.f32 %v2611, %v2641
        %v2650 = vadd.f32 %v2612, %v2641
        %v2651 = vadd.f32 %v2613, %v2641
        %v2652 = vadd.f32 %v2614, %v2641
        %v2653 = vadd.f32 %v2615, %v2641
        %v2654 = vadd.f32 %v2616, %v2641
        %v2655 = vadd.f32 %v2617, %v2641
        %v2656 = vadd.f32 %v2618, %v2641
        %v2657 = vadd.f32 %v2619, %v2641
        %v2658 = vadd.f32 %v2620, %v2641
        %v2659 = vadd.f32 %v2621, %v2641
        %v2660 = vadd.f32 %v2622, %v2641
        %v2661 = vadd.f32 %v2623, %v2641
        %v2662 = vadd.f32 %v2624, %v2641
        %v2663 = vadd.f32 %v2625, %v2641
        %v2664 = vadd.f32 %v2626, %v2641
        %v2665 = vadd.f32 %v2627, %v2641
        %v2666 = vadd.f32 %v2628, %v2641
        %v2667 = vadd.f32 %v2629, %v2641
        %v2668 = vadd.f32 %v2630, %v2641
        %v2669 = vadd.f32 %v2631, %v2641
        %v2670 = vadd.f32 %v2632, %v2641
        %v2671 = vadd.f32 %v2633, %v2641
        %v2672 = vadd.f32 %v2634, %v2641
        %v2673 = vadd.f32 %v2635, %v2641
        %v2674 = vadd.f32 %v2636, %v2641
        %v2675 = vadd.f32 %v1170, %v2643
        %v2676 = vadd.f32 %v1171, %v2644
        %v2677 = vadd.f32 %v1172, %v2645
        %v2678 = vadd.f32 %v1173, %v2646
        %v2679 = vadd.f32 %v1174, %v2647
        %v2680 = vadd.f32 %v1175, %v2648
        %v2681 = vadd.f32 %v1176, %v2649
        %v2682 = vadd.f32 %v1177, %v2650
        %v2683 = vadd.f32 %v1178, %v2651
        %v2684 = vadd.f32 %v1179, %v2652
        %v2685 = vadd.f32 %v1180, %v2653
        %v2686 = vadd.f32 %v1181, %v2654
        %v2687 = vadd.f32 %v1182, %v2655
        %v2688 = vadd.f32 %v1183, %v2656
        %v2689 = vadd.f32 %v1184, %v2657
        %v2690 = vadd.f32 %v1185, %v2658
        %v2691 = vadd.f32 %v1186, %v2659
        %v2692 = vadd.f32 %v1187, %v2660
        %v2693 = vadd.f32 %v1188, %v2661
        %v2694 = vadd.f32 %v1189, %v2662
        %v2695 = vadd.f32 %v1190, %v2663
        %v2696 = vadd.f32 %v1191, %v2664
        %v2697 = vadd.f32 %v1192, %v2665
        %v2698 = vadd.f32 %v1193, %v2666
        %v2699 = vadd.f32 %v1194, %v2667
        %v2700 = vadd.f32 %v1195, %v2668
        %v2701 = vadd.f32 %v1196, %v2669
        %v2702 = vadd.f32 %v1197, %v2670
        %v2703 = vadd.f32 %v1198, %v2671
        %v2704 = vadd.f32 %v1199, %v2672
        %v2705 = vadd.f32 %v1200, %v2673
        %v2706 = vadd.f32 %v1201, %v2674
        %v2707 = vadd.f32 %v2675, %v1663
        %v2708 = vadd.f32 %v2676, %v1664
        %v2709 = vadd.f32 %v2677, %v1665
        %v2710 = vadd.f32 %v2678, %v1666
        %v2711 = vadd.f32 %v2679, %v1667
        %v2712 = vadd.f32 %v2680, %v1668
        %v2713 = vadd.f32 %v2681, %v1669
        %v2714 = vadd.f32 %v2682, %v1670
        %v2715 = vadd.f32 %v2683, %v1671
        %v2716 = vadd.f32 %v2684, %v1672
        %v2717 = vadd.f32 %v2685, %v1673
        %v2718 = vadd.f32 %v2686, %v1674
        %v2719 = vadd.f32 %v2687, %v1675
        %v2720 = vadd.f32 %v2688, %v1676
        %v2721 = vadd.f32 %v2689, %v1677
        %v2722 = vadd.f32 %v2690, %v1678
        %v2723 = vadd.f32 %v2691, %v1679
        %v2724 = vadd.f32 %v2692, %v1680
        %v2725 = vadd.f32 %v2693, %v1681
        %v2726 = vadd.f32 %v2694, %v1682
        %v2727 = vadd.f32 %v2695, %v1683
        %v2728 = vadd.f32 %v2696, %v1684
        %v2729 = vadd.f32 %v2697, %v1685
        %v2730 = vadd.f32 %v2698, %v1686
        %v2731 = vadd.f32 %v2699, %v1687
        %v2732 = vadd.f32 %v2700, %v1688
        %v2733 = vadd.f32 %v2701, %v1689
        %v2734 = vadd.f32 %v2702, %v1690
        %v2735 = vadd.f32 %v2703, %v1691
        %v2736 = vadd.f32 %v2704, %v1692
        %v2737 = vadd.f32 %v2705, %v1693
        %v2738 = vadd.f32 %v2706, %v1694
        %v2739 = vpack.c.bf16 %v2708, %v2707
        %v2740 = vpack.c.bf16 %v2710, %v2709
        %v2741 = vpack.c.bf16 %v2712, %v2711
        %v2742 = vpack.c.bf16 %v2714, %v2713
        %v2743 = vpack.c.bf16 %v2716, %v2715
        %v2744 = vpack.c.bf16 %v2718, %v2717
        %v2745 = vpack.c.bf16 %v2720, %v2719
        %v2746 = vpack.c.bf16 %v2722, %v2721
        %v2747 = vpack.c.bf16 %v2724, %v2723
        %v2748 = vpack.c.bf16 %v2726, %v2725
        %v2749 = vpack.c.bf16 %v2728, %v2727
        %v2750 = vpack.c.bf16 %v2730, %v2729
        %v2751 = vpack.c.bf16 %v2732, %v2731
        %v2752 = vpack.c.bf16 %v2734, %v2733
        %v2753 = vpack.c.bf16 %v2736, %v2735
        %v2754 = vpack.c.bf16 %v2738, %v2737
        %v2755 = vld [vmem:[%s12] sm:$0xff]
        %v2756 = vld [vmem:[%s12 + $0x8] sm:$0xff]
        %v2757 = vld [vmem:[%s12 + $0x10] sm:$0xff]
        %v2758 = vld [vmem:[%s12 + $0x18] sm:$0xff]
        %v2759 = vld [vmem:[%s12 + $0x20] sm:$0xff]
        %v2760 = vld [vmem:[%s12 + $0x28] sm:$0xff]
        %v2761 = vld [vmem:[%s12 + $0x30] sm:$0xff]
        %v2762 = vld [vmem:[%s12 + $0x38] sm:$0xff]
        %v2763 = vld [vmem:[%s12 + $0x40] sm:$0xff]
        %v2764 = vld [vmem:[%s12 + $0x48] sm:$0xff]
        %v2765 = vld [vmem:[%s12 + $0x50] sm:$0xff]
        %v2766 = vld [vmem:[%s12 + $0x58] sm:$0xff]
        %v2767 = vld [vmem:[%s12 + $0x60] sm:$0xff]
        %v2768 = vld [vmem:[%s12 + $0x68] sm:$0xff]
        %v2769 = vld [vmem:[%s12 + $0x70] sm:$0xff]
        %v2770 = vld [vmem:[%s12 + $0x78] sm:$0xff]
        %v2771 = vld [vmem:[%s13] sm:$0x3]
        %v2773 = vlaneseq
        %v2774 = vshrl.u32 %v2773, 7
        %v2775 = vsub.s32 0, %v2774
        %v2776 = vrot.slane %v2771, %v2775
        %v2777 = vlaneseq
        %v2778 = vshrl.u32 %v2777, 7
        %v2779 = vsub.s32 1, %v2778
        %v2780 = vrot.slane %v2771, %v2779
        %v2799 = vunpack.c.l.b16 %v2755
        %v2800 = vunpack.c.h.b16 %v2755
        %v2801 = vunpack.c.l.b16 %v2756
        %v2802 = vunpack.c.h.b16 %v2756
        %v2803 = vunpack.c.l.b16 %v2757
        %v2804 = vunpack.c.h.b16 %v2757
        %v2805 = vunpack.c.l.b16 %v2758
        %v2806 = vunpack.c.h.b16 %v2758
        %v2807 = vunpack.c.l.b16 %v2759
        %v2808 = vunpack.c.h.b16 %v2759
        %v2809 = vunpack.c.l.b16 %v2760
        %v2810 = vunpack.c.h.b16 %v2760
        %v2811 = vunpack.c.l.b16 %v2761
        %v2812 = vunpack.c.h.b16 %v2761
        %v2813 = vunpack.c.l.b16 %v2762
        %v2814 = vunpack.c.h.b16 %v2762
        %v2815 = vunpack.c.l.b16 %v2763
        %v2816 = vunpack.c.h.b16 %v2763
        %v2817 = vunpack.c.l.b16 %v2764
        %v2818 = vunpack.c.h.b16 %v2764
        %v2819 = vunpack.c.l.b16 %v2765
        %v2820 = vunpack.c.h.b16 %v2765
        %v2821 = vunpack.c.l.b16 %v2766
        %v2822 = vunpack.c.h.b16 %v2766
        %v2823 = vunpack.c.l.b16 %v2767
        %v2824 = vunpack.c.h.b16 %v2767
        %v2825 = vunpack.c.l.b16 %v2768
        %v2826 = vunpack.c.h.b16 %v2768
        %v2827 = vunpack.c.l.b16 %v2769
        %v2828 = vunpack.c.h.b16 %v2769
        %v2829 = vunpack.c.l.b16 %v2770
        %v2830 = vunpack.c.h.b16 %v2770
        %v2831 = vpack.c.b16 %v2801, %v2799
        %v2832 = vpack.c.b16 %v2802, %v2800
        %v2833 = vpack.c.b16 %v2805, %v2803
        %v2834 = vpack.c.b16 %v2806, %v2804
        %v2835 = vpack.c.b16 %v2809, %v2807
        %v2836 = vpack.c.b16 %v2810, %v2808
        %v2837 = vpack.c.b16 %v2813, %v2811
        %v2838 = vpack.c.b16 %v2814, %v2812
        %v2839 = vpack.c.b16 %v2817, %v2815
        %v2840 = vpack.c.b16 %v2818, %v2816
        %v2841 = vpack.c.b16 %v2821, %v2819
        %v2842 = vpack.c.b16 %v2822, %v2820
        %v2843 = vpack.c.b16 %v2825, %v2823
        %v2844 = vpack.c.b16 %v2826, %v2824
        %v2845 = vpack.c.b16 %v2829, %v2827
        %v2846 = vpack.c.b16 %v2830, %v2828
        %2863 = vmatprep.subr.bf16.mxu0 %v2832
        %2864 = vmatpush1.bf16.msra.mxu0 %v2831
        %2865 = vmatprep.subr.bf16.mxu0 %v2834
        %2866 = vmatpush1.bf16.msra.mxu0 %v2833
        %2867 = vmatprep.subr.bf16.mxu0 %v2836
        %2868 = vmatpush1.bf16.msra.mxu0 %v2835
        %2869 = vmatprep.subr.bf16.mxu0 %v2838
        %2870 = vmatpush1.bf16.msra.mxu0 %v2837
        %2871 = vmatprep.subr.bf16.mxu0 %v2840
        %2872 = vmatpush1.bf16.msra.mxu0 %v2839
        %2873 = vmatprep.subr.bf16.mxu0 %v2842
        %2874 = vmatpush1.bf16.msra.mxu0 %v2841
        %2875 = vmatprep.subr.bf16.mxu0 %v2844
        %2876 = vmatpush1.bf16.msra.mxu0 %v2843
        %2877 = vmatprep.subr.bf16.mxu0 %v2846
        %2878 = vmatpush1.bf16.msra.mxu0 %v2845
        %2879 = vmatprep.subr.bf16.mxu0 0
        %2880 = vmatpush1.bf16.msra.mxu0 0
        %2881 = vmatprep.subr.bf16.mxu0 0
        %2882 = vmatpush1.bf16.msra.mxu0 0
        %2883 = vmatprep.subr.bf16.mxu0 0
        %2884 = vmatpush1.bf16.msra.mxu0 0
        %2885 = vmatprep.subr.bf16.mxu0 0
        %2886 = vmatpush1.bf16.msra.mxu0 0
        %2887 = vmatprep.subr.bf16.mxu0 0
        %2888 = vmatpush1.bf16.msra.mxu0 0
        %2889 = vmatprep.subr.bf16.mxu0 0
        %2890 = vmatpush1.bf16.msra.mxu0 0
        %2891 = vmatprep.subr.bf16.mxu0 0
        %2892 = vmatpush1.bf16.msra.mxu0 0
        %2893 = vmatprep.subr.bf16.mxu0 0
        %2894 = vmatpush1.bf16.msra.mxu0 0
        %2895 = vmatprep.mubr.bf16.mxu0 0
        %2896 = vmatmul.mubr.bf16.gmra.mrb[0].mxu0 %v2739
        %v2897 = vpop.f32.mrb[0].mxu0
        %v2898 = vadd.f32 %v2776, %v2897
        %v2899 = vpop.f32.mrb[0].mxu0
        %v2900 = vadd.f32 %v2780, %v2899
        %v2901 = vpop.f32.mrb[0].mxu0
        %v2902 = vadd.f32 %v2776, %v2901
        %v2903 = vpop.f32.mrb[0].mxu0
        %v2904 = vadd.f32 %v2780, %v2903
        %2905 = vmatprep.mubr.bf16.mxu0 0
        %2906 = vmatmul.mubr.bf16.gmra.mrb[0].mxu0 %v2740
        %v2907 = vpop.f32.mrb[0].mxu0
        %v2908 = vadd.f32 %v2776, %v2907
        %v2909 = vpop.f32.mrb[0].mxu0
        %v2910 = vadd.f32 %v2780, %v2909
        %v2911 = vpop.f32.mrb[0].mxu0
        %v2912 = vadd.f32 %v2776, %v2911
        %v2913 = vpop.f32.mrb[0].mxu0
        %v2914 = vadd.f32 %v2780, %v2913
        %2915 = vmatprep.mubr.bf16.mxu0 0
        %2916 = vmatmul.mubr.bf16.gmra.mrb[0].mxu0 %v2741
        %v2917 = vpop.f32.mrb[0].mxu0
        %v2918 = vadd.f32 %v2776, %v2917
        %v2919 = vpop.f32.mrb[0].mxu0
        %v2920 = vadd.f32 %v2780, %v2919
        %v2921 = vpop.f32.mrb[0].mxu0
        %v2922 = vadd.f32 %v2776, %v2921
        %v2923 = vpop.f32.mrb[0].mxu0
        %v2924 = vadd.f32 %v2780, %v2923
        %2925 = vmatprep.mubr.bf16.mxu0 0
        %2926 = vmatmul.mubr.bf16.gmra.mrb[0].mxu0 %v2742
        %v2927 = vpop.f32.mrb[0].mxu0
        %v2928 = vadd.f32 %v2776, %v2927
        %v2929 = vpop.f32.mrb[0].mxu0
        %v2930 = vadd.f32 %v2780, %v2929
        %v2931 = vpop.f32.mrb[0].mxu0
        %v2932 = vadd.f32 %v2776, %v2931
        %v2933 = vpop.f32.mrb[0].mxu0
        %v2934 = vadd.f32 %v2780, %v2933
        %2935 = vmatprep.mubr.bf16.mxu0 0
        %2936 = vmatmul.mubr.bf16.gmra.mrb[0].mxu0 %v2743
        %v2937 = vpop.f32.mrb[0].mxu0
        %v2938 = vadd.f32 %v2776, %v2937
        %v2939 = vpop.f32.mrb[0].mxu0
        %v2940 = vadd.f32 %v2780, %v2939
        %v2941 = vpop.f32.mrb[0].mxu0
        %v2942 = vadd.f32 %v2776, %v2941
        %v2943 = vpop.f32.mrb[0].mxu0
        %v2944 = vadd.f32 %v2780, %v2943
        %2945 = vmatprep.mubr.bf16.mxu0 0
        %2946 = vmatmul.mubr.bf16.gmra.mrb[0].mxu0 %v2744
        %v2947 = vpop.f32.mrb[0].mxu0
        %v2948 = vadd.f32 %v2776, %v2947
        %v2949 = vpop.f32.mrb[0].mxu0
        %v2950 = vadd.f32 %v2780, %v2949
        %v2951 = vpop.f32.mrb[0].mxu0
        %v2952 = vadd.f32 %v2776, %v2951
        %v2953 = vpop.f32.mrb[0].mxu0
        %v2954 = vadd.f32 %v2780, %v2953
        %2955 = vmatprep.mubr.bf16.mxu0 0
        %2956 = vmatmul.mubr.bf16.gmra.mrb[0].mxu0 %v2745
        %v2957 = vpop.f32.mrb[0].mxu0
        %v2958 = vadd.f32 %v2776, %v2957
        %v2959 = vpop.f32.mrb[0].mxu0
        %v2960 = vadd.f32 %v2780, %v2959
        %v2961 = vpop.f32.mrb[0].mxu0
        %v2962 = vadd.f32 %v2776, %v2961
        %v2963 = vpop.f32.mrb[0].mxu0
        %v2964 = vadd.f32 %v2780, %v2963
        %2965 = vmatprep.mubr.bf16.mxu0 0
        %2966 = vmatmul.mubr.bf16.gmra.mrb[0].mxu0 %v2746
        %v2967 = vpop.f32.mrb[0].mxu0
        %v2968 = vadd.f32 %v2776, %v2967
        %v2969 = vpop.f32.mrb[0].mxu0
        %v2970 = vadd.f32 %v2780, %v2969
        %v2971 = vpop.f32.mrb[0].mxu0
        %v2972 = vadd.f32 %v2776, %v2971
        %v2973 = vpop.f32.mrb[0].mxu0
        %v2974 = vadd.f32 %v2780, %v2973
        %2975 = vmatprep.mubr.bf16.mxu0 0
        %2976 = vmatmul.mubr.bf16.gmra.mrb[0].mxu0 %v2747
        %v2977 = vpop.f32.mrb[0].mxu0
        %v2978 = vadd.f32 %v2776, %v2977
        %v2979 = vpop.f32.mrb[0].mxu0
        %v2980 = vadd.f32 %v2780, %v2979
        %v2981 = vpop.f32.mrb[0].mxu0
        %v2982 = vadd.f32 %v2776, %v2981
        %v2983 = vpop.f32.mrb[0].mxu0
        %v2984 = vadd.f32 %v2780, %v2983
        %2985 = vmatprep.mubr.bf16.mxu0 0
        %2986 = vmatmul.mubr.bf16.gmra.mrb[0].mxu0 %v2748
        %v2987 = vpop.f32.mrb[0].mxu0
        %v2988 = vadd.f32 %v2776, %v2987
        %v2989 = vpop.f32.mrb[0].mxu0
        %v2990 = vadd.f32 %v2780, %v2989
        %v2991 = vpop.f32.mrb[0].mxu0
        %v2992 = vadd.f32 %v2776, %v2991
        %v2993 = vpop.f32.mrb[0].mxu0
        %v2994 = vadd.f32 %v2780, %v2993
        %2995 = vmatprep.mubr.bf16.mxu0 0
        %2996 = vmatmul.mubr.bf16.gmra.mrb[0].mxu0 %v2749
        %v2997 = vpop.f32.mrb[0].mxu0
        %v2998 = vadd.f32 %v2776, %v2997
        %v2999 = vpop.f32.mrb[0].mxu0
        %v3000 = vadd.f32 %v2780, %v2999
        %v3001 = vpop.f32.mrb[0].mxu0
        %v3002 = vadd.f32 %v2776, %v3001
        %v3003 = vpop.f32.mrb[0].mxu0
        %v3004 = vadd.f32 %v2780, %v3003
        %3005 = vmatprep.mubr.bf16.mxu0 0
        %3006 = vmatmul.mubr.bf16.gmra.mrb[0].mxu0 %v2750
        %v3007 = vpop.f32.mrb[0].mxu0
        %v3008 = vadd.f32 %v2776, %v3007
        %v3009 = vpop.f32.mrb[0].mxu0
        %v3010 = vadd.f32 %v2780, %v3009
        %v3011 = vpop.f32.mrb[0].mxu0
        %v3012 = vadd.f32 %v2776, %v3011
        %v3013 = vpop.f32.mrb[0].mxu0
        %v3014 = vadd.f32 %v2780, %v3013
        %3015 = vmatprep.mubr.bf16.mxu0 0
        %3016 = vmatmul.mubr.bf16.gmra.mrb[0].mxu0 %v2751
        %v3017 = vpop.f32.mrb[0].mxu0
        %v3018 = vadd.f32 %v2776, %v3017
        %v3019 = vpop.f32.mrb[0].mxu0
        %v3020 = vadd.f32 %v2780, %v3019
        %v3021 = vpop.f32.mrb[0].mxu0
        %v3022 = vadd.f32 %v2776, %v3021
        %v3023 = vpop.f32.mrb[0].mxu0
        %v3024 = vadd.f32 %v2780, %v3023
        %3025 = vmatprep.mubr.bf16.mxu0 0
        %3026 = vmatmul.mubr.bf16.gmra.mrb[0].mxu0 %v2752
        %v3027 = vpop.f32.mrb[0].mxu0
        %v3028 = vadd.f32 %v2776, %v3027
        %v3029 = vpop.f32.mrb[0].mxu0
        %v3030 = vadd.f32 %v2780, %v3029
        %v3031 = vpop.f32.mrb[0].mxu0
        %v3032 = vadd.f32 %v2776, %v3031
        %v3033 = vpop.f32.mrb[0].mxu0
        %v3034 = vadd.f32 %v2780, %v3033
        %3035 = vmatprep.mubr.bf16.mxu0 0
        %3036 = vmatmul.mubr.bf16.gmra.mrb[0].mxu0 %v2753
        %v3037 = vpop.f32.mrb[0].mxu0
        %v3038 = vadd.f32 %v2776, %v3037
        %v3039 = vpop.f32.mrb[0].mxu0
        %v3040 = vadd.f32 %v2780, %v3039
        %v3041 = vpop.f32.mrb[0].mxu0
        %v3042 = vadd.f32 %v2776, %v3041
        %v3043 = vpop.f32.mrb[0].mxu0
        %v3044 = vadd.f32 %v2780, %v3043
        %3045 = vmatprep.mubr.bf16.mxu0 0
        %3046 = vmatmul.mubr.bf16.gmra.mrb[0].mxu0 %v2754
        %v3047 = vpop.f32.mrb[0].mxu0
        %v3048 = vadd.f32 %v2776, %v3047
        %v3049 = vpop.f32.mrb[0].mxu0
        %v3050 = vadd.f32 %v2780, %v3049
        %v3051 = vpop.f32.mrb[0].mxu0
        %v3052 = vadd.f32 %v2776, %v3051
        %v3053 = vpop.f32.mrb[0].mxu0
        %v3054 = vadd.f32 %v2780, %v3053
        %3055 = vdwg.mxu0
        %vm3056 = vcmp.gt.f32.partialorder %v2898, 0.0
        %vm3057 = vcmp.gt.f32.partialorder %v2900, 0.0
        %vm3058 = vcmp.gt.f32.partialorder %v2902, 0.0
        %vm3059 = vcmp.gt.f32.partialorder %v2904, 0.0
        %vm3060 = vcmp.gt.f32.partialorder %v2908, 0.0
        %vm3061 = vcmp.gt.f32.partialorder %v2910, 0.0
        %vm3062 = vcmp.gt.f32.partialorder %v2912, 0.0
        %vm3063 = vcmp.gt.f32.partialorder %v2914, 0.0
        %vm3064 = vcmp.gt.f32.partialorder %v2918, 0.0
        %vm3065 = vcmp.gt.f32.partialorder %v2920, 0.0
        %vm3066 = vcmp.gt.f32.partialorder %v2922, 0.0
        %vm3067 = vcmp.gt.f32.partialorder %v2924, 0.0
        %vm3068 = vcmp.gt.f32.partialorder %v2928, 0.0
        %vm3069 = vcmp.gt.f32.partialorder %v2930, 0.0
        %vm3070 = vcmp.gt.f32.partialorder %v2932, 0.0
        %vm3071 = vcmp.gt.f32.partialorder %v2934, 0.0
        %vm3072 = vcmp.gt.f32.partialorder %v2938, 0.0
        %vm3073 = vcmp.gt.f32.partialorder %v2940, 0.0
        %vm3074 = vcmp.gt.f32.partialorder %v2942, 0.0
        %vm3075 = vcmp.gt.f32.partialorder %v2944, 0.0
        %vm3076 = vcmp.gt.f32.partialorder %v2948, 0.0
        %vm3077 = vcmp.gt.f32.partialorder %v2950, 0.0
        %vm3078 = vcmp.gt.f32.partialorder %v2952, 0.0
        %vm3079 = vcmp.gt.f32.partialorder %v2954, 0.0
        %vm3080 = vcmp.gt.f32.partialorder %v2958, 0.0
        %vm3081 = vcmp.gt.f32.partialorder %v2960, 0.0
        %vm3082 = vcmp.gt.f32.partialorder %v2962, 0.0
        %vm3083 = vcmp.gt.f32.partialorder %v2964, 0.0
        %vm3084 = vcmp.gt.f32.partialorder %v2968, 0.0
        %vm3085 = vcmp.gt.f32.partialorder %v2970, 0.0
        %vm3086 = vcmp.gt.f32.partialorder %v2972, 0.0
        %vm3087 = vcmp.gt.f32.partialorder %v2974, 0.0
        %vm3088 = vcmp.gt.f32.partialorder %v2978, 0.0
        %vm3089 = vcmp.gt.f32.partialorder %v2980, 0.0
        %vm3090 = vcmp.gt.f32.partialorder %v2982, 0.0
        %vm3091 = vcmp.gt.f32.partialorder %v2984, 0.0
        %vm3092 = vcmp.gt.f32.partialorder %v2988, 0.0
        %vm3093 = vcmp.gt.f32.partialorder %v2990, 0.0
        %vm3094 = vcmp.gt.f32.partialorder %v2992, 0.0
        %vm3095 = vcmp.gt.f32.partialorder %v2994, 0.0
        %vm3096 = vcmp.gt.f32.partialorder %v2998, 0.0
        %vm3097 = vcmp.gt.f32.partialorder %v3000, 0.0
        %vm3098 = vcmp.gt.f32.partialorder %v3002, 0.0
        %vm3099 = vcmp.gt.f32.partialorder %v3004, 0.0
        %vm3100 = vcmp.gt.f32.partialorder %v3008, 0.0
        %vm3101 = vcmp.gt.f32.partialorder %v3010, 0.0
        %vm3102 = vcmp.gt.f32.partialorder %v3012, 0.0
        %vm3103 = vcmp.gt.f32.partialorder %v3014, 0.0
        %vm3104 = vcmp.gt.f32.partialorder %v3018, 0.0
        %vm3105 = vcmp.gt.f32.partialorder %v3020, 0.0
        %vm3106 = vcmp.gt.f32.partialorder %v3022, 0.0
        %vm3107 = vcmp.gt.f32.partialorder %v3024, 0.0
        %vm3108 = vcmp.gt.f32.partialorder %v3028, 0.0
        %vm3109 = vcmp.gt.f32.partialorder %v3030, 0.0
        %vm3110 = vcmp.gt.f32.partialorder %v3032, 0.0
        %vm3111 = vcmp.gt.f32.partialorder %v3034, 0.0
        %vm3112 = vcmp.gt.f32.partialorder %v3038, 0.0
        %vm3113 = vcmp.gt.f32.partialorder %v3040, 0.0
        %vm3114 = vcmp.gt.f32.partialorder %v3042, 0.0
        %vm3115 = vcmp.gt.f32.partialorder %v3044, 0.0
        %vm3116 = vcmp.gt.f32.partialorder %v3048, 0.0
        %vm3117 = vcmp.gt.f32.partialorder %v3050, 0.0
        %vm3118 = vcmp.gt.f32.partialorder %v3052, 0.0
        %vm3119 = vcmp.gt.f32.partialorder %v3054, 0.0
        %v3120 = vmul.f32 %v2898, 0.01
        %v3121 = vmul.f32 %v2900, 0.01
        %v3122 = vmul.f32 %v2902, 0.01
        %v3123 = vmul.f32 %v2904, 0.01
        %v3124 = vmul.f32 %v2908, 0.01
        %v3125 = vmul.f32 %v2910, 0.01
        %v3126 = vmul.f32 %v2912, 0.01
        %v3127 = vmul.f32 %v2914, 0.01
        %v3128 = vmul.f32 %v2918, 0.01
        %v3129 = vmul.f32 %v2920, 0.01
        %v3130 = vmul.f32 %v2922, 0.01
        %v3131 = vmul.f32 %v2924, 0.01
        %v3132 = vmul.f32 %v2928, 0.01
        %v3133 = vmul.f32 %v2930, 0.01
        %v3134 = vmul.f32 %v2932, 0.01
        %v3135 = vmul.f32 %v2934, 0.01
        %v3136 = vmul.f32 %v2938, 0.01
        %v3137 = vmul.f32 %v2940, 0.01
        %v3138 = vmul.f32 %v2942, 0.01
        %v3139 = vmul.f32 %v2944, 0.01
        %v3140 = vmul.f32 %v2948, 0.01
        %v3141 = vmul.f32 %v2950, 0.01
        %v3142 = vmul.f32 %v2952, 0.01
        %v3143 = vmul.f32 %v2954, 0.01
        %v3144 = vmul.f32 %v2958, 0.01
        %v3145 = vmul.f32 %v2960, 0.01
        %v3146 = vmul.f32 %v2962, 0.01
        %v3147 = vmul.f32 %v2964, 0.01
        %v3148 = vmul.f32 %v2968, 0.01
        %v3149 = vmul.f32 %v2970, 0.01
        %v3150 = vmul.f32 %v2972, 0.01
        %v3151 = vmul.f32 %v2974, 0.01
        %v3152 = vmul.f32 %v2978, 0.01
        %v3153 = vmul.f32 %v2980, 0.01
        %v3154 = vmul.f32 %v2982, 0.01
        %v3155 = vmul.f32 %v2984, 0.01
        %v3156 = vmul.f32 %v2988, 0.01
        %v3157 = vmul.f32 %v2990, 0.01
        %v3158 = vmul.f32 %v2992, 0.01
        %v3159 = vmul.f32 %v2994, 0.01
        %v3160 = vmul.f32 %v2998, 0.01
        %v3161 = vmul.f32 %v3000, 0.01
        %v3162 = vmul.f32 %v3002, 0.01
        %v3163 = vmul.f32 %v3004, 0.01
        %v3164 = vmul.f32 %v3008, 0.01
        %v3165 = vmul.f32 %v3010, 0.01
        %v3166 = vmul.f32 %v3012, 0.01
        %v3167 = vmul.f32 %v3014, 0.01
        %v3168 = vmul.f32 %v3018, 0.01
        %v3169 = vmul.f32 %v3020, 0.01
        %v3170 = vmul.f32 %v3022, 0.01
        %v3171 = vmul.f32 %v3024, 0.01
        %v3172 = vmul.f32 %v3028, 0.01
        %v3173 = vmul.f32 %v3030, 0.01
        %v3174 = vmul.f32 %v3032, 0.01
        %v3175 = vmul.f32 %v3034, 0.01
        %v3176 = vmul.f32 %v3038, 0.01
        %v3177 = vmul.f32 %v3040, 0.01
        %v3178 = vmul.f32 %v3042, 0.01
        %v3179 = vmul.f32 %v3044, 0.01
        %v3180 = vmul.f32 %v3048, 0.01
        %v3181 = vmul.f32 %v3050, 0.01
        %v3182 = vmul.f32 %v3052, 0.01
        %v3183 = vmul.f32 %v3054, 0.01
        %v3184 = vsel %vm3056, %v2898, %v3120
        %v3185 = vsel %vm3057, %v2900, %v3121
        %v3186 = vsel %vm3058, %v2902, %v3122
        %v3187 = vsel %vm3059, %v2904, %v3123
        %v3188 = vsel %vm3060, %v2908, %v3124
        %v3189 = vsel %vm3061, %v2910, %v3125
        %v3190 = vsel %vm3062, %v2912, %v3126
        %v3191 = vsel %vm3063, %v2914, %v3127
        %v3192 = vsel %vm3064, %v2918, %v3128
        %v3193 = vsel %vm3065, %v2920, %v3129
        %v3194 = vsel %vm3066, %v2922, %v3130
        %v3195 = vsel %vm3067, %v2924, %v3131
        %v3196 = vsel %vm3068, %v2928, %v3132
        %v3197 = vsel %vm3069, %v2930, %v3133
        %v3198 = vsel %vm3070, %v2932, %v3134
        %v3199 = vsel %vm3071, %v2934, %v3135
        %v3200 = vsel %vm3072, %v2938, %v3136
        %v3201 = vsel %vm3073, %v2940, %v3137
        %v3202 = vsel %vm3074, %v2942, %v3138
        %v3203 = vsel %vm3075, %v2944, %v3139
        %v3204 = vsel %vm3076, %v2948, %v3140
        %v3205 = vsel %vm3077, %v2950, %v3141
        %v3206 = vsel %vm3078, %v2952, %v3142
        %v3207 = vsel %vm3079, %v2954, %v3143
        %v3208 = vsel %vm3080, %v2958, %v3144
        %v3209 = vsel %vm3081, %v2960, %v3145
        %v3210 = vsel %vm3082, %v2962, %v3146
        %v3211 = vsel %vm3083, %v2964, %v3147
        %v3212 = vsel %vm3084, %v2968, %v3148
        %v3213 = vsel %vm3085, %v2970, %v3149
        %v3214 = vsel %vm3086, %v2972, %v3150
        %v3215 = vsel %vm3087, %v2974, %v3151
        %v3216 = vsel %vm3088, %v2978, %v3152
        %v3217 = vsel %vm3089, %v2980, %v3153
        %v3218 = vsel %vm3090, %v2982, %v3154
        %v3219 = vsel %vm3091, %v2984, %v3155
        %v3220 = vsel %vm3092, %v2988, %v3156
        %v3221 = vsel %vm3093, %v2990, %v3157
        %v3222 = vsel %vm3094, %v2992, %v3158
        %v3223 = vsel %vm3095, %v2994, %v3159
        %v3224 = vsel %vm3096, %v2998, %v3160
        %v3225 = vsel %vm3097, %v3000, %v3161
        %v3226 = vsel %vm3098, %v3002, %v3162
        %v3227 = vsel %vm3099, %v3004, %v3163
        %v3228 = vsel %vm3100, %v3008, %v3164
        %v3229 = vsel %vm3101, %v3010, %v3165
        %v3230 = vsel %vm3102, %v3012, %v3166
        %v3231 = vsel %vm3103, %v3014, %v3167
        %v3232 = vsel %vm3104, %v3018, %v3168
        %v3233 = vsel %vm3105, %v3020, %v3169
        %v3234 = vsel %vm3106, %v3022, %v3170
        %v3235 = vsel %vm3107, %v3024, %v3171
        %v3236 = vsel %vm3108, %v3028, %v3172
        %v3237 = vsel %vm3109, %v3030, %v3173
        %v3238 = vsel %vm3110, %v3032, %v3174
        %v3239 = vsel %vm3111, %v3034, %v3175
        %v3240 = vsel %vm3112, %v3038, %v3176
        %v3241 = vsel %vm3113, %v3040, %v3177
        %v3242 = vsel %vm3114, %v3042, %v3178
        %v3243 = vsel %vm3115, %v3044, %v3179
        %v3244 = vsel %vm3116, %v3048, %v3180
        %v3245 = vsel %vm3117, %v3050, %v3181
        %v3246 = vsel %vm3118, %v3052, %v3182
        %v3247 = vsel %vm3119, %v3054, %v3183
        %v3248 = vpack.c.bf16 %v3186, %v3184
        %v3249 = vpack.c.bf16 %v3190, %v3188
        %v3250 = vpack.c.bf16 %v3194, %v3192
        %v3251 = vpack.c.bf16 %v3198, %v3196
        %v3252 = vpack.c.bf16 %v3202, %v3200
        %v3253 = vpack.c.bf16 %v3206, %v3204
        %v3254 = vpack.c.bf16 %v3210, %v3208
        %v3255 = vpack.c.bf16 %v3214, %v3212
        %v3256 = vpack.c.bf16 %v3218, %v3216
        %v3257 = vpack.c.bf16 %v3222, %v3220
        %v3258 = vpack.c.bf16 %v3226, %v3224
        %v3259 = vpack.c.bf16 %v3230, %v3228
        %v3260 = vpack.c.bf16 %v3234, %v3232
        %v3261 = vpack.c.bf16 %v3238, %v3236
        %v3262 = vpack.c.bf16 %v3242, %v3240
        %v3263 = vpack.c.bf16 %v3246, %v3244
        %v3264 = vld [vmem:[%s14] sm:$0xf]
        %v3265 = vld [vmem:[%s14 + $0x4] sm:$0xf]
        %v3266 = vld [vmem:[%s14 + $0x8] sm:$0xf]
        %v3267 = vld [vmem:[%s14 + $0xc] sm:$0xf]
        %v3268 = vld [vmem:[%s14 + $0x10] sm:$0xf]
        %v3269 = vld [vmem:[%s14 + $0x14] sm:$0xf]
        %v3270 = vld [vmem:[%s14 + $0x18] sm:$0xf]
        %v3271 = vld [vmem:[%s14 + $0x1c] sm:$0xf]
        %v3272 = vld [vmem:[%s14 + $0x20] sm:$0xf]
        %v3273 = vld [vmem:[%s14 + $0x24] sm:$0xf]
        %v3274 = vld [vmem:[%s14 + $0x28] sm:$0xf]
        %v3275 = vld [vmem:[%s14 + $0x2c] sm:$0xf]
        %v3276 = vld [vmem:[%s14 + $0x30] sm:$0xf]
        %v3277 = vld [vmem:[%s14 + $0x34] sm:$0xf]
        %v3278 = vld [vmem:[%s14 + $0x38] sm:$0xf]
        %v3279 = vld [vmem:[%s14 + $0x3c] sm:$0xf]
        %v3280 = vld [vmem:[%s15] sm:$0x1]
        %v3282 = vlaneseq
        %v3283 = vshrl.u32 %v3282, 7
        %v3284 = vsub.s32 0, %v3283
        %v3285 = vrot.slane %v3280, %v3284
        %v3303 = vunpack.c.l.b16 %v3264
        %v3304 = vunpack.c.l.b16 %v3265
        %v3305 = vunpack.c.l.b16 %v3266
        %v3306 = vunpack.c.l.b16 %v3267
        %v3307 = vunpack.c.l.b16 %v3268
        %v3308 = vunpack.c.l.b16 %v3269
        %v3309 = vunpack.c.l.b16 %v3270
        %v3310 = vunpack.c.l.b16 %v3271
        %v3311 = vunpack.c.l.b16 %v3272
        %v3312 = vunpack.c.l.b16 %v3273
        %v3313 = vunpack.c.l.b16 %v3274
        %v3314 = vunpack.c.l.b16 %v3275
        %v3315 = vunpack.c.l.b16 %v3276
        %v3316 = vunpack.c.l.b16 %v3277
        %v3317 = vunpack.c.l.b16 %v3278
        %v3318 = vunpack.c.l.b16 %v3279
        %v3319 = vpack.c.b16 %v3304, %v3303
        %v3320 = vpack.c.b16 %v3306, %v3305
        %v3321 = vpack.c.b16 %v3308, %v3307
        %v3322 = vpack.c.b16 %v3310, %v3309
        %v3323 = vpack.c.b16 %v3312, %v3311
        %v3324 = vpack.c.b16 %v3314, %v3313
        %v3325 = vpack.c.b16 %v3316, %v3315
        %v3326 = vpack.c.b16 %v3318, %v3317
        %3335 = vmatprep.subr.bf16.mxu0 0
        %3336 = vmatpush1.bf16.msra.mxu0 %v3319
        %3337 = vmatprep.subr.bf16.mxu0 0
        %3338 = vmatpush1.bf16.msra.mxu0 %v3320
        %3339 = vmatprep.subr.bf16.mxu0 0
        %3340 = vmatpush1.bf16.msra.mxu0 %v3321
        %3341 = vmatprep.subr.bf16.mxu0 0
        %3342 = vmatpush1.bf16.msra.mxu0 %v3322
        %3343 = vmatprep.subr.bf16.mxu0 0
        %3344 = vmatpush1.bf16.msra.mxu0 %v3323
        %3345 = vmatprep.subr.bf16.mxu0 0
        %3346 = vmatpush1.bf16.msra.mxu0 %v3324
        %3347 = vmatprep.subr.bf16.mxu0 0
        %3348 = vmatpush1.bf16.msra.mxu0 %v3325
        %3349 = vmatprep.subr.bf16.mxu0 0
        %3350 = vmatpush1.bf16.msra.mxu0 %v3326
        %3351 = vmatprep.subr.bf16.mxu0 0
        %3352 = vmatpush1.bf16.msra.mxu0 0
        %3353 = vmatprep.subr.bf16.mxu0 0
        %3354 = vmatpush1.bf16.msra.mxu0 0
        %3355 = vmatprep.subr.bf16.mxu0 0
        %3356 = vmatpush1.bf16.msra.mxu0 0
        %3357 = vmatprep.subr.bf16.mxu0 0
        %3358 = vmatpush1.bf16.msra.mxu0 0
        %3359 = vmatprep.subr.bf16.mxu0 0
        %3360 = vmatpush1.bf16.msra.mxu0 0
        %3361 = vmatprep.subr.bf16.mxu0 0
        %3362 = vmatpush1.bf16.msra.mxu0 0
        %3363 = vmatprep.subr.bf16.mxu0 0
        %3364 = vmatpush1.bf16.msra.mxu0 0
        %3365 = vmatprep.subr.bf16.mxu0 0
        %3366 = vmatpush1.bf16.msra.mxu0 0
        %3367 = vmatprep.mubr.bf16.mxu0 0
        %3368 = vmatmul.mubr.bf16.gmra.mrb[0].mxu0 %v3248
        %v3369 = vpop.f32.mrb[0].mxu0
        %v3370 = vadd.f32 %v3285, %v3369
        %v3371 = vpop.f32.mrb[0].mxu0
        %v3372 = vpop.f32.mrb[0].mxu0
        %v3373 = vadd.f32 %v3285, %v3372
        %v3374 = vpop.f32.mrb[0].mxu0
        %3375 = vmatprep.mubr.bf16.mxu0 0
        %3376 = vmatmul.mubr.bf16.gmra.mrb[0].mxu0 %v3249
        %v3377 = vpop.f32.mrb[0].mxu0
        %v3378 = vadd.f32 %v3285, %v3377
        %v3379 = vpop.f32.mrb[0].mxu0
        %v3380 = vpop.f32.mrb[0].mxu0
        %v3381 = vadd.f32 %v3285, %v3380
        %v3382 = vpop.f32.mrb[0].mxu0
        %3383 = vmatprep.mubr.bf16.mxu0 0
        %3384 = vmatmul.mubr.bf16.gmra.mrb[0].mxu0 %v3250
        %v3385 = vpop.f32.mrb[0].mxu0
        %v3386 = vadd.f32 %v3285, %v3385
        %v3387 = vpop.f32.mrb[0].mxu0
        %v3388 = vpop.f32.mrb[0].mxu0
        %v3389 = vadd.f32 %v3285, %v3388
        %v3390 = vpop.f32.mrb[0].mxu0
        %3391 = vmatprep.mubr.bf16.mxu0 0
        %3392 = vmatmul.mubr.bf16.gmra.mrb[0].mxu0 %v3251
        %v3393 = vpop.f32.mrb[0].mxu0
        %v3394 = vadd.f32 %v3285, %v3393
        %v3395 = vpop.f32.mrb[0].mxu0
        %v3396 = vpop.f32.mrb[0].mxu0
        %v3397 = vadd.f32 %v3285, %v3396
        %v3398 = vpop.f32.mrb[0].mxu0
        %3399 = vmatprep.mubr.bf16.mxu0 0
        %3400 = vmatmul.mubr.bf16.gmra.mrb[0].mxu0 %v3252
        %v3401 = vpop.f32.mrb[0].mxu0
        %v3402 = vadd.f32 %v3285, %v3401
        %v3403 = vpop.f32.mrb[0].mxu0
        %v3404 = vpop.f32.mrb[0].mxu0
        %v3405 = vadd.f32 %v3285, %v3404
        %v3406 = vpop.f32.mrb[0].mxu0
        %3407 = vmatprep.mubr.bf16.mxu0 0
        %3408 = vmatmul.mubr.bf16.gmra.mrb[0].mxu0 %v3253
        %v3409 = vpop.f32.mrb[0].mxu0
        %v3410 = vadd.f32 %v3285, %v3409
        %v3411 = vpop.f32.mrb[0].mxu0
        %v3412 = vpop.f32.mrb[0].mxu0
        %v3413 = vadd.f32 %v3285, %v3412
        %v3414 = vpop.f32.mrb[0].mxu0
        %3415 = vmatprep.mubr.bf16.mxu0 0
        %3416 = vmatmul.mubr.bf16.gmra.mrb[0].mxu0 %v3254
        %v3417 = vpop.f32.mrb[0].mxu0
        %v3418 = vadd.f32 %v3285, %v3417
        %v3419 = vpop.f32.mrb[0].mxu0
        %v3420 = vpop.f32.mrb[0].mxu0
        %v3421 = vadd.f32 %v3285, %v3420
        %v3422 = vpop.f32.mrb[0].mxu0
        %3423 = vmatprep.mubr.bf16.mxu0 0
        %3424 = vmatmul.mubr.bf16.gmra.mrb[0].mxu0 %v3255
        %v3425 = vpop.f32.mrb[0].mxu0
        %v3426 = vadd.f32 %v3285, %v3425
        %v3427 = vpop.f32.mrb[0].mxu0
        %v3428 = vpop.f32.mrb[0].mxu0
        %v3429 = vadd.f32 %v3285, %v3428
        %v3430 = vpop.f32.mrb[0].mxu0
        %3431 = vmatprep.mubr.bf16.mxu0 0
        %3432 = vmatmul.mubr.bf16.gmra.mrb[0].mxu0 %v3256
        %v3433 = vpop.f32.mrb[0].mxu0
        %v3434 = vadd.f32 %v3285, %v3433
        %v3435 = vpop.f32.mrb[0].mxu0
        %v3436 = vpop.f32.mrb[0].mxu0
        %v3437 = vadd.f32 %v3285, %v3436
        %v3438 = vpop.f32.mrb[0].mxu0
        %3439 = vmatprep.mubr.bf16.mxu0 0
        %3440 = vmatmul.mubr.bf16.gmra.mrb[0].mxu0 %v3257
        %v3441 = vpop.f32.mrb[0].mxu0
        %v3442 = vadd.f32 %v3285, %v3441
        %v3443 = vpop.f32.mrb[0].mxu0
        %v3444 = vpop.f32.mrb[0].mxu0
        %v3445 = vadd.f32 %v3285, %v3444
        %v3446 = vpop.f32.mrb[0].mxu0
        %3447 = vmatprep.mubr.bf16.mxu0 0
        %3448 = vmatmul.mubr.bf16.gmra.mrb[0].mxu0 %v3258
        %v3449 = vpop.f32.mrb[0].mxu0
        %v3450 = vadd.f32 %v3285, %v3449
        %v3451 = vpop.f32.mrb[0].mxu0
        %v3452 = vpop.f32.mrb[0].mxu0
        %v3453 = vadd.f32 %v3285, %v3452
        %v3454 = vpop.f32.mrb[0].mxu0
        %3455 = vmatprep.mubr.bf16.mxu0 0
        %3456 = vmatmul.mubr.bf16.gmra.mrb[0].mxu0 %v3259
        %v3457 = vpop.f32.mrb[0].mxu0
        %v3458 = vadd.f32 %v3285, %v3457
        %v3459 = vpop.f32.mrb[0].mxu0
        %v3460 = vpop.f32.mrb[0].mxu0
        %v3461 = vadd.f32 %v3285, %v3460
        %v3462 = vpop.f32.mrb[0].mxu0
        %3463 = vmatprep.mubr.bf16.mxu0 0
        %3464 = vmatmul.mubr.bf16.gmra.mrb[0].mxu0 %v3260
        %v3465 = vpop.f32.mrb[0].mxu0
        %v3466 = vadd.f32 %v3285, %v3465
        %v3467 = vpop.f32.mrb[0].mxu0
        %v3468 = vpop.f32.mrb[0].mxu0
        %v3469 = vadd.f32 %v3285, %v3468
        %v3470 = vpop.f32.mrb[0].mxu0
        %3471 = vmatprep.mubr.bf16.mxu0 0
        %3472 = vmatmul.mubr.bf16.gmra.mrb[0].mxu0 %v3261
        %v3473 = vpop.f32.mrb[0].mxu0
        %v3474 = vadd.f32 %v3285, %v3473
        %v3475 = vpop.f32.mrb[0].mxu0
        %v3476 = vpop.f32.mrb[0].mxu0
        %v3477 = vadd.f32 %v3285, %v3476
        %v3478 = vpop.f32.mrb[0].mxu0
        %3479 = vmatprep.mubr.bf16.mxu0 0
        %3480 = vmatmul.mubr.bf16.gmra.mrb[0].mxu0 %v3262
        %v3481 = vpop.f32.mrb[0].mxu0
        %v3482 = vadd.f32 %v3285, %v3481
        %v3483 = vpop.f32.mrb[0].mxu0
        %v3484 = vpop.f32.mrb[0].mxu0
        %v3485 = vadd.f32 %v3285, %v3484
        %v3486 = vpop.f32.mrb[0].mxu0
        %3487 = vmatprep.mubr.bf16.mxu0 0
        %3488 = vmatmul.mubr.bf16.gmra.mrb[0].mxu0 %v3263
        %v3489 = vpop.f32.mrb[0].mxu0
        %v3490 = vadd.f32 %v3285, %v3489
        %v3491 = vpop.f32.mrb[0].mxu0
        %v3492 = vpop.f32.mrb[0].mxu0
        %v3493 = vadd.f32 %v3285, %v3492
        %v3494 = vpop.f32.mrb[0].mxu0
        %3495 = vdwg.mxu0
        %vm3496 = vcmp.gt.f32.partialorder %v3370, 0.0
        %vm3497 = vcmp.gt.f32.partialorder %v3373, 0.0
        %vm3498 = vcmp.gt.f32.partialorder %v3378, 0.0
        %vm3499 = vcmp.gt.f32.partialorder %v3381, 0.0
        %vm3500 = vcmp.gt.f32.partialorder %v3386, 0.0
        %vm3501 = vcmp.gt.f32.partialorder %v3389, 0.0
        %vm3502 = vcmp.gt.f32.partialorder %v3394, 0.0
        %vm3503 = vcmp.gt.f32.partialorder %v3397, 0.0
        %vm3504 = vcmp.gt.f32.partialorder %v3402, 0.0
        %vm3505 = vcmp.gt.f32.partialorder %v3405, 0.0
        %vm3506 = vcmp.gt.f32.partialorder %v3410, 0.0
        %vm3507 = vcmp.gt.f32.partialorder %v3413, 0.0
        %vm3508 = vcmp.gt.f32.partialorder %v3418, 0.0
        %vm3509 = vcmp.gt.f32.partialorder %v3421, 0.0
        %vm3510 = vcmp.gt.f32.partialorder %v3426, 0.0
        %vm3511 = vcmp.gt.f32.partialorder %v3429, 0.0
        %vm3512 = vcmp.gt.f32.partialorder %v3434, 0.0
        %vm3513 = vcmp.gt.f32.partialorder %v3437, 0.0
        %vm3514 = vcmp.gt.f32.partialorder %v3442, 0.0
        %vm3515 = vcmp.gt.f32.partialorder %v3445, 0.0
        %vm3516 = vcmp.gt.f32.partialorder %v3450, 0.0
        %vm3517 = vcmp.gt.f32.partialorder %v3453, 0.0
        %vm3518 = vcmp.gt.f32.partialorder %v3458, 0.0
        %vm3519 = vcmp.gt.f32.partialorder %v3461, 0.0
        %vm3520 = vcmp.gt.f32.partialorder %v3466, 0.0
        %vm3521 = vcmp.gt.f32.partialorder %v3469, 0.0
        %vm3522 = vcmp.gt.f32.partialorder %v3474, 0.0
        %vm3523 = vcmp.gt.f32.partialorder %v3477, 0.0
        %vm3524 = vcmp.gt.f32.partialorder %v3482, 0.0
        %vm3525 = vcmp.gt.f32.partialorder %v3485, 0.0
        %vm3526 = vcmp.gt.f32.partialorder %v3490, 0.0
        %vm3527 = vcmp.gt.f32.partialorder %v3493, 0.0
        %v3528 = vmul.f32 %v3370, 0.01
        %v3529 = vmul.f32 %v3373, 0.01
        %v3530 = vmul.f32 %v3378, 0.01
        %v3531 = vmul.f32 %v3381, 0.01
        %v3532 = vmul.f32 %v3386, 0.01
        %v3533 = vmul.f32 %v3389, 0.01
        %v3534 = vmul.f32 %v3394, 0.01
        %v3535 = vmul.f32 %v3397, 0.01
        %v3536 = vmul.f32 %v3402, 0.01
        %v3537 = vmul.f32 %v3405, 0.01
        %v3538 = vmul.f32 %v3410, 0.01
        %v3539 = vmul.f32 %v3413, 0.01
        %v3540 = vmul.f32 %v3418, 0.01
        %v3541 = vmul.f32 %v3421, 0.01
        %v3542 = vmul.f32 %v3426, 0.01
        %v3543 = vmul.f32 %v3429, 0.01
        %v3544 = vmul.f32 %v3434, 0.01
        %v3545 = vmul.f32 %v3437, 0.01
        %v3546 = vmul.f32 %v3442, 0.01
        %v3547 = vmul.f32 %v3445, 0.01
        %v3548 = vmul.f32 %v3450, 0.01
        %v3549 = vmul.f32 %v3453, 0.01
        %v3550 = vmul.f32 %v3458, 0.01
        %v3551 = vmul.f32 %v3461, 0.01
        %v3552 = vmul.f32 %v3466, 0.01
        %v3553 = vmul.f32 %v3469, 0.01
        %v3554 = vmul.f32 %v3474, 0.01
        %v3555 = vmul.f32 %v3477, 0.01
        %v3556 = vmul.f32 %v3482, 0.01
        %v3557 = vmul.f32 %v3485, 0.01
        %v3558 = vmul.f32 %v3490, 0.01
        %v3559 = vmul.f32 %v3493, 0.01
        %v3560 = vsel %vm3496, %v3370, %v3528
        %v3561 = vsel %vm3497, %v3373, %v3529
        %v3562 = vsel %vm3498, %v3378, %v3530
        %v3563 = vsel %vm3499, %v3381, %v3531
        %v3564 = vsel %vm3500, %v3386, %v3532
        %v3565 = vsel %vm3501, %v3389, %v3533
        %v3566 = vsel %vm3502, %v3394, %v3534
        %v3567 = vsel %vm3503, %v3397, %v3535
        %v3568 = vsel %vm3504, %v3402, %v3536
        %v3569 = vsel %vm3505, %v3405, %v3537
        %v3570 = vsel %vm3506, %v3410, %v3538
        %v3571 = vsel %vm3507, %v3413, %v3539
        %v3572 = vsel %vm3508, %v3418, %v3540
        %v3573 = vsel %vm3509, %v3421, %v3541
        %v3574 = vsel %vm3510, %v3426, %v3542
        %v3575 = vsel %vm3511, %v3429, %v3543
        %v3576 = vsel %vm3512, %v3434, %v3544
        %v3577 = vsel %vm3513, %v3437, %v3545
        %v3578 = vsel %vm3514, %v3442, %v3546
        %v3579 = vsel %vm3515, %v3445, %v3547
        %v3580 = vsel %vm3516, %v3450, %v3548
        %v3581 = vsel %vm3517, %v3453, %v3549
        %v3582 = vsel %vm3518, %v3458, %v3550
        %v3583 = vsel %vm3519, %v3461, %v3551
        %v3584 = vsel %vm3520, %v3466, %v3552
        %v3585 = vsel %vm3521, %v3469, %v3553
        %v3586 = vsel %vm3522, %v3474, %v3554
        %v3587 = vsel %vm3523, %v3477, %v3555
        %v3588 = vsel %vm3524, %v3482, %v3556
        %v3589 = vsel %vm3525, %v3485, %v3557
        %v3590 = vsel %vm3526, %v3490, %v3558
        %v3591 = vsel %vm3527, %v3493, %v3559
        %v3592 = vpack.c.bf16 %v3187, %v3185
        %v3593 = vpack.c.bf16 %v3191, %v3189
        %v3594 = vpack.c.bf16 %v3195, %v3193
        %v3595 = vpack.c.bf16 %v3199, %v3197
        %v3596 = vpack.c.bf16 %v3203, %v3201
        %v3597 = vpack.c.bf16 %v3207, %v3205
        %v3598 = vpack.c.bf16 %v3211, %v3209
        %v3599 = vpack.c.bf16 %v3215, %v3213
        %v3600 = vpack.c.bf16 %v3219, %v3217
        %v3601 = vpack.c.bf16 %v3223, %v3221
        %v3602 = vpack.c.bf16 %v3227, %v3225
        %v3603 = vpack.c.bf16 %v3231, %v3229
        %v3604 = vpack.c.bf16 %v3235, %v3233
        %v3605 = vpack.c.bf16 %v3239, %v3237
        %v3606 = vpack.c.bf16 %v3243, %v3241
        %v3607 = vpack.c.bf16 %v3247, %v3245
        %v3608 = vld [vmem:[%s16] sm:$0xf]
        %v3609 = vld [vmem:[%s16 + $0x4] sm:$0xf]
        %v3610 = vld [vmem:[%s16 + $0x8] sm:$0xf]
        %v3611 = vld [vmem:[%s16 + $0xc] sm:$0xf]
        %v3612 = vld [vmem:[%s16 + $0x10] sm:$0xf]
        %v3613 = vld [vmem:[%s16 + $0x14] sm:$0xf]
        %v3614 = vld [vmem:[%s16 + $0x18] sm:$0xf]
        %v3615 = vld [vmem:[%s16 + $0x1c] sm:$0xf]
        %v3616 = vld [vmem:[%s16 + $0x20] sm:$0xf]
        %v3617 = vld [vmem:[%s16 + $0x24] sm:$0xf]
        %v3618 = vld [vmem:[%s16 + $0x28] sm:$0xf]
        %v3619 = vld [vmem:[%s16 + $0x2c] sm:$0xf]
        %v3620 = vld [vmem:[%s16 + $0x30] sm:$0xf]
        %v3621 = vld [vmem:[%s16 + $0x34] sm:$0xf]
        %v3622 = vld [vmem:[%s16 + $0x38] sm:$0xf]
        %v3623 = vld [vmem:[%s16 + $0x3c] sm:$0xf]
        %v3624 = vld [vmem:[%s17] sm:$0x1]
        %v3626 = vlaneseq
        %v3627 = vshrl.u32 %v3626, 7
        %v3628 = vsub.s32 0, %v3627
        %v3629 = vrot.slane %v3624, %v3628
        %v3647 = vunpack.c.l.b16 %v3608
        %v3648 = vunpack.c.l.b16 %v3609
        %v3649 = vunpack.c.l.b16 %v3610
        %v3650 = vunpack.c.l.b16 %v3611
        %v3651 = vunpack.c.l.b16 %v3612
        %v3652 = vunpack.c.l.b16 %v3613
        %v3653 = vunpack.c.l.b16 %v3614
        %v3654 = vunpack.c.l.b16 %v3615
        %v3655 = vunpack.c.l.b16 %v3616
        %v3656 = vunpack.c.l.b16 %v3617
        %v3657 = vunpack.c.l.b16 %v3618
        %v3658 = vunpack.c.l.b16 %v3619
        %v3659 = vunpack.c.l.b16 %v3620
        %v3660 = vunpack.c.l.b16 %v3621
        %v3661 = vunpack.c.l.b16 %v3622
        %v3662 = vunpack.c.l.b16 %v3623
        %v3663 = vpack.c.b16 %v3648, %v3647
        %v3664 = vpack.c.b16 %v3650, %v3649
        %v3665 = vpack.c.b16 %v3652, %v3651
        %v3666 = vpack.c.b16 %v3654, %v3653
        %v3667 = vpack.c.b16 %v3656, %v3655
        %v3668 = vpack.c.b16 %v3658, %v3657
        %v3669 = vpack.c.b16 %v3660, %v3659
        %v3670 = vpack.c.b16 %v3662, %v3661
        %3679 = vmatprep.subr.bf16.mxu0 0
        %3680 = vmatpush1.bf16.msra.mxu0 %v3663
        %3681 = vmatprep.subr.bf16.mxu0 0
        %3682 = vmatpush1.bf16.msra.mxu0 %v3664
        %3683 = vmatprep.subr.bf16.mxu0 0
        %3684 = vmatpush1.bf16.msra.mxu0 %v3665
        %3685 = vmatprep.subr.bf16.mxu0 0
        %3686 = vmatpush1.bf16.msra.mxu0 %v3666
        %3687 = vmatprep.subr.bf16.mxu0 0
        %3688 = vmatpush1.bf16.msra.mxu0 %v3667
        %3689 = vmatprep.subr.bf16.mxu0 0
        %3690 = vmatpush1.bf16.msra.mxu0 %v3668
        %3691 = vmatprep.subr.bf16.mxu0 0
        %3692 = vmatpush1.bf16.msra.mxu0 %v3669
        %3693 = vmatprep.subr.bf16.mxu0 0
        %3694 = vmatpush1.bf16.msra.mxu0 %v3670
        %3695 = vmatprep.subr.bf16.mxu0 0
        %3696 = vmatpush1.bf16.msra.mxu0 0
        %3697 = vmatprep.subr.bf16.mxu0 0
        %3698 = vmatpush1.bf16.msra.mxu0 0
        %3699 = vmatprep.subr.bf16.mxu0 0
        %3700 = vmatpush1.bf16.msra.mxu0 0
        %3701 = vmatprep.subr.bf16.mxu0 0
        %3702 = vmatpush1.bf16.msra.mxu0 0
        %3703 = vmatprep.subr.bf16.mxu0 0
        %3704 = vmatpush1.bf16.msra.mxu0 0
        %3705 = vmatprep.subr.bf16.mxu0 0
        %3706 = vmatpush1.bf16.msra.mxu0 0
        %3707 = vmatprep.subr.bf16.mxu0 0
        %3708 = vmatpush1.bf16.msra.mxu0 0
        %3709 = vmatprep.subr.bf16.mxu0 0
        %3710 = vmatpush1.bf16.msra.mxu0 0
        %3711 = vmatprep.mubr.bf16.mxu0 0
        %3712 = vmatmul.mubr.bf16.gmra.mrb[0].mxu0 %v3592
        %v3713 = vpop.f32.mrb[0].mxu0
        %v3714 = vadd.f32 %v3629, %v3713
        %v3715 = vpop.f32.mrb[0].mxu0
        %v3716 = vpop.f32.mrb[0].mxu0
        %v3717 = vadd.f32 %v3629, %v3716
        %v3718 = vpop.f32.mrb[0].mxu0
        %3719 = vmatprep.mubr.bf16.mxu0 0
        %3720 = vmatmul.mubr.bf16.gmra.mrb[0].mxu0 %v3593
        %v3721 = vpop.f32.mrb[0].mxu0
        %v3722 = vadd.f32 %v3629, %v3721
        %v3723 = vpop.f32.mrb[0].mxu0
        %v3724 = vpop.f32.mrb[0].mxu0
        %v3725 = vadd.f32 %v3629, %v3724
        %v3726 = vpop.f32.mrb[0].mxu0
        %3727 = vmatprep.mubr.bf16.mxu0 0
        %3728 = vmatmul.mubr.bf16.gmra.mrb[0].mxu0 %v3594
        %v3729 = vpop.f32.mrb[0].mxu0
        %v3730 = vadd.f32 %v3629, %v3729
        %v3731 = vpop.f32.mrb[0].mxu0
        %v3732 = vpop.f32.mrb[0].mxu0
        %v3733 = vadd.f32 %v3629, %v3732
        %v3734 = vpop.f32.mrb[0].mxu0
        %3735 = vmatprep.mubr.bf16.mxu0 0
        %3736 = vmatmul.mubr.bf16.gmra.mrb[0].mxu0 %v3595
        %v3737 = vpop.f32.mrb[0].mxu0
        %v3738 = vadd.f32 %v3629, %v3737
        %v3739 = vpop.f32.mrb[0].mxu0
        %v3740 = vpop.f32.mrb[0].mxu0
        %v3741 = vadd.f32 %v3629, %v3740
        %v3742 = vpop.f32.mrb[0].mxu0
        %3743 = vmatprep.mubr.bf16.mxu0 0
        %3744 = vmatmul.mubr.bf16.gmra.mrb[0].mxu0 %v3596
        %v3745 = vpop.f32.mrb[0].mxu0
        %v3746 = vadd.f32 %v3629, %v3745
        %v3747 = vpop.f32.mrb[0].mxu0
        %v3748 = vpop.f32.mrb[0].mxu0
        %v3749 = vadd.f32 %v3629, %v3748
        %v3750 = vpop.f32.mrb[0].mxu0
        %3751 = vmatprep.mubr.bf16.mxu0 0
        %3752 = vmatmul.mubr.bf16.gmra.mrb[0].mxu0 %v3597
        %v3753 = vpop.f32.mrb[0].mxu0
        %v3754 = vadd.f32 %v3629, %v3753
        %v3755 = vpop.f32.mrb[0].mxu0
        %v3756 = vpop.f32.mrb[0].mxu0
        %v3757 = vadd.f32 %v3629, %v3756
        %v3758 = vpop.f32.mrb[0].mxu0
        %3759 = vmatprep.mubr.bf16.mxu0 0
        %3760 = vmatmul.mubr.bf16.gmra.mrb[0].mxu0 %v3598
        %v3761 = vpop.f32.mrb[0].mxu0
        %v3762 = vadd.f32 %v3629, %v3761
        %v3763 = vpop.f32.mrb[0].mxu0
        %v3764 = vpop.f32.mrb[0].mxu0
        %v3765 = vadd.f32 %v3629, %v3764
        %v3766 = vpop.f32.mrb[0].mxu0
        %3767 = vmatprep.mubr.bf16.mxu0 0
        %3768 = vmatmul.mubr.bf16.gmra.mrb[0].mxu0 %v3599
        %v3769 = vpop.f32.mrb[0].mxu0
        %v3770 = vadd.f32 %v3629, %v3769
        %v3771 = vpop.f32.mrb[0].mxu0
        %v3772 = vpop.f32.mrb[0].mxu0
        %v3773 = vadd.f32 %v3629, %v3772
        %v3774 = vpop.f32.mrb[0].mxu0
        %3775 = vmatprep.mubr.bf16.mxu0 0
        %3776 = vmatmul.mubr.bf16.gmra.mrb[0].mxu0 %v3600
        %v3777 = vpop.f32.mrb[0].mxu0
        %v3778 = vadd.f32 %v3629, %v3777
        %v3779 = vpop.f32.mrb[0].mxu0
        %v3780 = vpop.f32.mrb[0].mxu0
        %v3781 = vadd.f32 %v3629, %v3780
        %v3782 = vpop.f32.mrb[0].mxu0
        %3783 = vmatprep.mubr.bf16.mxu0 0
        %3784 = vmatmul.mubr.bf16.gmra.mrb[0].mxu0 %v3601
        %v3785 = vpop.f32.mrb[0].mxu0
        %v3786 = vadd.f32 %v3629, %v3785
        %v3787 = vpop.f32.mrb[0].mxu0
        %v3788 = vpop.f32.mrb[0].mxu0
        %v3789 = vadd.f32 %v3629, %v3788
        %v3790 = vpop.f32.mrb[0].mxu0
        %3791 = vmatprep.mubr.bf16.mxu0 0
        %3792 = vmatmul.mubr.bf16.gmra.mrb[0].mxu0 %v3602
        %v3793 = vpop.f32.mrb[0].mxu0
        %v3794 = vadd.f32 %v3629, %v3793
        %v3795 = vpop.f32.mrb[0].mxu0
        %v3796 = vpop.f32.mrb[0].mxu0
        %v3797 = vadd.f32 %v3629, %v3796
        %v3798 = vpop.f32.mrb[0].mxu0
        %3799 = vmatprep.mubr.bf16.mxu0 0
        %3800 = vmatmul.mubr.bf16.gmra.mrb[0].mxu0 %v3603
        %v3801 = vpop.f32.mrb[0].mxu0
        %v3802 = vadd.f32 %v3629, %v3801
        %v3803 = vpop.f32.mrb[0].mxu0
        %v3804 = vpop.f32.mrb[0].mxu0
        %v3805 = vadd.f32 %v3629, %v3804
        %v3806 = vpop.f32.mrb[0].mxu0
        %3807 = vmatprep.mubr.bf16.mxu0 0
        %3808 = vmatmul.mubr.bf16.gmra.mrb[0].mxu0 %v3604
        %v3809 = vpop.f32.mrb[0].mxu0
        %v3810 = vadd.f32 %v3629, %v3809
        %v3811 = vpop.f32.mrb[0].mxu0
        %v3812 = vpop.f32.mrb[0].mxu0
        %v3813 = vadd.f32 %v3629, %v3812
        %v3814 = vpop.f32.mrb[0].mxu0
        %3815 = vmatprep.mubr.bf16.mxu0 0
        %3816 = vmatmul.mubr.bf16.gmra.mrb[0].mxu0 %v3605
        %v3817 = vpop.f32.mrb[0].mxu0
        %v3818 = vadd.f32 %v3629, %v3817
        %v3819 = vpop.f32.mrb[0].mxu0
        %v3820 = vpop.f32.mrb[0].mxu0
        %v3821 = vadd.f32 %v3629, %v3820
        %v3822 = vpop.f32.mrb[0].mxu0
        %3823 = vmatprep.mubr.bf16.mxu0 0
        %3824 = vmatmul.mubr.bf16.gmra.mrb[0].mxu0 %v3606
        %v3825 = vpop.f32.mrb[0].mxu0
        %v3826 = vadd.f32 %v3629, %v3825
        %v3827 = vpop.f32.mrb[0].mxu0
        %v3828 = vpop.f32.mrb[0].mxu0
        %v3829 = vadd.f32 %v3629, %v3828
        %v3830 = vpop.f32.mrb[0].mxu0
        %3831 = vmatprep.mubr.bf16.mxu0 0
        %3832 = vmatmul.mubr.bf16.gmra.mrb[0].mxu0 %v3607
        %v3833 = vpop.f32.mrb[0].mxu0
        %v3834 = vadd.f32 %v3629, %v3833
        %v3835 = vpop.f32.mrb[0].mxu0
        %v3836 = vpop.f32.mrb[0].mxu0
        %v3837 = vadd.f32 %v3629, %v3836
        %v3838 = vpop.f32.mrb[0].mxu0
        %3839 = vdwg.mxu0
        %vm3840 = vcmp.gt.f32.partialorder %v3714, 0.0
        %vm3841 = vcmp.gt.f32.partialorder %v3717, 0.0
        %vm3842 = vcmp.gt.f32.partialorder %v3722, 0.0
        %vm3843 = vcmp.gt.f32.partialorder %v3725, 0.0
        %vm3844 = vcmp.gt.f32.partialorder %v3730, 0.0
        %vm3845 = vcmp.gt.f32.partialorder %v3733, 0.0
        %vm3846 = vcmp.gt.f32.partialorder %v3738, 0.0
        %vm3847 = vcmp.gt.f32.partialorder %v3741, 0.0
        %vm3848 = vcmp.gt.f32.partialorder %v3746, 0.0
        %vm3849 = vcmp.gt.f32.partialorder %v3749, 0.0
        %vm3850 = vcmp.gt.f32.partialorder %v3754, 0.0
        %vm3851 = vcmp.gt.f32.partialorder %v3757, 0.0
        %vm3852 = vcmp.gt.f32.partialorder %v3762, 0.0
        %vm3853 = vcmp.gt.f32.partialorder %v3765, 0.0
        %vm3854 = vcmp.gt.f32.partialorder %v3770, 0.0
        %vm3855 = vcmp.gt.f32.partialorder %v3773, 0.0
        %vm3856 = vcmp.gt.f32.partialorder %v3778, 0.0
        %vm3857 = vcmp.gt.f32.partialorder %v3781, 0.0
        %vm3858 = vcmp.gt.f32.partialorder %v3786, 0.0
        %vm3859 = vcmp.gt.f32.partialorder %v3789, 0.0
        %vm3860 = vcmp.gt.f32.partialorder %v3794, 0.0
        %vm3861 = vcmp.gt.f32.partialorder %v3797, 0.0
        %vm3862 = vcmp.gt.f32.partialorder %v3802, 0.0
        %vm3863 = vcmp.gt.f32.partialorder %v3805, 0.0
        %vm3864 = vcmp.gt.f32.partialorder %v3810, 0.0
        %vm3865 = vcmp.gt.f32.partialorder %v3813, 0.0
        %vm3866 = vcmp.gt.f32.partialorder %v3818, 0.0
        %vm3867 = vcmp.gt.f32.partialorder %v3821, 0.0
        %vm3868 = vcmp.gt.f32.partialorder %v3826, 0.0
        %vm3869 = vcmp.gt.f32.partialorder %v3829, 0.0
        %vm3870 = vcmp.gt.f32.partialorder %v3834, 0.0
        %vm3871 = vcmp.gt.f32.partialorder %v3837, 0.0
        %v3872 = vmul.f32 %v3714, 0.01
        %v3873 = vmul.f32 %v3717, 0.01
        %v3874 = vmul.f32 %v3722, 0.01
        %v3875 = vmul.f32 %v3725, 0.01
        %v3876 = vmul.f32 %v3730, 0.01
        %v3877 = vmul.f32 %v3733, 0.01
        %v3878 = vmul.f32 %v3738, 0.01
        %v3879 = vmul.f32 %v3741, 0.01
        %v3880 = vmul.f32 %v3746, 0.01
        %v3881 = vmul.f32 %v3749, 0.01
        %v3882 = vmul.f32 %v3754, 0.01
        %v3883 = vmul.f32 %v3757, 0.01
        %v3884 = vmul.f32 %v3762, 0.01
        %v3885 = vmul.f32 %v3765, 0.01
        %v3886 = vmul.f32 %v3770, 0.01
        %v3887 = vmul.f32 %v3773, 0.01
        %v3888 = vmul.f32 %v3778, 0.01
        %v3889 = vmul.f32 %v3781, 0.01
        %v3890 = vmul.f32 %v3786, 0.01
        %v3891 = vmul.f32 %v3789, 0.01
        %v3892 = vmul.f32 %v3794, 0.01
        %v3893 = vmul.f32 %v3797, 0.01
        %v3894 = vmul.f32 %v3802, 0.01
        %v3895 = vmul.f32 %v3805, 0.01
        %v3896 = vmul.f32 %v3810, 0.01
        %v3897 = vmul.f32 %v3813, 0.01
        %v3898 = vmul.f32 %v3818, 0.01
        %v3899 = vmul.f32 %v3821, 0.01
        %v3900 = vmul.f32 %v3826, 0.01
        %v3901 = vmul.f32 %v3829, 0.01
        %v3902 = vmul.f32 %v3834, 0.01
        %v3903 = vmul.f32 %v3837, 0.01
        %v3904 = vsel %vm3840, %v3714, %v3872
        %v3905 = vsel %vm3841, %v3717, %v3873
        %v3906 = vsel %vm3842, %v3722, %v3874
        %v3907 = vsel %vm3843, %v3725, %v3875
        %v3908 = vsel %vm3844, %v3730, %v3876
        %v3909 = vsel %vm3845, %v3733, %v3877
        %v3910 = vsel %vm3846, %v3738, %v3878
        %v3911 = vsel %vm3847, %v3741, %v3879
        %v3912 = vsel %vm3848, %v3746, %v3880
        %v3913 = vsel %vm3849, %v3749, %v3881
        %v3914 = vsel %vm3850, %v3754, %v3882
        %v3915 = vsel %vm3851, %v3757, %v3883
        %v3916 = vsel %vm3852, %v3762, %v3884
        %v3917 = vsel %vm3853, %v3765, %v3885
        %v3918 = vsel %vm3854, %v3770, %v3886
        %v3919 = vsel %vm3855, %v3773, %v3887
        %v3920 = vsel %vm3856, %v3778, %v3888
        %v3921 = vsel %vm3857, %v3781, %v3889
        %v3922 = vsel %vm3858, %v3786, %v3890
        %v3923 = vsel %vm3859, %v3789, %v3891
        %v3924 = vsel %vm3860, %v3794, %v3892
        %v3925 = vsel %vm3861, %v3797, %v3893
        %v3926 = vsel %vm3862, %v3802, %v3894
        %v3927 = vsel %vm3863, %v3805, %v3895
        %v3928 = vsel %vm3864, %v3810, %v3896
        %v3929 = vsel %vm3865, %v3813, %v3897
        %v3930 = vsel %vm3866, %v3818, %v3898
        %v3931 = vsel %vm3867, %v3821, %v3899
        %v3932 = vsel %vm3868, %v3826, %v3900
        %v3933 = vsel %vm3869, %v3829, %v3901
        %v3934 = vsel %vm3870, %v3834, %v3902
        %v3935 = vsel %vm3871, %v3837, %v3903
        %3937 = vset.pattern.permute.xlu0 0
        %3938 = vperm.xlu0 %3937, %v707
        %v3939 = vpop.permute.xlu0 %3938
        %3942 = vset.pattern.permute.xlu0 0
        %3943 = vperm.xlu0 %3942, %v708
        %v3944 = vpop.permute.xlu0 %3943
        %3947 = vset.pattern.permute.xlu0 0
        %3948 = vperm.xlu0 %3947, %v709
        %v3949 = vpop.permute.xlu0 %3948
        %3952 = vset.pattern.permute.xlu0 0
        %3953 = vperm.xlu0 %3952, %v710
        %v3954 = vpop.permute.xlu0 %3953
        %3957 = vset.pattern.permute.xlu0 0
        %3958 = vperm.xlu0 %3957, %v711
        %v3959 = vpop.permute.xlu0 %3958
        %3962 = vset.pattern.permute.xlu0 0
        %3963 = vperm.xlu0 %3962, %v712
        %v3964 = vpop.permute.xlu0 %3963
        %3967 = vset.pattern.permute.xlu0 0
        %3968 = vperm.xlu0 %3967, %v713
        %v3969 = vpop.permute.xlu0 %3968
        %3972 = vset.pattern.permute.xlu0 0
        %3973 = vperm.xlu0 %3972, %v714
        %v3974 = vpop.permute.xlu0 %3973
        %3977 = vset.pattern.permute.xlu0 0
        %3978 = vperm.xlu0 %3977, %v715
        %v3979 = vpop.permute.xlu0 %3978
        %3982 = vset.pattern.permute.xlu0 0
        %3983 = vperm.xlu0 %3982, %v716
        %v3984 = vpop.permute.xlu0 %3983
        %3987 = vset.pattern.permute.xlu0 0
        %3988 = vperm.xlu0 %3987, %v717
        %v3989 = vpop.permute.xlu0 %3988
        %3992 = vset.pattern.permute.xlu0 0
        %3993 = vperm.xlu0 %3992, %v718
        %v3994 = vpop.permute.xlu0 %3993
        %3997 = vset.pattern.permute.xlu0 0
        %3998 = vperm.xlu0 %3997, %v719
        %v3999 = vpop.permute.xlu0 %3998
        %4002 = vset.pattern.permute.xlu0 0
        %4003 = vperm.xlu0 %4002, %v720
        %v4004 = vpop.permute.xlu0 %4003
        %4007 = vset.pattern.permute.xlu0 0
        %4008 = vperm.xlu0 %4007, %v721
        %v4009 = vpop.permute.xlu0 %4008
        %4012 = vset.pattern.permute.xlu0 0
        %4013 = vperm.xlu0 %4012, %v722
        %v4014 = vpop.permute.xlu0 %4013
        %4017 = vset.pattern.permute.xlu0 0
        %4018 = vperm.xlu0 %4017, %v723
        %v4019 = vpop.permute.xlu0 %4018
        %4022 = vset.pattern.permute.xlu0 0
        %4023 = vperm.xlu0 %4022, %v724
        %v4024 = vpop.permute.xlu0 %4023
        %4027 = vset.pattern.permute.xlu0 0
        %4028 = vperm.xlu0 %4027, %v725
        %v4029 = vpop.permute.xlu0 %4028
        %4032 = vset.pattern.permute.xlu0 0
        %4033 = vperm.xlu0 %4032, %v726
        %v4034 = vpop.permute.xlu0 %4033
        %4037 = vset.pattern.permute.xlu0 0
        %4038 = vperm.xlu0 %4037, %v727
        %v4039 = vpop.permute.xlu0 %4038
        %4042 = vset.pattern.permute.xlu0 0
        %4043 = vperm.xlu0 %4042, %v728
        %v4044 = vpop.permute.xlu0 %4043
        %4047 = vset.pattern.permute.xlu0 0
        %4048 = vperm.xlu0 %4047, %v729
        %v4049 = vpop.permute.xlu0 %4048
        %4052 = vset.pattern.permute.xlu0 0
        %4053 = vperm.xlu0 %4052, %v730
        %v4054 = vpop.permute.xlu0 %4053
        %4057 = vset.pattern.permute.xlu0 0
        %4058 = vperm.xlu0 %4057, %v731
        %v4059 = vpop.permute.xlu0 %4058
        %4062 = vset.pattern.permute.xlu0 0
        %4063 = vperm.xlu0 %4062, %v732
        %v4064 = vpop.permute.xlu0 %4063
        %4067 = vset.pattern.permute.xlu0 0
        %4068 = vperm.xlu0 %4067, %v733
        %v4069 = vpop.permute.xlu0 %4068
        %4072 = vset.pattern.permute.xlu0 0
        %4073 = vperm.xlu0 %4072, %v734
        %v4074 = vpop.permute.xlu0 %4073
        %4077 = vset.pattern.permute.xlu0 0
        %4078 = vperm.xlu0 %4077, %v735
        %v4079 = vpop.permute.xlu0 %4078
        %4082 = vset.pattern.permute.xlu0 0
        %4083 = vperm.xlu0 %4082, %v736
        %v4084 = vpop.permute.xlu0 %4083
        %4087 = vset.pattern.permute.xlu0 0
        %4088 = vperm.xlu0 %4087, %v737
        %v4089 = vpop.permute.xlu0 %4088
        %4092 = vset.pattern.permute.xlu0 0
        %4093 = vperm.xlu0 %4092, %v738
        %v4094 = vpop.permute.xlu0 %4093
        %v4096 = vmul.f32 %v3560, %v3939
        %v4097 = vmul.f32 %v3561, %v3944
        %v4098 = vmul.f32 %v3562, %v3949
        %v4099 = vmul.f32 %v3563, %v3954
        %v4100 = vmul.f32 %v3564, %v3959
        %v4101 = vmul.f32 %v3565, %v3964
        %v4102 = vmul.f32 %v3566, %v3969
        %v4103 = vmul.f32 %v3567, %v3974
        %v4104 = vmul.f32 %v3568, %v3979
        %v4105 = vmul.f32 %v3569, %v3984
        %v4106 = vmul.f32 %v3570, %v3989
        %v4107 = vmul.f32 %v3571, %v3994
        %v4108 = vmul.f32 %v3572, %v3999
        %v4109 = vmul.f32 %v3573, %v4004
        %v4110 = vmul.f32 %v3574, %v4009
        %v4111 = vmul.f32 %v3575, %v4014
        %v4112 = vmul.f32 %v3576, %v4019
        %v4113 = vmul.f32 %v3577, %v4024
        %v4114 = vmul.f32 %v3578, %v4029
        %v4115 = vmul.f32 %v3579, %v4034
        %v4116 = vmul.f32 %v3580, %v4039
        %v4117 = vmul.f32 %v3581, %v4044
        %v4118 = vmul.f32 %v3582, %v4049
        %v4119 = vmul.f32 %v3583, %v4054
        %v4120 = vmul.f32 %v3584, %v4059
        %v4121 = vmul.f32 %v3585, %v4064
        %v4122 = vmul.f32 %v3586, %v4069
        %v4123 = vmul.f32 %v3587, %v4074
        %v4124 = vmul.f32 %v3588, %v4079
        %v4125 = vmul.f32 %v3589, %v4084
        %v4126 = vmul.f32 %v3590, %v4089
        %v4127 = vmul.f32 %v3591, %v4094
        %v4128 = vpack.c.bf16 %v4097, %v4096
        %v4129 = vpack.c.bf16 %v4099, %v4098
        %v4130 = vpack.c.bf16 %v4101, %v4100
        %v4131 = vpack.c.bf16 %v4103, %v4102
        %v4132 = vpack.c.bf16 %v4105, %v4104
        %v4133 = vpack.c.bf16 %v4107, %v4106
        %v4134 = vpack.c.bf16 %v4109, %v4108
        %v4135 = vpack.c.bf16 %v4111, %v4110
        %v4136 = vpack.c.bf16 %v4113, %v4112
        %v4137 = vpack.c.bf16 %v4115, %v4114
        %v4138 = vpack.c.bf16 %v4117, %v4116
        %v4139 = vpack.c.bf16 %v4119, %v4118
        %v4140 = vpack.c.bf16 %v4121, %v4120
        %v4141 = vpack.c.bf16 %v4123, %v4122
        %v4142 = vpack.c.bf16 %v4125, %v4124
        %v4143 = vpack.c.bf16 %v4127, %v4126
        %v4144 = vpack.c.bf16 %v3905, %v3904
        %v4145 = vpack.c.bf16 %v3907, %v3906
        %v4146 = vpack.c.bf16 %v3909, %v3908
        %v4147 = vpack.c.bf16 %v3911, %v3910
        %v4148 = vpack.c.bf16 %v3913, %v3912
        %v4149 = vpack.c.bf16 %v3915, %v3914
        %v4150 = vpack.c.bf16 %v3917, %v3916
        %v4151 = vpack.c.bf16 %v3919, %v3918
        %v4152 = vpack.c.bf16 %v3921, %v3920
        %v4153 = vpack.c.bf16 %v3923, %v3922
        %v4154 = vpack.c.bf16 %v3925, %v3924
        %v4155 = vpack.c.bf16 %v3927, %v3926
        %v4156 = vpack.c.bf16 %v3929, %v3928
        %v4157 = vpack.c.bf16 %v3931, %v3930
        %v4158 = vpack.c.bf16 %v3933, %v3932
        %v4159 = vpack.c.bf16 %v3935, %v3934
        %v4160 = vld [vmem:[%s18] sm:$0xf]
        %v4161 = vld [vmem:[%s18 + $0x4] sm:$0xf]
        %v4162 = vld [vmem:[%s18 + $0x8] sm:$0xf]
        %v4163 = vld [vmem:[%s18 + $0xc] sm:$0xf]
        %v4164 = vld [vmem:[%s18 + $0x10] sm:$0xf]
        %v4165 = vld [vmem:[%s18 + $0x14] sm:$0xf]
        %v4166 = vld [vmem:[%s18 + $0x18] sm:$0xf]
        %v4167 = vld [vmem:[%s18 + $0x1c] sm:$0xf]
        %v4168 = vld [vmem:[%s18 + $0x20] sm:$0xf]
        %v4169 = vld [vmem:[%s18 + $0x24] sm:$0xf]
        %v4170 = vld [vmem:[%s18 + $0x28] sm:$0xf]
        %v4171 = vld [vmem:[%s18 + $0x2c] sm:$0xf]
        %v4172 = vld [vmem:[%s18 + $0x30] sm:$0xf]
        %v4173 = vld [vmem:[%s18 + $0x34] sm:$0xf]
        %v4174 = vld [vmem:[%s18 + $0x38] sm:$0xf]
        %v4175 = vld [vmem:[%s18 + $0x3c] sm:$0xf]
        %v4176 = vld [vmem:[%s18 + $0x40] sm:$0xf]
        %v4177 = vld [vmem:[%s18 + $0x44] sm:$0xf]
        %v4178 = vld [vmem:[%s18 + $0x48] sm:$0xf]
        %v4179 = vld [vmem:[%s18 + $0x4c] sm:$0xf]
        %v4180 = vld [vmem:[%s18 + $0x50] sm:$0xf]
        %v4181 = vld [vmem:[%s18 + $0x54] sm:$0xf]
        %v4182 = vld [vmem:[%s18 + $0x58] sm:$0xf]
        %v4183 = vld [vmem:[%s18 + $0x5c] sm:$0xf]
        %v4184 = vld [vmem:[%s18 + $0x60] sm:$0xf]
        %v4185 = vld [vmem:[%s18 + $0x64] sm:$0xf]
        %v4186 = vld [vmem:[%s18 + $0x68] sm:$0xf]
        %v4187 = vld [vmem:[%s18 + $0x6c] sm:$0xf]
        %v4188 = vld [vmem:[%s18 + $0x70] sm:$0xf]
        %v4189 = vld [vmem:[%s18 + $0x74] sm:$0xf]
        %v4190 = vld [vmem:[%s18 + $0x78] sm:$0xf]
        %v4191 = vld [vmem:[%s18 + $0x7c] sm:$0xf]
        %v4192 = vld [vmem:[#allocation2] sm:$0x1]
        %v4194 = vlaneseq
        %v4195 = vshrl.u32 %v4194, 7
        %v4196 = vsub.s32 0, %v4195
        %v4197 = vrot.slane %v4192, %v4196
        %v4199 = vmul.f32 %v4197, %v707
        %v4200 = vmul.f32 %v4197, %v708
        %v4201 = vmul.f32 %v4197, %v709
        %v4202 = vmul.f32 %v4197, %v710
        %v4203 = vmul.f32 %v4197, %v711
        %v4204 = vmul.f32 %v4197, %v712
        %v4205 = vmul.f32 %v4197, %v713
        %v4206 = vmul.f32 %v4197, %v714
        %v4207 = vmul.f32 %v4197, %v715
        %v4208 = vmul.f32 %v4197, %v716
        %v4209 = vmul.f32 %v4197, %v717
        %v4210 = vmul.f32 %v4197, %v718
        %v4211 = vmul.f32 %v4197, %v719
        %v4212 = vmul.f32 %v4197, %v720
        %v4213 = vmul.f32 %v4197, %v721
        %v4214 = vmul.f32 %v4197, %v722
        %v4215 = vmul.f32 %v4197, %v723
        %v4216 = vmul.f32 %v4197, %v724
        %v4217 = vmul.f32 %v4197, %v725
        %v4218 = vmul.f32 %v4197, %v726
        %v4219 = vmul.f32 %v4197, %v727
        %v4220 = vmul.f32 %v4197, %v728
        %v4221 = vmul.f32 %v4197, %v729
        %v4222 = vmul.f32 %v4197, %v730
        %v4223 = vmul.f32 %v4197, %v731
        %v4224 = vmul.f32 %v4197, %v732
        %v4225 = vmul.f32 %v4197, %v733
        %v4226 = vmul.f32 %v4197, %v734
        %v4227 = vmul.f32 %v4197, %v735
        %v4228 = vmul.f32 %v4197, %v736
        %v4229 = vmul.f32 %v4197, %v737
        %v4230 = vmul.f32 %v4197, %v738
        %v4263 = vunpack.c.l.b16 %v4160
        %v4264 = vunpack.c.l.b16 %v4161
        %v4265 = vunpack.c.l.b16 %v4162
        %v4266 = vunpack.c.l.b16 %v4163
        %v4267 = vunpack.c.l.b16 %v4164
        %v4268 = vunpack.c.l.b16 %v4165
        %v4269 = vunpack.c.l.b16 %v4166
        %v4270 = vunpack.c.l.b16 %v4167
        %v4271 = vunpack.c.l.b16 %v4168
        %v4272 = vunpack.c.l.b16 %v4169
        %v4273 = vunpack.c.l.b16 %v4170
        %v4274 = vunpack.c.l.b16 %v4171
        %v4275 = vunpack.c.l.b16 %v4172
        %v4276 = vunpack.c.l.b16 %v4173
        %v4277 = vunpack.c.l.b16 %v4174
        %v4278 = vunpack.c.l.b16 %v4175
        %v4279 = vunpack.c.l.b16 %v4176
        %v4280 = vunpack.c.l.b16 %v4177
        %v4281 = vunpack.c.l.b16 %v4178
        %v4282 = vunpack.c.l.b16 %v4179
        %v4283 = vunpack.c.l.b16 %v4180
        %v4284 = vunpack.c.l.b16 %v4181
        %v4285 = vunpack.c.l.b16 %v4182
        %v4286 = vunpack.c.l.b16 %v4183
        %v4287 = vunpack.c.l.b16 %v4184
        %v4288 = vunpack.c.l.b16 %v4185
        %v4289 = vunpack.c.l.b16 %v4186
        %v4290 = vunpack.c.l.b16 %v4187
        %v4291 = vunpack.c.l.b16 %v4188
        %v4292 = vunpack.c.l.b16 %v4189
        %v4293 = vunpack.c.l.b16 %v4190
        %v4294 = vunpack.c.l.b16 %v4191
        %v4295 = vpack.c.b16 %v4264, %v4263
        %v4296 = vpack.c.b16 %v4266, %v4265
        %v4297 = vpack.c.b16 %v4268, %v4267
        %v4298 = vpack.c.b16 %v4270, %v4269
        %v4299 = vpack.c.b16 %v4272, %v4271
        %v4300 = vpack.c.b16 %v4274, %v4273
        %v4301 = vpack.c.b16 %v4276, %v4275
        %v4302 = vpack.c.b16 %v4278, %v4277
        %v4303 = vpack.c.b16 %v4280, %v4279
        %v4304 = vpack.c.b16 %v4282, %v4281
        %v4305 = vpack.c.b16 %v4284, %v4283
        %v4306 = vpack.c.b16 %v4286, %v4285
        %v4307 = vpack.c.b16 %v4288, %v4287
        %v4308 = vpack.c.b16 %v4290, %v4289
        %v4309 = vpack.c.b16 %v4292, %v4291
        %v4310 = vpack.c.b16 %v4294, %v4293
        %4327 = vmatprep.subr.bf16.mxu0 0
        %4328 = vmatpush1.bf16.msra.mxu0 %v4295
        %4329 = vmatprep.subr.bf16.mxu0 0
        %4330 = vmatpush1.bf16.msra.mxu0 %v4296
        %4331 = vmatprep.subr.bf16.mxu0 0
        %4332 = vmatpush1.bf16.msra.mxu0 %v4297
        %4333 = vmatprep.subr.bf16.mxu0 0
        %4334 = vmatpush1.bf16.msra.mxu0 %v4298
        %4335 = vmatprep.subr.bf16.mxu0 0
        %4336 = vmatpush1.bf16.msra.mxu0 %v4299
        %4337 = vmatprep.subr.bf16.mxu0 0
        %4338 = vmatpush1.bf16.msra.mxu0 %v4300
        %4339 = vmatprep.subr.bf16.mxu0 0
        %4340 = vmatpush1.bf16.msra.mxu0 %v4301
        %4341 = vmatprep.subr.bf16.mxu0 0
        %4342 = vmatpush1.bf16.msra.mxu0 %v4302
        %4343 = vmatprep.subr.bf16.mxu0 0
        %4344 = vmatpush1.bf16.msra.mxu0 %v4303
        %4345 = vmatprep.subr.bf16.mxu0 0
        %4346 = vmatpush1.bf16.msra.mxu0 %v4304
        %4347 = vmatprep.subr.bf16.mxu0 0
        %4348 = vmatpush1.bf16.msra.mxu0 %v4305
        %4349 = vmatprep.subr.bf16.mxu0 0
        %4350 = vmatpush1.bf16.msra.mxu0 %v4306
        %4351 = vmatprep.subr.bf16.mxu0 0
        %4352 = vmatpush1.bf16.msra.mxu0 %v4307
        %4353 = vmatprep.subr.bf16.mxu0 0
        %4354 = vmatpush1.bf16.msra.mxu0 %v4308
        %4355 = vmatprep.subr.bf16.mxu0 0
        %4356 = vmatpush1.bf16.msra.mxu0 %v4309
        %4357 = vmatprep.subr.bf16.mxu0 0
        %4358 = vmatpush1.bf16.msra.mxu0 %v4310
        %4359 = vmatprep.mubr.bf16.mxu0 %v4144
        %4360 = vmatmul.mubr.bf16.gmra.mrb[0].mxu0 %v4128
        %v4361 = vpop.f32.mrb[0].mxu0
        %v4362 = vadd.f32 %v4199, %v4361
        %v4363 = vpop.f32.mrb[0].mxu0
        %v4364 = vpop.f32.mrb[0].mxu0
        %v4365 = vadd.f32 %v4200, %v4364
        %v4366 = vpop.f32.mrb[0].mxu0
        %4367 = vmatprep.mubr.bf16.mxu0 %v4145
        %4368 = vmatmul.mubr.bf16.gmra.mrb[0].mxu0 %v4129
        %v4369 = vpop.f32.mrb[0].mxu0
        %v4370 = vadd.f32 %v4201, %v4369
        %v4371 = vpop.f32.mrb[0].mxu0
        %v4372 = vpop.f32.mrb[0].mxu0
        %v4373 = vadd.f32 %v4202, %v4372
        %v4374 = vpop.f32.mrb[0].mxu0
        %4375 = vmatprep.mubr.bf16.mxu0 %v4146
        %4376 = vmatmul.mubr.bf16.gmra.mrb[0].mxu0 %v4130
        %v4377 = vpop.f32.mrb[0].mxu0
        %v4378 = vadd.f32 %v4203, %v4377
        %v4379 = vpop.f32.mrb[0].mxu0
        %v4380 = vpop.f32.mrb[0].mxu0
        %v4381 = vadd.f32 %v4204, %v4380
        %v4382 = vpop.f32.mrb[0].mxu0
        %4383 = vmatprep.mubr.bf16.mxu0 %v4147
        %4384 = vmatmul.mubr.bf16.gmra.mrb[0].mxu0 %v4131
        %v4385 = vpop.f32.mrb[0].mxu0
        %v4386 = vadd.f32 %v4205, %v4385
        %v4387 = vpop.f32.mrb[0].mxu0
        %v4388 = vpop.f32.mrb[0].mxu0
        %v4389 = vadd.f32 %v4206, %v4388
        %v4390 = vpop.f32.mrb[0].mxu0
        %4391 = vmatprep.mubr.bf16.mxu0 %v4148
        %4392 = vmatmul.mubr.bf16.gmra.mrb[0].mxu0 %v4132
        %v4393 = vpop.f32.mrb[0].mxu0
        %v4394 = vadd.f32 %v4207, %v4393
        %v4395 = vpop.f32.mrb[0].mxu0
        %v4396 = vpop.f32.mrb[0].mxu0
        %v4397 = vadd.f32 %v4208, %v4396
        %v4398 = vpop.f32.mrb[0].mxu0
        %4399 = vmatprep.mubr.bf16.mxu0 %v4149
        %4400 = vmatmul.mubr.bf16.gmra.mrb[0].mxu0 %v4133
        %v4401 = vpop.f32.mrb[0].mxu0
        %v4402 = vadd.f32 %v4209, %v4401
        %v4403 = vpop.f32.mrb[0].mxu0
        %v4404 = vpop.f32.mrb[0].mxu0
        %v4405 = vadd.f32 %v4210, %v4404
        %v4406 = vpop.f32.mrb[0].mxu0
        %4407 = vmatprep.mubr.bf16.mxu0 %v4150
        %4408 = vmatmul.mubr.bf16.gmra.mrb[0].mxu0 %v4134
        %v4409 = vpop.f32.mrb[0].mxu0
        %v4410 = vadd.f32 %v4211, %v4409
        %v4411 = vpop.f32.mrb[0].mxu0
        %v4412 = vpop.f32.mrb[0].mxu0
        %v4413 = vadd.f32 %v4212, %v4412
        %v4414 = vpop.f32.mrb[0].mxu0
        %4415 = vmatprep.mubr.bf16.mxu0 %v4151
        %4416 = vmatmul.mubr.bf16.gmra.mrb[0].mxu0 %v4135
        %v4417 = vpop.f32.mrb[0].mxu0
        %v4418 = vadd.f32 %v4213, %v4417
        %v4419 = vpop.f32.mrb[0].mxu0
        %v4420 = vpop.f32.mrb[0].mxu0
        %v4421 = vadd.f32 %v4214, %v4420
        %v4422 = vpop.f32.mrb[0].mxu0
        %4423 = vmatprep.mubr.bf16.mxu0 %v4152
        %4424 = vmatmul.mubr.bf16.gmra.mrb[0].mxu0 %v4136
        %v4425 = vpop.f32.mrb[0].mxu0
        %v4426 = vadd.f32 %v4215, %v4425
        %v4427 = vpop.f32.mrb[0].mxu0
        %v4428 = vpop.f32.mrb[0].mxu0
        %v4429 = vadd.f32 %v4216, %v4428
        %v4430 = vpop.f32.mrb[0].mxu0
        %4431 = vmatprep.mubr.bf16.mxu0 %v4153
        %4432 = vmatmul.mubr.bf16.gmra.mrb[0].mxu0 %v4137
        %v4433 = vpop.f32.mrb[0].mxu0
        %v4434 = vadd.f32 %v4217, %v4433
        %v4435 = vpop.f32.mrb[0].mxu0
        %v4436 = vpop.f32.mrb[0].mxu0
        %v4437 = vadd.f32 %v4218, %v4436
        %v4438 = vpop.f32.mrb[0].mxu0
        %4439 = vmatprep.mubr.bf16.mxu0 %v4154
        %4440 = vmatmul.mubr.bf16.gmra.mrb[0].mxu0 %v4138
        %v4441 = vpop.f32.mrb[0].mxu0
        %v4442 = vadd.f32 %v4219, %v4441
        %v4443 = vpop.f32.mrb[0].mxu0
        %v4444 = vpop.f32.mrb[0].mxu0
        %v4445 = vadd.f32 %v4220, %v4444
        %v4446 = vpop.f32.mrb[0].mxu0
        %4447 = vmatprep.mubr.bf16.mxu0 %v4155
        %4448 = vmatmul.mubr.bf16.gmra.mrb[0].mxu0 %v4139
        %v4449 = vpop.f32.mrb[0].mxu0
        %v4450 = vadd.f32 %v4221, %v4449
        %v4451 = vpop.f32.mrb[0].mxu0
        %v4452 = vpop.f32.mrb[0].mxu0
        %v4453 = vadd.f32 %v4222, %v4452
        %v4454 = vpop.f32.mrb[0].mxu0
        %4455 = vmatprep.mubr.bf16.mxu0 %v4156
        %4456 = vmatmul.mubr.bf16.gmra.mrb[0].mxu0 %v4140
        %v4457 = vpop.f32.mrb[0].mxu0
        %v4458 = vadd.f32 %v4223, %v4457
        %v4459 = vpop.f32.mrb[0].mxu0
        %v4460 = vpop.f32.mrb[0].mxu0
        %v4461 = vadd.f32 %v4224, %v4460
        %v4462 = vpop.f32.mrb[0].mxu0
        %4463 = vmatprep.mubr.bf16.mxu0 %v4157
        %4464 = vmatmul.mubr.bf16.gmra.mrb[0].mxu0 %v4141
        %v4465 = vpop.f32.mrb[0].mxu0
        %v4466 = vadd.f32 %v4225, %v4465
        %v4467 = vpop.f32.mrb[0].mxu0
        %v4468 = vpop.f32.mrb[0].mxu0
        %v4469 = vadd.f32 %v4226, %v4468
        %v4470 = vpop.f32.mrb[0].mxu0
        %4471 = vmatprep.mubr.bf16.mxu0 %v4158
        %4472 = vmatmul.mubr.bf16.gmra.mrb[0].mxu0 %v4142
        %v4473 = vpop.f32.mrb[0].mxu0
        %v4474 = vadd.f32 %v4227, %v4473
        %v4475 = vpop.f32.mrb[0].mxu0
        %v4476 = vpop.f32.mrb[0].mxu0
        %v4477 = vadd.f32 %v4228, %v4476
        %v4478 = vpop.f32.mrb[0].mxu0
        %4479 = vmatprep.mubr.bf16.mxu0 %v4159
        %4480 = vmatmul.mubr.bf16.gmra.mrb[0].mxu0 %v4143
        %v4481 = vpop.f32.mrb[0].mxu0
        %v4482 = vadd.f32 %v4229, %v4481
        %v4483 = vpop.f32.mrb[0].mxu0
        %v4484 = vpop.f32.mrb[0].mxu0
        %v4485 = vadd.f32 %v4230, %v4484
        %v4486 = vpop.f32.mrb[0].mxu0
        %4487 = vdwg.mxu0
        %v4488 = vld [vmem:[#allocation3] sm:$0x1]
        %v4490 = vlaneseq
        %v4491 = vshrl.u32 %v4490, 7
        %v4492 = vsub.s32 0, %v4491
        %v4493 = vrot.slane %v4488, %v4492
        %v4495 = vadd.f32 %v4362, %v4493
        %v4496 = vadd.f32 %v4365, %v4493
        %v4497 = vadd.f32 %v4370, %v4493
        %v4498 = vadd.f32 %v4373, %v4493
        %v4499 = vadd.f32 %v4378, %v4493
        %v4500 = vadd.f32 %v4381, %v4493
        %v4501 = vadd.f32 %v4386, %v4493
        %v4502 = vadd.f32 %v4389, %v4493
        %v4503 = vadd.f32 %v4394, %v4493
        %v4504 = vadd.f32 %v4397, %v4493
        %v4505 = vadd.f32 %v4402, %v4493
        %v4506 = vadd.f32 %v4405, %v4493
        %v4507 = vadd.f32 %v4410, %v4493
        %v4508 = vadd.f32 %v4413, %v4493
        %v4509 = vadd.f32 %v4418, %v4493
        %v4510 = vadd.f32 %v4421, %v4493
        %v4511 = vadd.f32 %v4426, %v4493
        %v4512 = vadd.f32 %v4429, %v4493
        %v4513 = vadd.f32 %v4434, %v4493
        %v4514 = vadd.f32 %v4437, %v4493
        %v4515 = vadd.f32 %v4442, %v4493
        %v4516 = vadd.f32 %v4445, %v4493
        %v4517 = vadd.f32 %v4450, %v4493
        %v4518 = vadd.f32 %v4453, %v4493
        %v4519 = vadd.f32 %v4458, %v4493
        %v4520 = vadd.f32 %v4461, %v4493
        %v4521 = vadd.f32 %v4466, %v4493
        %v4522 = vadd.f32 %v4469, %v4493
        %v4523 = vadd.f32 %v4474, %v4493
        %v4524 = vadd.f32 %v4477, %v4493
        %v4525 = vadd.f32 %v4482, %v4493
        %v4526 = vadd.f32 %v4485, %v4493
        %v4559 = vcombine.high %v4495, %v4495
        %v4561 = vunpack.c.l.s4 1966171168
        %v4562 = vunpack.c.0.s8 %v4561
        %v4563 = vlaneseq
        %v4564 = vshrl.u32 %v4563, 7
        %v4565 = vsub.s32 %v4562, %v4564
        %v4566 = vrot.slane %v4495, %v4565
        %v4568 = vunpack.c.l.s4 1966171168
        %v4569 = vunpack.c.0.s8 %v4568
        %v4570 = vlaneseq
        %v4571 = vshrl.u32 %v4570, 7
        %v4572 = vsub.s32 %v4569, %v4571
        %v4573 = vrot.slane %v4559, %v4572
        %v4574 = vcombine.high %v4566, %v4566
        %v4575 = vcombine.high %v4573, %v4573
        %v4577 = vunpack.c.l.s4 1966171168
        %v4578 = vunpack.c.0.s8 %v4577
        %v4579 = vlaneseq
        %v4580 = vshrl.u32 %v4579, 7
        %v4581 = vsub.s32 %v4578, %v4580
        %v4582 = vrot.slane %v4566, %v4581
        %v4584 = vunpack.c.l.s4 1966171168
        %v4585 = vunpack.c.0.s8 %v4584
        %v4586 = vlaneseq
        %v4587 = vshrl.u32 %v4586, 7
        %v4588 = vsub.s32 %v4585, %v4587
        %v4589 = vrot.slane %v4573, %v4588
        %v4591 = vunpack.c.l.s4 1966171168
        %v4592 = vunpack.c.0.s8 %v4591
        %v4593 = vlaneseq
        %v4594 = vshrl.u32 %v4593, 7
        %v4595 = vsub.s32 %v4592, %v4594
        %v4596 = vrot.slane %v4574, %v4595
        %v4598 = vunpack.c.l.s4 1966171168
        %v4599 = vunpack.c.0.s8 %v4598
        %v4600 = vlaneseq
        %v4601 = vshrl.u32 %v4600, 7
        %v4602 = vsub.s32 %v4599, %v4601
        %v4603 = vrot.slane %v4575, %v4602
        %v4604 = vcombine.high %v4582, %v4582
        %v4605 = vcombine.high %v4589, %v4589
        %v4606 = vcombine.high %v4596, %v4596
        %v4607 = vcombine.high %v4603, %v4603
        %v4608 = vcombine.high %v4496, %v4496
        %v4610 = vunpack.c.l.s4 1966171168
        %v4611 = vunpack.c.0.s8 %v4610
        %v4612 = vlaneseq
        %v4613 = vshrl.u32 %v4612, 7
        %v4614 = vsub.s32 %v4611, %v4613
        %v4615 = vrot.slane %v4496, %v4614
        %v4617 = vunpack.c.l.s4 1966171168
        %v4618 = vunpack.c.0.s8 %v4617
        %v4619 = vlaneseq
        %v4620 = vshrl.u32 %v4619, 7
        %v4621 = vsub.s32 %v4618, %v4620
        %v4622 = vrot.slane %v4608, %v4621
        %v4623 = vcombine.high %v4615, %v4615
        %v4624 = vcombine.high %v4622, %v4622
        %v4626 = vunpack.c.l.s4 1966171168
        %v4627 = vunpack.c.0.s8 %v4626
        %v4628 = vlaneseq
        %v4629 = vshrl.u32 %v4628, 7
        %v4630 = vsub.s32 %v4627, %v4629
        %v4631 = vrot.slane %v4615, %v4630
        %v4633 = vunpack.c.l.s4 1966171168
        %v4634 = vunpack.c.0.s8 %v4633
        %v4635 = vlaneseq
        %v4636 = vshrl.u32 %v4635, 7
        %v4637 = vsub.s32 %v4634, %v4636
        %v4638 = vrot.slane %v4622, %v4637
        %v4640 = vunpack.c.l.s4 1966171168
        %v4641 = vunpack.c.0.s8 %v4640
        %v4642 = vlaneseq
        %v4643 = vshrl.u32 %v4642, 7
        %v4644 = vsub.s32 %v4641, %v4643
        %v4645 = vrot.slane %v4623, %v4644
        %v4647 = vunpack.c.l.s4 1966171168
        %v4648 = vunpack.c.0.s8 %v4647
        %v4649 = vlaneseq
        %v4650 = vshrl.u32 %v4649, 7
        %v4651 = vsub.s32 %v4648, %v4650
        %v4652 = vrot.slane %v4624, %v4651
        %v4653 = vcombine.high %v4631, %v4631
        %v4654 = vcombine.high %v4638, %v4638
        %v4655 = vcombine.high %v4645, %v4645
        %v4656 = vcombine.high %v4652, %v4652
        %v4657 = vcombine.high %v4497, %v4497
        %v4659 = vunpack.c.l.s4 1966171168
        %v4660 = vunpack.c.0.s8 %v4659
        %v4661 = vlaneseq
        %v4662 = vshrl.u32 %v4661, 7
        %v4663 = vsub.s32 %v4660, %v4662
        %v4664 = vrot.slane %v4497, %v4663
        %v4666 = vunpack.c.l.s4 1966171168
        %v4667 = vunpack.c.0.s8 %v4666
        %v4668 = vlaneseq
        %v4669 = vshrl.u32 %v4668, 7
        %v4670 = vsub.s32 %v4667, %v4669
        %v4671 = vrot.slane %v4657, %v4670
        %v4672 = vcombine.high %v4664, %v4664
        %v4673 = vcombine.high %v4671, %v4671
        %v4675 = vunpack.c.l.s4 1966171168
        %v4676 = vunpack.c.0.s8 %v4675
        %v4677 = vlaneseq
        %v4678 = vshrl.u32 %v4677, 7
        %v4679 = vsub.s32 %v4676, %v4678
        %v4680 = vrot.slane %v4664, %v4679
        %v4682 = vunpack.c.l.s4 1966171168
        %v4683 = vunpack.c.0.s8 %v4682
        %v4684 = vlaneseq
        %v4685 = vshrl.u32 %v4684, 7
        %v4686 = vsub.s32 %v4683, %v4685
        %v4687 = vrot.slane %v4671, %v4686
        %v4689 = vunpack.c.l.s4 1966171168
        %v4690 = vunpack.c.0.s8 %v4689
        %v4691 = vlaneseq
        %v4692 = vshrl.u32 %v4691, 7
        %v4693 = vsub.s32 %v4690, %v4692
        %v4694 = vrot.slane %v4672, %v4693
        %v4696 = vunpack.c.l.s4 1966171168
        %v4697 = vunpack.c.0.s8 %v4696
        %v4698 = vlaneseq
        %v4699 = vshrl.u32 %v4698, 7
        %v4700 = vsub.s32 %v4697, %v4699
        %v4701 = vrot.slane %v4673, %v4700
        %v4702 = vcombine.high %v4680, %v4680
        %v4703 = vcombine.high %v4687, %v4687
        %v4704 = vcombine.high %v4694, %v4694
        %v4705 = vcombine.high %v4701, %v4701
        %v4706 = vcombine.high %v4498, %v4498
        %v4708 = vunpack.c.l.s4 1966171168
        %v4709 = vunpack.c.0.s8 %v4708
        %v4710 = vlaneseq
        %v4711 = vshrl.u32 %v4710, 7
        %v4712 = vsub.s32 %v4709, %v4711
        %v4713 = vrot.slane %v4498, %v4712
        %v4715 = vunpack.c.l.s4 1966171168
        %v4716 = vunpack.c.0.s8 %v4715
        %v4717 = vlaneseq
        %v4718 = vshrl.u32 %v4717, 7
        %v4719 = vsub.s32 %v4716, %v4718
        %v4720 = vrot.slane %v4706, %v4719
        %v4721 = vcombine.high %v4713, %v4713
        %v4722 = vcombine.high %v4720, %v4720
        %v4724 = vunpack.c.l.s4 1966171168
        %v4725 = vunpack.c.0.s8 %v4724
        %v4726 = vlaneseq
        %v4727 = vshrl.u32 %v4726, 7
        %v4728 = vsub.s32 %v4725, %v4727
        %v4729 = vrot.slane %v4713, %v4728
        %v4731 = vunpack.c.l.s4 1966171168
        %v4732 = vunpack.c.0.s8 %v4731
        %v4733 = vlaneseq
        %v4734 = vshrl.u32 %v4733, 7
        %v4735 = vsub.s32 %v4732, %v4734
        %v4736 = vrot.slane %v4720, %v4735
        %v4738 = vunpack.c.l.s4 1966171168
        %v4739 = vunpack.c.0.s8 %v4738
        %v4740 = vlaneseq
        %v4741 = vshrl.u32 %v4740, 7
        %v4742 = vsub.s32 %v4739, %v4741
        %v4743 = vrot.slane %v4721, %v4742
        %v4745 = vunpack.c.l.s4 1966171168
        %v4746 = vunpack.c.0.s8 %v4745
        %v4747 = vlaneseq
        %v4748 = vshrl.u32 %v4747, 7
        %v4749 = vsub.s32 %v4746, %v4748
        %v4750 = vrot.slane %v4722, %v4749
        %v4751 = vcombine.high %v4729, %v4729
        %v4752 = vcombine.high %v4736, %v4736
        %v4753 = vcombine.high %v4743, %v4743
        %v4754 = vcombine.high %v4750, %v4750
        %v4755 = vcombine.high %v4499, %v4499
        %v4757 = vunpack.c.l.s4 1966171168
        %v4758 = vunpack.c.0.s8 %v4757
        %v4759 = vlaneseq
        %v4760 = vshrl.u32 %v4759, 7
        %v4761 = vsub.s32 %v4758, %v4760
        %v4762 = vrot.slane %v4499, %v4761
        %v4764 = vunpack.c.l.s4 1966171168
        %v4765 = vunpack.c.0.s8 %v4764
        %v4766 = vlaneseq
        %v4767 = vshrl.u32 %v4766, 7
        %v4768 = vsub.s32 %v4765, %v4767
        %v4769 = vrot.slane %v4755, %v4768
        %v4770 = vcombine.high %v4762, %v4762
        %v4771 = vcombine.high %v4769, %v4769
        %v4773 = vunpack.c.l.s4 1966171168
        %v4774 = vunpack.c.0.s8 %v4773
        %v4775 = vlaneseq
        %v4776 = vshrl.u32 %v4775, 7
        %v4777 = vsub.s32 %v4774, %v4776
        %v4778 = vrot.slane %v4762, %v4777
        %v4780 = vunpack.c.l.s4 1966171168
        %v4781 = vunpack.c.0.s8 %v4780
        %v4782 = vlaneseq
        %v4783 = vshrl.u32 %v4782, 7
        %v4784 = vsub.s32 %v4781, %v4783
        %v4785 = vrot.slane %v4769, %v4784
        %v4787 = vunpack.c.l.s4 1966171168
        %v4788 = vunpack.c.0.s8 %v4787
        %v4789 = vlaneseq
        %v4790 = vshrl.u32 %v4789, 7
        %v4791 = vsub.s32 %v4788, %v4790
        %v4792 = vrot.slane %v4770, %v4791
        %v4794 = vunpack.c.l.s4 1966171168
        %v4795 = vunpack.c.0.s8 %v4794
        %v4796 = vlaneseq
        %v4797 = vshrl.u32 %v4796, 7
        %v4798 = vsub.s32 %v4795, %v4797
        %v4799 = vrot.slane %v4771, %v4798
        %v4800 = vcombine.high %v4778, %v4778
        %v4801 = vcombine.high %v4785, %v4785
        %v4802 = vcombine.high %v4792, %v4792
        %v4803 = vcombine.high %v4799, %v4799
        %v4804 = vcombine.high %v4500, %v4500
        %v4806 = vunpack.c.l.s4 1966171168
        %v4807 = vunpack.c.0.s8 %v4806
        %v4808 = vlaneseq
        %v4809 = vshrl.u32 %v4808, 7
        %v4810 = vsub.s32 %v4807, %v4809
        %v4811 = vrot.slane %v4500, %v4810
        %v4813 = vunpack.c.l.s4 1966171168
        %v4814 = vunpack.c.0.s8 %v4813
        %v4815 = vlaneseq
        %v4816 = vshrl.u32 %v4815, 7
        %v4817 = vsub.s32 %v4814, %v4816
        %v4818 = vrot.slane %v4804, %v4817
        %v4819 = vcombine.high %v4811, %v4811
        %v4820 = vcombine.high %v4818, %v4818
        %v4822 = vunpack.c.l.s4 1966171168
        %v4823 = vunpack.c.0.s8 %v4822
        %v4824 = vlaneseq
        %v4825 = vshrl.u32 %v4824, 7
        %v4826 = vsub.s32 %v4823, %v4825
        %v4827 = vrot.slane %v4811, %v4826
        %v4829 = vunpack.c.l.s4 1966171168
        %v4830 = vunpack.c.0.s8 %v4829
        %v4831 = vlaneseq
        %v4832 = vshrl.u32 %v4831, 7
        %v4833 = vsub.s32 %v4830, %v4832
        %v4834 = vrot.slane %v4818, %v4833
        %v4836 = vunpack.c.l.s4 1966171168
        %v4837 = vunpack.c.0.s8 %v4836
        %v4838 = vlaneseq
        %v4839 = vshrl.u32 %v4838, 7
        %v4840 = vsub.s32 %v4837, %v4839
        %v4841 = vrot.slane %v4819, %v4840
        %v4843 = vunpack.c.l.s4 1966171168
        %v4844 = vunpack.c.0.s8 %v4843
        %v4845 = vlaneseq
        %v4846 = vshrl.u32 %v4845, 7
        %v4847 = vsub.s32 %v4844, %v4846
        %v4848 = vrot.slane %v4820, %v4847
        %v4849 = vcombine.high %v4827, %v4827
        %v4850 = vcombine.high %v4834, %v4834
        %v4851 = vcombine.high %v4841, %v4841
        %v4852 = vcombine.high %v4848, %v4848
        %v4853 = vcombine.high %v4501, %v4501
        %v4855 = vunpack.c.l.s4 1966171168
        %v4856 = vunpack.c.0.s8 %v4855
        %v4857 = vlaneseq
        %v4858 = vshrl.u32 %v4857, 7
        %v4859 = vsub.s32 %v4856, %v4858
        %v4860 = vrot.slane %v4501, %v4859
        %v4862 = vunpack.c.l.s4 1966171168
        %v4863 = vunpack.c.0.s8 %v4862
        %v4864 = vlaneseq
        %v4865 = vshrl.u32 %v4864, 7
        %v4866 = vsub.s32 %v4863, %v4865
        %v4867 = vrot.slane %v4853, %v4866
        %v4868 = vcombine.high %v4860, %v4860
        %v4869 = vcombine.high %v4867, %v4867
        %v4871 = vunpack.c.l.s4 1966171168
        %v4872 = vunpack.c.0.s8 %v4871
        %v4873 = vlaneseq
        %v4874 = vshrl.u32 %v4873, 7
        %v4875 = vsub.s32 %v4872, %v4874
        %v4876 = vrot.slane %v4860, %v4875
        %v4878 = vunpack.c.l.s4 1966171168
        %v4879 = vunpack.c.0.s8 %v4878
        %v4880 = vlaneseq
        %v4881 = vshrl.u32 %v4880, 7
        %v4882 = vsub.s32 %v4879, %v4881
        %v4883 = vrot.slane %v4867, %v4882
        %v4885 = vunpack.c.l.s4 1966171168
        %v4886 = vunpack.c.0.s8 %v4885
        %v4887 = vlaneseq
        %v4888 = vshrl.u32 %v4887, 7
        %v4889 = vsub.s32 %v4886, %v4888
        %v4890 = vrot.slane %v4868, %v4889
        %v4892 = vunpack.c.l.s4 1966171168
        %v4893 = vunpack.c.0.s8 %v4892
        %v4894 = vlaneseq
        %v4895 = vshrl.u32 %v4894, 7
        %v4896 = vsub.s32 %v4893, %v4895
        %v4897 = vrot.slane %v4869, %v4896
        %v4898 = vcombine.high %v4876, %v4876
        %v4899 = vcombine.high %v4883, %v4883
        %v4900 = vcombine.high %v4890, %v4890
        %v4901 = vcombine.high %v4897, %v4897
        %v4902 = vcombine.high %v4502, %v4502
        %v4904 = vunpack.c.l.s4 1966171168
        %v4905 = vunpack.c.0.s8 %v4904
        %v4906 = vlaneseq
        %v4907 = vshrl.u32 %v4906, 7
        %v4908 = vsub.s32 %v4905, %v4907
        %v4909 = vrot.slane %v4502, %v4908
        %v4911 = vunpack.c.l.s4 1966171168
        %v4912 = vunpack.c.0.s8 %v4911
        %v4913 = vlaneseq
        %v4914 = vshrl.u32 %v4913, 7
        %v4915 = vsub.s32 %v4912, %v4914
        %v4916 = vrot.slane %v4902, %v4915
        %v4917 = vcombine.high %v4909, %v4909
        %v4918 = vcombine.high %v4916, %v4916
        %v4920 = vunpack.c.l.s4 1966171168
        %v4921 = vunpack.c.0.s8 %v4920
        %v4922 = vlaneseq
        %v4923 = vshrl.u32 %v4922, 7
        %v4924 = vsub.s32 %v4921, %v4923
        %v4925 = vrot.slane %v4909, %v4924
        %v4927 = vunpack.c.l.s4 1966171168
        %v4928 = vunpack.c.0.s8 %v4927
        %v4929 = vlaneseq
        %v4930 = vshrl.u32 %v4929, 7
        %v4931 = vsub.s32 %v4928, %v4930
        %v4932 = vrot.slane %v4916, %v4931
        %v4934 = vunpack.c.l.s4 1966171168
        %v4935 = vunpack.c.0.s8 %v4934
        %v4936 = vlaneseq
        %v4937 = vshrl.u32 %v4936, 7
        %v4938 = vsub.s32 %v4935, %v4937
        %v4939 = vrot.slane %v4917, %v4938
        %v4941 = vunpack.c.l.s4 1966171168
        %v4942 = vunpack.c.0.s8 %v4941
        %v4943 = vlaneseq
        %v4944 = vshrl.u32 %v4943, 7
        %v4945 = vsub.s32 %v4942, %v4944
        %v4946 = vrot.slane %v4918, %v4945
        %v4947 = vcombine.high %v4925, %v4925
        %v4948 = vcombine.high %v4932, %v4932
        %v4949 = vcombine.high %v4939, %v4939
        %v4950 = vcombine.high %v4946, %v4946
        %v4951 = vcombine.high %v4503, %v4503
        %v4953 = vunpack.c.l.s4 1966171168
        %v4954 = vunpack.c.0.s8 %v4953
        %v4955 = vlaneseq
        %v4956 = vshrl.u32 %v4955, 7
        %v4957 = vsub.s32 %v4954, %v4956
        %v4958 = vrot.slane %v4503, %v4957
        %v4960 = vunpack.c.l.s4 1966171168
        %v4961 = vunpack.c.0.s8 %v4960
        %v4962 = vlaneseq
        %v4963 = vshrl.u32 %v4962, 7
        %v4964 = vsub.s32 %v4961, %v4963
        %v4965 = vrot.slane %v4951, %v4964
        %v4966 = vcombine.high %v4958, %v4958
        %v4967 = vcombine.high %v4965, %v4965
        %v4969 = vunpack.c.l.s4 1966171168
        %v4970 = vunpack.c.0.s8 %v4969
        %v4971 = vlaneseq
        %v4972 = vshrl.u32 %v4971, 7
        %v4973 = vsub.s32 %v4970, %v4972
        %v4974 = vrot.slane %v4958, %v4973
        %v4976 = vunpack.c.l.s4 1966171168
        %v4977 = vunpack.c.0.s8 %v4976
        %v4978 = vlaneseq
        %v4979 = vshrl.u32 %v4978, 7
        %v4980 = vsub.s32 %v4977, %v4979
        %v4981 = vrot.slane %v4965, %v4980
        %v4983 = vunpack.c.l.s4 1966171168
        %v4984 = vunpack.c.0.s8 %v4983
        %v4985 = vlaneseq
        %v4986 = vshrl.u32 %v4985, 7
        %v4987 = vsub.s32 %v4984, %v4986
        %v4988 = vrot.slane %v4966, %v4987
        %v4990 = vunpack.c.l.s4 1966171168
        %v4991 = vunpack.c.0.s8 %v4990
        %v4992 = vlaneseq
        %v4993 = vshrl.u32 %v4992, 7
        %v4994 = vsub.s32 %v4991, %v4993
        %v4995 = vrot.slane %v4967, %v4994
        %v4996 = vcombine.high %v4974, %v4974
        %v4997 = vcombine.high %v4981, %v4981
        %v4998 = vcombine.high %v4988, %v4988
        %v4999 = vcombine.high %v4995, %v4995
        %v5000 = vcombine.high %v4504, %v4504
        %v5002 = vunpack.c.l.s4 1966171168
        %v5003 = vunpack.c.0.s8 %v5002
        %v5004 = vlaneseq
        %v5005 = vshrl.u32 %v5004, 7
        %v5006 = vsub.s32 %v5003, %v5005
        %v5007 = vrot.slane %v4504, %v5006
        %v5009 = vunpack.c.l.s4 1966171168
        %v5010 = vunpack.c.0.s8 %v5009
        %v5011 = vlaneseq
        %v5012 = vshrl.u32 %v5011, 7
        %v5013 = vsub.s32 %v5010, %v5012
        %v5014 = vrot.slane %v5000, %v5013
        %v5015 = vcombine.high %v5007, %v5007
        %v5016 = vcombine.high %v5014, %v5014
        %v5018 = vunpack.c.l.s4 1966171168
        %v5019 = vunpack.c.0.s8 %v5018
        %v5020 = vlaneseq
        %v5021 = vshrl.u32 %v5020, 7
        %v5022 = vsub.s32 %v5019, %v5021
        %v5023 = vrot.slane %v5007, %v5022
        %v5025 = vunpack.c.l.s4 1966171168
        %v5026 = vunpack.c.0.s8 %v5025
        %v5027 = vlaneseq
        %v5028 = vshrl.u32 %v5027, 7
        %v5029 = vsub.s32 %v5026, %v5028
        %v5030 = vrot.slane %v5014, %v5029
        %v5032 = vunpack.c.l.s4 1966171168
        %v5033 = vunpack.c.0.s8 %v5032
        %v5034 = vlaneseq
        %v5035 = vshrl.u32 %v5034, 7
        %v5036 = vsub.s32 %v5033, %v5035
        %v5037 = vrot.slane %v5015, %v5036
        %v5039 = vunpack.c.l.s4 1966171168
        %v5040 = vunpack.c.0.s8 %v5039
        %v5041 = vlaneseq
        %v5042 = vshrl.u32 %v5041, 7
        %v5043 = vsub.s32 %v5040, %v5042
        %v5044 = vrot.slane %v5016, %v5043
        %v5045 = vcombine.high %v5023, %v5023
        %v5046 = vcombine.high %v5030, %v5030
        %v5047 = vcombine.high %v5037, %v5037
        %v5048 = vcombine.high %v5044, %v5044
        %v5049 = vcombine.high %v4505, %v4505
        %v5051 = vunpack.c.l.s4 1966171168
        %v5052 = vunpack.c.0.s8 %v5051
        %v5053 = vlaneseq
        %v5054 = vshrl.u32 %v5053, 7
        %v5055 = vsub.s32 %v5052, %v5054
        %v5056 = vrot.slane %v4505, %v5055
        %v5058 = vunpack.c.l.s4 1966171168
        %v5059 = vunpack.c.0.s8 %v5058
        %v5060 = vlaneseq
        %v5061 = vshrl.u32 %v5060, 7
        %v5062 = vsub.s32 %v5059, %v5061
        %v5063 = vrot.slane %v5049, %v5062
        %v5064 = vcombine.high %v5056, %v5056
        %v5065 = vcombine.high %v5063, %v5063
        %v5067 = vunpack.c.l.s4 1966171168
        %v5068 = vunpack.c.0.s8 %v5067
        %v5069 = vlaneseq
        %v5070 = vshrl.u32 %v5069, 7
        %v5071 = vsub.s32 %v5068, %v5070
        %v5072 = vrot.slane %v5056, %v5071
        %v5074 = vunpack.c.l.s4 1966171168
        %v5075 = vunpack.c.0.s8 %v5074
        %v5076 = vlaneseq
        %v5077 = vshrl.u32 %v5076, 7
        %v5078 = vsub.s32 %v5075, %v5077
        %v5079 = vrot.slane %v5063, %v5078
        %v5081 = vunpack.c.l.s4 1966171168
        %v5082 = vunpack.c.0.s8 %v5081
        %v5083 = vlaneseq
        %v5084 = vshrl.u32 %v5083, 7
        %v5085 = vsub.s32 %v5082, %v5084
        %v5086 = vrot.slane %v5064, %v5085
        %v5088 = vunpack.c.l.s4 1966171168
        %v5089 = vunpack.c.0.s8 %v5088
        %v5090 = vlaneseq
        %v5091 = vshrl.u32 %v5090, 7
        %v5092 = vsub.s32 %v5089, %v5091
        %v5093 = vrot.slane %v5065, %v5092
        %v5094 = vcombine.high %v5072, %v5072
        %v5095 = vcombine.high %v5079, %v5079
        %v5096 = vcombine.high %v5086, %v5086
        %v5097 = vcombine.high %v5093, %v5093
        %v5098 = vcombine.high %v4506, %v4506
        %v5100 = vunpack.c.l.s4 1966171168
        %v5101 = vunpack.c.0.s8 %v5100
        %v5102 = vlaneseq
        %v5103 = vshrl.u32 %v5102, 7
        %v5104 = vsub.s32 %v5101, %v5103
        %v5105 = vrot.slane %v4506, %v5104
        %v5107 = vunpack.c.l.s4 1966171168
        %v5108 = vunpack.c.0.s8 %v5107
        %v5109 = vlaneseq
        %v5110 = vshrl.u32 %v5109, 7
        %v5111 = vsub.s32 %v5108, %v5110
        %v5112 = vrot.slane %v5098, %v5111
        %v5113 = vcombine.high %v5105, %v5105
        %v5114 = vcombine.high %v5112, %v5112
        %v5116 = vunpack.c.l.s4 1966171168
        %v5117 = vunpack.c.0.s8 %v5116
        %v5118 = vlaneseq
        %v5119 = vshrl.u32 %v5118, 7
        %v5120 = vsub.s32 %v5117, %v5119
        %v5121 = vrot.slane %v5105, %v5120
        %v5123 = vunpack.c.l.s4 1966171168
        %v5124 = vunpack.c.0.s8 %v5123
        %v5125 = vlaneseq
        %v5126 = vshrl.u32 %v5125, 7
        %v5127 = vsub.s32 %v5124, %v5126
        %v5128 = vrot.slane %v5112, %v5127
        %v5130 = vunpack.c.l.s4 1966171168
        %v5131 = vunpack.c.0.s8 %v5130
        %v5132 = vlaneseq
        %v5133 = vshrl.u32 %v5132, 7
        %v5134 = vsub.s32 %v5131, %v5133
        %v5135 = vrot.slane %v5113, %v5134
        %v5137 = vunpack.c.l.s4 1966171168
        %v5138 = vunpack.c.0.s8 %v5137
        %v5139 = vlaneseq
        %v5140 = vshrl.u32 %v5139, 7
        %v5141 = vsub.s32 %v5138, %v5140
        %v5142 = vrot.slane %v5114, %v5141
        %v5143 = vcombine.high %v5121, %v5121
        %v5144 = vcombine.high %v5128, %v5128
        %v5145 = vcombine.high %v5135, %v5135
        %v5146 = vcombine.high %v5142, %v5142
        %v5147 = vcombine.high %v4507, %v4507
        %v5149 = vunpack.c.l.s4 1966171168
        %v5150 = vunpack.c.0.s8 %v5149
        %v5151 = vlaneseq
        %v5152 = vshrl.u32 %v5151, 7
        %v5153 = vsub.s32 %v5150, %v5152
        %v5154 = vrot.slane %v4507, %v5153
        %v5156 = vunpack.c.l.s4 1966171168
        %v5157 = vunpack.c.0.s8 %v5156
        %v5158 = vlaneseq
        %v5159 = vshrl.u32 %v5158, 7
        %v5160 = vsub.s32 %v5157, %v5159
        %v5161 = vrot.slane %v5147, %v5160
        %v5162 = vcombine.high %v5154, %v5154
        %v5163 = vcombine.high %v5161, %v5161
        %v5165 = vunpack.c.l.s4 1966171168
        %v5166 = vunpack.c.0.s8 %v5165
        %v5167 = vlaneseq
        %v5168 = vshrl.u32 %v5167, 7
        %v5169 = vsub.s32 %v5166, %v5168
        %v5170 = vrot.slane %v5154, %v5169
        %v5172 = vunpack.c.l.s4 1966171168
        %v5173 = vunpack.c.0.s8 %v5172
        %v5174 = vlaneseq
        %v5175 = vshrl.u32 %v5174, 7
        %v5176 = vsub.s32 %v5173, %v5175
        %v5177 = vrot.slane %v5161, %v5176
        %v5179 = vunpack.c.l.s4 1966171168
        %v5180 = vunpack.c.0.s8 %v5179
        %v5181 = vlaneseq
        %v5182 = vshrl.u32 %v5181, 7
        %v5183 = vsub.s32 %v5180, %v5182
        %v5184 = vrot.slane %v5162, %v5183
        %v5186 = vunpack.c.l.s4 1966171168
        %v5187 = vunpack.c.0.s8 %v5186
        %v5188 = vlaneseq
        %v5189 = vshrl.u32 %v5188, 7
        %v5190 = vsub.s32 %v5187, %v5189
        %v5191 = vrot.slane %v5163, %v5190
        %v5192 = vcombine.high %v5170, %v5170
        %v5193 = vcombine.high %v5177, %v5177
        %v5194 = vcombine.high %v5184, %v5184
        %v5195 = vcombine.high %v5191, %v5191
        %v5196 = vcombine.high %v4508, %v4508
        %v5198 = vunpack.c.l.s4 1966171168
        %v5199 = vunpack.c.0.s8 %v5198
        %v5200 = vlaneseq
        %v5201 = vshrl.u32 %v5200, 7
        %v5202 = vsub.s32 %v5199, %v5201
        %v5203 = vrot.slane %v4508, %v5202
        %v5205 = vunpack.c.l.s4 1966171168
        %v5206 = vunpack.c.0.s8 %v5205
        %v5207 = vlaneseq
        %v5208 = vshrl.u32 %v5207, 7
        %v5209 = vsub.s32 %v5206, %v5208
        %v5210 = vrot.slane %v5196, %v5209
        %v5211 = vcombine.high %v5203, %v5203
        %v5212 = vcombine.high %v5210, %v5210
        %v5214 = vunpack.c.l.s4 1966171168
        %v5215 = vunpack.c.0.s8 %v5214
        %v5216 = vlaneseq
        %v5217 = vshrl.u32 %v5216, 7
        %v5218 = vsub.s32 %v5215, %v5217
        %v5219 = vrot.slane %v5203, %v5218
        %v5221 = vunpack.c.l.s4 1966171168
        %v5222 = vunpack.c.0.s8 %v5221
        %v5223 = vlaneseq
        %v5224 = vshrl.u32 %v5223, 7
        %v5225 = vsub.s32 %v5222, %v5224
        %v5226 = vrot.slane %v5210, %v5225
        %v5228 = vunpack.c.l.s4 1966171168
        %v5229 = vunpack.c.0.s8 %v5228
        %v5230 = vlaneseq
        %v5231 = vshrl.u32 %v5230, 7
        %v5232 = vsub.s32 %v5229, %v5231
        %v5233 = vrot.slane %v5211, %v5232
        %v5235 = vunpack.c.l.s4 1966171168
        %v5236 = vunpack.c.0.s8 %v5235
        %v5237 = vlaneseq
        %v5238 = vshrl.u32 %v5237, 7
        %v5239 = vsub.s32 %v5236, %v5238
        %v5240 = vrot.slane %v5212, %v5239
        %v5241 = vcombine.high %v5219, %v5219
        %v5242 = vcombine.high %v5226, %v5226
        %v5243 = vcombine.high %v5233, %v5233
        %v5244 = vcombine.high %v5240, %v5240
        %v5245 = vcombine.high %v4509, %v4509
        %v5247 = vunpack.c.l.s4 1966171168
        %v5248 = vunpack.c.0.s8 %v5247
        %v5249 = vlaneseq
        %v5250 = vshrl.u32 %v5249, 7
        %v5251 = vsub.s32 %v5248, %v5250
        %v5252 = vrot.slane %v4509, %v5251
        %v5254 = vunpack.c.l.s4 1966171168
        %v5255 = vunpack.c.0.s8 %v5254
        %v5256 = vlaneseq
        %v5257 = vshrl.u32 %v5256, 7
        %v5258 = vsub.s32 %v5255, %v5257
        %v5259 = vrot.slane %v5245, %v5258
        %v5260 = vcombine.high %v5252, %v5252
        %v5261 = vcombine.high %v5259, %v5259
        %v5263 = vunpack.c.l.s4 1966171168
        %v5264 = vunpack.c.0.s8 %v5263
        %v5265 = vlaneseq
        %v5266 = vshrl.u32 %v5265, 7
        %v5267 = vsub.s32 %v5264, %v5266
        %v5268 = vrot.slane %v5252, %v5267
        %v5270 = vunpack.c.l.s4 1966171168
        %v5271 = vunpack.c.0.s8 %v5270
        %v5272 = vlaneseq
        %v5273 = vshrl.u32 %v5272, 7
        %v5274 = vsub.s32 %v5271, %v5273
        %v5275 = vrot.slane %v5259, %v5274
        %v5277 = vunpack.c.l.s4 1966171168
        %v5278 = vunpack.c.0.s8 %v5277
        %v5279 = vlaneseq
        %v5280 = vshrl.u32 %v5279, 7
        %v5281 = vsub.s32 %v5278, %v5280
        %v5282 = vrot.slane %v5260, %v5281
        %v5284 = vunpack.c.l.s4 1966171168
        %v5285 = vunpack.c.0.s8 %v5284
        %v5286 = vlaneseq
        %v5287 = vshrl.u32 %v5286, 7
        %v5288 = vsub.s32 %v5285, %v5287
        %v5289 = vrot.slane %v5261, %v5288
        %v5290 = vcombine.high %v5268, %v5268
        %v5291 = vcombine.high %v5275, %v5275
        %v5292 = vcombine.high %v5282, %v5282
        %v5293 = vcombine.high %v5289, %v5289
        %v5294 = vcombine.high %v4510, %v4510
        %v5296 = vunpack.c.l.s4 1966171168
        %v5297 = vunpack.c.0.s8 %v5296
        %v5298 = vlaneseq
        %v5299 = vshrl.u32 %v5298, 7
        %v5300 = vsub.s32 %v5297, %v5299
        %v5301 = vrot.slane %v4510, %v5300
        %v5303 = vunpack.c.l.s4 1966171168
        %v5304 = vunpack.c.0.s8 %v5303
        %v5305 = vlaneseq
        %v5306 = vshrl.u32 %v5305, 7
        %v5307 = vsub.s32 %v5304, %v5306
        %v5308 = vrot.slane %v5294, %v5307
        %v5309 = vcombine.high %v5301, %v5301
        %v5310 = vcombine.high %v5308, %v5308
        %v5312 = vunpack.c.l.s4 1966171168
        %v5313 = vunpack.c.0.s8 %v5312
        %v5314 = vlaneseq
        %v5315 = vshrl.u32 %v5314, 7
        %v5316 = vsub.s32 %v5313, %v5315
        %v5317 = vrot.slane %v5301, %v5316
        %v5319 = vunpack.c.l.s4 1966171168
        %v5320 = vunpack.c.0.s8 %v5319
        %v5321 = vlaneseq
        %v5322 = vshrl.u32 %v5321, 7
        %v5323 = vsub.s32 %v5320, %v5322
        %v5324 = vrot.slane %v5308, %v5323
        %v5326 = vunpack.c.l.s4 1966171168
        %v5327 = vunpack.c.0.s8 %v5326
        %v5328 = vlaneseq
        %v5329 = vshrl.u32 %v5328, 7
        %v5330 = vsub.s32 %v5327, %v5329
        %v5331 = vrot.slane %v5309, %v5330
        %v5333 = vunpack.c.l.s4 1966171168
        %v5334 = vunpack.c.0.s8 %v5333
        %v5335 = vlaneseq
        %v5336 = vshrl.u32 %v5335, 7
        %v5337 = vsub.s32 %v5334, %v5336
        %v5338 = vrot.slane %v5310, %v5337
        %v5339 = vcombine.high %v5317, %v5317
        %v5340 = vcombine.high %v5324, %v5324
        %v5341 = vcombine.high %v5331, %v5331
        %v5342 = vcombine.high %v5338, %v5338
        %v5343 = vcombine.high %v4511, %v4511
        %v5345 = vunpack.c.l.s4 1966171168
        %v5346 = vunpack.c.0.s8 %v5345
        %v5347 = vlaneseq
        %v5348 = vshrl.u32 %v5347, 7
        %v5349 = vsub.s32 %v5346, %v5348
        %v5350 = vrot.slane %v4511, %v5349
        %v5352 = vunpack.c.l.s4 1966171168
        %v5353 = vunpack.c.0.s8 %v5352
        %v5354 = vlaneseq
        %v5355 = vshrl.u32 %v5354, 7
        %v5356 = vsub.s32 %v5353, %v5355
        %v5357 = vrot.slane %v5343, %v5356
        %v5358 = vcombine.high %v5350, %v5350
        %v5359 = vcombine.high %v5357, %v5357
        %v5361 = vunpack.c.l.s4 1966171168
        %v5362 = vunpack.c.0.s8 %v5361
        %v5363 = vlaneseq
        %v5364 = vshrl.u32 %v5363, 7
        %v5365 = vsub.s32 %v5362, %v5364
        %v5366 = vrot.slane %v5350, %v5365
        %v5368 = vunpack.c.l.s4 1966171168
        %v5369 = vunpack.c.0.s8 %v5368
        %v5370 = vlaneseq
        %v5371 = vshrl.u32 %v5370, 7
        %v5372 = vsub.s32 %v5369, %v5371
        %v5373 = vrot.slane %v5357, %v5372
        %v5375 = vunpack.c.l.s4 1966171168
        %v5376 = vunpack.c.0.s8 %v5375
        %v5377 = vlaneseq
        %v5378 = vshrl.u32 %v5377, 7
        %v5379 = vsub.s32 %v5376, %v5378
        %v5380 = vrot.slane %v5358, %v5379
        %v5382 = vunpack.c.l.s4 1966171168
        %v5383 = vunpack.c.0.s8 %v5382
        %v5384 = vlaneseq
        %v5385 = vshrl.u32 %v5384, 7
        %v5386 = vsub.s32 %v5383, %v5385
        %v5387 = vrot.slane %v5359, %v5386
        %v5388 = vcombine.high %v5366, %v5366
        %v5389 = vcombine.high %v5373, %v5373
        %v5390 = vcombine.high %v5380, %v5380
        %v5391 = vcombine.high %v5387, %v5387
        %v5392 = vcombine.high %v4512, %v4512
        %v5394 = vunpack.c.l.s4 1966171168
        %v5395 = vunpack.c.0.s8 %v5394
        %v5396 = vlaneseq
        %v5397 = vshrl.u32 %v5396, 7
        %v5398 = vsub.s32 %v5395, %v5397
        %v5399 = vrot.slane %v4512, %v5398
        %v5401 = vunpack.c.l.s4 1966171168
        %v5402 = vunpack.c.0.s8 %v5401
        %v5403 = vlaneseq
        %v5404 = vshrl.u32 %v5403, 7
        %v5405 = vsub.s32 %v5402, %v5404
        %v5406 = vrot.slane %v5392, %v5405
        %v5407 = vcombine.high %v5399, %v5399
        %v5408 = vcombine.high %v5406, %v5406
        %v5410 = vunpack.c.l.s4 1966171168
        %v5411 = vunpack.c.0.s8 %v5410
        %v5412 = vlaneseq
        %v5413 = vshrl.u32 %v5412, 7
        %v5414 = vsub.s32 %v5411, %v5413
        %v5415 = vrot.slane %v5399, %v5414
        %v5417 = vunpack.c.l.s4 1966171168
        %v5418 = vunpack.c.0.s8 %v5417
        %v5419 = vlaneseq
        %v5420 = vshrl.u32 %v5419, 7
        %v5421 = vsub.s32 %v5418, %v5420
        %v5422 = vrot.slane %v5406, %v5421
        %v5424 = vunpack.c.l.s4 1966171168
        %v5425 = vunpack.c.0.s8 %v5424
        %v5426 = vlaneseq
        %v5427 = vshrl.u32 %v5426, 7
        %v5428 = vsub.s32 %v5425, %v5427
        %v5429 = vrot.slane %v5407, %v5428
        %v5431 = vunpack.c.l.s4 1966171168
        %v5432 = vunpack.c.0.s8 %v5431
        %v5433 = vlaneseq
        %v5434 = vshrl.u32 %v5433, 7
        %v5435 = vsub.s32 %v5432, %v5434
        %v5436 = vrot.slane %v5408, %v5435
        %v5437 = vcombine.high %v5415, %v5415
        %v5438 = vcombine.high %v5422, %v5422
        %v5439 = vcombine.high %v5429, %v5429
        %v5440 = vcombine.high %v5436, %v5436
        %v5441 = vcombine.high %v4513, %v4513
        %v5443 = vunpack.c.l.s4 1966171168
        %v5444 = vunpack.c.0.s8 %v5443
        %v5445 = vlaneseq
        %v5446 = vshrl.u32 %v5445, 7
        %v5447 = vsub.s32 %v5444, %v5446
        %v5448 = vrot.slane %v4513, %v5447
        %v5450 = vunpack.c.l.s4 1966171168
        %v5451 = vunpack.c.0.s8 %v5450
        %v5452 = vlaneseq
        %v5453 = vshrl.u32 %v5452, 7
        %v5454 = vsub.s32 %v5451, %v5453
        %v5455 = vrot.slane %v5441, %v5454
        %v5456 = vcombine.high %v5448, %v5448
        %v5457 = vcombine.high %v5455, %v5455
        %v5459 = vunpack.c.l.s4 1966171168
        %v5460 = vunpack.c.0.s8 %v5459
        %v5461 = vlaneseq
        %v5462 = vshrl.u32 %v5461, 7
        %v5463 = vsub.s32 %v5460, %v5462
        %v5464 = vrot.slane %v5448, %v5463
        %v5466 = vunpack.c.l.s4 1966171168
        %v5467 = vunpack.c.0.s8 %v5466
        %v5468 = vlaneseq
        %v5469 = vshrl.u32 %v5468, 7
        %v5470 = vsub.s32 %v5467, %v5469
        %v5471 = vrot.slane %v5455, %v5470
        %v5473 = vunpack.c.l.s4 1966171168
        %v5474 = vunpack.c.0.s8 %v5473
        %v5475 = vlaneseq
        %v5476 = vshrl.u32 %v5475, 7
        %v5477 = vsub.s32 %v5474, %v5476
        %v5478 = vrot.slane %v5456, %v5477
        %v5480 = vunpack.c.l.s4 1966171168
        %v5481 = vunpack.c.0.s8 %v5480
        %v5482 = vlaneseq
        %v5483 = vshrl.u32 %v5482, 7
        %v5484 = vsub.s32 %v5481, %v5483
        %v5485 = vrot.slane %v5457, %v5484
        %v5486 = vcombine.high %v5464, %v5464
        %v5487 = vcombine.high %v5471, %v5471
        %v5488 = vcombine.high %v5478, %v5478
        %v5489 = vcombine.high %v5485, %v5485
        %v5490 = vcombine.high %v4514, %v4514
        %v5492 = vunpack.c.l.s4 1966171168
        %v5493 = vunpack.c.0.s8 %v5492
        %v5494 = vlaneseq
        %v5495 = vshrl.u32 %v5494, 7
        %v5496 = vsub.s32 %v5493, %v5495
        %v5497 = vrot.slane %v4514, %v5496
        %v5499 = vunpack.c.l.s4 1966171168
        %v5500 = vunpack.c.0.s8 %v5499
        %v5501 = vlaneseq
        %v5502 = vshrl.u32 %v5501, 7
        %v5503 = vsub.s32 %v5500, %v5502
        %v5504 = vrot.slane %v5490, %v5503
        %v5505 = vcombine.high %v5497, %v5497
        %v5506 = vcombine.high %v5504, %v5504
        %v5508 = vunpack.c.l.s4 1966171168
        %v5509 = vunpack.c.0.s8 %v5508
        %v5510 = vlaneseq
        %v5511 = vshrl.u32 %v5510, 7
        %v5512 = vsub.s32 %v5509, %v5511
        %v5513 = vrot.slane %v5497, %v5512
        %v5515 = vunpack.c.l.s4 1966171168
        %v5516 = vunpack.c.0.s8 %v5515
        %v5517 = vlaneseq
        %v5518 = vshrl.u32 %v5517, 7
        %v5519 = vsub.s32 %v5516, %v5518
        %v5520 = vrot.slane %v5504, %v5519
        %v5522 = vunpack.c.l.s4 1966171168
        %v5523 = vunpack.c.0.s8 %v5522
        %v5524 = vlaneseq
        %v5525 = vshrl.u32 %v5524, 7
        %v5526 = vsub.s32 %v5523, %v5525
        %v5527 = vrot.slane %v5505, %v5526
        %v5529 = vunpack.c.l.s4 1966171168
        %v5530 = vunpack.c.0.s8 %v5529
        %v5531 = vlaneseq
        %v5532 = vshrl.u32 %v5531, 7
        %v5533 = vsub.s32 %v5530, %v5532
        %v5534 = vrot.slane %v5506, %v5533
        %v5535 = vcombine.high %v5513, %v5513
        %v5536 = vcombine.high %v5520, %v5520
        %v5537 = vcombine.high %v5527, %v5527
        %v5538 = vcombine.high %v5534, %v5534
        %v5539 = vcombine.high %v4515, %v4515
        %v5541 = vunpack.c.l.s4 1966171168
        %v5542 = vunpack.c.0.s8 %v5541
        %v5543 = vlaneseq
        %v5544 = vshrl.u32 %v5543, 7
        %v5545 = vsub.s32 %v5542, %v5544
        %v5546 = vrot.slane %v4515, %v5545
        %v5548 = vunpack.c.l.s4 1966171168
        %v5549 = vunpack.c.0.s8 %v5548
        %v5550 = vlaneseq
        %v5551 = vshrl.u32 %v5550, 7
        %v5552 = vsub.s32 %v5549, %v5551
        %v5553 = vrot.slane %v5539, %v5552
        %v5554 = vcombine.high %v5546, %v5546
        %v5555 = vcombine.high %v5553, %v5553
        %v5557 = vunpack.c.l.s4 1966171168
        %v5558 = vunpack.c.0.s8 %v5557
        %v5559 = vlaneseq
        %v5560 = vshrl.u32 %v5559, 7
        %v5561 = vsub.s32 %v5558, %v5560
        %v5562 = vrot.slane %v5546, %v5561
        %v5564 = vunpack.c.l.s4 1966171168
        %v5565 = vunpack.c.0.s8 %v5564
        %v5566 = vlaneseq
        %v5567 = vshrl.u32 %v5566, 7
        %v5568 = vsub.s32 %v5565, %v5567
        %v5569 = vrot.slane %v5553, %v5568
        %v5571 = vunpack.c.l.s4 1966171168
        %v5572 = vunpack.c.0.s8 %v5571
        %v5573 = vlaneseq
        %v5574 = vshrl.u32 %v5573, 7
        %v5575 = vsub.s32 %v5572, %v5574
        %v5576 = vrot.slane %v5554, %v5575
        %v5578 = vunpack.c.l.s4 1966171168
        %v5579 = vunpack.c.0.s8 %v5578
        %v5580 = vlaneseq
        %v5581 = vshrl.u32 %v5580, 7
        %v5582 = vsub.s32 %v5579, %v5581
        %v5583 = vrot.slane %v5555, %v5582
        %v5584 = vcombine.high %v5562, %v5562
        %v5585 = vcombine.high %v5569, %v5569
        %v5586 = vcombine.high %v5576, %v5576
        %v5587 = vcombine.high %v5583, %v5583
        %v5588 = vcombine.high %v4516, %v4516
        %v5590 = vunpack.c.l.s4 1966171168
        %v5591 = vunpack.c.0.s8 %v5590
        %v5592 = vlaneseq
        %v5593 = vshrl.u32 %v5592, 7
        %v5594 = vsub.s32 %v5591, %v5593
        %v5595 = vrot.slane %v4516, %v5594
        %v5597 = vunpack.c.l.s4 1966171168
        %v5598 = vunpack.c.0.s8 %v5597
        %v5599 = vlaneseq
        %v5600 = vshrl.u32 %v5599, 7
        %v5601 = vsub.s32 %v5598, %v5600
        %v5602 = vrot.slane %v5588, %v5601
        %v5603 = vcombine.high %v5595, %v5595
        %v5604 = vcombine.high %v5602, %v5602
        %v5606 = vunpack.c.l.s4 1966171168
        %v5607 = vunpack.c.0.s8 %v5606
        %v5608 = vlaneseq
        %v5609 = vshrl.u32 %v5608, 7
        %v5610 = vsub.s32 %v5607, %v5609
        %v5611 = vrot.slane %v5595, %v5610
        %v5613 = vunpack.c.l.s4 1966171168
        %v5614 = vunpack.c.0.s8 %v5613
        %v5615 = vlaneseq
        %v5616 = vshrl.u32 %v5615, 7
        %v5617 = vsub.s32 %v5614, %v5616
        %v5618 = vrot.slane %v5602, %v5617
        %v5620 = vunpack.c.l.s4 1966171168
        %v5621 = vunpack.c.0.s8 %v5620
        %v5622 = vlaneseq
        %v5623 = vshrl.u32 %v5622, 7
        %v5624 = vsub.s32 %v5621, %v5623
        %v5625 = vrot.slane %v5603, %v5624
        %v5627 = vunpack.c.l.s4 1966171168
        %v5628 = vunpack.c.0.s8 %v5627
        %v5629 = vlaneseq
        %v5630 = vshrl.u32 %v5629, 7
        %v5631 = vsub.s32 %v5628, %v5630
        %v5632 = vrot.slane %v5604, %v5631
        %v5633 = vcombine.high %v5611, %v5611
        %v5634 = vcombine.high %v5618, %v5618
        %v5635 = vcombine.high %v5625, %v5625
        %v5636 = vcombine.high %v5632, %v5632
        %v5637 = vcombine.high %v4517, %v4517
        %v5639 = vunpack.c.l.s4 1966171168
        %v5640 = vunpack.c.0.s8 %v5639
        %v5641 = vlaneseq
        %v5642 = vshrl.u32 %v5641, 7
        %v5643 = vsub.s32 %v5640, %v5642
        %v5644 = vrot.slane %v4517, %v5643
        %v5646 = vunpack.c.l.s4 1966171168
        %v5647 = vunpack.c.0.s8 %v5646
        %v5648 = vlaneseq
        %v5649 = vshrl.u32 %v5648, 7
        %v5650 = vsub.s32 %v5647, %v5649
        %v5651 = vrot.slane %v5637, %v5650
        %v5652 = vcombine.high %v5644, %v5644
        %v5653 = vcombine.high %v5651, %v5651
        %v5655 = vunpack.c.l.s4 1966171168
        %v5656 = vunpack.c.0.s8 %v5655
        %v5657 = vlaneseq
        %v5658 = vshrl.u32 %v5657, 7
        %v5659 = vsub.s32 %v5656, %v5658
        %v5660 = vrot.slane %v5644, %v5659
        %v5662 = vunpack.c.l.s4 1966171168
        %v5663 = vunpack.c.0.s8 %v5662
        %v5664 = vlaneseq
        %v5665 = vshrl.u32 %v5664, 7
        %v5666 = vsub.s32 %v5663, %v5665
        %v5667 = vrot.slane %v5651, %v5666
        %v5669 = vunpack.c.l.s4 1966171168
        %v5670 = vunpack.c.0.s8 %v5669
        %v5671 = vlaneseq
        %v5672 = vshrl.u32 %v5671, 7
        %v5673 = vsub.s32 %v5670, %v5672
        %v5674 = vrot.slane %v5652, %v5673
        %v5676 = vunpack.c.l.s4 1966171168
        %v5677 = vunpack.c.0.s8 %v5676
        %v5678 = vlaneseq
        %v5679 = vshrl.u32 %v5678, 7
        %v5680 = vsub.s32 %v5677, %v5679
        %v5681 = vrot.slane %v5653, %v5680
        %v5682 = vcombine.high %v5660, %v5660
        %v5683 = vcombine.high %v5667, %v5667
        %v5684 = vcombine.high %v5674, %v5674
        %v5685 = vcombine.high %v5681, %v5681
        %v5686 = vcombine.high %v4518, %v4518
        %v5688 = vunpack.c.l.s4 1966171168
        %v5689 = vunpack.c.0.s8 %v5688
        %v5690 = vlaneseq
        %v5691 = vshrl.u32 %v5690, 7
        %v5692 = vsub.s32 %v5689, %v5691
        %v5693 = vrot.slane %v4518, %v5692
        %v5695 = vunpack.c.l.s4 1966171168
        %v5696 = vunpack.c.0.s8 %v5695
        %v5697 = vlaneseq
        %v5698 = vshrl.u32 %v5697, 7
        %v5699 = vsub.s32 %v5696, %v5698
        %v5700 = vrot.slane %v5686, %v5699
        %v5701 = vcombine.high %v5693, %v5693
        %v5702 = vcombine.high %v5700, %v5700
        %v5704 = vunpack.c.l.s4 1966171168
        %v5705 = vunpack.c.0.s8 %v5704
        %v5706 = vlaneseq
        %v5707 = vshrl.u32 %v5706, 7
        %v5708 = vsub.s32 %v5705, %v5707
        %v5709 = vrot.slane %v5693, %v5708
        %v5711 = vunpack.c.l.s4 1966171168
        %v5712 = vunpack.c.0.s8 %v5711
        %v5713 = vlaneseq
        %v5714 = vshrl.u32 %v5713, 7
        %v5715 = vsub.s32 %v5712, %v5714
        %v5716 = vrot.slane %v5700, %v5715
        %v5718 = vunpack.c.l.s4 1966171168
        %v5719 = vunpack.c.0.s8 %v5718
        %v5720 = vlaneseq
        %v5721 = vshrl.u32 %v5720, 7
        %v5722 = vsub.s32 %v5719, %v5721
        %v5723 = vrot.slane %v5701, %v5722
        %v5725 = vunpack.c.l.s4 1966171168
        %v5726 = vunpack.c.0.s8 %v5725
        %v5727 = vlaneseq
        %v5728 = vshrl.u32 %v5727, 7
        %v5729 = vsub.s32 %v5726, %v5728
        %v5730 = vrot.slane %v5702, %v5729
        %v5731 = vcombine.high %v5709, %v5709
        %v5732 = vcombine.high %v5716, %v5716
        %v5733 = vcombine.high %v5723, %v5723
        %v5734 = vcombine.high %v5730, %v5730
        %v5735 = vcombine.high %v4519, %v4519
        %v5737 = vunpack.c.l.s4 1966171168
        %v5738 = vunpack.c.0.s8 %v5737
        %v5739 = vlaneseq
        %v5740 = vshrl.u32 %v5739, 7
        %v5741 = vsub.s32 %v5738, %v5740
        %v5742 = vrot.slane %v4519, %v5741
        %v5744 = vunpack.c.l.s4 1966171168
        %v5745 = vunpack.c.0.s8 %v5744
        %v5746 = vlaneseq
        %v5747 = vshrl.u32 %v5746, 7
        %v5748 = vsub.s32 %v5745, %v5747
        %v5749 = vrot.slane %v5735, %v5748
        %v5750 = vcombine.high %v5742, %v5742
        %v5751 = vcombine.high %v5749, %v5749
        %v5753 = vunpack.c.l.s4 1966171168
        %v5754 = vunpack.c.0.s8 %v5753
        %v5755 = vlaneseq
        %v5756 = vshrl.u32 %v5755, 7
        %v5757 = vsub.s32 %v5754, %v5756
        %v5758 = vrot.slane %v5742, %v5757
        %v5760 = vunpack.c.l.s4 1966171168
        %v5761 = vunpack.c.0.s8 %v5760
        %v5762 = vlaneseq
        %v5763 = vshrl.u32 %v5762, 7
        %v5764 = vsub.s32 %v5761, %v5763
        %v5765 = vrot.slane %v5749, %v5764
        %v5767 = vunpack.c.l.s4 1966171168
        %v5768 = vunpack.c.0.s8 %v5767
        %v5769 = vlaneseq
        %v5770 = vshrl.u32 %v5769, 7
        %v5771 = vsub.s32 %v5768, %v5770
        %v5772 = vrot.slane %v5750, %v5771
        %v5774 = vunpack.c.l.s4 1966171168
        %v5775 = vunpack.c.0.s8 %v5774
        %v5776 = vlaneseq
        %v5777 = vshrl.u32 %v5776, 7
        %v5778 = vsub.s32 %v5775, %v5777
        %v5779 = vrot.slane %v5751, %v5778
        %v5780 = vcombine.high %v5758, %v5758
        %v5781 = vcombine.high %v5765, %v5765
        %v5782 = vcombine.high %v5772, %v5772
        %v5783 = vcombine.high %v5779, %v5779
        %v5784 = vcombine.high %v4520, %v4520
        %v5786 = vunpack.c.l.s4 1966171168
        %v5787 = vunpack.c.0.s8 %v5786
        %v5788 = vlaneseq
        %v5789 = vshrl.u32 %v5788, 7
        %v5790 = vsub.s32 %v5787, %v5789
        %v5791 = vrot.slane %v4520, %v5790
        %v5793 = vunpack.c.l.s4 1966171168
        %v5794 = vunpack.c.0.s8 %v5793
        %v5795 = vlaneseq
        %v5796 = vshrl.u32 %v5795, 7
        %v5797 = vsub.s32 %v5794, %v5796
        %v5798 = vrot.slane %v5784, %v5797
        %v5799 = vcombine.high %v5791, %v5791
        %v5800 = vcombine.high %v5798, %v5798
        %v5802 = vunpack.c.l.s4 1966171168
        %v5803 = vunpack.c.0.s8 %v5802
        %v5804 = vlaneseq
        %v5805 = vshrl.u32 %v5804, 7
        %v5806 = vsub.s32 %v5803, %v5805
        %v5807 = vrot.slane %v5791, %v5806
        %v5809 = vunpack.c.l.s4 1966171168
        %v5810 = vunpack.c.0.s8 %v5809
        %v5811 = vlaneseq
        %v5812 = vshrl.u32 %v5811, 7
        %v5813 = vsub.s32 %v5810, %v5812
        %v5814 = vrot.slane %v5798, %v5813
        %v5816 = vunpack.c.l.s4 1966171168
        %v5817 = vunpack.c.0.s8 %v5816
        %v5818 = vlaneseq
        %v5819 = vshrl.u32 %v5818, 7
        %v5820 = vsub.s32 %v5817, %v5819
        %v5821 = vrot.slane %v5799, %v5820
        %v5823 = vunpack.c.l.s4 1966171168
        %v5824 = vunpack.c.0.s8 %v5823
        %v5825 = vlaneseq
        %v5826 = vshrl.u32 %v5825, 7
        %v5827 = vsub.s32 %v5824, %v5826
        %v5828 = vrot.slane %v5800, %v5827
        %v5829 = vcombine.high %v5807, %v5807
        %v5830 = vcombine.high %v5814, %v5814
        %v5831 = vcombine.high %v5821, %v5821
        %v5832 = vcombine.high %v5828, %v5828
        %v5833 = vcombine.high %v4521, %v4521
        %v5835 = vunpack.c.l.s4 1966171168
        %v5836 = vunpack.c.0.s8 %v5835
        %v5837 = vlaneseq
        %v5838 = vshrl.u32 %v5837, 7
        %v5839 = vsub.s32 %v5836, %v5838
        %v5840 = vrot.slane %v4521, %v5839
        %v5842 = vunpack.c.l.s4 1966171168
        %v5843 = vunpack.c.0.s8 %v5842
        %v5844 = vlaneseq
        %v5845 = vshrl.u32 %v5844, 7
        %v5846 = vsub.s32 %v5843, %v5845
        %v5847 = vrot.slane %v5833, %v5846
        %v5848 = vcombine.high %v5840, %v5840
        %v5849 = vcombine.high %v5847, %v5847
        %v5851 = vunpack.c.l.s4 1966171168
        %v5852 = vunpack.c.0.s8 %v5851
        %v5853 = vlaneseq
        %v5854 = vshrl.u32 %v5853, 7
        %v5855 = vsub.s32 %v5852, %v5854
        %v5856 = vrot.slane %v5840, %v5855
        %v5858 = vunpack.c.l.s4 1966171168
        %v5859 = vunpack.c.0.s8 %v5858
        %v5860 = vlaneseq
        %v5861 = vshrl.u32 %v5860, 7
        %v5862 = vsub.s32 %v5859, %v5861
        %v5863 = vrot.slane %v5847, %v5862
        %v5865 = vunpack.c.l.s4 1966171168
        %v5866 = vunpack.c.0.s8 %v5865
        %v5867 = vlaneseq
        %v5868 = vshrl.u32 %v5867, 7
        %v5869 = vsub.s32 %v5866, %v5868
        %v5870 = vrot.slane %v5848, %v5869
        %v5872 = vunpack.c.l.s4 1966171168
        %v5873 = vunpack.c.0.s8 %v5872
        %v5874 = vlaneseq
        %v5875 = vshrl.u32 %v5874, 7
        %v5876 = vsub.s32 %v5873, %v5875
        %v5877 = vrot.slane %v5849, %v5876
        %v5878 = vcombine.high %v5856, %v5856
        %v5879 = vcombine.high %v5863, %v5863
        %v5880 = vcombine.high %v5870, %v5870
        %v5881 = vcombine.high %v5877, %v5877
        %v5882 = vcombine.high %v4522, %v4522
        %v5884 = vunpack.c.l.s4 1966171168
        %v5885 = vunpack.c.0.s8 %v5884
        %v5886 = vlaneseq
        %v5887 = vshrl.u32 %v5886, 7
        %v5888 = vsub.s32 %v5885, %v5887
        %v5889 = vrot.slane %v4522, %v5888
        %v5891 = vunpack.c.l.s4 1966171168
        %v5892 = vunpack.c.0.s8 %v5891
        %v5893 = vlaneseq
        %v5894 = vshrl.u32 %v5893, 7
        %v5895 = vsub.s32 %v5892, %v5894
        %v5896 = vrot.slane %v5882, %v5895
        %v5897 = vcombine.high %v5889, %v5889
        %v5898 = vcombine.high %v5896, %v5896
        %v5900 = vunpack.c.l.s4 1966171168
        %v5901 = vunpack.c.0.s8 %v5900
        %v5902 = vlaneseq
        %v5903 = vshrl.u32 %v5902, 7
        %v5904 = vsub.s32 %v5901, %v5903
        %v5905 = vrot.slane %v5889, %v5904
        %v5907 = vunpack.c.l.s4 1966171168
        %v5908 = vunpack.c.0.s8 %v5907
        %v5909 = vlaneseq
        %v5910 = vshrl.u32 %v5909, 7
        %v5911 = vsub.s32 %v5908, %v5910
        %v5912 = vrot.slane %v5896, %v5911
        %v5914 = vunpack.c.l.s4 1966171168
        %v5915 = vunpack.c.0.s8 %v5914
        %v5916 = vlaneseq
        %v5917 = vshrl.u32 %v5916, 7
        %v5918 = vsub.s32 %v5915, %v5917
        %v5919 = vrot.slane %v5897, %v5918
        %v5921 = vunpack.c.l.s4 1966171168
        %v5922 = vunpack.c.0.s8 %v5921
        %v5923 = vlaneseq
        %v5924 = vshrl.u32 %v5923, 7
        %v5925 = vsub.s32 %v5922, %v5924
        %v5926 = vrot.slane %v5898, %v5925
        %v5927 = vcombine.high %v5905, %v5905
        %v5928 = vcombine.high %v5912, %v5912
        %v5929 = vcombine.high %v5919, %v5919
        %v5930 = vcombine.high %v5926, %v5926
        %v5931 = vcombine.high %v4523, %v4523
        %v5933 = vunpack.c.l.s4 1966171168
        %v5934 = vunpack.c.0.s8 %v5933
        %v5935 = vlaneseq
        %v5936 = vshrl.u32 %v5935, 7
        %v5937 = vsub.s32 %v5934, %v5936
        %v5938 = vrot.slane %v4523, %v5937
        %v5940 = vunpack.c.l.s4 1966171168
        %v5941 = vunpack.c.0.s8 %v5940
        %v5942 = vlaneseq
        %v5943 = vshrl.u32 %v5942, 7
        %v5944 = vsub.s32 %v5941, %v5943
        %v5945 = vrot.slane %v5931, %v5944
        %v5946 = vcombine.high %v5938, %v5938
        %v5947 = vcombine.high %v5945, %v5945
        %v5949 = vunpack.c.l.s4 1966171168
        %v5950 = vunpack.c.0.s8 %v5949
        %v5951 = vlaneseq
        %v5952 = vshrl.u32 %v5951, 7
        %v5953 = vsub.s32 %v5950, %v5952
        %v5954 = vrot.slane %v5938, %v5953
        %v5956 = vunpack.c.l.s4 1966171168
        %v5957 = vunpack.c.0.s8 %v5956
        %v5958 = vlaneseq
        %v5959 = vshrl.u32 %v5958, 7
        %v5960 = vsub.s32 %v5957, %v5959
        %v5961 = vrot.slane %v5945, %v5960
        %v5963 = vunpack.c.l.s4 1966171168
        %v5964 = vunpack.c.0.s8 %v5963
        %v5965 = vlaneseq
        %v5966 = vshrl.u32 %v5965, 7
        %v5967 = vsub.s32 %v5964, %v5966
        %v5968 = vrot.slane %v5946, %v5967
        %v5970 = vunpack.c.l.s4 1966171168
        %v5971 = vunpack.c.0.s8 %v5970
        %v5972 = vlaneseq
        %v5973 = vshrl.u32 %v5972, 7
        %v5974 = vsub.s32 %v5971, %v5973
        %v5975 = vrot.slane %v5947, %v5974
        %v5976 = vcombine.high %v5954, %v5954
        %v5977 = vcombine.high %v5961, %v5961
        %v5978 = vcombine.high %v5968, %v5968
        %v5979 = vcombine.high %v5975, %v5975
        %v5980 = vcombine.high %v4524, %v4524
        %v5982 = vunpack.c.l.s4 1966171168
        %v5983 = vunpack.c.0.s8 %v5982
        %v5984 = vlaneseq
        %v5985 = vshrl.u32 %v5984, 7
        %v5986 = vsub.s32 %v5983, %v5985
        %v5987 = vrot.slane %v4524, %v5986
        %v5989 = vunpack.c.l.s4 1966171168
        %v5990 = vunpack.c.0.s8 %v5989
        %v5991 = vlaneseq
        %v5992 = vshrl.u32 %v5991, 7
        %v5993 = vsub.s32 %v5990, %v5992
        %v5994 = vrot.slane %v5980, %v5993
        %v5995 = vcombine.high %v5987, %v5987
        %v5996 = vcombine.high %v5994, %v5994
        %v5998 = vunpack.c.l.s4 1966171168
        %v5999 = vunpack.c.0.s8 %v5998
        %v6000 = vlaneseq
        %v6001 = vshrl.u32 %v6000, 7
        %v6002 = vsub.s32 %v5999, %v6001
        %v6003 = vrot.slane %v5987, %v6002
        %v6005 = vunpack.c.l.s4 1966171168
        %v6006 = vunpack.c.0.s8 %v6005
        %v6007 = vlaneseq
        %v6008 = vshrl.u32 %v6007, 7
        %v6009 = vsub.s32 %v6006, %v6008
        %v6010 = vrot.slane %v5994, %v6009
        %v6012 = vunpack.c.l.s4 1966171168
        %v6013 = vunpack.c.0.s8 %v6012
        %v6014 = vlaneseq
        %v6015 = vshrl.u32 %v6014, 7
        %v6016 = vsub.s32 %v6013, %v6015
        %v6017 = vrot.slane %v5995, %v6016
        %v6019 = vunpack.c.l.s4 1966171168
        %v6020 = vunpack.c.0.s8 %v6019
        %v6021 = vlaneseq
        %v6022 = vshrl.u32 %v6021, 7
        %v6023 = vsub.s32 %v6020, %v6022
        %v6024 = vrot.slane %v5996, %v6023
        %v6025 = vcombine.high %v6003, %v6003
        %v6026 = vcombine.high %v6010, %v6010
        %v6027 = vcombine.high %v6017, %v6017
        %v6028 = vcombine.high %v6024, %v6024
        %v6029 = vcombine.high %v4525, %v4525
        %v6031 = vunpack.c.l.s4 1966171168
        %v6032 = vunpack.c.0.s8 %v6031
        %v6033 = vlaneseq
        %v6034 = vshrl.u32 %v6033, 7
        %v6035 = vsub.s32 %v6032, %v6034
        %v6036 = vrot.slane %v4525, %v6035
        %v6038 = vunpack.c.l.s4 1966171168
        %v6039 = vunpack.c.0.s8 %v6038
        %v6040 = vlaneseq
        %v6041 = vshrl.u32 %v6040, 7
        %v6042 = vsub.s32 %v6039, %v6041
        %v6043 = vrot.slane %v6029, %v6042
        %v6044 = vcombine.high %v6036, %v6036
        %v6045 = vcombine.high %v6043, %v6043
        %v6047 = vunpack.c.l.s4 1966171168
        %v6048 = vunpack.c.0.s8 %v6047
        %v6049 = vlaneseq
        %v6050 = vshrl.u32 %v6049, 7
        %v6051 = vsub.s32 %v6048, %v6050
        %v6052 = vrot.slane %v6036, %v6051
        %v6054 = vunpack.c.l.s4 1966171168
        %v6055 = vunpack.c.0.s8 %v6054
        %v6056 = vlaneseq
        %v6057 = vshrl.u32 %v6056, 7
        %v6058 = vsub.s32 %v6055, %v6057
        %v6059 = vrot.slane %v6043, %v6058
        %v6061 = vunpack.c.l.s4 1966171168
        %v6062 = vunpack.c.0.s8 %v6061
        %v6063 = vlaneseq
        %v6064 = vshrl.u32 %v6063, 7
        %v6065 = vsub.s32 %v6062, %v6064
        %v6066 = vrot.slane %v6044, %v6065
        %v6068 = vunpack.c.l.s4 1966171168
        %v6069 = vunpack.c.0.s8 %v6068
        %v6070 = vlaneseq
        %v6071 = vshrl.u32 %v6070, 7
        %v6072 = vsub.s32 %v6069, %v6071
        %v6073 = vrot.slane %v6045, %v6072
        %v6074 = vcombine.high %v6052, %v6052
        %v6075 = vcombine.high %v6059, %v6059
        %v6076 = vcombine.high %v6066, %v6066
        %v6077 = vcombine.high %v6073, %v6073
        %v6078 = vcombine.high %v4526, %v4526
        %v6080 = vunpack.c.l.s4 1966171168
        %v6081 = vunpack.c.0.s8 %v6080
        %v6082 = vlaneseq
        %v6083 = vshrl.u32 %v6082, 7
        %v6084 = vsub.s32 %v6081, %v6083
        %v6085 = vrot.slane %v4526, %v6084
        %v6087 = vunpack.c.l.s4 1966171168
        %v6088 = vunpack.c.0.s8 %v6087
        %v6089 = vlaneseq
        %v6090 = vshrl.u32 %v6089, 7
        %v6091 = vsub.s32 %v6088, %v6090
        %v6092 = vrot.slane %v6078, %v6091
        %v6093 = vcombine.high %v6085, %v6085
        %v6094 = vcombine.high %v6092, %v6092
        %v6096 = vunpack.c.l.s4 1966171168
        %v6097 = vunpack.c.0.s8 %v6096
        %v6098 = vlaneseq
        %v6099 = vshrl.u32 %v6098, 7
        %v6100 = vsub.s32 %v6097, %v6099
        %v6101 = vrot.slane %v6085, %v6100
        %v6103 = vunpack.c.l.s4 1966171168
        %v6104 = vunpack.c.0.s8 %v6103
        %v6105 = vlaneseq
        %v6106 = vshrl.u32 %v6105, 7
        %v6107 = vsub.s32 %v6104, %v6106
        %v6108 = vrot.slane %v6092, %v6107
        %v6110 = vunpack.c.l.s4 1966171168
        %v6111 = vunpack.c.0.s8 %v6110
        %v6112 = vlaneseq
        %v6113 = vshrl.u32 %v6112, 7
        %v6114 = vsub.s32 %v6111, %v6113
        %v6115 = vrot.slane %v6093, %v6114
        %v6117 = vunpack.c.l.s4 1966171168
        %v6118 = vunpack.c.0.s8 %v6117
        %v6119 = vlaneseq
        %v6120 = vshrl.u32 %v6119, 7
        %v6121 = vsub.s32 %v6118, %v6120
        %v6122 = vrot.slane %v6094, %v6121
        %v6123 = vcombine.high %v6101, %v6101
        %v6124 = vcombine.high %v6108, %v6108
        %v6125 = vcombine.high %v6115, %v6115
        %v6126 = vcombine.high %v6122, %v6122
        %v6127 = vcombine.low %v4582, %v4596
        %v6128 = vcombine.low %v4604, %v4606
        %v6129 = vcombine.low %v4589, %v4603
        %v6130 = vcombine.low %v4605, %v4607
        %v6132 = vunpack.c.l.s4 1966171168
        %v6133 = vunpack.c.0.s8 %v6132
        %v6134 = vlaneseq
        %v6135 = vshrl.u32 %v6134, 7
        %v6136 = vsub.s32 %v6133, %v6135
        %v6137 = vrot.slane %v6127, %v6136
        %v6139 = vunpack.c.l.s4 1966171168
        %v6140 = vunpack.c.0.s8 %v6139
        %v6141 = vlaneseq
        %v6142 = vshrl.u32 %v6141, 7
        %v6143 = vsub.s32 %v6140, %v6142
        %v6144 = vrot.slane %v6128, %v6143
        %v6146 = vunpack.c.l.s4 1966171168
        %v6147 = vunpack.c.0.s8 %v6146
        %v6148 = vlaneseq
        %v6149 = vshrl.u32 %v6148, 7
        %v6150 = vsub.s32 %v6147, %v6149
        %v6151 = vrot.slane %v6129, %v6150
        %v6153 = vunpack.c.l.s4 1966171168
        %v6154 = vunpack.c.0.s8 %v6153
        %v6155 = vlaneseq
        %v6156 = vshrl.u32 %v6155, 7
        %v6157 = vsub.s32 %v6154, %v6156
        %v6158 = vrot.slane %v6130, %v6157
        %v6159 = vcombine.low %v6137, %v6144
        %v6160 = vcombine.low %v6151, %v6158
        %v6162 = vunpack.c.l.s4 1966171168
        %v6163 = vunpack.c.0.s8 %v6162
        %v6164 = vlaneseq
        %v6165 = vshrl.u32 %v6164, 7
        %v6166 = vsub.s32 %v6163, %v6165
        %v6167 = vrot.slane %v6159, %v6166
        %v6169 = vunpack.c.l.s4 1966171168
        %v6170 = vunpack.c.0.s8 %v6169
        %v6171 = vlaneseq
        %v6172 = vshrl.u32 %v6171, 7
        %v6173 = vsub.s32 %v6170, %v6172
        %v6174 = vrot.slane %v6160, %v6173
        %v6175 = vcombine.low %v6167, %v6174
        %v6176 = vcombine.low %v4631, %v4645
        %v6177 = vcombine.low %v4653, %v4655
        %v6178 = vcombine.low %v4638, %v4652
        %v6179 = vcombine.low %v4654, %v4656
        %v6181 = vunpack.c.l.s4 1966171168
        %v6182 = vunpack.c.0.s8 %v6181
        %v6183 = vlaneseq
        %v6184 = vshrl.u32 %v6183, 7
        %v6185 = vsub.s32 %v6182, %v6184
        %v6186 = vrot.slane %v6176, %v6185
        %v6188 = vunpack.c.l.s4 1966171168
        %v6189 = vunpack.c.0.s8 %v6188
        %v6190 = vlaneseq
        %v6191 = vshrl.u32 %v6190, 7
        %v6192 = vsub.s32 %v6189, %v6191
        %v6193 = vrot.slane %v6177, %v6192
        %v6195 = vunpack.c.l.s4 1966171168
        %v6196 = vunpack.c.0.s8 %v6195
        %v6197 = vlaneseq
        %v6198 = vshrl.u32 %v6197, 7
        %v6199 = vsub.s32 %v6196, %v6198
        %v6200 = vrot.slane %v6178, %v6199
        %v6202 = vunpack.c.l.s4 1966171168
        %v6203 = vunpack.c.0.s8 %v6202
        %v6204 = vlaneseq
        %v6205 = vshrl.u32 %v6204, 7
        %v6206 = vsub.s32 %v6203, %v6205
        %v6207 = vrot.slane %v6179, %v6206
        %v6208 = vcombine.low %v6186, %v6193
        %v6209 = vcombine.low %v6200, %v6207
        %v6211 = vunpack.c.l.s4 1966171168
        %v6212 = vunpack.c.0.s8 %v6211
        %v6213 = vlaneseq
        %v6214 = vshrl.u32 %v6213, 7
        %v6215 = vsub.s32 %v6212, %v6214
        %v6216 = vrot.slane %v6208, %v6215
        %v6218 = vunpack.c.l.s4 1966171168
        %v6219 = vunpack.c.0.s8 %v6218
        %v6220 = vlaneseq
        %v6221 = vshrl.u32 %v6220, 7
        %v6222 = vsub.s32 %v6219, %v6221
        %v6223 = vrot.slane %v6209, %v6222
        %v6224 = vcombine.low %v6216, %v6223
        %v6225 = vcombine.low %v4680, %v4694
        %v6226 = vcombine.low %v4702, %v4704
        %v6227 = vcombine.low %v4687, %v4701
        %v6228 = vcombine.low %v4703, %v4705
        %v6230 = vunpack.c.l.s4 1966171168
        %v6231 = vunpack.c.0.s8 %v6230
        %v6232 = vlaneseq
        %v6233 = vshrl.u32 %v6232, 7
        %v6234 = vsub.s32 %v6231, %v6233
        %v6235 = vrot.slane %v6225, %v6234
        %v6237 = vunpack.c.l.s4 1966171168
        %v6238 = vunpack.c.0.s8 %v6237
        %v6239 = vlaneseq
        %v6240 = vshrl.u32 %v6239, 7
        %v6241 = vsub.s32 %v6238, %v6240
        %v6242 = vrot.slane %v6226, %v6241
        %v6244 = vunpack.c.l.s4 1966171168
        %v6245 = vunpack.c.0.s8 %v6244
        %v6246 = vlaneseq
        %v6247 = vshrl.u32 %v6246, 7
        %v6248 = vsub.s32 %v6245, %v6247
        %v6249 = vrot.slane %v6227, %v6248
        %v6251 = vunpack.c.l.s4 1966171168
        %v6252 = vunpack.c.0.s8 %v6251
        %v6253 = vlaneseq
        %v6254 = vshrl.u32 %v6253, 7
        %v6255 = vsub.s32 %v6252, %v6254
        %v6256 = vrot.slane %v6228, %v6255
        %v6257 = vcombine.low %v6235, %v6242
        %v6258 = vcombine.low %v6249, %v6256
        %v6260 = vunpack.c.l.s4 1966171168
        %v6261 = vunpack.c.0.s8 %v6260
        %v6262 = vlaneseq
        %v6263 = vshrl.u32 %v6262, 7
        %v6264 = vsub.s32 %v6261, %v6263
        %v6265 = vrot.slane %v6257, %v6264
        %v6267 = vunpack.c.l.s4 1966171168
        %v6268 = vunpack.c.0.s8 %v6267
        %v6269 = vlaneseq
        %v6270 = vshrl.u32 %v6269, 7
        %v6271 = vsub.s32 %v6268, %v6270
        %v6272 = vrot.slane %v6258, %v6271
        %v6273 = vcombine.low %v6265, %v6272
        %v6274 = vcombine.low %v4729, %v4743
        %v6275 = vcombine.low %v4751, %v4753
        %v6276 = vcombine.low %v4736, %v4750
        %v6277 = vcombine.low %v4752, %v4754
        %v6279 = vunpack.c.l.s4 1966171168
        %v6280 = vunpack.c.0.s8 %v6279
        %v6281 = vlaneseq
        %v6282 = vshrl.u32 %v6281, 7
        %v6283 = vsub.s32 %v6280, %v6282
        %v6284 = vrot.slane %v6274, %v6283
        %v6286 = vunpack.c.l.s4 1966171168
        %v6287 = vunpack.c.0.s8 %v6286
        %v6288 = vlaneseq
        %v6289 = vshrl.u32 %v6288, 7
        %v6290 = vsub.s32 %v6287, %v6289
        %v6291 = vrot.slane %v6275, %v6290
        %v6293 = vunpack.c.l.s4 1966171168
        %v6294 = vunpack.c.0.s8 %v6293
        %v6295 = vlaneseq
        %v6296 = vshrl.u32 %v6295, 7
        %v6297 = vsub.s32 %v6294, %v6296
        %v6298 = vrot.slane %v6276, %v6297
        %v6300 = vunpack.c.l.s4 1966171168
        %v6301 = vunpack.c.0.s8 %v6300
        %v6302 = vlaneseq
        %v6303 = vshrl.u32 %v6302, 7
        %v6304 = vsub.s32 %v6301, %v6303
        %v6305 = vrot.slane %v6277, %v6304
        %v6306 = vcombine.low %v6284, %v6291
        %v6307 = vcombine.low %v6298, %v6305
        %v6309 = vunpack.c.l.s4 1966171168
        %v6310 = vunpack.c.0.s8 %v6309
        %v6311 = vlaneseq
        %v6312 = vshrl.u32 %v6311, 7
        %v6313 = vsub.s32 %v6310, %v6312
        %v6314 = vrot.slane %v6306, %v6313
        %v6316 = vunpack.c.l.s4 1966171168
        %v6317 = vunpack.c.0.s8 %v6316
        %v6318 = vlaneseq
        %v6319 = vshrl.u32 %v6318, 7
        %v6320 = vsub.s32 %v6317, %v6319
        %v6321 = vrot.slane %v6307, %v6320
        %v6322 = vcombine.low %v6314, %v6321
        %v6323 = vcombine.low %v4778, %v4792
        %v6324 = vcombine.low %v4800, %v4802
        %v6325 = vcombine.low %v4785, %v4799
        %v6326 = vcombine.low %v4801, %v4803
        %v6328 = vunpack.c.l.s4 1966171168
        %v6329 = vunpack.c.0.s8 %v6328
        %v6330 = vlaneseq
        %v6331 = vshrl.u32 %v6330, 7
        %v6332 = vsub.s32 %v6329, %v6331
        %v6333 = vrot.slane %v6323, %v6332
        %v6335 = vunpack.c.l.s4 1966171168
        %v6336 = vunpack.c.0.s8 %v6335
        %v6337 = vlaneseq
        %v6338 = vshrl.u32 %v6337, 7
        %v6339 = vsub.s32 %v6336, %v6338
        %v6340 = vrot.slane %v6324, %v6339
        %v6342 = vunpack.c.l.s4 1966171168
        %v6343 = vunpack.c.0.s8 %v6342
        %v6344 = vlaneseq
        %v6345 = vshrl.u32 %v6344, 7
        %v6346 = vsub.s32 %v6343, %v6345
        %v6347 = vrot.slane %v6325, %v6346
        %v6349 = vunpack.c.l.s4 1966171168
        %v6350 = vunpack.c.0.s8 %v6349
        %v6351 = vlaneseq
        %v6352 = vshrl.u32 %v6351, 7
        %v6353 = vsub.s32 %v6350, %v6352
        %v6354 = vrot.slane %v6326, %v6353
        %v6355 = vcombine.low %v6333, %v6340
        %v6356 = vcombine.low %v6347, %v6354
        %v6358 = vunpack.c.l.s4 1966171168
        %v6359 = vunpack.c.0.s8 %v6358
        %v6360 = vlaneseq
        %v6361 = vshrl.u32 %v6360, 7
        %v6362 = vsub.s32 %v6359, %v6361
        %v6363 = vrot.slane %v6355, %v6362
        %v6365 = vunpack.c.l.s4 1966171168
        %v6366 = vunpack.c.0.s8 %v6365
        %v6367 = vlaneseq
        %v6368 = vshrl.u32 %v6367, 7
        %v6369 = vsub.s32 %v6366, %v6368
        %v6370 = vrot.slane %v6356, %v6369
        %v6371 = vcombine.low %v6363, %v6370
        %v6372 = vcombine.low %v4827, %v4841
        %v6373 = vcombine.low %v4849, %v4851
        %v6374 = vcombine.low %v4834, %v4848
        %v6375 = vcombine.low %v4850, %v4852
        %v6377 = vunpack.c.l.s4 1966171168
        %v6378 = vunpack.c.0.s8 %v6377
        %v6379 = vlaneseq
        %v6380 = vshrl.u32 %v6379, 7
        %v6381 = vsub.s32 %v6378, %v6380
        %v6382 = vrot.slane %v6372, %v6381
        %v6384 = vunpack.c.l.s4 1966171168
        %v6385 = vunpack.c.0.s8 %v6384
        %v6386 = vlaneseq
        %v6387 = vshrl.u32 %v6386, 7
        %v6388 = vsub.s32 %v6385, %v6387
        %v6389 = vrot.slane %v6373, %v6388
        %v6391 = vunpack.c.l.s4 1966171168
        %v6392 = vunpack.c.0.s8 %v6391
        %v6393 = vlaneseq
        %v6394 = vshrl.u32 %v6393, 7
        %v6395 = vsub.s32 %v6392, %v6394
        %v6396 = vrot.slane %v6374, %v6395
        %v6398 = vunpack.c.l.s4 1966171168
        %v6399 = vunpack.c.0.s8 %v6398
        %v6400 = vlaneseq
        %v6401 = vshrl.u32 %v6400, 7
        %v6402 = vsub.s32 %v6399, %v6401
        %v6403 = vrot.slane %v6375, %v6402
        %v6404 = vcombine.low %v6382, %v6389
        %v6405 = vcombine.low %v6396, %v6403
        %v6407 = vunpack.c.l.s4 1966171168
        %v6408 = vunpack.c.0.s8 %v6407
        %v6409 = vlaneseq
        %v6410 = vshrl.u32 %v6409, 7
        %v6411 = vsub.s32 %v6408, %v6410
        %v6412 = vrot.slane %v6404, %v6411
        %v6414 = vunpack.c.l.s4 1966171168
        %v6415 = vunpack.c.0.s8 %v6414
        %v6416 = vlaneseq
        %v6417 = vshrl.u32 %v6416, 7
        %v6418 = vsub.s32 %v6415, %v6417
        %v6419 = vrot.slane %v6405, %v6418
        %v6420 = vcombine.low %v6412, %v6419
        %v6421 = vcombine.low %v4876, %v4890
        %v6422 = vcombine.low %v4898, %v4900
        %v6423 = vcombine.low %v4883, %v4897
        %v6424 = vcombine.low %v4899, %v4901
        %v6426 = vunpack.c.l.s4 1966171168
        %v6427 = vunpack.c.0.s8 %v6426
        %v6428 = vlaneseq
        %v6429 = vshrl.u32 %v6428, 7
        %v6430 = vsub.s32 %v6427, %v6429
        %v6431 = vrot.slane %v6421, %v6430
        %v6433 = vunpack.c.l.s4 1966171168
        %v6434 = vunpack.c.0.s8 %v6433
        %v6435 = vlaneseq
        %v6436 = vshrl.u32 %v6435, 7
        %v6437 = vsub.s32 %v6434, %v6436
        %v6438 = vrot.slane %v6422, %v6437
        %v6440 = vunpack.c.l.s4 1966171168
        %v6441 = vunpack.c.0.s8 %v6440
        %v6442 = vlaneseq
        %v6443 = vshrl.u32 %v6442, 7
        %v6444 = vsub.s32 %v6441, %v6443
        %v6445 = vrot.slane %v6423, %v6444
        %v6447 = vunpack.c.l.s4 1966171168
        %v6448 = vunpack.c.0.s8 %v6447
        %v6449 = vlaneseq
        %v6450 = vshrl.u32 %v6449, 7
        %v6451 = vsub.s32 %v6448, %v6450
        %v6452 = vrot.slane %v6424, %v6451
        %v6453 = vcombine.low %v6431, %v6438
        %v6454 = vcombine.low %v6445, %v6452
        %v6456 = vunpack.c.l.s4 1966171168
        %v6457 = vunpack.c.0.s8 %v6456
        %v6458 = vlaneseq
        %v6459 = vshrl.u32 %v6458, 7
        %v6460 = vsub.s32 %v6457, %v6459
        %v6461 = vrot.slane %v6453, %v6460
        %v6463 = vunpack.c.l.s4 1966171168
        %v6464 = vunpack.c.0.s8 %v6463
        %v6465 = vlaneseq
        %v6466 = vshrl.u32 %v6465, 7
        %v6467 = vsub.s32 %v6464, %v6466
        %v6468 = vrot.slane %v6454, %v6467
        %v6469 = vcombine.low %v6461, %v6468
        %v6470 = vcombine.low %v4925, %v4939
        %v6471 = vcombine.low %v4947, %v4949
        %v6472 = vcombine.low %v4932, %v4946
        %v6473 = vcombine.low %v4948, %v4950
        %v6475 = vunpack.c.l.s4 1966171168
        %v6476 = vunpack.c.0.s8 %v6475
        %v6477 = vlaneseq
        %v6478 = vshrl.u32 %v6477, 7
        %v6479 = vsub.s32 %v6476, %v6478
        %v6480 = vrot.slane %v6470, %v6479
        %v6482 = vunpack.c.l.s4 1966171168
        %v6483 = vunpack.c.0.s8 %v6482
        %v6484 = vlaneseq
        %v6485 = vshrl.u32 %v6484, 7
        %v6486 = vsub.s32 %v6483, %v6485
        %v6487 = vrot.slane %v6471, %v6486
        %v6489 = vunpack.c.l.s4 1966171168
        %v6490 = vunpack.c.0.s8 %v6489
        %v6491 = vlaneseq
        %v6492 = vshrl.u32 %v6491, 7
        %v6493 = vsub.s32 %v6490, %v6492
        %v6494 = vrot.slane %v6472, %v6493
        %v6496 = vunpack.c.l.s4 1966171168
        %v6497 = vunpack.c.0.s8 %v6496
        %v6498 = vlaneseq
        %v6499 = vshrl.u32 %v6498, 7
        %v6500 = vsub.s32 %v6497, %v6499
        %v6501 = vrot.slane %v6473, %v6500
        %v6502 = vcombine.low %v6480, %v6487
        %v6503 = vcombine.low %v6494, %v6501
        %v6505 = vunpack.c.l.s4 1966171168
        %v6506 = vunpack.c.0.s8 %v6505
        %v6507 = vlaneseq
        %v6508 = vshrl.u32 %v6507, 7
        %v6509 = vsub.s32 %v6506, %v6508
        %v6510 = vrot.slane %v6502, %v6509
        %v6512 = vunpack.c.l.s4 1966171168
        %v6513 = vunpack.c.0.s8 %v6512
        %v6514 = vlaneseq
        %v6515 = vshrl.u32 %v6514, 7
        %v6516 = vsub.s32 %v6513, %v6515
        %v6517 = vrot.slane %v6503, %v6516
        %v6518 = vcombine.low %v6510, %v6517
        %v6519 = vcombine.low %v4974, %v4988
        %v6520 = vcombine.low %v4996, %v4998
        %v6521 = vcombine.low %v4981, %v4995
        %v6522 = vcombine.low %v4997, %v4999
        %v6524 = vunpack.c.l.s4 1966171168
        %v6525 = vunpack.c.0.s8 %v6524
        %v6526 = vlaneseq
        %v6527 = vshrl.u32 %v6526, 7
        %v6528 = vsub.s32 %v6525, %v6527
        %v6529 = vrot.slane %v6519, %v6528
        %v6531 = vunpack.c.l.s4 1966171168
        %v6532 = vunpack.c.0.s8 %v6531
        %v6533 = vlaneseq
        %v6534 = vshrl.u32 %v6533, 7
        %v6535 = vsub.s32 %v6532, %v6534
        %v6536 = vrot.slane %v6520, %v6535
        %v6538 = vunpack.c.l.s4 1966171168
        %v6539 = vunpack.c.0.s8 %v6538
        %v6540 = vlaneseq
        %v6541 = vshrl.u32 %v6540, 7
        %v6542 = vsub.s32 %v6539, %v6541
        %v6543 = vrot.slane %v6521, %v6542
        %v6545 = vunpack.c.l.s4 1966171168
        %v6546 = vunpack.c.0.s8 %v6545
        %v6547 = vlaneseq
        %v6548 = vshrl.u32 %v6547, 7
        %v6549 = vsub.s32 %v6546, %v6548
        %v6550 = vrot.slane %v6522, %v6549
        %v6551 = vcombine.low %v6529, %v6536
        %v6552 = vcombine.low %v6543, %v6550
        %v6554 = vunpack.c.l.s4 1966171168
        %v6555 = vunpack.c.0.s8 %v6554
        %v6556 = vlaneseq
        %v6557 = vshrl.u32 %v6556, 7
        %v6558 = vsub.s32 %v6555, %v6557
        %v6559 = vrot.slane %v6551, %v6558
        %v6561 = vunpack.c.l.s4 1966171168
        %v6562 = vunpack.c.0.s8 %v6561
        %v6563 = vlaneseq
        %v6564 = vshrl.u32 %v6563, 7
        %v6565 = vsub.s32 %v6562, %v6564
        %v6566 = vrot.slane %v6552, %v6565
        %v6567 = vcombine.low %v6559, %v6566
        %v6568 = vcombine.low %v5023, %v5037
        %v6569 = vcombine.low %v5045, %v5047
        %v6570 = vcombine.low %v5030, %v5044
        %v6571 = vcombine.low %v5046, %v5048
        %v6573 = vunpack.c.l.s4 1966171168
        %v6574 = vunpack.c.0.s8 %v6573
        %v6575 = vlaneseq
        %v6576 = vshrl.u32 %v6575, 7
        %v6577 = vsub.s32 %v6574, %v6576
        %v6578 = vrot.slane %v6568, %v6577
        %v6580 = vunpack.c.l.s4 1966171168
        %v6581 = vunpack.c.0.s8 %v6580
        %v6582 = vlaneseq
        %v6583 = vshrl.u32 %v6582, 7
        %v6584 = vsub.s32 %v6581, %v6583
        %v6585 = vrot.slane %v6569, %v6584
        %v6587 = vunpack.c.l.s4 1966171168
        %v6588 = vunpack.c.0.s8 %v6587
        %v6589 = vlaneseq
        %v6590 = vshrl.u32 %v6589, 7
        %v6591 = vsub.s32 %v6588, %v6590
        %v6592 = vrot.slane %v6570, %v6591
        %v6594 = vunpack.c.l.s4 1966171168
        %v6595 = vunpack.c.0.s8 %v6594
        %v6596 = vlaneseq
        %v6597 = vshrl.u32 %v6596, 7
        %v6598 = vsub.s32 %v6595, %v6597
        %v6599 = vrot.slane %v6571, %v6598
        %v6600 = vcombine.low %v6578, %v6585
        %v6601 = vcombine.low %v6592, %v6599
        %v6603 = vunpack.c.l.s4 1966171168
        %v6604 = vunpack.c.0.s8 %v6603
        %v6605 = vlaneseq
        %v6606 = vshrl.u32 %v6605, 7
        %v6607 = vsub.s32 %v6604, %v6606
        %v6608 = vrot.slane %v6600, %v6607
        %v6610 = vunpack.c.l.s4 1966171168
        %v6611 = vunpack.c.0.s8 %v6610
        %v6612 = vlaneseq
        %v6613 = vshrl.u32 %v6612, 7
        %v6614 = vsub.s32 %v6611, %v6613
        %v6615 = vrot.slane %v6601, %v6614
        %v6616 = vcombine.low %v6608, %v6615
        %v6617 = vcombine.low %v5072, %v5086
        %v6618 = vcombine.low %v5094, %v5096
        %v6619 = vcombine.low %v5079, %v5093
        %v6620 = vcombine.low %v5095, %v5097
        %v6622 = vunpack.c.l.s4 1966171168
        %v6623 = vunpack.c.0.s8 %v6622
        %v6624 = vlaneseq
        %v6625 = vshrl.u32 %v6624, 7
        %v6626 = vsub.s32 %v6623, %v6625
        %v6627 = vrot.slane %v6617, %v6626
        %v6629 = vunpack.c.l.s4 1966171168
        %v6630 = vunpack.c.0.s8 %v6629
        %v6631 = vlaneseq
        %v6632 = vshrl.u32 %v6631, 7
        %v6633 = vsub.s32 %v6630, %v6632
        %v6634 = vrot.slane %v6618, %v6633
        %v6636 = vunpack.c.l.s4 1966171168
        %v6637 = vunpack.c.0.s8 %v6636
        %v6638 = vlaneseq
        %v6639 = vshrl.u32 %v6638, 7
        %v6640 = vsub.s32 %v6637, %v6639
        %v6641 = vrot.slane %v6619, %v6640
        %v6643 = vunpack.c.l.s4 1966171168
        %v6644 = vunpack.c.0.s8 %v6643
        %v6645 = vlaneseq
        %v6646 = vshrl.u32 %v6645, 7
        %v6647 = vsub.s32 %v6644, %v6646
        %v6648 = vrot.slane %v6620, %v6647
        %v6649 = vcombine.low %v6627, %v6634
        %v6650 = vcombine.low %v6641, %v6648
        %v6652 = vunpack.c.l.s4 1966171168
        %v6653 = vunpack.c.0.s8 %v6652
        %v6654 = vlaneseq
        %v6655 = vshrl.u32 %v6654, 7
        %v6656 = vsub.s32 %v6653, %v6655
        %v6657 = vrot.slane %v6649, %v6656
        %v6659 = vunpack.c.l.s4 1966171168
        %v6660 = vunpack.c.0.s8 %v6659
        %v6661 = vlaneseq
        %v6662 = vshrl.u32 %v6661, 7
        %v6663 = vsub.s32 %v6660, %v6662
        %v6664 = vrot.slane %v6650, %v6663
        %v6665 = vcombine.low %v6657, %v6664
        %v6666 = vcombine.low %v5121, %v5135
        %v6667 = vcombine.low %v5143, %v5145
        %v6668 = vcombine.low %v5128, %v5142
        %v6669 = vcombine.low %v5144, %v5146
        %v6671 = vunpack.c.l.s4 1966171168
        %v6672 = vunpack.c.0.s8 %v6671
        %v6673 = vlaneseq
        %v6674 = vshrl.u32 %v6673, 7
        %v6675 = vsub.s32 %v6672, %v6674
        %v6676 = vrot.slane %v6666, %v6675
        %v6678 = vunpack.c.l.s4 1966171168
        %v6679 = vunpack.c.0.s8 %v6678
        %v6680 = vlaneseq
        %v6681 = vshrl.u32 %v6680, 7
        %v6682 = vsub.s32 %v6679, %v6681
        %v6683 = vrot.slane %v6667, %v6682
        %v6685 = vunpack.c.l.s4 1966171168
        %v6686 = vunpack.c.0.s8 %v6685
        %v6687 = vlaneseq
        %v6688 = vshrl.u32 %v6687, 7
        %v6689 = vsub.s32 %v6686, %v6688
        %v6690 = vrot.slane %v6668, %v6689
        %v6692 = vunpack.c.l.s4 1966171168
        %v6693 = vunpack.c.0.s8 %v6692
        %v6694 = vlaneseq
        %v6695 = vshrl.u32 %v6694, 7
        %v6696 = vsub.s32 %v6693, %v6695
        %v6697 = vrot.slane %v6669, %v6696
        %v6698 = vcombine.low %v6676, %v6683
        %v6699 = vcombine.low %v6690, %v6697
        %v6701 = vunpack.c.l.s4 1966171168
        %v6702 = vunpack.c.0.s8 %v6701
        %v6703 = vlaneseq
        %v6704 = vshrl.u32 %v6703, 7
        %v6705 = vsub.s32 %v6702, %v6704
        %v6706 = vrot.slane %v6698, %v6705
        %v6708 = vunpack.c.l.s4 1966171168
        %v6709 = vunpack.c.0.s8 %v6708
        %v6710 = vlaneseq
        %v6711 = vshrl.u32 %v6710, 7
        %v6712 = vsub.s32 %v6709, %v6711
        %v6713 = vrot.slane %v6699, %v6712
        %v6714 = vcombine.low %v6706, %v6713
        %v6715 = vcombine.low %v5170, %v5184
        %v6716 = vcombine.low %v5192, %v5194
        %v6717 = vcombine.low %v5177, %v5191
        %v6718 = vcombine.low %v5193, %v5195
        %v6720 = vunpack.c.l.s4 1966171168
        %v6721 = vunpack.c.0.s8 %v6720
        %v6722 = vlaneseq
        %v6723 = vshrl.u32 %v6722, 7
        %v6724 = vsub.s32 %v6721, %v6723
        %v6725 = vrot.slane %v6715, %v6724
        %v6727 = vunpack.c.l.s4 1966171168
        %v6728 = vunpack.c.0.s8 %v6727
        %v6729 = vlaneseq
        %v6730 = vshrl.u32 %v6729, 7
        %v6731 = vsub.s32 %v6728, %v6730
        %v6732 = vrot.slane %v6716, %v6731
        %v6734 = vunpack.c.l.s4 1966171168
        %v6735 = vunpack.c.0.s8 %v6734
        %v6736 = vlaneseq
        %v6737 = vshrl.u32 %v6736, 7
        %v6738 = vsub.s32 %v6735, %v6737
        %v6739 = vrot.slane %v6717, %v6738
        %v6741 = vunpack.c.l.s4 1966171168
        %v6742 = vunpack.c.0.s8 %v6741
        %v6743 = vlaneseq
        %v6744 = vshrl.u32 %v6743, 7
        %v6745 = vsub.s32 %v6742, %v6744
        %v6746 = vrot.slane %v6718, %v6745
        %v6747 = vcombine.low %v6725, %v6732
        %v6748 = vcombine.low %v6739, %v6746
        %v6750 = vunpack.c.l.s4 1966171168
        %v6751 = vunpack.c.0.s8 %v6750
        %v6752 = vlaneseq
        %v6753 = vshrl.u32 %v6752, 7
        %v6754 = vsub.s32 %v6751, %v6753
        %v6755 = vrot.slane %v6747, %v6754
        %v6757 = vunpack.c.l.s4 1966171168
        %v6758 = vunpack.c.0.s8 %v6757
        %v6759 = vlaneseq
        %v6760 = vshrl.u32 %v6759, 7
        %v6761 = vsub.s32 %v6758, %v6760
        %v6762 = vrot.slane %v6748, %v6761
        %v6763 = vcombine.low %v6755, %v6762
        %v6764 = vcombine.low %v5219, %v5233
        %v6765 = vcombine.low %v5241, %v5243
        %v6766 = vcombine.low %v5226, %v5240
        %v6767 = vcombine.low %v5242, %v5244
        %v6769 = vunpack.c.l.s4 1966171168
        %v6770 = vunpack.c.0.s8 %v6769
        %v6771 = vlaneseq
        %v6772 = vshrl.u32 %v6771, 7
        %v6773 = vsub.s32 %v6770, %v6772
        %v6774 = vrot.slane %v6764, %v6773
        %v6776 = vunpack.c.l.s4 1966171168
        %v6777 = vunpack.c.0.s8 %v6776
        %v6778 = vlaneseq
        %v6779 = vshrl.u32 %v6778, 7
        %v6780 = vsub.s32 %v6777, %v6779
        %v6781 = vrot.slane %v6765, %v6780
        %v6783 = vunpack.c.l.s4 1966171168
        %v6784 = vunpack.c.0.s8 %v6783
        %v6785 = vlaneseq
        %v6786 = vshrl.u32 %v6785, 7
        %v6787 = vsub.s32 %v6784, %v6786
        %v6788 = vrot.slane %v6766, %v6787
        %v6790 = vunpack.c.l.s4 1966171168
        %v6791 = vunpack.c.0.s8 %v6790
        %v6792 = vlaneseq
        %v6793 = vshrl.u32 %v6792, 7
        %v6794 = vsub.s32 %v6791, %v6793
        %v6795 = vrot.slane %v6767, %v6794
        %v6796 = vcombine.low %v6774, %v6781
        %v6797 = vcombine.low %v6788, %v6795
        %v6799 = vunpack.c.l.s4 1966171168
        %v6800 = vunpack.c.0.s8 %v6799
        %v6801 = vlaneseq
        %v6802 = vshrl.u32 %v6801, 7
        %v6803 = vsub.s32 %v6800, %v6802
        %v6804 = vrot.slane %v6796, %v6803
        %v6806 = vunpack.c.l.s4 1966171168
        %v6807 = vunpack.c.0.s8 %v6806
        %v6808 = vlaneseq
        %v6809 = vshrl.u32 %v6808, 7
        %v6810 = vsub.s32 %v6807, %v6809
        %v6811 = vrot.slane %v6797, %v6810
        %v6812 = vcombine.low %v6804, %v6811
        %v6813 = vcombine.low %v5268, %v5282
        %v6814 = vcombine.low %v5290, %v5292
        %v6815 = vcombine.low %v5275, %v5289
        %v6816 = vcombine.low %v5291, %v5293
        %v6818 = vunpack.c.l.s4 1966171168
        %v6819 = vunpack.c.0.s8 %v6818
        %v6820 = vlaneseq
        %v6821 = vshrl.u32 %v6820, 7
        %v6822 = vsub.s32 %v6819, %v6821
        %v6823 = vrot.slane %v6813, %v6822
        %v6825 = vunpack.c.l.s4 1966171168
        %v6826 = vunpack.c.0.s8 %v6825
        %v6827 = vlaneseq
        %v6828 = vshrl.u32 %v6827, 7
        %v6829 = vsub.s32 %v6826, %v6828
        %v6830 = vrot.slane %v6814, %v6829
        %v6832 = vunpack.c.l.s4 1966171168
        %v6833 = vunpack.c.0.s8 %v6832
        %v6834 = vlaneseq
        %v6835 = vshrl.u32 %v6834, 7
        %v6836 = vsub.s32 %v6833, %v6835
        %v6837 = vrot.slane %v6815, %v6836
        %v6839 = vunpack.c.l.s4 1966171168
        %v6840 = vunpack.c.0.s8 %v6839
        %v6841 = vlaneseq
        %v6842 = vshrl.u32 %v6841, 7
        %v6843 = vsub.s32 %v6840, %v6842
        %v6844 = vrot.slane %v6816, %v6843
        %v6845 = vcombine.low %v6823, %v6830
        %v6846 = vcombine.low %v6837, %v6844
        %v6848 = vunpack.c.l.s4 1966171168
        %v6849 = vunpack.c.0.s8 %v6848
        %v6850 = vlaneseq
        %v6851 = vshrl.u32 %v6850, 7
        %v6852 = vsub.s32 %v6849, %v6851
        %v6853 = vrot.slane %v6845, %v6852
        %v6855 = vunpack.c.l.s4 1966171168
        %v6856 = vunpack.c.0.s8 %v6855
        %v6857 = vlaneseq
        %v6858 = vshrl.u32 %v6857, 7
        %v6859 = vsub.s32 %v6856, %v6858
        %v6860 = vrot.slane %v6846, %v6859
        %v6861 = vcombine.low %v6853, %v6860
        %v6862 = vcombine.low %v5317, %v5331
        %v6863 = vcombine.low %v5339, %v5341
        %v6864 = vcombine.low %v5324, %v5338
        %v6865 = vcombine.low %v5340, %v5342
        %v6867 = vunpack.c.l.s4 1966171168
        %v6868 = vunpack.c.0.s8 %v6867
        %v6869 = vlaneseq
        %v6870 = vshrl.u32 %v6869, 7
        %v6871 = vsub.s32 %v6868, %v6870
        %v6872 = vrot.slane %v6862, %v6871
        %v6874 = vunpack.c.l.s4 1966171168
        %v6875 = vunpack.c.0.s8 %v6874
        %v6876 = vlaneseq
        %v6877 = vshrl.u32 %v6876, 7
        %v6878 = vsub.s32 %v6875, %v6877
        %v6879 = vrot.slane %v6863, %v6878
        %v6881 = vunpack.c.l.s4 1966171168
        %v6882 = vunpack.c.0.s8 %v6881
        %v6883 = vlaneseq
        %v6884 = vshrl.u32 %v6883, 7
        %v6885 = vsub.s32 %v6882, %v6884
        %v6886 = vrot.slane %v6864, %v6885
        %v6888 = vunpack.c.l.s4 1966171168
        %v6889 = vunpack.c.0.s8 %v6888
        %v6890 = vlaneseq
        %v6891 = vshrl.u32 %v6890, 7
        %v6892 = vsub.s32 %v6889, %v6891
        %v6893 = vrot.slane %v6865, %v6892
        %v6894 = vcombine.low %v6872, %v6879
        %v6895 = vcombine.low %v6886, %v6893
        %v6897 = vunpack.c.l.s4 1966171168
        %v6898 = vunpack.c.0.s8 %v6897
        %v6899 = vlaneseq
        %v6900 = vshrl.u32 %v6899, 7
        %v6901 = vsub.s32 %v6898, %v6900
        %v6902 = vrot.slane %v6894, %v6901
        %v6904 = vunpack.c.l.s4 1966171168
        %v6905 = vunpack.c.0.s8 %v6904
        %v6906 = vlaneseq
        %v6907 = vshrl.u32 %v6906, 7
        %v6908 = vsub.s32 %v6905, %v6907
        %v6909 = vrot.slane %v6895, %v6908
        %v6910 = vcombine.low %v6902, %v6909
        %v6911 = vcombine.low %v5366, %v5380
        %v6912 = vcombine.low %v5388, %v5390
        %v6913 = vcombine.low %v5373, %v5387
        %v6914 = vcombine.low %v5389, %v5391
        %v6916 = vunpack.c.l.s4 1966171168
        %v6917 = vunpack.c.0.s8 %v6916
        %v6918 = vlaneseq
        %v6919 = vshrl.u32 %v6918, 7
        %v6920 = vsub.s32 %v6917, %v6919
        %v6921 = vrot.slane %v6911, %v6920
        %v6923 = vunpack.c.l.s4 1966171168
        %v6924 = vunpack.c.0.s8 %v6923
        %v6925 = vlaneseq
        %v6926 = vshrl.u32 %v6925, 7
        %v6927 = vsub.s32 %v6924, %v6926
        %v6928 = vrot.slane %v6912, %v6927
        %v6930 = vunpack.c.l.s4 1966171168
        %v6931 = vunpack.c.0.s8 %v6930
        %v6932 = vlaneseq
        %v6933 = vshrl.u32 %v6932, 7
        %v6934 = vsub.s32 %v6931, %v6933
        %v6935 = vrot.slane %v6913, %v6934
        %v6937 = vunpack.c.l.s4 1966171168
        %v6938 = vunpack.c.0.s8 %v6937
        %v6939 = vlaneseq
        %v6940 = vshrl.u32 %v6939, 7
        %v6941 = vsub.s32 %v6938, %v6940
        %v6942 = vrot.slane %v6914, %v6941
        %v6943 = vcombine.low %v6921, %v6928
        %v6944 = vcombine.low %v6935, %v6942
        %v6946 = vunpack.c.l.s4 1966171168
        %v6947 = vunpack.c.0.s8 %v6946
        %v6948 = vlaneseq
        %v6949 = vshrl.u32 %v6948, 7
        %v6950 = vsub.s32 %v6947, %v6949
        %v6951 = vrot.slane %v6943, %v6950
        %v6953 = vunpack.c.l.s4 1966171168
        %v6954 = vunpack.c.0.s8 %v6953
        %v6955 = vlaneseq
        %v6956 = vshrl.u32 %v6955, 7
        %v6957 = vsub.s32 %v6954, %v6956
        %v6958 = vrot.slane %v6944, %v6957
        %v6959 = vcombine.low %v6951, %v6958
        %v6960 = vcombine.low %v5415, %v5429
        %v6961 = vcombine.low %v5437, %v5439
        %v6962 = vcombine.low %v5422, %v5436
        %v6963 = vcombine.low %v5438, %v5440
        %v6965 = vunpack.c.l.s4 1966171168
        %v6966 = vunpack.c.0.s8 %v6965
        %v6967 = vlaneseq
        %v6968 = vshrl.u32 %v6967, 7
        %v6969 = vsub.s32 %v6966, %v6968
        %v6970 = vrot.slane %v6960, %v6969
        %v6972 = vunpack.c.l.s4 1966171168
        %v6973 = vunpack.c.0.s8 %v6972
        %v6974 = vlaneseq
        %v6975 = vshrl.u32 %v6974, 7
        %v6976 = vsub.s32 %v6973, %v6975
        %v6977 = vrot.slane %v6961, %v6976
        %v6979 = vunpack.c.l.s4 1966171168
        %v6980 = vunpack.c.0.s8 %v6979
        %v6981 = vlaneseq
        %v6982 = vshrl.u32 %v6981, 7
        %v6983 = vsub.s32 %v6980, %v6982
        %v6984 = vrot.slane %v6962, %v6983
        %v6986 = vunpack.c.l.s4 1966171168
        %v6987 = vunpack.c.0.s8 %v6986
        %v6988 = vlaneseq
        %v6989 = vshrl.u32 %v6988, 7
        %v6990 = vsub.s32 %v6987, %v6989
        %v6991 = vrot.slane %v6963, %v6990
        %v6992 = vcombine.low %v6970, %v6977
        %v6993 = vcombine.low %v6984, %v6991
        %v6995 = vunpack.c.l.s4 1966171168
        %v6996 = vunpack.c.0.s8 %v6995
        %v6997 = vlaneseq
        %v6998 = vshrl.u32 %v6997, 7
        %v6999 = vsub.s32 %v6996, %v6998
        %v7000 = vrot.slane %v6992, %v6999
        %v7002 = vunpack.c.l.s4 1966171168
        %v7003 = vunpack.c.0.s8 %v7002
        %v7004 = vlaneseq
        %v7005 = vshrl.u32 %v7004, 7
        %v7006 = vsub.s32 %v7003, %v7005
        %v7007 = vrot.slane %v6993, %v7006
        %v7008 = vcombine.low %v7000, %v7007
        %v7009 = vcombine.low %v5464, %v5478
        %v7010 = vcombine.low %v5486, %v5488
        %v7011 = vcombine.low %v5471, %v5485
        %v7012 = vcombine.low %v5487, %v5489
        %v7014 = vunpack.c.l.s4 1966171168
        %v7015 = vunpack.c.0.s8 %v7014
        %v7016 = vlaneseq
        %v7017 = vshrl.u32 %v7016, 7
        %v7018 = vsub.s32 %v7015, %v7017
        %v7019 = vrot.slane %v7009, %v7018
        %v7021 = vunpack.c.l.s4 1966171168
        %v7022 = vunpack.c.0.s8 %v7021
        %v7023 = vlaneseq
        %v7024 = vshrl.u32 %v7023, 7
        %v7025 = vsub.s32 %v7022, %v7024
        %v7026 = vrot.slane %v7010, %v7025
        %v7028 = vunpack.c.l.s4 1966171168
        %v7029 = vunpack.c.0.s8 %v7028
        %v7030 = vlaneseq
        %v7031 = vshrl.u32 %v7030, 7
        %v7032 = vsub.s32 %v7029, %v7031
        %v7033 = vrot.slane %v7011, %v7032
        %v7035 = vunpack.c.l.s4 1966171168
        %v7036 = vunpack.c.0.s8 %v7035
        %v7037 = vlaneseq
        %v7038 = vshrl.u32 %v7037, 7
        %v7039 = vsub.s32 %v7036, %v7038
        %v7040 = vrot.slane %v7012, %v7039
        %v7041 = vcombine.low %v7019, %v7026
        %v7042 = vcombine.low %v7033, %v7040
        %v7044 = vunpack.c.l.s4 1966171168
        %v7045 = vunpack.c.0.s8 %v7044
        %v7046 = vlaneseq
        %v7047 = vshrl.u32 %v7046, 7
        %v7048 = vsub.s32 %v7045, %v7047
        %v7049 = vrot.slane %v7041, %v7048
        %v7051 = vunpack.c.l.s4 1966171168
        %v7052 = vunpack.c.0.s8 %v7051
        %v7053 = vlaneseq
        %v7054 = vshrl.u32 %v7053, 7
        %v7055 = vsub.s32 %v7052, %v7054
        %v7056 = vrot.slane %v7042, %v7055
        %v7057 = vcombine.low %v7049, %v7056
        %v7058 = vcombine.low %v5513, %v5527
        %v7059 = vcombine.low %v5535, %v5537
        %v7060 = vcombine.low %v5520, %v5534
        %v7061 = vcombine.low %v5536, %v5538
        %v7063 = vunpack.c.l.s4 1966171168
        %v7064 = vunpack.c.0.s8 %v7063
        %v7065 = vlaneseq
        %v7066 = vshrl.u32 %v7065, 7
        %v7067 = vsub.s32 %v7064, %v7066
        %v7068 = vrot.slane %v7058, %v7067
        %v7070 = vunpack.c.l.s4 1966171168
        %v7071 = vunpack.c.0.s8 %v7070
        %v7072 = vlaneseq
        %v7073 = vshrl.u32 %v7072, 7
        %v7074 = vsub.s32 %v7071, %v7073
        %v7075 = vrot.slane %v7059, %v7074
        %v7077 = vunpack.c.l.s4 1966171168
        %v7078 = vunpack.c.0.s8 %v7077
        %v7079 = vlaneseq
        %v7080 = vshrl.u32 %v7079, 7
        %v7081 = vsub.s32 %v7078, %v7080
        %v7082 = vrot.slane %v7060, %v7081
        %v7084 = vunpack.c.l.s4 1966171168
        %v7085 = vunpack.c.0.s8 %v7084
        %v7086 = vlaneseq
        %v7087 = vshrl.u32 %v7086, 7
        %v7088 = vsub.s32 %v7085, %v7087
        %v7089 = vrot.slane %v7061, %v7088
        %v7090 = vcombine.low %v7068, %v7075
        %v7091 = vcombine.low %v7082, %v7089
        %v7093 = vunpack.c.l.s4 1966171168
        %v7094 = vunpack.c.0.s8 %v7093
        %v7095 = vlaneseq
        %v7096 = vshrl.u32 %v7095, 7
        %v7097 = vsub.s32 %v7094, %v7096
        %v7098 = vrot.slane %v7090, %v7097
        %v7100 = vunpack.c.l.s4 1966171168
        %v7101 = vunpack.c.0.s8 %v7100
        %v7102 = vlaneseq
        %v7103 = vshrl.u32 %v7102, 7
        %v7104 = vsub.s32 %v7101, %v7103
        %v7105 = vrot.slane %v7091, %v7104
        %v7106 = vcombine.low %v7098, %v7105
        %v7107 = vcombine.low %v5562, %v5576
        %v7108 = vcombine.low %v5584, %v5586
        %v7109 = vcombine.low %v5569, %v5583
        %v7110 = vcombine.low %v5585, %v5587
        %v7112 = vunpack.c.l.s4 1966171168
        %v7113 = vunpack.c.0.s8 %v7112
        %v7114 = vlaneseq
        %v7115 = vshrl.u32 %v7114, 7
        %v7116 = vsub.s32 %v7113, %v7115
        %v7117 = vrot.slane %v7107, %v7116
        %v7119 = vunpack.c.l.s4 1966171168
        %v7120 = vunpack.c.0.s8 %v7119
        %v7121 = vlaneseq
        %v7122 = vshrl.u32 %v7121, 7
        %v7123 = vsub.s32 %v7120, %v7122
        %v7124 = vrot.slane %v7108, %v7123
        %v7126 = vunpack.c.l.s4 1966171168
        %v7127 = vunpack.c.0.s8 %v7126
        %v7128 = vlaneseq
        %v7129 = vshrl.u32 %v7128, 7
        %v7130 = vsub.s32 %v7127, %v7129
        %v7131 = vrot.slane %v7109, %v7130
        %v7133 = vunpack.c.l.s4 1966171168
        %v7134 = vunpack.c.0.s8 %v7133
        %v7135 = vlaneseq
        %v7136 = vshrl.u32 %v7135, 7
        %v7137 = vsub.s32 %v7134, %v7136
        %v7138 = vrot.slane %v7110, %v7137
        %v7139 = vcombine.low %v7117, %v7124
        %v7140 = vcombine.low %v7131, %v7138
        %v7142 = vunpack.c.l.s4 1966171168
        %v7143 = vunpack.c.0.s8 %v7142
        %v7144 = vlaneseq
        %v7145 = vshrl.u32 %v7144, 7
        %v7146 = vsub.s32 %v7143, %v7145
        %v7147 = vrot.slane %v7139, %v7146
        %v7149 = vunpack.c.l.s4 1966171168
        %v7150 = vunpack.c.0.s8 %v7149
        %v7151 = vlaneseq
        %v7152 = vshrl.u32 %v7151, 7
        %v7153 = vsub.s32 %v7150, %v7152
        %v7154 = vrot.slane %v7140, %v7153
        %v7155 = vcombine.low %v7147, %v7154
        %v7156 = vcombine.low %v5611, %v5625
        %v7157 = vcombine.low %v5633, %v5635
        %v7158 = vcombine.low %v5618, %v5632
        %v7159 = vcombine.low %v5634, %v5636
        %v7161 = vunpack.c.l.s4 1966171168
        %v7162 = vunpack.c.0.s8 %v7161
        %v7163 = vlaneseq
        %v7164 = vshrl.u32 %v7163, 7
        %v7165 = vsub.s32 %v7162, %v7164
        %v7166 = vrot.slane %v7156, %v7165
        %v7168 = vunpack.c.l.s4 1966171168
        %v7169 = vunpack.c.0.s8 %v7168
        %v7170 = vlaneseq
        %v7171 = vshrl.u32 %v7170, 7
        %v7172 = vsub.s32 %v7169, %v7171
        %v7173 = vrot.slane %v7157, %v7172
        %v7175 = vunpack.c.l.s4 1966171168
        %v7176 = vunpack.c.0.s8 %v7175
        %v7177 = vlaneseq
        %v7178 = vshrl.u32 %v7177, 7
        %v7179 = vsub.s32 %v7176, %v7178
        %v7180 = vrot.slane %v7158, %v7179
        %v7182 = vunpack.c.l.s4 1966171168
        %v7183 = vunpack.c.0.s8 %v7182
        %v7184 = vlaneseq
        %v7185 = vshrl.u32 %v7184, 7
        %v7186 = vsub.s32 %v7183, %v7185
        %v7187 = vrot.slane %v7159, %v7186
        %v7188 = vcombine.low %v7166, %v7173
        %v7189 = vcombine.low %v7180, %v7187
        %v7191 = vunpack.c.l.s4 1966171168
        %v7192 = vunpack.c.0.s8 %v7191
        %v7193 = vlaneseq
        %v7194 = vshrl.u32 %v7193, 7
        %v7195 = vsub.s32 %v7192, %v7194
        %v7196 = vrot.slane %v7188, %v7195
        %v7198 = vunpack.c.l.s4 1966171168
        %v7199 = vunpack.c.0.s8 %v7198
        %v7200 = vlaneseq
        %v7201 = vshrl.u32 %v7200, 7
        %v7202 = vsub.s32 %v7199, %v7201
        %v7203 = vrot.slane %v7189, %v7202
        %v7204 = vcombine.low %v7196, %v7203
        %v7205 = vcombine.low %v5660, %v5674
        %v7206 = vcombine.low %v5682, %v5684
        %v7207 = vcombine.low %v5667, %v5681
        %v7208 = vcombine.low %v5683, %v5685
        %v7210 = vunpack.c.l.s4 1966171168
        %v7211 = vunpack.c.0.s8 %v7210
        %v7212 = vlaneseq
        %v7213 = vshrl.u32 %v7212, 7
        %v7214 = vsub.s32 %v7211, %v7213
        %v7215 = vrot.slane %v7205, %v7214
        %v7217 = vunpack.c.l.s4 1966171168
        %v7218 = vunpack.c.0.s8 %v7217
        %v7219 = vlaneseq
        %v7220 = vshrl.u32 %v7219, 7
        %v7221 = vsub.s32 %v7218, %v7220
        %v7222 = vrot.slane %v7206, %v7221
        %v7224 = vunpack.c.l.s4 1966171168
        %v7225 = vunpack.c.0.s8 %v7224
        %v7226 = vlaneseq
        %v7227 = vshrl.u32 %v7226, 7
        %v7228 = vsub.s32 %v7225, %v7227
        %v7229 = vrot.slane %v7207, %v7228
        %v7231 = vunpack.c.l.s4 1966171168
        %v7232 = vunpack.c.0.s8 %v7231
        %v7233 = vlaneseq
        %v7234 = vshrl.u32 %v7233, 7
        %v7235 = vsub.s32 %v7232, %v7234
        %v7236 = vrot.slane %v7208, %v7235
        %v7237 = vcombine.low %v7215, %v7222
        %v7238 = vcombine.low %v7229, %v7236
        %v7240 = vunpack.c.l.s4 1966171168
        %v7241 = vunpack.c.0.s8 %v7240
        %v7242 = vlaneseq
        %v7243 = vshrl.u32 %v7242, 7
        %v7244 = vsub.s32 %v7241, %v7243
        %v7245 = vrot.slane %v7237, %v7244
        %v7247 = vunpack.c.l.s4 1966171168
        %v7248 = vunpack.c.0.s8 %v7247
        %v7249 = vlaneseq
        %v7250 = vshrl.u32 %v7249, 7
        %v7251 = vsub.s32 %v7248, %v7250
        %v7252 = vrot.slane %v7238, %v7251
        %v7253 = vcombine.low %v7245, %v7252
        %v7254 = vcombine.low %v5709, %v5723
        %v7255 = vcombine.low %v5731, %v5733
        %v7256 = vcombine.low %v5716, %v5730
        %v7257 = vcombine.low %v5732, %v5734
        %v7259 = vunpack.c.l.s4 1966171168
        %v7260 = vunpack.c.0.s8 %v7259
        %v7261 = vlaneseq
        %v7262 = vshrl.u32 %v7261, 7
        %v7263 = vsub.s32 %v7260, %v7262
        %v7264 = vrot.slane %v7254, %v7263
        %v7266 = vunpack.c.l.s4 1966171168
        %v7267 = vunpack.c.0.s8 %v7266
        %v7268 = vlaneseq
        %v7269 = vshrl.u32 %v7268, 7
        %v7270 = vsub.s32 %v7267, %v7269
        %v7271 = vrot.slane %v7255, %v7270
        %v7273 = vunpack.c.l.s4 1966171168
        %v7274 = vunpack.c.0.s8 %v7273
        %v7275 = vlaneseq
        %v7276 = vshrl.u32 %v7275, 7
        %v7277 = vsub.s32 %v7274, %v7276
        %v7278 = vrot.slane %v7256, %v7277
        %v7280 = vunpack.c.l.s4 1966171168
        %v7281 = vunpack.c.0.s8 %v7280
        %v7282 = vlaneseq
        %v7283 = vshrl.u32 %v7282, 7
        %v7284 = vsub.s32 %v7281, %v7283
        %v7285 = vrot.slane %v7257, %v7284
        %v7286 = vcombine.low %v7264, %v7271
        %v7287 = vcombine.low %v7278, %v7285
        %v7289 = vunpack.c.l.s4 1966171168
        %v7290 = vunpack.c.0.s8 %v7289
        %v7291 = vlaneseq
        %v7292 = vshrl.u32 %v7291, 7
        %v7293 = vsub.s32 %v7290, %v7292
        %v7294 = vrot.slane %v7286, %v7293
        %v7296 = vunpack.c.l.s4 1966171168
        %v7297 = vunpack.c.0.s8 %v7296
        %v7298 = vlaneseq
        %v7299 = vshrl.u32 %v7298, 7
        %v7300 = vsub.s32 %v7297, %v7299
        %v7301 = vrot.slane %v7287, %v7300
        %v7302 = vcombine.low %v7294, %v7301
        %v7303 = vcombine.low %v5758, %v5772
        %v7304 = vcombine.low %v5780, %v5782
        %v7305 = vcombine.low %v5765, %v5779
        %v7306 = vcombine.low %v5781, %v5783
        %v7308 = vunpack.c.l.s4 1966171168
        %v7309 = vunpack.c.0.s8 %v7308
        %v7310 = vlaneseq
        %v7311 = vshrl.u32 %v7310, 7
        %v7312 = vsub.s32 %v7309, %v7311
        %v7313 = vrot.slane %v7303, %v7312
        %v7315 = vunpack.c.l.s4 1966171168
        %v7316 = vunpack.c.0.s8 %v7315
        %v7317 = vlaneseq
        %v7318 = vshrl.u32 %v7317, 7
        %v7319 = vsub.s32 %v7316, %v7318
        %v7320 = vrot.slane %v7304, %v7319
        %v7322 = vunpack.c.l.s4 1966171168
        %v7323 = vunpack.c.0.s8 %v7322
        %v7324 = vlaneseq
        %v7325 = vshrl.u32 %v7324, 7
        %v7326 = vsub.s32 %v7323, %v7325
        %v7327 = vrot.slane %v7305, %v7326
        %v7329 = vunpack.c.l.s4 1966171168
        %v7330 = vunpack.c.0.s8 %v7329
        %v7331 = vlaneseq
        %v7332 = vshrl.u32 %v7331, 7
        %v7333 = vsub.s32 %v7330, %v7332
        %v7334 = vrot.slane %v7306, %v7333
        %v7335 = vcombine.low %v7313, %v7320
        %v7336 = vcombine.low %v7327, %v7334
        %v7338 = vunpack.c.l.s4 1966171168
        %v7339 = vunpack.c.0.s8 %v7338
        %v7340 = vlaneseq
        %v7341 = vshrl.u32 %v7340, 7
        %v7342 = vsub.s32 %v7339, %v7341
        %v7343 = vrot.slane %v7335, %v7342
        %v7345 = vunpack.c.l.s4 1966171168
        %v7346 = vunpack.c.0.s8 %v7345
        %v7347 = vlaneseq
        %v7348 = vshrl.u32 %v7347, 7
        %v7349 = vsub.s32 %v7346, %v7348
        %v7350 = vrot.slane %v7336, %v7349
        %v7351 = vcombine.low %v7343, %v7350
        %v7352 = vcombine.low %v5807, %v5821
        %v7353 = vcombine.low %v5829, %v5831
        %v7354 = vcombine.low %v5814, %v5828
        %v7355 = vcombine.low %v5830, %v5832
        %v7357 = vunpack.c.l.s4 1966171168
        %v7358 = vunpack.c.0.s8 %v7357
        %v7359 = vlaneseq
        %v7360 = vshrl.u32 %v7359, 7
        %v7361 = vsub.s32 %v7358, %v7360
        %v7362 = vrot.slane %v7352, %v7361
        %v7364 = vunpack.c.l.s4 1966171168
        %v7365 = vunpack.c.0.s8 %v7364
        %v7366 = vlaneseq
        %v7367 = vshrl.u32 %v7366, 7
        %v7368 = vsub.s32 %v7365, %v7367
        %v7369 = vrot.slane %v7353, %v7368
        %v7371 = vunpack.c.l.s4 1966171168
        %v7372 = vunpack.c.0.s8 %v7371
        %v7373 = vlaneseq
        %v7374 = vshrl.u32 %v7373, 7
        %v7375 = vsub.s32 %v7372, %v7374
        %v7376 = vrot.slane %v7354, %v7375
        %v7378 = vunpack.c.l.s4 1966171168
        %v7379 = vunpack.c.0.s8 %v7378
        %v7380 = vlaneseq
        %v7381 = vshrl.u32 %v7380, 7
        %v7382 = vsub.s32 %v7379, %v7381
        %v7383 = vrot.slane %v7355, %v7382
        %v7384 = vcombine.low %v7362, %v7369
        %v7385 = vcombine.low %v7376, %v7383
        %v7387 = vunpack.c.l.s4 1966171168
        %v7388 = vunpack.c.0.s8 %v7387
        %v7389 = vlaneseq
        %v7390 = vshrl.u32 %v7389, 7
        %v7391 = vsub.s32 %v7388, %v7390
        %v7392 = vrot.slane %v7384, %v7391
        %v7394 = vunpack.c.l.s4 1966171168
        %v7395 = vunpack.c.0.s8 %v7394
        %v7396 = vlaneseq
        %v7397 = vshrl.u32 %v7396, 7
        %v7398 = vsub.s32 %v7395, %v7397
        %v7399 = vrot.slane %v7385, %v7398
        %v7400 = vcombine.low %v7392, %v7399
        %v7401 = vcombine.low %v5856, %v5870
        %v7402 = vcombine.low %v5878, %v5880
        %v7403 = vcombine.low %v5863, %v5877
        %v7404 = vcombine.low %v5879, %v5881
        %v7406 = vunpack.c.l.s4 1966171168
        %v7407 = vunpack.c.0.s8 %v7406
        %v7408 = vlaneseq
        %v7409 = vshrl.u32 %v7408, 7
        %v7410 = vsub.s32 %v7407, %v7409
        %v7411 = vrot.slane %v7401, %v7410
        %v7413 = vunpack.c.l.s4 1966171168
        %v7414 = vunpack.c.0.s8 %v7413
        %v7415 = vlaneseq
        %v7416 = vshrl.u32 %v7415, 7
        %v7417 = vsub.s32 %v7414, %v7416
        %v7418 = vrot.slane %v7402, %v7417
        %v7420 = vunpack.c.l.s4 1966171168
        %v7421 = vunpack.c.0.s8 %v7420
        %v7422 = vlaneseq
        %v7423 = vshrl.u32 %v7422, 7
        %v7424 = vsub.s32 %v7421, %v7423
        %v7425 = vrot.slane %v7403, %v7424
        %v7427 = vunpack.c.l.s4 1966171168
        %v7428 = vunpack.c.0.s8 %v7427
        %v7429 = vlaneseq
        %v7430 = vshrl.u32 %v7429, 7
        %v7431 = vsub.s32 %v7428, %v7430
        %v7432 = vrot.slane %v7404, %v7431
        %v7433 = vcombine.low %v7411, %v7418
        %v7434 = vcombine.low %v7425, %v7432
        %v7436 = vunpack.c.l.s4 1966171168
        %v7437 = vunpack.c.0.s8 %v7436
        %v7438 = vlaneseq
        %v7439 = vshrl.u32 %v7438, 7
        %v7440 = vsub.s32 %v7437, %v7439
        %v7441 = vrot.slane %v7433, %v7440
        %v7443 = vunpack.c.l.s4 1966171168
        %v7444 = vunpack.c.0.s8 %v7443
        %v7445 = vlaneseq
        %v7446 = vshrl.u32 %v7445, 7
        %v7447 = vsub.s32 %v7444, %v7446
        %v7448 = vrot.slane %v7434, %v7447
        %v7449 = vcombine.low %v7441, %v7448
        %v7450 = vcombine.low %v5905, %v5919
        %v7451 = vcombine.low %v5927, %v5929
        %v7452 = vcombine.low %v5912, %v5926
        %v7453 = vcombine.low %v5928, %v5930
        %v7455 = vunpack.c.l.s4 1966171168
        %v7456 = vunpack.c.0.s8 %v7455
        %v7457 = vlaneseq
        %v7458 = vshrl.u32 %v7457, 7
        %v7459 = vsub.s32 %v7456, %v7458
        %v7460 = vrot.slane %v7450, %v7459
        %v7462 = vunpack.c.l.s4 1966171168
        %v7463 = vunpack.c.0.s8 %v7462
        %v7464 = vlaneseq
        %v7465 = vshrl.u32 %v7464, 7
        %v7466 = vsub.s32 %v7463, %v7465
        %v7467 = vrot.slane %v7451, %v7466
        %v7469 = vunpack.c.l.s4 1966171168
        %v7470 = vunpack.c.0.s8 %v7469
        %v7471 = vlaneseq
        %v7472 = vshrl.u32 %v7471, 7
        %v7473 = vsub.s32 %v7470, %v7472
        %v7474 = vrot.slane %v7452, %v7473
        %v7476 = vunpack.c.l.s4 1966171168
        %v7477 = vunpack.c.0.s8 %v7476
        %v7478 = vlaneseq
        %v7479 = vshrl.u32 %v7478, 7
        %v7480 = vsub.s32 %v7477, %v7479
        %v7481 = vrot.slane %v7453, %v7480
        %v7482 = vcombine.low %v7460, %v7467
        %v7483 = vcombine.low %v7474, %v7481
        %v7485 = vunpack.c.l.s4 1966171168
        %v7486 = vunpack.c.0.s8 %v7485
        %v7487 = vlaneseq
        %v7488 = vshrl.u32 %v7487, 7
        %v7489 = vsub.s32 %v7486, %v7488
        %v7490 = vrot.slane %v7482, %v7489
        %v7492 = vunpack.c.l.s4 1966171168
        %v7493 = vunpack.c.0.s8 %v7492
        %v7494 = vlaneseq
        %v7495 = vshrl.u32 %v7494, 7
        %v7496 = vsub.s32 %v7493, %v7495
        %v7497 = vrot.slane %v7483, %v7496
        %v7498 = vcombine.low %v7490, %v7497
        %v7499 = vcombine.low %v5954, %v5968
        %v7500 = vcombine.low %v5976, %v5978
        %v7501 = vcombine.low %v5961, %v5975
        %v7502 = vcombine.low %v5977, %v5979
        %v7504 = vunpack.c.l.s4 1966171168
        %v7505 = vunpack.c.0.s8 %v7504
        %v7506 = vlaneseq
        %v7507 = vshrl.u32 %v7506, 7
        %v7508 = vsub.s32 %v7505, %v7507
        %v7509 = vrot.slane %v7499, %v7508
        %v7511 = vunpack.c.l.s4 1966171168
        %v7512 = vunpack.c.0.s8 %v7511
        %v7513 = vlaneseq
        %v7514 = vshrl.u32 %v7513, 7
        %v7515 = vsub.s32 %v7512, %v7514
        %v7516 = vrot.slane %v7500, %v7515
        %v7518 = vunpack.c.l.s4 1966171168
        %v7519 = vunpack.c.0.s8 %v7518
        %v7520 = vlaneseq
        %v7521 = vshrl.u32 %v7520, 7
        %v7522 = vsub.s32 %v7519, %v7521
        %v7523 = vrot.slane %v7501, %v7522
        %v7525 = vunpack.c.l.s4 1966171168
        %v7526 = vunpack.c.0.s8 %v7525
        %v7527 = vlaneseq
        %v7528 = vshrl.u32 %v7527, 7
        %v7529 = vsub.s32 %v7526, %v7528
        %v7530 = vrot.slane %v7502, %v7529
        %v7531 = vcombine.low %v7509, %v7516
        %v7532 = vcombine.low %v7523, %v7530
        %v7534 = vunpack.c.l.s4 1966171168
        %v7535 = vunpack.c.0.s8 %v7534
        %v7536 = vlaneseq
        %v7537 = vshrl.u32 %v7536, 7
        %v7538 = vsub.s32 %v7535, %v7537
        %v7539 = vrot.slane %v7531, %v7538
        %v7541 = vunpack.c.l.s4 1966171168
        %v7542 = vunpack.c.0.s8 %v7541
        %v7543 = vlaneseq
        %v7544 = vshrl.u32 %v7543, 7
        %v7545 = vsub.s32 %v7542, %v7544
        %v7546 = vrot.slane %v7532, %v7545
        %v7547 = vcombine.low %v7539, %v7546
        %v7548 = vcombine.low %v6003, %v6017
        %v7549 = vcombine.low %v6025, %v6027
        %v7550 = vcombine.low %v6010, %v6024
        %v7551 = vcombine.low %v6026, %v6028
        %v7553 = vunpack.c.l.s4 1966171168
        %v7554 = vunpack.c.0.s8 %v7553
        %v7555 = vlaneseq
        %v7556 = vshrl.u32 %v7555, 7
        %v7557 = vsub.s32 %v7554, %v7556
        %v7558 = vrot.slane %v7548, %v7557
        %v7560 = vunpack.c.l.s4 1966171168
        %v7561 = vunpack.c.0.s8 %v7560
        %v7562 = vlaneseq
        %v7563 = vshrl.u32 %v7562, 7
        %v7564 = vsub.s32 %v7561, %v7563
        %v7565 = vrot.slane %v7549, %v7564
        %v7567 = vunpack.c.l.s4 1966171168
        %v7568 = vunpack.c.0.s8 %v7567
        %v7569 = vlaneseq
        %v7570 = vshrl.u32 %v7569, 7
        %v7571 = vsub.s32 %v7568, %v7570
        %v7572 = vrot.slane %v7550, %v7571
        %v7574 = vunpack.c.l.s4 1966171168
        %v7575 = vunpack.c.0.s8 %v7574
        %v7576 = vlaneseq
        %v7577 = vshrl.u32 %v7576, 7
        %v7578 = vsub.s32 %v7575, %v7577
        %v7579 = vrot.slane %v7551, %v7578
        %v7580 = vcombine.low %v7558, %v7565
        %v7581 = vcombine.low %v7572, %v7579
        %v7583 = vunpack.c.l.s4 1966171168
        %v7584 = vunpack.c.0.s8 %v7583
        %v7585 = vlaneseq
        %v7586 = vshrl.u32 %v7585, 7
        %v7587 = vsub.s32 %v7584, %v7586
        %v7588 = vrot.slane %v7580, %v7587
        %v7590 = vunpack.c.l.s4 1966171168
        %v7591 = vunpack.c.0.s8 %v7590
        %v7592 = vlaneseq
        %v7593 = vshrl.u32 %v7592, 7
        %v7594 = vsub.s32 %v7591, %v7593
        %v7595 = vrot.slane %v7581, %v7594
        %v7596 = vcombine.low %v7588, %v7595
        %v7597 = vcombine.low %v6052, %v6066
        %v7598 = vcombine.low %v6074, %v6076
        %v7599 = vcombine.low %v6059, %v6073
        %v7600 = vcombine.low %v6075, %v6077
        %v7602 = vunpack.c.l.s4 1966171168
        %v7603 = vunpack.c.0.s8 %v7602
        %v7604 = vlaneseq
        %v7605 = vshrl.u32 %v7604, 7
        %v7606 = vsub.s32 %v7603, %v7605
        %v7607 = vrot.slane %v7597, %v7606
        %v7609 = vunpack.c.l.s4 1966171168
        %v7610 = vunpack.c.0.s8 %v7609
        %v7611 = vlaneseq
        %v7612 = vshrl.u32 %v7611, 7
        %v7613 = vsub.s32 %v7610, %v7612
        %v7614 = vrot.slane %v7598, %v7613
        %v7616 = vunpack.c.l.s4 1966171168
        %v7617 = vunpack.c.0.s8 %v7616
        %v7618 = vlaneseq
        %v7619 = vshrl.u32 %v7618, 7
        %v7620 = vsub.s32 %v7617, %v7619
        %v7621 = vrot.slane %v7599, %v7620
        %v7623 = vunpack.c.l.s4 1966171168
        %v7624 = vunpack.c.0.s8 %v7623
        %v7625 = vlaneseq
        %v7626 = vshrl.u32 %v7625, 7
        %v7627 = vsub.s32 %v7624, %v7626
        %v7628 = vrot.slane %v7600, %v7627
        %v7629 = vcombine.low %v7607, %v7614
        %v7630 = vcombine.low %v7621, %v7628
        %v7632 = vunpack.c.l.s4 1966171168
        %v7633 = vunpack.c.0.s8 %v7632
        %v7634 = vlaneseq
        %v7635 = vshrl.u32 %v7634, 7
        %v7636 = vsub.s32 %v7633, %v7635
        %v7637 = vrot.slane %v7629, %v7636
        %v7639 = vunpack.c.l.s4 1966171168
        %v7640 = vunpack.c.0.s8 %v7639
        %v7641 = vlaneseq
        %v7642 = vshrl.u32 %v7641, 7
        %v7643 = vsub.s32 %v7640, %v7642
        %v7644 = vrot.slane %v7630, %v7643
        %v7645 = vcombine.low %v7637, %v7644
        %v7646 = vcombine.low %v6101, %v6115
        %v7647 = vcombine.low %v6123, %v6125
        %v7648 = vcombine.low %v6108, %v6122
        %v7649 = vcombine.low %v6124, %v6126
        %v7651 = vunpack.c.l.s4 1966171168
        %v7652 = vunpack.c.0.s8 %v7651
        %v7653 = vlaneseq
        %v7654 = vshrl.u32 %v7653, 7
        %v7655 = vsub.s32 %v7652, %v7654
        %v7656 = vrot.slane %v7646, %v7655
        %v7658 = vunpack.c.l.s4 1966171168
        %v7659 = vunpack.c.0.s8 %v7658
        %v7660 = vlaneseq
        %v7661 = vshrl.u32 %v7660, 7
        %v7662 = vsub.s32 %v7659, %v7661
        %v7663 = vrot.slane %v7647, %v7662
        %v7665 = vunpack.c.l.s4 1966171168
        %v7666 = vunpack.c.0.s8 %v7665
        %v7667 = vlaneseq
        %v7668 = vshrl.u32 %v7667, 7
        %v7669 = vsub.s32 %v7666, %v7668
        %v7670 = vrot.slane %v7648, %v7669
        %v7672 = vunpack.c.l.s4 1966171168
        %v7673 = vunpack.c.0.s8 %v7672
        %v7674 = vlaneseq
        %v7675 = vshrl.u32 %v7674, 7
        %v7676 = vsub.s32 %v7673, %v7675
        %v7677 = vrot.slane %v7649, %v7676
        %v7678 = vcombine.low %v7656, %v7663
        %v7679 = vcombine.low %v7670, %v7677
        %v7681 = vunpack.c.l.s4 1966171168
        %v7682 = vunpack.c.0.s8 %v7681
        %v7683 = vlaneseq
        %v7684 = vshrl.u32 %v7683, 7
        %v7685 = vsub.s32 %v7682, %v7684
        %v7686 = vrot.slane %v7678, %v7685
        %v7688 = vunpack.c.l.s4 1966171168
        %v7689 = vunpack.c.0.s8 %v7688
        %v7690 = vlaneseq
        %v7691 = vshrl.u32 %v7690, 7
        %v7692 = vsub.s32 %v7689, %v7691
        %v7693 = vrot.slane %v7679, %v7692
        %v7694 = vcombine.low %v7686, %v7693
        %7695 = vset.pattern.permute.xlu0 0
        %7696 = vperm.xlu0 %7695, %v6175
        %v7697 = vpop.permute.xlu0 %7696
        %7698 = vset.pattern.permute.xlu0 0
        %7699 = vperm.xlu0 %7698, %v6224
        %v7700 = vpop.permute.xlu0 %7699
        %7701 = vset.pattern.permute.xlu0 0
        %7702 = vperm.xlu0 %7701, %v6273
        %v7703 = vpop.permute.xlu0 %7702
        %7704 = vset.pattern.permute.xlu0 0
        %7705 = vperm.xlu0 %7704, %v6322
        %v7706 = vpop.permute.xlu0 %7705
        %7707 = vset.pattern.permute.xlu0 0
        %7708 = vperm.xlu0 %7707, %v6371
        %v7709 = vpop.permute.xlu0 %7708
        %7710 = vset.pattern.permute.xlu0 0
        %7711 = vperm.xlu0 %7710, %v6420
        %v7712 = vpop.permute.xlu0 %7711
        %7713 = vset.pattern.permute.xlu0 0
        %7714 = vperm.xlu0 %7713, %v6469
        %v7715 = vpop.permute.xlu0 %7714
        %7716 = vset.pattern.permute.xlu0 0
        %7717 = vperm.xlu0 %7716, %v6518
        %v7718 = vpop.permute.xlu0 %7717
        %7719 = vset.pattern.permute.xlu0 0
        %7720 = vperm.xlu0 %7719, %v6567
        %v7721 = vpop.permute.xlu0 %7720
        %7722 = vset.pattern.permute.xlu0 0
        %7723 = vperm.xlu0 %7722, %v6616
        %v7724 = vpop.permute.xlu0 %7723
        %7725 = vset.pattern.permute.xlu0 0
        %7726 = vperm.xlu0 %7725, %v6665
        %v7727 = vpop.permute.xlu0 %7726
        %7728 = vset.pattern.permute.xlu0 0
        %7729 = vperm.xlu0 %7728, %v6714
        %v7730 = vpop.permute.xlu0 %7729
        %7731 = vset.pattern.permute.xlu0 0
        %7732 = vperm.xlu0 %7731, %v6763
        %v7733 = vpop.permute.xlu0 %7732
        %7734 = vset.pattern.permute.xlu0 0
        %7735 = vperm.xlu0 %7734, %v6812
        %v7736 = vpop.permute.xlu0 %7735
        %7737 = vset.pattern.permute.xlu0 0
        %7738 = vperm.xlu0 %7737, %v6861
        %v7739 = vpop.permute.xlu0 %7738
        %7740 = vset.pattern.permute.xlu0 0
        %7741 = vperm.xlu0 %7740, %v6910
        %v7742 = vpop.permute.xlu0 %7741
        %7743 = vset.pattern.permute.xlu0 0
        %7744 = vperm.xlu0 %7743, %v6959
        %v7745 = vpop.permute.xlu0 %7744
        %7746 = vset.pattern.permute.xlu0 0
        %7747 = vperm.xlu0 %7746, %v7008
        %v7748 = vpop.permute.xlu0 %7747
        %7749 = vset.pattern.permute.xlu0 0
        %7750 = vperm.xlu0 %7749, %v7057
        %v7751 = vpop.permute.xlu0 %7750
        %7752 = vset.pattern.permute.xlu0 0
        %7753 = vperm.xlu0 %7752, %v7106
        %v7754 = vpop.permute.xlu0 %7753
        %7755 = vset.pattern.permute.xlu0 0
        %7756 = vperm.xlu0 %7755, %v7155
        %v7757 = vpop.permute.xlu0 %7756
        %7758 = vset.pattern.permute.xlu0 0
        %7759 = vperm.xlu0 %7758, %v7204
        %v7760 = vpop.permute.xlu0 %7759
        %7761 = vset.pattern.permute.xlu0 0
        %7762 = vperm.xlu0 %7761, %v7253
        %v7763 = vpop.permute.xlu0 %7762
        %7764 = vset.pattern.permute.xlu0 0
        %7765 = vperm.xlu0 %7764, %v7302
        %v7766 = vpop.permute.xlu0 %7765
        %7767 = vset.pattern.permute.xlu0 0
        %7768 = vperm.xlu0 %7767, %v7351
        %v7769 = vpop.permute.xlu0 %7768
        %7770 = vset.pattern.permute.xlu0 0
        %7771 = vperm.xlu0 %7770, %v7400
        %v7772 = vpop.permute.xlu0 %7771
        %7773 = vset.pattern.permute.xlu0 0
        %7774 = vperm.xlu0 %7773, %v7449
        %v7775 = vpop.permute.xlu0 %7774
        %7776 = vset.pattern.permute.xlu0 0
        %7777 = vperm.xlu0 %7776, %v7498
        %v7778 = vpop.permute.xlu0 %7777
        %7779 = vset.pattern.permute.xlu0 0
        %7780 = vperm.xlu0 %7779, %v7547
        %v7781 = vpop.permute.xlu0 %7780
        %7782 = vset.pattern.permute.xlu0 0
        %7783 = vperm.xlu0 %7782, %v7596
        %v7784 = vpop.permute.xlu0 %7783
        %7785 = vset.pattern.permute.xlu0 0
        %7786 = vperm.xlu0 %7785, %v7645
        %v7787 = vpop.permute.xlu0 %7786
        %7788 = vset.pattern.permute.xlu0 0
        %7789 = vperm.xlu0 %7788, %v7694
        %v7790 = vpop.permute.xlu0 %7789
        %v7791 = vlaneseq
        %v7792 = vand.u32 %v7791, 127
        %v7793 = vlaneseq
        %v7794 = vshrl.u32 %v7793, 7
        %v7795 = vsub.s32 %v7792, %v7794
        %v7796 = vrot.slane %v7697, %v7795
        %v7797 = vadd.s32 %v7792, 4294967288
        %v7798 = vlaneseq
        %v7799 = vshrl.u32 %v7798, 7
        %v7800 = vsub.s32 %v7797, %v7799
        %v7801 = vrot.slane %v7700, %v7800
        %vm7802 = vcmask 130112
        %v7803 = vsel %vm7802, %v7801, %v7796
        %v7804 = vadd.s32 %v7792, 4294967280
        %v7805 = vlaneseq
        %v7806 = vshrl.u32 %v7805, 7
        %v7807 = vsub.s32 %v7804, %v7806
        %v7808 = vrot.slane %v7703, %v7807
        %vm7809 = vcmask 195712
        %v7810 = vsel %vm7809, %v7808, %v7803
        %v7811 = vadd.s32 %v7792, 4294967272
        %v7812 = vlaneseq
        %v7813 = vshrl.u32 %v7812, 7
        %v7814 = vsub.s32 %v7811, %v7813
        %v7815 = vrot.slane %v7706, %v7814
        %vm7816 = vcmask 261312
        %v7817 = vsel %vm7816, %v7815, %v7810
        %v7818 = vadd.s32 %v7792, 4294967264
        %v7819 = vlaneseq
        %v7820 = vshrl.u32 %v7819, 7
        %v7821 = vsub.s32 %v7818, %v7820
        %v7822 = vrot.slane %v7709, %v7821
        %vm7823 = vcmask 326912
        %v7824 = vsel %vm7823, %v7822, %v7817
        %v7825 = vadd.s32 %v7792, 4294967256
        %v7826 = vlaneseq
        %v7827 = vshrl.u32 %v7826, 7
        %v7828 = vsub.s32 %v7825, %v7827
        %v7829 = vrot.slane %v7712, %v7828
        %vm7830 = vcmask 392512
        %v7831 = vsel %vm7830, %v7829, %v7824
        %v7832 = vadd.s32 %v7792, 4294967248
        %v7833 = vlaneseq
        %v7834 = vshrl.u32 %v7833, 7
        %v7835 = vsub.s32 %v7832, %v7834
        %v7836 = vrot.slane %v7715, %v7835
        %vm7837 = vcmask 458112
        %v7838 = vsel %vm7837, %v7836, %v7831
        %v7839 = vadd.s32 %v7792, 4294967240
        %v7840 = vlaneseq
        %v7841 = vshrl.u32 %v7840, 7
        %v7842 = vsub.s32 %v7839, %v7841
        %v7843 = vrot.slane %v7718, %v7842
        %vm7844 = vcmask 523712
        %v7845 = vsel %vm7844, %v7843, %v7838
        %v7846 = vadd.s32 %v7792, 4294967232
        %v7847 = vlaneseq
        %v7848 = vshrl.u32 %v7847, 7
        %v7849 = vsub.s32 %v7846, %v7848
        %v7850 = vrot.slane %v7721, %v7849
        %vm7851 = vcmask 589312
        %v7852 = vsel %vm7851, %v7850, %v7845
        %v7853 = vadd.s32 %v7792, 4294967224
        %v7854 = vlaneseq
        %v7855 = vshrl.u32 %v7854, 7
        %v7856 = vsub.s32 %v7853, %v7855
        %v7857 = vrot.slane %v7724, %v7856
        %vm7858 = vcmask 654912
        %v7859 = vsel %vm7858, %v7857, %v7852
        %v7860 = vadd.s32 %v7792, 4294967216
        %v7861 = vlaneseq
        %v7862 = vshrl.u32 %v7861, 7
        %v7863 = vsub.s32 %v7860, %v7862
        %v7864 = vrot.slane %v7727, %v7863
        %vm7865 = vcmask 720512
        %v7866 = vsel %vm7865, %v7864, %v7859
        %v7867 = vadd.s32 %v7792, 4294967208
        %v7868 = vlaneseq
        %v7869 = vshrl.u32 %v7868, 7
        %v7870 = vsub.s32 %v7867, %v7869
        %v7871 = vrot.slane %v7730, %v7870
        %vm7872 = vcmask 786112
        %v7873 = vsel %vm7872, %v7871, %v7866
        %v7874 = vadd.s32 %v7792, 4294967200
        %v7875 = vlaneseq
        %v7876 = vshrl.u32 %v7875, 7
        %v7877 = vsub.s32 %v7874, %v7876
        %v7878 = vrot.slane %v7733, %v7877
        %vm7879 = vcmask 851712
        %v7880 = vsel %vm7879, %v7878, %v7873
        %v7881 = vadd.s32 %v7792, 4294967192
        %v7882 = vlaneseq
        %v7883 = vshrl.u32 %v7882, 7
        %v7884 = vsub.s32 %v7881, %v7883
        %v7885 = vrot.slane %v7736, %v7884
        %vm7886 = vcmask 917312
        %v7887 = vsel %vm7886, %v7885, %v7880
        %v7888 = vadd.s32 %v7792, 4294967184
        %v7889 = vlaneseq
        %v7890 = vshrl.u32 %v7889, 7
        %v7891 = vsub.s32 %v7888, %v7890
        %v7892 = vrot.slane %v7739, %v7891
        %vm7893 = vcmask 982912
        %v7894 = vsel %vm7893, %v7892, %v7887
        %v7895 = vadd.s32 %v7792, 4294967176
        %v7896 = vlaneseq
        %v7897 = vshrl.u32 %v7896, 7
        %v7898 = vsub.s32 %v7895, %v7897
        %v7899 = vrot.slane %v7742, %v7898
        %vm7900 = vcmask 1048512
        %v7901 = vsel %vm7900, %v7899, %v7894
        %v7902 = vlaneseq
        %v7903 = vshrl.u32 %v7902, 7
        %v7904 = vsub.s32 %v7792, %v7903
        %v7905 = vrot.slane %v7745, %v7904
        %v7906 = vlaneseq
        %v7907 = vshrl.u32 %v7906, 7
        %v7908 = vsub.s32 %v7797, %v7907
        %v7909 = vrot.slane %v7748, %v7908
        %v7910 = vsel %vm7802, %v7909, %v7905
        %v7911 = vlaneseq
        %v7912 = vshrl.u32 %v7911, 7
        %v7913 = vsub.s32 %v7804, %v7912
        %v7914 = vrot.slane %v7751, %v7913
        %v7915 = vsel %vm7809, %v7914, %v7910
        %v7916 = vlaneseq
        %v7917 = vshrl.u32 %v7916, 7
        %v7918 = vsub.s32 %v7811, %v7917
        %v7919 = vrot.slane %v7754, %v7918
        %v7920 = vsel %vm7816, %v7919, %v7915
        %v7921 = vlaneseq
        %v7922 = vshrl.u32 %v7921, 7
        %v7923 = vsub.s32 %v7818, %v7922
        %v7924 = vrot.slane %v7757, %v7923
        %v7925 = vsel %vm7823, %v7924, %v7920
        %v7926 = vlaneseq
        %v7927 = vshrl.u32 %v7926, 7
        %v7928 = vsub.s32 %v7825, %v7927
        %v7929 = vrot.slane %v7760, %v7928
        %v7930 = vsel %vm7830, %v7929, %v7925
        %v7931 = vlaneseq
        %v7932 = vshrl.u32 %v7931, 7
        %v7933 = vsub.s32 %v7832, %v7932
        %v7934 = vrot.slane %v7763, %v7933
        %v7935 = vsel %vm7837, %v7934, %v7930
        %v7936 = vlaneseq
        %v7937 = vshrl.u32 %v7936, 7
        %v7938 = vsub.s32 %v7839, %v7937
        %v7939 = vrot.slane %v7766, %v7938
        %v7940 = vsel %vm7844, %v7939, %v7935
        %v7941 = vlaneseq
        %v7942 = vshrl.u32 %v7941, 7
        %v7943 = vsub.s32 %v7846, %v7942
        %v7944 = vrot.slane %v7769, %v7943
        %v7945 = vsel %vm7851, %v7944, %v7940
        %v7946 = vlaneseq
        %v7947 = vshrl.u32 %v7946, 7
        %v7948 = vsub.s32 %v7853, %v7947
        %v7949 = vrot.slane %v7772, %v7948
        %v7950 = vsel %vm7858, %v7949, %v7945
        %v7951 = vlaneseq
        %v7952 = vshrl.u32 %v7951, 7
        %v7953 = vsub.s32 %v7860, %v7952
        %v7954 = vrot.slane %v7775, %v7953
        %v7955 = vsel %vm7865, %v7954, %v7950
        %v7956 = vlaneseq
        %v7957 = vshrl.u32 %v7956, 7
        %v7958 = vsub.s32 %v7867, %v7957
        %v7959 = vrot.slane %v7778, %v7958
        %v7960 = vsel %vm7872, %v7959, %v7955
        %v7961 = vlaneseq
        %v7962 = vshrl.u32 %v7961, 7
        %v7963 = vsub.s32 %v7874, %v7962
        %v7964 = vrot.slane %v7781, %v7963
        %v7965 = vsel %vm7879, %v7964, %v7960
        %v7966 = vlaneseq
        %v7967 = vshrl.u32 %v7966, 7
        %v7968 = vsub.s32 %v7881, %v7967
        %v7969 = vrot.slane %v7784, %v7968
        %v7970 = vsel %vm7886, %v7969, %v7965
        %v7971 = vlaneseq
        %v7972 = vshrl.u32 %v7971, 7
        %v7973 = vsub.s32 %v7888, %v7972
        %v7974 = vrot.slane %v7787, %v7973
        %v7975 = vsel %vm7893, %v7974, %v7970
        %v7976 = vlaneseq
        %v7977 = vshrl.u32 %v7976, 7
        %v7978 = vsub.s32 %v7895, %v7977
        %v7979 = vrot.slane %v7790, %v7978
        %v7980 = vsel %vm7900, %v7979, %v7975
        %v7981 = vcombine.low %v7901, %v7980
        %v7983 = vunpack.c.l.s4 1966171168
        %v7984 = vunpack.c.0.s8 %v7983
        %v7985 = vlaneseq
        %v7986 = vshrl.u32 %v7985, 7
        %v7987 = vsub.s32 %v7984, %v7986
        %v7988 = vrot.slane %v7981, %v7987
        %v7990 = vunpack.c.l.s4 1966171168
        %v7991 = vunpack.c.0.s8 %v7990
        %v7992 = vlaneseq
        %v7993 = vshrl.u32 %v7992, 7
        %v7994 = vsub.s32 %v7991, %v7993
        %v7995 = vrot.slane %v7988, %v7994
        %v7997 = vlaneseq
        %vm7998 = vcmp.ge.s32.totalorder %v7997, 0
        %vm7999 = vcmp.lt.s32.totalorder %v7997, 256
        %vm8000 = vmand %vm7998, %vm7999
        %8001 = vst.msk [vmem:[%s686] sm:$0x3] %vm8000, %v7995
        %s8002 = sand.u32 %s503, 1
        %s8003 = scalar_lea.sflag [#allocation5], %s8002
        %s8004 = sand.u32 %s503, 1
        %s8005 = smul.addr %s8004, 2
        %s8006 = scalar_lea.vmem [#allocation4], %s8005
        // Predicated region
        $region105: #{tpu_custom_call.1} parent=103 // pred_check
          %p8007 = pneg %p513
        $region106: #{tpu_custom_call.1} parent=103 // pred_check_branch
          %8009 = sbr.rel (%p8007) target = $region108
        $region107: #{tpu_custom_call.1} parent=103 // pred_region
          %s8010 = smul.u32 2, %s39
          %s8012 = ssub.s32 32, 32
          %8013 = vsyncadd %s8003, %s8012
          %s8014 = smul.addr %s8010, 16
          %s8015 = scalar_lea.hbm %s21, %s8014
          %s8017 = sshll.u32 %s8006, 4
          %s8018 = int_to_ptr.vmem [resolvable:$true] %s8017
          %8020 = dma.vmem_to_hbm [thread:$0]  %s8018, 32, %s8015, %s8003
        $region108: #{tpu_custom_call.1} parent=103 // pred_fallthru
          _
      $region104: #{tpu_custom_call.1} parent=5 // pred_fallthru
        _
      %p8021 = scmp.le.s32.totalorder 2, %s34
      // Predicated region
      $region109: #{tpu_custom_call.1} parent=5 // pred_check
        %p8022 = pneg %p8021
      $region110: #{tpu_custom_call.1} parent=5 // pred_check_branch
        %8024 = sbr.rel (%p8022) target = $region112
      $region111: #{tpu_custom_call.1} parent=5 // pred_region
        %s8025 = ssub.s32 %s34, 2
        // Predicated region
        $region113: #{tpu_custom_call.1} parent=111 // pred_check
          %p8026 = pneg %p519
        $region114: #{tpu_custom_call.1} parent=111 // pred_check_branch
          %8028 = sbr.rel (%p8026) target = $region116
        $region115: #{tpu_custom_call.1} parent=111 // pred_region
          %s8029 = sand.u32 %s504, 1
          %s8030 = scalar_lea.sflag [#allocation5], %s8029
          %s8031 = sand.u32 %s504, 1
          %s8032 = smul.addr %s8031, 2
          %s8033 = scalar_lea.vmem [#allocation4], %s8032
          %8034 = dma.done %s8030, 32
        $region116: #{tpu_custom_call.1} parent=111 // pred_fallthru
          _
      $region112: #{tpu_custom_call.1} parent=5 // pred_fallthru
        _
    $region6: #{tpu_custom_call.1} parent=1 // loop_footer
      %s38 = sadd.s32 1, %s34
    $region7: #{tpu_custom_call.1} parent=1 // loop_footer_branch
      %33 = sbr.rel target = $region3
    $region8: #{tpu_custom_call.1} parent=1 // loop_exit
      _
    %8035 = vsyncpa [#allocation5], 1
    %s8036 = scalar_lea.sflag [#allocation5], 1
    %8037 = vsyncpa %s8036, 1

</llo_original>
